<compile_context>
chip_gen: v7x
topology: tpu7x:2x2x1
jax: 0.10.0
libtpu: 0.0.40
codegen_flags: <defaults>
</compile_context>

<pallas_src>
import math
import jax
import jax.numpy as jnp
from jax import lax
from jax.experimental import pallas as pl
from jax.experimental.pallas import tpu as pltpu


def _round_up(x, m):
    return (x + m - 1) // m * m


# ------------------------------------------------------------------
# Pallas GEMM kernel (fused bias + ReLU), lane-tiled over the M axis
# ------------------------------------------------------------------
def _pick_tn(N, K, M, out_bytes):
    """Largest 128-aligned lane tile that divides M, keeps the per-step VMEM
    working set under ~2 MiB (v7x-safe), and gives >= 2 grid steps when
    M >= 256 (v7x dual TensorCore sharding + DMA/compute overlap)."""
    if M % 128 != 0 or M < 256:
        return M
    budget = 2 << 20

    def step_bytes(t):
        # A (double-buffered bf16) + B tile (dbl bf16) + out tile (dbl) + f32 acc
        return 2 * N * K * 2 + 2 * K * t * 2 + 2 * N * t * out_bytes + N * t * 4

    best = None
    for t in range(128, M // 2 + 1, 128):
        if M % t == 0 and step_bytes(t) <= budget:
            best = t
    return best if best is not None else 128


def _vmem_limit_bytes(N, K, tn, out_bytes):
    step = 2 * N * K * 2 + 2 * K * tn * 2 + 2 * N * tn * out_bytes + N * tn * 4
    return int(min(32 * 1024 * 1024, max(8 * 1024 * 1024, 4 * step)))


def pallas_gemm_t(a, b, bias, *, relu, out_dtype):
    """Fused out = a @ b + bias[:, None] (+ ReLU) on the MXU.

    a:    (N, K)  weight-like operand (output channels on the sublane axis)
    b:    (K, M)  activation columns (batch*spatial on the lane axis)
    bias: (N,)
    Returns (N, M) in `out_dtype`; bf16 inputs, f32 accumulation.
    """
    N, K = a.shape
    M = b.shape[1]
    a = a.astype(jnp.bfloat16)
    b = b.astype(jnp.bfloat16)
    bias2 = bias.reshape(N, 1).astype(jnp.float32)
    out_bytes = jnp.dtype(out_dtype).itemsize

    tn = _pick_tn(N, K, M, out_bytes)
    grid = (M // tn,)

    def kernel(a_ref, b_ref, bias_ref, o_ref):
        acc = jnp.dot(a_ref[...], b_ref[...], preferred_element_type=jnp.float32)
        acc = acc + bias_ref[...]   # (N,1) lane broadcast, folded into the epilogue
        if relu:
            acc = jnp.maximum(acc, 0.0)
        o_ref[...] = acc.astype(o_ref.dtype)

    return pl.pallas_call(
        kernel,
        out_shape=jax.ShapeDtypeStruct((N, M), out_dtype),
        grid=grid,
        in_specs=[
            pl.BlockSpec((N, K), lambda i: (0, 0)),
            pl.BlockSpec((K, tn), lambda i: (0, i)),
            pl.BlockSpec((N, 1), lambda i: (0, 0)),
        ],
        out_specs=pl.BlockSpec((N, tn), lambda i: (0, i)),
        compiler_params=pltpu.CompilerParams(
            dimension_semantics=("parallel",),
            vmem_limit_bytes=_vmem_limit_bytes(N, K, tn, out_bytes),
        ),
    )(a, b, bias2)


# ------------------------------------------------------------------
# Fused FC tail kernel
# ------------------------------------------------------------------
def pallas_fc_tail(flat, noise, p):
    """Single fused kernel: e_fc -> (mean|logvar) -> reparameterize ->
    d_fc_latent -> d_fc.  The tiny (B, 256) activations never leave VMEM.

    mean/logvar are one concatenated (256, 2L) f32 matmul; the mean/logvar/z/
    d_fc_latent path stays in f32; only the two large matmuls (1024x256,
    256x1024) run in bf16.  z_mean/z_logvar/z come back packed in one (B, 3L)
    f32 output; decoder hidden (B, 1024) in bf16.
    """
    B = flat.shape[0]
    L = noise.shape[1]
    f32 = jnp.float32

    def kernel(x_ref, n_ref, wefc, befc, wml, bml, wdl, bdl, wdf, bdf,
               stats_ref, dh_ref):
        xb = x_ref[...].astype(jnp.bfloat16)
        h = jnp.dot(xb, wefc[...], preferred_element_type=f32) + befc[...]
        h = jnp.maximum(h, 0.0)
        ml = jnp.dot(h, wml[...], preferred_element_type=f32) + bml[...]
        zm, zlv = ml[:, :L], ml[:, L:]
        z = n_ref[...] * jnp.exp(zlv * 0.5) + zm
        d = jnp.dot(z, wdl[...], preferred_element_type=f32) + bdl[...]
        d = jnp.maximum(d, 0.0)
        dh = jnp.dot(d.astype(jnp.bfloat16), wdf[...],
                     preferred_element_type=f32) + bdf[...]
        dh = jnp.maximum(dh, 0.0)
        stats_ref[:, 0 * L:1 * L] = zm
        stats_ref[:, 1 * L:2 * L] = zlv
        stats_ref[:, 2 * L:3 * L] = z
        dh_ref[...] = dh.astype(dh_ref.dtype)

    out_shape = (
        jax.ShapeDtypeStruct((B, 3 * L), f32),          # [mean | logvar | z]
        jax.ShapeDtypeStruct((B, 1024), jnp.bfloat16),  # decoder hidden
    )
    stats, dh = pl.pallas_call(kernel, out_shape=out_shape)(
        flat, noise.astype(f32),
        p["e_fc_w"], p["e_fc_b"],
        p["e_fc_ml_w"], p["e_fc_ml_b"],
        p["d_fc_latent_w"], p["d_fc_latent_b"],
        p["d_fc_w"], p["d_fc_b"],
    )
    return stats[:, :L], stats[:, L:2 * L], stats[:, 2 * L:], dh


# ------------------------------------------------------------------
# Conv / transposed-conv built on the transposed Pallas GEMM
# ------------------------------------------------------------------
def _im2col_t(x, ksize, stride, pad):
    """x: (C, B, H, W) -> cols (C*k*k, B*Ho*Wo); row index = ci*k*k + kh*k + kw."""
    C, B, H, W = x.shape
    xp = jnp.pad(x, ((0, 0), (0, 0), (pad, pad), (pad, pad)))
    Ho = (H + 2 * pad - ksize) // stride + 1
    Wo = (W + 2 * pad - ksize) // stride + 1
    patches = []
    for kh in range(ksize):
        for kw in range(ksize):
            patches.append(
                xp[:, :, kh:kh + stride * Ho:stride, kw:kw + stride * Wo:stride])
    cols = jnp.stack(patches, axis=1)                     # (C, k*k, B, Ho, Wo)
    return cols.reshape(C * ksize * ksize, B * Ho * Wo), Ho, Wo


def conv2d_cm(x, a, bias, *, ksize, stride, pad, relu, out_dtype=jnp.bfloat16):
    """PyTorch-equivalent Conv2d on channel-major activations.

    x: (Ci, B, H, W); a: (Co, Ci*k*k) (= w.reshape(Co, -1)); bias: (Co,).
    Returns (Co, B, Ho, Wo).  The GEMM M axis is zero-padded to a multiple of
    128 so the Pallas stores are lane-dense.
    """
    Co = a.shape[0]
    B = x.shape[1]
    cols, Ho, Wo = _im2col_t(x, ksize, stride, pad)
    M = cols.shape[1]
    Mp = _round_up(M, 128)
    if Mp != M:
        cols = jnp.pad(cols, ((0, 0), (0, Mp - M)))
    out = pallas_gemm_t(a, cols, bias, relu=relu, out_dtype=out_dtype)
    if Mp != M:
        out = out[:, :M]
    return out.reshape(Co, B, Ho, Wo)


def deconv2x_cm(x, a_sub, bias_sub, *, relu, out_dtype=jnp.bfloat16):
    """PyTorch-equivalent ConvTranspose2d(k=4, s=2, p=1) via subpixel decomposition.

    x: (Ci, B, H, W); a_sub: (4*Co, Ci*4) precomputed subpixel kernels.
    Output pixel (2i+r, 2j+c) = dot(2x2 padded-input patch anchored at
    (i+r, j+c), sub-kernel (r, c)); each output element is produced exactly
    once, so fused bias + ReLU is exact.  Returns (Co, B, 2H, 2W).
    """
    Ci, B, H, W = x.shape
    Co = a_sub.shape[0] // 4
    xp = jnp.pad(x, ((0, 0), (0, 0), (1, 1), (1, 1)))
    Ha, Wa = H + 1, W + 1
    patches = [xp[:, :, dr:dr + Ha, dc:dc + Wa]
               for dr in range(2) for dc in range(2)]
    cols = jnp.stack(patches, axis=1).reshape(Ci * 4, B * Ha * Wa)
    M = B * Ha * Wa
    Mp = _round_up(M, 128)                      # lane-dense stores (review item)
    if Mp != M:
        cols = jnp.pad(cols, ((0, 0), (0, Mp - M)))
    y = pallas_gemm_t(a_sub, cols, bias_sub, relu=relu, out_dtype=out_dtype)
    y = y[:, :M].reshape(2, 2, Co, B, Ha, Wa)
    # out[co, b, 2i+r, 2j+c] = y[r, c, co, b, i+r, j+c]
    z = jnp.stack([
        y[0, 0, :, :, 0:H, 0:W], y[0, 1, :, :, 0:H, 1:W + 1],
        y[1, 0, :, :, 1:H + 1, 0:W], y[1, 1, :, :, 1:H + 1, 1:W + 1],
    ], axis=0).reshape(2, 2, Co, B, H, W)
    out = z.transpose(2, 3, 4, 0, 5, 1).reshape(Co, B, 2 * H, 2 * W)
    return out


def _subpixel_deconv_weight(wt):
    """(Ci, Co, 4, 4) ConvTranspose2d weight -> (4*Co, Ci*4) subpixel GEMM weight.

    Row index = (r*2 + c)*Co + co; column index = ci*4 + dr*2 + dc;
    value = wt[ci, co, 3 - r - 2*dr, 3 - c - 2*dc].
    """
    Ci, Co = wt.shape[0], wt.shape[1]
    idx = 3 - jnp.arange(2)[:, None] - 2 * jnp.arange(2)[None, :]     # k(r, dr)
    sub = wt[:, :, idx[:, :, None, None], idx[None, None, :, :]]      # (Ci,Co,r,dr,c,dc)
    sub = jnp.transpose(sub, (2, 4, 1, 0, 3, 5))                      # (r,c,Co,Ci,dr,dc)
    return sub.reshape(4 * Co, Ci * 4)


# ------------------------------------------------------------------
# Parameters (deterministic init, PyTorch-like uniform(-1/sqrt(fan_in), ...))
# ------------------------------------------------------------------
def init_params(key, img_channels, n_latents):
    params = {}

    def uinit(k, shape, fan_in):
        bound = 1.0 / math.sqrt(fan_in)
        return jax.random.uniform(k, shape, jnp.float32, -bound, bound)

    defs = {
        # encoder
        "e_conv1_w": ((32, img_channels, 4, 4), img_channels * 16),
        "e_conv1_b": ((32,), img_channels * 16),
        "e_conv2_w": ((32, 32, 4, 4), 32 * 16),
        "e_conv2_b": ((32,), 32 * 16),
        "e_conv3_w": ((64, 32, 4, 4), 32 * 16),
        "e_conv3_b": ((64,), 32 * 16),
        "e_conv4_w": ((64, 64, 4, 4), 64 * 16),
        "e_conv4_b": ((64,), 64 * 16),
        "e_fc_w": ((1024, 256), 1024),
        "e_fc_b": ((256,), 1024),
        "e_fc_mean_w": ((256, n_latents), 256),
        "e_fc_mean_b": ((n_latents,), 256),
        "e_fc_logvar_w": ((256, n_latents), 256),
        "e_fc_logvar_b": ((n_latents,), 256),
        # decoder
        "d_fc_latent_w": ((n_latents, 256), n_latents),
        "d_fc_latent_b": ((256,), n_latents),
        "d_fc_w": ((256, 1024), 256),
        "d_fc_b": ((1024,), 256),
        "d_deconv1_w": ((64, 64, 4, 4), 64 * 16),
        "d_deconv1_b": ((64,), 64 * 16),
        "d_deconv2_w": ((64, 32, 4, 4), 64 * 16),
        "d_deconv2_b": ((32,), 64 * 16),
        "d_deconv3_w": ((32, 32, 4, 4), 32 * 16),
        "d_deconv3_b": ((32,), 32 * 16),
        "d_deconv4_w": ((32, img_channels, 4, 4), 32 * 16),
        "d_deconv4_b": ((img_channels,), 32 * 16),
    }
    keys = jax.random.split(key, len(defs))
    for k, (name, (shape, fan_in)) in zip(keys, defs.items()):
        params[name] = uinit(k, shape, fan_in)
    return params


def prepare_params(params):
    """One-time conversion of PyTorch-layout params into GEMM-ready operands."""
    bf16, f32 = jnp.bfloat16, jnp.float32
    q = {}
    # encoder convs: (Co, Ci, 4, 4) -> (Co, Ci*16) GEMM weight
    for name in ("e_conv1", "e_conv2", "e_conv3", "e_conv4"):
        w = params[name + "_w"]
        q[name + "_a"] = w.reshape(w.shape[0], -1).astype(bf16)
        q[name + "_b"] = params[name + "_b"].astype(f32)
    # FC tail: big matmuls bf16; mean/logvar + latent path f32 for accuracy
    q["e_fc_w"] = params["e_fc_w"].astype(bf16)
    q["e_fc_b"] = params["e_fc_b"].reshape(1, -1).astype(f32)
    q["e_fc_ml_w"] = jnp.concatenate(
        [params["e_fc_mean_w"], params["e_fc_logvar_w"]], axis=1).astype(f32)
    q["e_fc_ml_b"] = jnp.concatenate(
        [params["e_fc_mean_b"], params["e_fc_logvar_b"]]).reshape(1, -1).astype(f32)
    q["d_fc_latent_w"] = params["d_fc_latent_w"].astype(f32)
    q["d_fc_latent_b"] = params["d_fc_latent_b"].reshape(1, -1).astype(f32)
    q["d_fc_w"] = params["d_fc_w"].astype(bf16)
    q["d_fc_b"] = params["d_fc_b"].reshape(1, -1).astype(f32)
    # decoder deconvs: subpixel GEMM weights
    for name in ("d_deconv1", "d_deconv2", "d_deconv3", "d_deconv4"):
        q[name + "_a"] = _subpixel_deconv_weight(params[name + "_w"]).astype(bf16)
        q[name + "_b"] = jnp.tile(params[name + "_b"], 4).astype(f32)
    return q


# ------------------------------------------------------------------
# BetaTCVAE forward
# ------------------------------------------------------------------
def beta_tc_vae_forward(prep, x, noise):
    """x: (B, C, 64, 64) NCHW, noise: (B, n_latents)."""
    B = x.shape[0]

    # --- encoder (channel-major activations, no inter-layer transposes) ---
    h = jnp.transpose(x, (1, 0, 2, 3)).astype(jnp.bfloat16)            # (C, B, 64, 64)
    h = conv2d_cm(h, prep["e_conv1_a"], prep["e_conv1_b"],
                  ksize=4, stride=2, pad=1, relu=True)                 # (32, B, 32, 32)
    h = conv2d_cm(h, prep["e_conv2_a"], prep["e_conv2_b"],
                  ksize=4, stride=2, pad=1, relu=True)                 # (32, B, 16, 16)
    h = conv2d_cm(h, prep["e_conv3_a"], prep["e_conv3_b"],
                  ksize=4, stride=2, pad=1, relu=True)                 # (64, B,  8,  8)
    h = conv2d_cm(h, prep["e_conv4_a"], prep["e_conv4_b"],
                  ksize=4, stride=2, pad=1, relu=True)                 # (64, B,  4,  4)
    flat = jnp.transpose(h, (1, 0, 2, 3)).reshape(B, 1024)             # NCHW flatten order

    # --- fused FC tail: e_fc -> (mean|logvar) -> sample -> d_fc_latent -> d_fc ---
    z_mean, z_logvar, z, dh = pallas_fc_tail(flat, noise, prep)

    # --- decoder ---
    d = jnp.transpose(dh.reshape(B, 64, 4, 4), (1, 0, 2, 3))           # (64, B, 4, 4)
    d = deconv2x_cm(d, prep["d_deconv1_a"], prep["d_deconv1_b"], relu=True)   # (64, B,  8,  8)
    d = deconv2x_cm(d, prep["d_deconv2_a"], prep["d_deconv2_b"], relu=True)   # (32, B, 16, 16)
    d = deconv2x_cm(d, prep["d_deconv3_a"], prep["d_deconv3_b"], relu=True)   # (32, B, 32, 32)
    r = deconv2x_cm(d, prep["d_deconv4_a"], prep["d_deconv4_b"],
                    relu=False, out_dtype=jnp.float32)                 # (C, B, 64, 64)
    recon_x = jnp.transpose(r, (1, 0, 2, 3))                           # (B, C, 64, 64)

    return recon_x, z, z_mean, z_logvar


# ------------------------------------------------------------------
# Pure-XLA f32 reference of the same forward pass (for the numeric check)
# ------------------------------------------------------------------
def reference_forward(params, x, noise):
    dn = ("NCHW", "OIHW", "NCHW")
    relu = lambda t: jnp.maximum(t, 0.0)

    def conv(h, w, b):
        y = lax.conv_general_dilated(h, w, window_strides=(2, 2),
                                     padding=((1, 1), (1, 1)),
                                     dimension_numbers=dn)
        return y + b.reshape(1, -1, 1, 1)

    def deconv(h, w, b):
        # ConvTranspose2d(k=4, s=2, p=1) == cross-correlation of the 2x
        # zero-dilated input with the (in<->out transposed, spatially flipped)
        # kernel and padding k - 1 - p = 2.
        wf = jnp.transpose(w, (1, 0, 2, 3))[:, :, ::-1, ::-1]
        y = lax.conv_general_dilated(h, wf, window_strides=(1, 1),
                                     padding=((2, 2), (2, 2)),
                                     lhs_dilation=(2, 2),
                                     dimension_numbers=dn)
        return y + b.reshape(1, -1, 1, 1)

    h = relu(conv(x, params["e_conv1_w"], params["e_conv1_b"]))
    h = relu(conv(h, params["e_conv2_w"], params["e_conv2_b"]))
    h = relu(conv(h, params["e_conv3_w"], params["e_conv3_b"]))
    h = relu(conv(h, params["e_conv4_w"], params["e_conv4_b"]))
    flat = h.reshape(h.shape[0], -1)
    hf = relu(flat @ params["e_fc_w"] + params["e_fc_b"])
    z_mean = hf @ params["e_fc_mean_w"] + params["e_fc_mean_b"]
    z_logvar = hf @ params["e_fc_logvar_w"] + params["e_fc_logvar_b"]
    z = noise * jnp.exp(z_logvar * 0.5) + z_mean
    d = relu(z @ params["d_fc_latent_w"] + params["d_fc_latent_b"])
    d = relu(d @ params["d_fc_w"] + params["d_fc_b"])
    d = d.reshape(-1, 64, 4, 4)
    d = relu(deconv(d, params["d_deconv1_w"], params["d_deconv1_b"]))
    d = relu(deconv(d, params["d_deconv2_w"], params["d_deconv2_b"]))
    d = relu(deconv(d, params["d_deconv3_w"], params["d_deconv3_b"]))
    r = deconv(d, params["d_deconv4_w"], params["d_deconv4_b"])
    return r, z, z_mean, z_logvar


if __name__ == "__main__":
    # Architecture forces 64x64 spatial input (encoder flatten = 64 * 4 * 4 = 1024).
    batch, img_channels, n_latents = 2, 1, 8
    key = jax.random.PRNGKey(0)
    k_params, k_x, k_noise = jax.random.split(key, 3)

    params = init_params(k_params, img_channels, n_latents)
    prep = prepare_params(params)                     # one-time, outside the step
    x = jax.random.uniform(k_x, (batch, img_channels, 64, 64), jnp.float32)
    noise = jax.random.normal(k_noise, (batch, n_latents), jnp.float32)

    fwd = jax.jit(beta_tc_vae_forward)
    recon_x, z, z_mean, z_logvar = fwd(prep, x, noise)
    jax.block_until_ready((recon_x, z, z_mean, z_logvar))

    assert recon_x.shape == (batch, img_channels, 64, 64)
    assert z.shape == (batch, n_latents)
    assert z_mean.shape == (batch, n_latents)
    assert z_logvar.shape == (batch, n_latents)

    # Numeric sanity check against the pure-XLA f32 reference (loose tolerance
    # for the bf16 GEMM path; catches any weight / layout mapping error).
    ref = jax.jit(reference_forward)(params, x, noise)
    names = ("recon_x", "z", "z_mean", "z_logvar")
    outs = (recon_x, z, z_mean, z_logvar)
    for name, got, want in zip(names, outs, ref):
        err = float(jnp.max(jnp.abs(got.astype(jnp.float32) - want)))
        scale = float(jnp.max(jnp.abs(want)))
        assert err <= 0.1 * scale + 1e-3, (
            f"{name}: max_err={err:.3e} vs max_ref={scale:.3e}")

    print("KERNEL_OK")
</pallas_src>

<mosaic_0001>
module attributes {stable_mosaic.version = 11 : i64} {
  func.func @kernel(%arg0: i32, %arg1: memref<32x16xbf16, #tpu.memory_space<vmem>>, %arg2: memref<16x1024xbf16, #tpu.memory_space<vmem>>, %arg3: memref<32x1xf32, #tpu.memory_space<vmem>>, %arg4: memref<32x1024xbf16, #tpu.memory_space<vmem>>) attributes {dimension_semantics = [#tpu.dimension_semantics<parallel>], iteration_bounds = array<i64: 2>, scalar_prefetch = 0 : i64, scratch_operands = 0 : i64, tpu.core_type = #tpu.core_type<tc>, window_params = [{pipeline_mode = #tpu.pipeline_mode<synchronous>, transform_indices = @transform_0, window_bounds = array<i64: 32, 16>}, {transform_indices = @transform_1, window_bounds = array<i64: 16, 1024>}, {pipeline_mode = #tpu.pipeline_mode<synchronous>, transform_indices = @transform_2, window_bounds = array<i64: 32, 1>}, {transform_indices = @transform_3, window_bounds = array<i64: 32, 1024>}]} {
    %c0 = arith.constant 0 : index
    %c0_0 = arith.constant 0 : index
    %0 = vector.load %arg1[%c0, %c0_0] : memref<32x16xbf16, #tpu.memory_space<vmem>>, vector<32x16xbf16>
    %c0_1 = arith.constant 0 : index
    %c0_2 = arith.constant 0 : index
    %1 = vector.load %arg2[%c0_1, %c0_2] : memref<16x1024xbf16, #tpu.memory_space<vmem>>, vector<16x1024xbf16>
    %cst = arith.constant dense<0.000000e+00> : vector<32x1024xf32>
    %2 = tpu.matmul %0, %1, %cst {dimension_numbers = #tpu.dot_dimension_numbers<[1], [0], [0], [1], [0, 0, 1, 1], [], []>} : vector<32x16xbf16>, vector<16x1024xbf16>, vector<32x1024xf32> -> vector<32x1024xf32>
    %c0_3 = arith.constant 0 : index
    %c0_4 = arith.constant 0 : index
    %3 = vector.load %arg3[%c0_3, %c0_4] : memref<32x1xf32, #tpu.memory_space<vmem>>, vector<32x1xf32>
    %4 = vector.broadcast %3 : vector<32x1xf32> to vector<32x1024xf32>
    %5 = arith.addf %2, %4 : vector<32x1024xf32>
    %cst_5 = arith.constant 0.000000e+00 : f32
    %6 = vector.broadcast %cst_5 : f32 to vector<32x1024xf32>
    %7 = arith.maximumf %5, %6 : vector<32x1024xf32>
    %8 = arith.truncf %7 : vector<32x1024xf32> to vector<32x1024xbf16>
    %c0_6 = arith.constant 0 : index
    %c0_7 = arith.constant 0 : index
    %9 = vector.load %arg4[%c0_6, %c0_7] : memref<32x1024xbf16, #tpu.memory_space<vmem>>, vector<32x1024xbf16>
    tpu.vector_store %arg4[%c0_6, %c0_7], %8 {strides = array<i32>} : memref<32x1024xbf16, #tpu.memory_space<vmem>>, vector<32x1024xbf16>,
    return
  }
  func.func @transform_0(%arg0: i32) -> (i32, i32) {
    %c0_i32 = arith.constant 0 : i32
    %c0_i32_0 = arith.constant 0 : i32
    %c0_i32_1 = arith.constant 0 : i32
    return %c0_i32, %c0_i32_0 : i32, i32
  }
  func.func @transform_1(%arg0: i32) -> (i32, i32) {
    %c0_i32 = arith.constant 0 : i32
    %c0_i32_0 = arith.constant 0 : i32
    return %c0_i32, %arg0 : i32, i32
  }
  func.func @transform_2(%arg0: i32) -> (i32, i32) {
    %c0_i32 = arith.constant 0 : i32
    %c0_i32_0 = arith.constant 0 : i32
    %c0_i32_1 = arith.constant 0 : i32
    return %c0_i32, %c0_i32_0 : i32, i32
  }
  func.func @transform_3(%arg0: i32) -> (i32, i32) {
    %c0_i32 = arith.constant 0 : i32
    %c0_i32_0 = arith.constant 0 : i32
    return %c0_i32, %arg0 : i32, i32
  }
}

module attributes {stable_mosaic.version = 11 : i64} {
  func.func @kernel(%arg0: i32, %arg1: memref<32x512xbf16, #tpu.memory_space<vmem>>, %arg2: memref<512x256xbf16, #tpu.memory_space<vmem>>, %arg3: memref<32x1xf32, #tpu.memory_space<vmem>>, %arg4: memref<32x256xbf16, #tpu.memory_space<vmem>>) attributes {dimension_semantics = [#tpu.dimension_semantics<parallel>], iteration_bounds = array<i64: 2>, scalar_prefetch = 0 : i64, scratch_operands = 0 : i64, tpu.core_type = #tpu.core_type<tc>, window_params = [{pipeline_mode = #tpu.pipeline_mode<synchronous>, transform_indices = @transform_0, window_bounds = array<i64: 32, 512>}, {transform_indices = @transform_1, window_bounds = array<i64: 512, 256>}, {pipeline_mode = #tpu.pipeline_mode<synchronous>, transform_indices = @transform_2, window_bounds = array<i64: 32, 1>}, {transform_indices = @transform_3, window_bounds = array<i64: 32, 256>}]} {
    %c0 = arith.constant 0 : index
    %c0_0 = arith.constant 0 : index
    %0 = vector.load %arg1[%c0, %c0_0] : memref<32x512xbf16, #tpu.memory_space<vmem>>, vector<32x512xbf16>
    %c0_1 = arith.constant 0 : index
    %c0_2 = arith.constant 0 : index
    %1 = vector.load %arg2[%c0_1, %c0_2] : memref<512x256xbf16, #tpu.memory_space<vmem>>, vector<512x256xbf16>
    %cst = arith.constant dense<0.000000e+00> : vector<32x256xf32>
    %2 = tpu.matmul %0, %1, %cst {dimension_numbers = #tpu.dot_dimension_numbers<[1], [0], [0], [1], [0, 0, 1, 1], [], []>} : vector<32x512xbf16>, vector<512x256xbf16>, vector<32x256xf32> -> vector<32x256xf32>
    %c0_3 = arith.constant 0 : index
    %c0_4 = arith.constant 0 : index
    %3 = vector.load %arg3[%c0_3, %c0_4] : memref<32x1xf32, #tpu.memory_space<vmem>>, vector<32x1xf32>
    %4 = vector.broadcast %3 : vector<32x1xf32> to vector<32x256xf32>
    %5 = arith.addf %2, %4 : vector<32x256xf32>
    %cst_5 = arith.constant 0.000000e+00 : f32
    %6 = vector.broadcast %cst_5 : f32 to vector<32x256xf32>
    %7 = arith.maximumf %5, %6 : vector<32x256xf32>
    %8 = arith.truncf %7 : vector<32x256xf32> to vector<32x256xbf16>
    %c0_6 = arith.constant 0 : index
    %c0_7 = arith.constant 0 : index
    %9 = vector.load %arg4[%c0_6, %c0_7] : memref<32x256xbf16, #tpu.memory_space<vmem>>, vector<32x256xbf16>
    tpu.vector_store %arg4[%c0_6, %c0_7], %8 {strides = array<i32>} : memref<32x256xbf16, #tpu.memory_space<vmem>>, vector<32x256xbf16>,
    return
  }
  func.func @transform_0(%arg0: i32) -> (i32, i32) {
    %c0_i32 = arith.constant 0 : i32
    %c0_i32_0 = arith.constant 0 : i32
    %c0_i32_1 = arith.constant 0 : i32
    return %c0_i32, %c0_i32_0 : i32, i32
  }
  func.func @transform_1(%arg0: i32) -> (i32, i32) {
    %c0_i32 = arith.constant 0 : i32
    %c0_i32_0 = arith.constant 0 : i32
    return %c0_i32, %arg0 : i32, i32
  }
  func.func @transform_2(%arg0: i32) -> (i32, i32) {
    %c0_i32 = arith.constant 0 : i32
    %c0_i32_0 = arith.constant 0 : i32
    %c0_i32_1 = arith.constant 0 : i32
    return %c0_i32, %c0_i32_0 : i32, i32
  }
  func.func @transform_3(%arg0: i32) -> (i32, i32) {
    %c0_i32 = arith.constant 0 : i32
    %c0_i32_0 = arith.constant 0 : i32
    return %c0_i32, %arg0 : i32, i32
  }
}

module attributes {stable_mosaic.version = 11 : i64} {
  func.func @kernel(%arg0: i32, %arg1: memref<64x512xbf16, #tpu.memory_space<vmem>>, %arg2: memref<512x128xbf16, #tpu.memory_space<vmem>>, %arg3: memref<64x1xf32, #tpu.memory_space<vmem>>, %arg4: memref<64x128xbf16, #tpu.memory_space<vmem>>) attributes {dimension_semantics = [#tpu.dimension_semantics<parallel>], iteration_bounds = array<i64: 1>, scalar_prefetch = 0 : i64, scratch_operands = 0 : i64, tpu.core_type = #tpu.core_type<tc>, window_params = [{pipeline_mode = #tpu.pipeline_mode<synchronous>, transform_indices = @transform_0, window_bounds = array<i64: 64, 512>}, {transform_indices = @transform_1, window_bounds = array<i64: 512, 128>}, {pipeline_mode = #tpu.pipeline_mode<synchronous>, transform_indices = @transform_2, window_bounds = array<i64: 64, 1>}, {transform_indices = @transform_3, window_bounds = array<i64: 64, 128>}]} {
    %c0 = arith.constant 0 : index
    %c0_0 = arith.constant 0 : index
    %0 = vector.load %arg1[%c0, %c0_0] : memref<64x512xbf16, #tpu.memory_space<vmem>>, vector<64x512xbf16>
    %c0_1 = arith.constant 0 : index
    %c0_2 = arith.constant 0 : index
    %1 = vector.load %arg2[%c0_1, %c0_2] : memref<512x128xbf16, #tpu.memory_space<vmem>>, vector<512x128xbf16>
    %cst = arith.constant dense<0.000000e+00> : vector<64x128xf32>
    %2 = tpu.matmul %0, %1, %cst {dimension_numbers = #tpu.dot_dimension_numbers<[1], [0], [0], [1], [0, 0, 1, 1], [], []>} : vector<64x512xbf16>, vector<512x128xbf16>, vector<64x128xf32> -> vector<64x128xf32>
    %c0_3 = arith.constant 0 : index
    %c0_4 = arith.constant 0 : index
    %3 = vector.load %arg3[%c0_3, %c0_4] : memref<64x1xf32, #tpu.memory_space<vmem>>, vector<64x1xf32>
    %4 = vector.broadcast %3 : vector<64x1xf32> to vector<64x128xf32>
    %5 = arith.addf %2, %4 : vector<64x128xf32>
    %cst_5 = arith.constant 0.000000e+00 : f32
    %6 = vector.broadcast %cst_5 : f32 to vector<64x128xf32>
    %7 = arith.maximumf %5, %6 : vector<64x128xf32>
    %8 = arith.truncf %7 : vector<64x128xf32> to vector<64x128xbf16>
    %c0_6 = arith.constant 0 : index
    %c0_7 = arith.constant 0 : index
    %9 = vector.load %arg4[%c0_6, %c0_7] : memref<64x128xbf16, #tpu.memory_space<vmem>>, vector<64x128xbf16>
    tpu.vector_store %arg4[%c0_6, %c0_7], %8 {strides = array<i32>} : memref<64x128xbf16, #tpu.memory_space<vmem>>, vector<64x128xbf16>,
    return
  }
  func.func @transform_0(%arg0: i32) -> (i32, i32) {
    %c0_i32 = arith.constant 0 : i32
    %c0_i32_0 = arith.constant 0 : i32
    %c0_i32_1 = arith.constant 0 : i32
    return %c0_i32, %c0_i32_0 : i32, i32
  }
  func.func @transform_1(%arg0: i32) -> (i32, i32) {
    %c0_i32 = arith.constant 0 : i32
    %c0_i32_0 = arith.constant 0 : i32
    return %c0_i32, %arg0 : i32, i32
  }
  func.func @transform_2(%arg0: i32) -> (i32, i32) {
    %c0_i32 = arith.constant 0 : i32
    %c0_i32_0 = arith.constant 0 : i32
    %c0_i32_1 = arith.constant 0 : i32
    return %c0_i32, %c0_i32_0 : i32, i32
  }
  func.func @transform_3(%arg0: i32) -> (i32, i32) {
    %c0_i32 = arith.constant 0 : i32
    %c0_i32_0 = arith.constant 0 : i32
    return %c0_i32, %arg0 : i32, i32
  }
}

module attributes {stable_mosaic.version = 11 : i64} {
  func.func @kernel(%arg0: i32, %arg1: memref<64x1024xbf16, #tpu.memory_space<vmem>>, %arg2: memref<1024x128xbf16, #tpu.memory_space<vmem>>, %arg3: memref<64x1xf32, #tpu.memory_space<vmem>>, %arg4: memref<64x128xbf16, #tpu.memory_space<vmem>>) attributes {dimension_semantics = [#tpu.dimension_semantics<parallel>], iteration_bounds = array<i64: 1>, scalar_prefetch = 0 : i64, scratch_operands = 0 : i64, tpu.core_type = #tpu.core_type<tc>, window_params = [{pipeline_mode = #tpu.pipeline_mode<synchronous>, transform_indices = @transform_0, window_bounds = array<i64: 64, 1024>}, {transform_indices = @transform_1, window_bounds = array<i64: 1024, 128>}, {pipeline_mode = #tpu.pipeline_mode<synchronous>, transform_indices = @transform_2, window_bounds = array<i64: 64, 1>}, {transform_indices = @transform_3, window_bounds = array<i64: 64, 128>}]} {
    %c0 = arith.constant 0 : index
    %c0_0 = arith.constant 0 : index
    %0 = vector.load %arg1[%c0, %c0_0] : memref<64x1024xbf16, #tpu.memory_space<vmem>>, vector<64x1024xbf16>
    %c0_1 = arith.constant 0 : index
    %c0_2 = arith.constant 0 : index
    %1 = vector.load %arg2[%c0_1, %c0_2] : memref<1024x128xbf16, #tpu.memory_space<vmem>>, vector<1024x128xbf16>
    %cst = arith.constant dense<0.000000e+00> : vector<64x128xf32>
    %2 = tpu.matmul %0, %1, %cst {dimension_numbers = #tpu.dot_dimension_numbers<[1], [0], [0], [1], [0, 0, 1, 1], [], []>} : vector<64x1024xbf16>, vector<1024x128xbf16>, vector<64x128xf32> -> vector<64x128xf32>
    %c0_3 = arith.constant 0 : index
    %c0_4 = arith.constant 0 : index
    %3 = vector.load %arg3[%c0_3, %c0_4] : memref<64x1xf32, #tpu.memory_space<vmem>>, vector<64x1xf32>
    %4 = vector.broadcast %3 : vector<64x1xf32> to vector<64x128xf32>
    %5 = arith.addf %2, %4 : vector<64x128xf32>
    %cst_5 = arith.constant 0.000000e+00 : f32
    %6 = vector.broadcast %cst_5 : f32 to vector<64x128xf32>
    %7 = arith.maximumf %5, %6 : vector<64x128xf32>
    %8 = arith.truncf %7 : vector<64x128xf32> to vector<64x128xbf16>
    %c0_6 = arith.constant 0 : index
    %c0_7 = arith.constant 0 : index
    %9 = vector.load %arg4[%c0_6, %c0_7] : memref<64x128xbf16, #tpu.memory_space<vmem>>, vector<64x128xbf16>
    tpu.vector_store %arg4[%c0_6, %c0_7], %8 {strides = array<i32>} : memref<64x128xbf16, #tpu.memory_space<vmem>>, vector<64x128xbf16>,
    return
  }
  func.func @transform_0(%arg0: i32) -> (i32, i32) {
    %c0_i32 = arith.constant 0 : i32
    %c0_i32_0 = arith.constant 0 : i32
    %c0_i32_1 = arith.constant 0 : i32
    return %c0_i32, %c0_i32_0 : i32, i32
  }
  func.func @transform_1(%arg0: i32) -> (i32, i32) {
    %c0_i32 = arith.constant 0 : i32
    %c0_i32_0 = arith.constant 0 : i32
    return %c0_i32, %arg0 : i32, i32
  }
  func.func @transform_2(%arg0: i32) -> (i32, i32) {
    %c0_i32 = arith.constant 0 : i32
    %c0_i32_0 = arith.constant 0 : i32
    %c0_i32_1 = arith.constant 0 : i32
    return %c0_i32, %c0_i32_0 : i32, i32
  }
  func.func @transform_3(%arg0: i32) -> (i32, i32) {
    %c0_i32 = arith.constant 0 : i32
    %c0_i32_0 = arith.constant 0 : i32
    return %c0_i32, %arg0 : i32, i32
  }
}

module attributes {stable_mosaic.version = 11 : i64} {
  func.func @kernel(%arg0: memref<2x1024xbf16, #tpu.memory_space<vmem>>, %arg1: memref<2x8xf32, #tpu.memory_space<vmem>>, %arg2: memref<1024x256xbf16, #tpu.memory_space<vmem>>, %arg3: memref<1x256xf32, #tpu.memory_space<vmem>>, %arg4: memref<256x16xf32, #tpu.memory_space<vmem>>, %arg5: memref<1x16xf32, #tpu.memory_space<vmem>>, %arg6: memref<8x256xf32, #tpu.memory_space<vmem>>, %arg7: memref<1x256xf32, #tpu.memory_space<vmem>>, %arg8: memref<256x1024xbf16, #tpu.memory_space<vmem>>, %arg9: memref<1x1024xf32, #tpu.memory_space<vmem>>, %arg10: memref<2x24xf32, #tpu.memory_space<vmem>>, %arg11: memref<2x1024xbf16, #tpu.memory_space<vmem>>) attributes {dimension_semantics = [], scalar_prefetch = 0 : i64, scratch_operands = 0 : i64, tpu.core_type = #tpu.core_type<tc>} {
    %c0 = arith.constant 0 : index
    %c0_0 = arith.constant 0 : index
    %0 = vector.load %arg0[%c0, %c0_0] : memref<2x1024xbf16, #tpu.memory_space<vmem>>, vector<2x1024xbf16>
    %c0_1 = arith.constant 0 : index
    %c0_2 = arith.constant 0 : index
    %1 = vector.load %arg2[%c0_1, %c0_2] : memref<1024x256xbf16, #tpu.memory_space<vmem>>, vector<1024x256xbf16>
    %cst = arith.constant dense<0.000000e+00> : vector<2x256xf32>
    %2 = tpu.matmul %0, %1, %cst {dimension_numbers = #tpu.dot_dimension_numbers<[1], [0], [0], [1], [0, 0, 1, 1], [], []>} : vector<2x1024xbf16>, vector<1024x256xbf16>, vector<2x256xf32> -> vector<2x256xf32>
    %c0_3 = arith.constant 0 : index
    %c0_4 = arith.constant 0 : index
    %3 = vector.load %arg3[%c0_3, %c0_4] : memref<1x256xf32, #tpu.memory_space<vmem>>, vector<1x256xf32>
    %4 = vector.broadcast %3 : vector<1x256xf32> to vector<2x256xf32>
    %5 = arith.addf %2, %4 : vector<2x256xf32>
    %cst_5 = arith.constant 0.000000e+00 : f32
    %6 = vector.broadcast %cst_5 : f32 to vector<2x256xf32>
    %7 = arith.maximumf %5, %6 : vector<2x256xf32>
    %c0_6 = arith.constant 0 : index
    %c0_7 = arith.constant 0 : index
    %8 = vector.load %arg4[%c0_6, %c0_7] : memref<256x16xf32, #tpu.memory_space<vmem>>, vector<256x16xf32>
    %cst_8 = arith.constant dense<0.000000e+00> : vector<2x16xf32>
    %9 = tpu.matmul %7, %8, %cst_8 {dimension_numbers = #tpu.dot_dimension_numbers<[1], [0], [0], [1], [0, 0, 1, 1], [], []>} : vector<2x256xf32>, vector<256x16xf32>, vector<2x16xf32> -> vector<2x16xf32>
    %c0_9 = arith.constant 0 : index
    %c0_10 = arith.constant 0 : index
    %10 = vector.load %arg5[%c0_9, %c0_10] : memref<1x16xf32, #tpu.memory_space<vmem>>, vector<1x16xf32>
    %11 = vector.broadcast %10 : vector<1x16xf32> to vector<2x16xf32>
    %12 = arith.addf %9, %11 : vector<2x16xf32>
    %13 = vector.extract_strided_slice %12 {offsets = [0, 0], sizes = [2, 8], strides = [1, 1]} : vector<2x16xf32> to vector<2x8xf32>
    %14 = vector.extract_strided_slice %12 {offsets = [0, 8], sizes = [2, 8], strides = [1, 1]} : vector<2x16xf32> to vector<2x8xf32>
    %c0_11 = arith.constant 0 : index
    %c0_12 = arith.constant 0 : index
    %15 = vector.load %arg1[%c0_11, %c0_12] : memref<2x8xf32, #tpu.memory_space<vmem>>, vector<2x8xf32>
    %cst_13 = arith.constant 5.000000e-01 : f32
    %16 = vector.broadcast %cst_13 : f32 to vector<2x8xf32>
    %17 = arith.mulf %14, %16 : vector<2x8xf32>
    %18 = math.exp %17 : vector<2x8xf32>
    %19 = arith.mulf %15, %18 : vector<2x8xf32>
    %20 = arith.addf %19, %13 : vector<2x8xf32>
    %c0_14 = arith.constant 0 : index
    %c0_15 = arith.constant 0 : index
    %21 = vector.load %arg6[%c0_14, %c0_15] : memref<8x256xf32, #tpu.memory_space<vmem>>, vector<8x256xf32>
    %cst_16 = arith.constant dense<0.000000e+00> : vector<2x256xf32>
    %22 = tpu.matmul %20, %21, %cst_16 {dimension_numbers = #tpu.dot_dimension_numbers<[1], [0], [0], [1], [0, 0, 1, 1], [], []>} : vector<2x8xf32>, vector<8x256xf32>, vector<2x256xf32> -> vector<2x256xf32>
    %c0_17 = arith.constant 0 : index
    %c0_18 = arith.constant 0 : index
    %23 = vector.load %arg7[%c0_17, %c0_18] : memref<1x256xf32, #tpu.memory_space<vmem>>, vector<1x256xf32>
    %24 = vector.broadcast %23 : vector<1x256xf32> to vector<2x256xf32>
    %25 = arith.addf %22, %24 : vector<2x256xf32>
    %cst_19 = arith.constant 0.000000e+00 : f32
    %26 = vector.broadcast %cst_19 : f32 to vector<2x256xf32>
    %27 = arith.maximumf %25, %26 : vector<2x256xf32>
    %28 = arith.truncf %27 : vector<2x256xf32> to vector<2x256xbf16>
    %c0_20 = arith.constant 0 : index
    %c0_21 = arith.constant 0 : index
    %29 = vector.load %arg8[%c0_20, %c0_21] : memref<256x1024xbf16, #tpu.memory_space<vmem>>, vector<256x1024xbf16>
    %cst_22 = arith.constant dense<0.000000e+00> : vector<2x1024xf32>
    %30 = tpu.matmul %28, %29, %cst_22 {dimension_numbers = #tpu.dot_dimension_numbers<[1], [0], [0], [1], [0, 0, 1, 1], [], []>} : vector<2x256xbf16>, vector<256x1024xbf16>, vector<2x1024xf32> -> vector<2x1024xf32>
    %c0_23 = arith.constant 0 : index
    %c0_24 = arith.constant 0 : index
    %31 = vector.load %arg9[%c0_23, %c0_24] : memref<1x1024xf32, #tpu.memory_space<vmem>>, vector<1x1024xf32>
    %32 = vector.broadcast %31 : vector<1x1024xf32> to vector<2x1024xf32>
    %33 = arith.addf %30, %32 : vector<2x1024xf32>
    %cst_25 = arith.constant 0.000000e+00 : f32
    %34 = vector.broadcast %cst_25 : f32 to vector<2x1024xf32>
    %35 = arith.maximumf %33, %34 : vector<2x1024xf32>
    %c0_26 = arith.constant 0 : index
    %c0_27 = arith.constant 0 : index
    %36 = vector.load %arg10[%c0_26, %c0_27] : memref<2x24xf32, #tpu.memory_space<vmem>>, vector<2x8xf32>
    tpu.vector_store %arg10[%c0_26, %c0_27], %13 {strides = array<i32>} : memref<2x24xf32, #tpu.memory_space<vmem>>, vector<2x8xf32>,
    %c0_28 = arith.constant 0 : index
    %c8 = arith.constant 8 : index
    %37 = vector.load %arg10[%c0_28, %c8] : memref<2x24xf32, #tpu.memory_space<vmem>>, vector<2x8xf32>
    tpu.vector_store %arg10[%c0_28, %c8], %14 {strides = array<i32>} : memref<2x24xf32, #tpu.memory_space<vmem>>, vector<2x8xf32>,
    %c0_29 = arith.constant 0 : index
    %c16 = arith.constant 16 : index
    %38 = vector.load %arg10[%c0_29, %c16] : memref<2x24xf32, #tpu.memory_space<vmem>>, vector<2x8xf32>
    tpu.vector_store %arg10[%c0_29, %c16], %20 {strides = array<i32>} : memref<2x24xf32, #tpu.memory_space<vmem>>, vector<2x8xf32>,
    %39 = arith.truncf %35 : vector<2x1024xf32> to vector<2x1024xbf16>
    %c0_30 = arith.constant 0 : index
    %c0_31 = arith.constant 0 : index
    %40 = vector.load %arg11[%c0_30, %c0_31] : memref<2x1024xbf16, #tpu.memory_space<vmem>>, vector<2x1024xbf16>
    tpu.vector_store %arg11[%c0_30, %c0_31], %39 {strides = array<i32>} : memref<2x1024xbf16, #tpu.memory_space<vmem>>, vector<2x1024xbf16>,
    return
  }
}

module attributes {stable_mosaic.version = 11 : i64} {
  func.func @kernel(%arg0: i32, %arg1: memref<256x256xbf16, #tpu.memory_space<vmem>>, %arg2: memref<256x128xbf16, #tpu.memory_space<vmem>>, %arg3: memref<256x1xf32, #tpu.memory_space<vmem>>, %arg4: memref<256x128xbf16, #tpu.memory_space<vmem>>) attributes {dimension_semantics = [#tpu.dimension_semantics<parallel>], iteration_bounds = array<i64: 1>, scalar_prefetch = 0 : i64, scratch_operands = 0 : i64, tpu.core_type = #tpu.core_type<tc>, window_params = [{pipeline_mode = #tpu.pipeline_mode<synchronous>, transform_indices = @transform_0, window_bounds = array<i64: 256, 256>}, {transform_indices = @transform_1, window_bounds = array<i64: 256, 128>}, {pipeline_mode = #tpu.pipeline_mode<synchronous>, transform_indices = @transform_2, window_bounds = array<i64: 256, 1>}, {transform_indices = @transform_3, window_bounds = array<i64: 256, 128>}]} {
    %c0 = arith.constant 0 : index
    %c0_0 = arith.constant 0 : index
    %0 = vector.load %arg1[%c0, %c0_0] : memref<256x256xbf16, #tpu.memory_space<vmem>>, vector<256x256xbf16>
    %c0_1 = arith.constant 0 : index
    %c0_2 = arith.constant 0 : index
    %1 = vector.load %arg2[%c0_1, %c0_2] : memref<256x128xbf16, #tpu.memory_space<vmem>>, vector<256x128xbf16>
    %cst = arith.constant dense<0.000000e+00> : vector<256x128xf32>
    %2 = tpu.matmul %0, %1, %cst {dimension_numbers = #tpu.dot_dimension_numbers<[1], [0], [0], [1], [0, 0, 1, 1], [], []>} : vector<256x256xbf16>, vector<256x128xbf16>, vector<256x128xf32> -> vector<256x128xf32>
    %c0_3 = arith.constant 0 : index
    %c0_4 = arith.constant 0 : index
    %3 = vector.load %arg3[%c0_3, %c0_4] : memref<256x1xf32, #tpu.memory_space<vmem>>, vector<256x1xf32>
    %4 = vector.broadcast %3 : vector<256x1xf32> to vector<256x128xf32>
    %5 = arith.addf %2, %4 : vector<256x128xf32>
    %cst_5 = arith.constant 0.000000e+00 : f32
    %6 = vector.broadcast %cst_5 : f32 to vector<256x128xf32>
    %7 = arith.maximumf %5, %6 : vector<256x128xf32>
    %8 = arith.truncf %7 : vector<256x128xf32> to vector<256x128xbf16>
    %c0_6 = arith.constant 0 : index
    %c0_7 = arith.constant 0 : index
    %9 = vector.load %arg4[%c0_6, %c0_7] : memref<256x128xbf16, #tpu.memory_space<vmem>>, vector<256x128xbf16>
    tpu.vector_store %arg4[%c0_6, %c0_7], %8 {strides = array<i32>} : memref<256x128xbf16, #tpu.memory_space<vmem>>, vector<256x128xbf16>,
    return
  }
  func.func @transform_0(%arg0: i32) -> (i32, i32) {
    %c0_i32 = arith.constant 0 : i32
    %c0_i32_0 = arith.constant 0 : i32
    %c0_i32_1 = arith.constant 0 : i32
    return %c0_i32, %c0_i32_0 : i32, i32
  }
  func.func @transform_1(%arg0: i32) -> (i32, i32) {
    %c0_i32 = arith.constant 0 : i32
    %c0_i32_0 = arith.constant 0 : i32
    return %c0_i32, %arg0 : i32, i32
  }
  func.func @transform_2(%arg0: i32) -> (i32, i32) {
    %c0_i32 = arith.constant 0 : i32
    %c0_i32_0 = arith.constant 0 : i32
    %c0_i32_1 = arith.constant 0 : i32
    return %c0_i32, %c0_i32_0 : i32, i32
  }
  func.func @transform_3(%arg0: i32) -> (i32, i32) {
    %c0_i32 = arith.constant 0 : i32
    %c0_i32_0 = arith.constant 0 : i32
    return %c0_i32, %arg0 : i32, i32
  }
}

module attributes {stable_mosaic.version = 11 : i64} {
  func.func @kernel(%arg0: i32, %arg1: memref<128x256xbf16, #tpu.memory_space<vmem>>, %arg2: memref<256x128xbf16, #tpu.memory_space<vmem>>, %arg3: memref<128x1xf32, #tpu.memory_space<vmem>>, %arg4: memref<128x128xbf16, #tpu.memory_space<vmem>>) attributes {dimension_semantics = [#tpu.dimension_semantics<parallel>], iteration_bounds = array<i64: 2>, scalar_prefetch = 0 : i64, scratch_operands = 0 : i64, tpu.core_type = #tpu.core_type<tc>, window_params = [{pipeline_mode = #tpu.pipeline_mode<synchronous>, transform_indices = @transform_0, window_bounds = array<i64: 128, 256>}, {transform_indices = @transform_1, window_bounds = array<i64: 256, 128>}, {pipeline_mode = #tpu.pipeline_mode<synchronous>, transform_indices = @transform_2, window_bounds = array<i64: 128, 1>}, {transform_indices = @transform_3, window_bounds = array<i64: 128, 128>}]} {
    %c0 = arith.constant 0 : index
    %c0_0 = arith.constant 0 : index
    %0 = vector.load %arg1[%c0, %c0_0] : memref<128x256xbf16, #tpu.memory_space<vmem>>, vector<128x256xbf16>
    %c0_1 = arith.constant 0 : index
    %c0_2 = arith.constant 0 : index
    %1 = vector.load %arg2[%c0_1, %c0_2] : memref<256x128xbf16, #tpu.memory_space<vmem>>, vector<256x128xbf16>
    %cst = arith.constant dense<0.000000e+00> : vector<128x128xf32>
    %2 = tpu.matmul %0, %1, %cst {dimension_numbers = #tpu.dot_dimension_numbers<[1], [0], [0], [1], [0, 0, 1, 1], [], []>} : vector<128x256xbf16>, vector<256x128xbf16>, vector<128x128xf32> -> vector<128x128xf32>
    %c0_3 = arith.constant 0 : index
    %c0_4 = arith.constant 0 : index
    %3 = vector.load %arg3[%c0_3, %c0_4] : memref<128x1xf32, #tpu.memory_space<vmem>>, vector<128x1xf32>
    %4 = vector.broadcast %3 : vector<128x1xf32> to vector<128x128xf32>
    %5 = arith.addf %2, %4 : vector<128x128xf32>
    %cst_5 = arith.constant 0.000000e+00 : f32
    %6 = vector.broadcast %cst_5 : f32 to vector<128x128xf32>
    %7 = arith.maximumf %5, %6 : vector<128x128xf32>
    %8 = arith.truncf %7 : vector<128x128xf32> to vector<128x128xbf16>
    %c0_6 = arith.constant 0 : index
    %c0_7 = arith.constant 0 : index
    %9 = vector.load %arg4[%c0_6, %c0_7] : memref<128x128xbf16, #tpu.memory_space<vmem>>, vector<128x128xbf16>
    tpu.vector_store %arg4[%c0_6, %c0_7], %8 {strides = array<i32>} : memref<128x128xbf16, #tpu.memory_space<vmem>>, vector<128x128xbf16>,
    return
  }
  func.func @transform_0(%arg0: i32) -> (i32, i32) {
    %c0_i32 = arith.constant 0 : i32
    %c0_i32_0 = arith.constant 0 : i32
    %c0_i32_1 = arith.constant 0 : i32
    return %c0_i32, %c0_i32_0 : i32, i32
  }
  func.func @transform_1(%arg0: i32) -> (i32, i32) {
    %c0_i32 = arith.constant 0 : i32
    %c0_i32_0 = arith.constant 0 : i32
    return %c0_i32, %arg0 : i32, i32
  }
  func.func @transform_2(%arg0: i32) -> (i32, i32) {
    %c0_i32 = arith.constant 0 : i32
    %c0_i32_0 = arith.constant 0 : i32
    %c0_i32_1 = arith.constant 0 : i32
    return %c0_i32, %c0_i32_0 : i32, i32
  }
  func.func @transform_3(%arg0: i32) -> (i32, i32) {
    %c0_i32 = arith.constant 0 : i32
    %c0_i32_0 = arith.constant 0 : i32
    return %c0_i32, %arg0 : i32, i32
  }
}

module attributes {stable_mosaic.version = 11 : i64} {
  func.func @kernel(%arg0: i32, %arg1: memref<128x128xbf16, #tpu.memory_space<vmem>>, %arg2: memref<128x128xbf16, #tpu.memory_space<vmem>>, %arg3: memref<128x1xf32, #tpu.memory_space<vmem>>, %arg4: memref<128x128xbf16, #tpu.memory_space<vmem>>) attributes {dimension_semantics = [#tpu.dimension_semantics<parallel>], iteration_bounds = array<i64: 5>, scalar_prefetch = 0 : i64, scratch_operands = 0 : i64, tpu.core_type = #tpu.core_type<tc>, window_params = [{pipeline_mode = #tpu.pipeline_mode<synchronous>, transform_indices = @transform_0, window_bounds = array<i64: 128, 128>}, {transform_indices = @transform_1, window_bounds = array<i64: 128, 128>}, {pipeline_mode = #tpu.pipeline_mode<synchronous>, transform_indices = @transform_2, window_bounds = array<i64: 128, 1>}, {transform_indices = @transform_3, window_bounds = array<i64: 128, 128>}]} {
    %c0 = arith.constant 0 : index
    %c0_0 = arith.constant 0 : index
    %0 = vector.load %arg1[%c0, %c0_0] : memref<128x128xbf16, #tpu.memory_space<vmem>>, vector<128x128xbf16>
    %c0_1 = arith.constant 0 : index
    %c0_2 = arith.constant 0 : index
    %1 = vector.load %arg2[%c0_1, %c0_2] : memref<128x128xbf16, #tpu.memory_space<vmem>>, vector<128x128xbf16>
    %cst = arith.constant dense<0.000000e+00> : vector<128x128xf32>
    %2 = tpu.matmul %0, %1, %cst {dimension_numbers = #tpu.dot_dimension_numbers<[1], [0], [0], [1], [0, 0, 1, 1], [], []>} : vector<128x128xbf16>, vector<128x128xbf16>, vector<128x128xf32> -> vector<128x128xf32>
    %c0_3 = arith.constant 0 : index
    %c0_4 = arith.constant 0 : index
    %3 = vector.load %arg3[%c0_3, %c0_4] : memref<128x1xf32, #tpu.memory_space<vmem>>, vector<128x1xf32>
    %4 = vector.broadcast %3 : vector<128x1xf32> to vector<128x128xf32>
    %5 = arith.addf %2, %4 : vector<128x128xf32>
    %cst_5 = arith.constant 0.000000e+00 : f32
    %6 = vector.broadcast %cst_5 : f32 to vector<128x128xf32>
    %7 = arith.maximumf %5, %6 : vector<128x128xf32>
    %8 = arith.truncf %7 : vector<128x128xf32> to vector<128x128xbf16>
    %c0_6 = arith.constant 0 : index
    %c0_7 = arith.constant 0 : index
    %9 = vector.load %arg4[%c0_6, %c0_7] : memref<128x128xbf16, #tpu.memory_space<vmem>>, vector<128x128xbf16>
    tpu.vector_store %arg4[%c0_6, %c0_7], %8 {strides = array<i32>} : memref<128x128xbf16, #tpu.memory_space<vmem>>, vector<128x128xbf16>,
    return
  }
  func.func @transform_0(%arg0: i32) -> (i32, i32) {
    %c0_i32 = arith.constant 0 : i32
    %c0_i32_0 = arith.constant 0 : i32
    %c0_i32_1 = arith.constant 0 : i32
    return %c0_i32, %c0_i32_0 : i32, i32
  }
  func.func @transform_1(%arg0: i32) -> (i32, i32) {
    %c0_i32 = arith.constant 0 : i32
    %c0_i32_0 = arith.constant 0 : i32
    return %c0_i32, %arg0 : i32, i32
  }
  func.func @transform_2(%arg0: i32) -> (i32, i32) {
    %c0_i32 = arith.constant 0 : i32
    %c0_i32_0 = arith.constant 0 : i32
    %c0_i32_1 = arith.constant 0 : i32
    return %c0_i32, %c0_i32_0 : i32, i32
  }
  func.func @transform_3(%arg0: i32) -> (i32, i32) {
    %c0_i32 = arith.constant 0 : i32
    %c0_i32_0 = arith.constant 0 : i32
    return %c0_i32, %arg0 : i32, i32
  }
}

module attributes {stable_mosaic.version = 11 : i64} {
  func.func @kernel(%arg0: i32, %arg1: memref<4x128xbf16, #tpu.memory_space<vmem>>, %arg2: memref<128x1152xbf16, #tpu.memory_space<vmem>>, %arg3: memref<4x1xf32, #tpu.memory_space<vmem>>, %arg4: memref<4x1152xf32, #tpu.memory_space<vmem>>) attributes {dimension_semantics = [#tpu.dimension_semantics<parallel>], iteration_bounds = array<i64: 2>, scalar_prefetch = 0 : i64, scratch_operands = 0 : i64, tpu.core_type = #tpu.core_type<tc>, window_params = [{pipeline_mode = #tpu.pipeline_mode<synchronous>, transform_indices = @transform_0, window_bounds = array<i64: 4, 128>}, {transform_indices = @transform_1, window_bounds = array<i64: 128, 1152>}, {pipeline_mode = #tpu.pipeline_mode<synchronous>, transform_indices = @transform_2, window_bounds = array<i64: 4, 1>}, {transform_indices = @transform_3, window_bounds = array<i64: 4, 1152>}]} {
    %c0 = arith.constant 0 : index
    %c0_0 = arith.constant 0 : index
    %0 = vector.load %arg1[%c0, %c0_0] : memref<4x128xbf16, #tpu.memory_space<vmem>>, vector<4x128xbf16>
    %c0_1 = arith.constant 0 : index
    %c0_2 = arith.constant 0 : index
    %1 = vector.load %arg2[%c0_1, %c0_2] : memref<128x1152xbf16, #tpu.memory_space<vmem>>, vector<128x1152xbf16>
    %cst = arith.constant dense<0.000000e+00> : vector<4x1152xf32>
    %2 = tpu.matmul %0, %1, %cst {dimension_numbers = #tpu.dot_dimension_numbers<[1], [0], [0], [1], [0, 0, 1, 1], [], []>} : vector<4x128xbf16>, vector<128x1152xbf16>, vector<4x1152xf32> -> vector<4x1152xf32>
    %c0_3 = arith.constant 0 : index
    %c0_4 = arith.constant 0 : index
    %3 = vector.load %arg3[%c0_3, %c0_4] : memref<4x1xf32, #tpu.memory_space<vmem>>, vector<4x1xf32>
    %4 = vector.broadcast %3 : vector<4x1xf32> to vector<4x1152xf32>
    %5 = arith.addf %2, %4 : vector<4x1152xf32>
    %c0_5 = arith.constant 0 : index
    %c0_6 = arith.constant 0 : index
    %6 = vector.load %arg4[%c0_5, %c0_6] : memref<4x1152xf32, #tpu.memory_space<vmem>>, vector<4x1152xf32>
    tpu.vector_store %arg4[%c0_5, %c0_6], %5 {strides = array<i32>} : memref<4x1152xf32, #tpu.memory_space<vmem>>, vector<4x1152xf32>,
    return
  }
  func.func @transform_0(%arg0: i32) -> (i32, i32) {
    %c0_i32 = arith.constant 0 : i32
    %c0_i32_0 = arith.constant 0 : i32
    %c0_i32_1 = arith.constant 0 : i32
    return %c0_i32, %c0_i32_0 : i32, i32
  }
  func.func @transform_1(%arg0: i32) -> (i32, i32) {
    %c0_i32 = arith.constant 0 : i32
    %c0_i32_0 = arith.constant 0 : i32
    return %c0_i32, %arg0 : i32, i32
  }
  func.func @transform_2(%arg0: i32) -> (i32, i32) {
    %c0_i32 = arith.constant 0 : i32
    %c0_i32_0 = arith.constant 0 : i32
    %c0_i32_1 = arith.constant 0 : i32
    return %c0_i32, %c0_i32_0 : i32, i32
  }
  func.func @transform_3(%arg0: i32) -> (i32, i32) {
    %c0_i32 = arith.constant 0 : i32
    %c0_i32_0 = arith.constant 0 : i32
    return %c0_i32, %arg0 : i32, i32
  }
}

</mosaic_0001>

<llo_original>
// kernel: beta_tc_vae_forward.9
$region0: #{beta_tc_vae_forward.9}
  #allocation0 [shape = 'u32[]', space=smem, size = 0x4, offset = 0x4, fixed_abs, tag = 'smem constant byte address 0x4 - core index']
  #allocation1 [shape = 'u32[144,128]{1,0:T(1,128)}', space=vmem, size = 0x12000, scoped, tag = 'internal scratch']
  %s0 = inlined_call_operand.vmem [shape: bf16[32,16], index: 0, kind: input, shape index: {}]
  %s1 = inlined_call_operand.vmem [shape: bf16[16,2048], index: 1, kind: input, shape index: {}]
  %s2 = inlined_call_operand.vmem [shape: f32[32,1], index: 2, kind: input, shape index: {}]
  %s3 = inlined_call_operand.vmem [shape: bf16[32,2048], index: 3, kind: output, shape index: {}]
  %s4 = sld [smem:[#allocation0]]
  $region87: #{beta_tc_vae_forward.9} parent=0
    _
  %s6 = ssub.s32 1, %s4
  %s7 = scalar_select 0, %s6, %s4
  $region1: #{beta_tc_vae_forward.9} parent=0
    #allocation2 [shape = 'u8[65536]{0}', space=vmem, size = 0x10000, scoped, tag = 'input window, operand 1']
    #allocation3 [shape = 'u8[131072]{0}', space=vmem, size = 0x20000, scoped, tag = 'output window, operand 0']
    loop: start=0, step=1, limit=4
    $region2: #{beta_tc_vae_forward.9} parent=1 // loop_pre_header
      _
    $region3: #{beta_tc_vae_forward.9} parent=1 // loop_header
      %s9 = sphi 0, %s13
      %p10 = scmp.ge.s32.totalorder %s9, 4
      %s17 = sphi 0, %s17
      %s19 = sphi 0, %s17
      %s20 = sphi 0, %s19
      %s34 = sphi 0, %s20
      %s40 = sphi 0, %s42
      %s43 = sphi 0, %s40
      %s44 = sphi 0, %s43
      %s60 = sphi 0, %s44
      %s64 = sphi 0, %s64
      %s66 = sphi 0, %s64
      %s67 = sphi 0, %s66
      %s81 = sphi 0, %s67
      %s87 = sphi 0, %s89
      %s90 = sphi 0, %s87
      %s91 = sphi 0, %s90
      %s107 = sphi 0, %s91
    $region4: #{beta_tc_vae_forward.9} parent=1 // loop_header_branch
      %12 = sbr.rel (%p10) target = $region8
    $region5: #{beta_tc_vae_forward.9} parent=1 // loop_body
      %s14 = ssub.s32 %s9, 1
      %s15 = ssub.s32 %s9, 2
      %s16 = sadd.s32 %s9, 1
      %s18 = sadd.s32 %s17, 1
      %p21 = scmp.eq.s32.totalorder %s9, 1
      %p22 = scmp.ne.s32.totalorder %s17, %s19
      %p23 = scmp.eq.s32.totalorder %s9, 0
      %p24 = por %p22, %p23
      %p25 = scmp.ne.s32.totalorder %s17, %s19
      %p26 = scmp.eq.s32.totalorder %s14, 1
      %p27 = por %p25, %p26
      %p28 = scmp.ne.s32.totalorder %s19, %s20
      %p29 = scmp.eq.s32.totalorder %s14, 0
      %p30 = por %p28, %p29
      %p31 = scmp.ne.s32.totalorder %s19, %s20
      %p32 = scmp.eq.s32.totalorder %s15, 1
      %p33 = por %p31, %p32
      %p35 = scmp.ne.s32.totalorder %s20, %s34
      %p36 = scmp.eq.s32.totalorder %s15, 0
      %p37 = por %p35, %p36
      %s38 = ssub.s32 %s9, %s16
      %p39 = scmp.eq.s32.totalorder %s38, 0
      %s41 = sadd.s32 %s40, 1
      %s42 = scalar_select %p39, %s40, %s41
      %p45 = pneg %p39
      %p46 = scmp.eq.s32.totalorder %s9, 1
      %p47 = por %p45, %p46
      %p48 = scmp.ne.s32.totalorder %s40, %s43
      %p49 = scmp.eq.s32.totalorder %s9, 0
      %p50 = por %p48, %p49
      %p51 = scmp.ne.s32.totalorder %s40, %s43
      %p52 = scmp.eq.s32.totalorder %s14, 1
      %p53 = por %p51, %p52
      %p54 = scmp.ne.s32.totalorder %s43, %s44
      %p55 = scmp.eq.s32.totalorder %s14, 0
      %p56 = por %p54, %p55
      %p57 = scmp.ne.s32.totalorder %s43, %s44
      %p58 = scmp.eq.s32.totalorder %s15, 1
      %p59 = por %p57, %p58
      %p61 = scmp.ne.s32.totalorder %s44, %s60
      %p62 = scmp.eq.s32.totalorder %s15, 0
      %p63 = por %p61, %p62
      %s65 = sadd.s32 %s64, 1
      %p68 = scmp.eq.s32.totalorder %s9, 1
      %p69 = scmp.ne.s32.totalorder %s64, %s66
      %p70 = scmp.eq.s32.totalorder %s9, 0
      %p71 = por %p69, %p70
      %p72 = scmp.ne.s32.totalorder %s64, %s66
      %p73 = scmp.eq.s32.totalorder %s14, 1
      %p74 = por %p72, %p73
      %p75 = scmp.ne.s32.totalorder %s66, %s67
      %p76 = scmp.eq.s32.totalorder %s14, 0
      %p77 = por %p75, %p76
      %p78 = scmp.ne.s32.totalorder %s66, %s67
      %p79 = scmp.eq.s32.totalorder %s15, 1
      %p80 = por %p78, %p79
      %p82 = scmp.ne.s32.totalorder %s67, %s81
      %p83 = scmp.eq.s32.totalorder %s15, 0
      %p84 = por %p82, %p83
      %s85 = ssub.s32 %s9, %s16
      %p86 = scmp.eq.s32.totalorder %s85, 0
      %s88 = sadd.s32 %s87, 1
      %s89 = scalar_select %p86, %s87, %s88
      %p92 = pneg %p86
      %p93 = scmp.eq.s32.totalorder %s9, 1
      %p94 = por %p92, %p93
      %p95 = scmp.ne.s32.totalorder %s87, %s90
      %p96 = scmp.eq.s32.totalorder %s9, 0
      %p97 = por %p95, %p96
      %p98 = scmp.ne.s32.totalorder %s87, %s90
      %p99 = scmp.eq.s32.totalorder %s14, 1
      %p100 = por %p98, %p99
      %p101 = scmp.ne.s32.totalorder %s90, %s91
      %p102 = scmp.eq.s32.totalorder %s14, 0
      %p103 = por %p101, %p102
      %p104 = scmp.ne.s32.totalorder %s90, %s91
      %p105 = scmp.eq.s32.totalorder %s15, 1
      %p106 = por %p104, %p105
      %p108 = scmp.ne.s32.totalorder %s91, %s107
      %p109 = scmp.eq.s32.totalorder %s15, 0
      %p110 = por %p108, %p109
      %p111 = scmp.le.s32.totalorder 1, %s9
      %p112 = scmp.lt.s32.totalorder %s9, 3
      %p113 = pnand %p111, %p112
      %p114 = pneg %p113
      // Predicated region
      $region9: #{beta_tc_vae_forward.9} parent=5 // pred_check
        _
      $region10: #{beta_tc_vae_forward.9} parent=5 // pred_check_branch
        %116 = sbr.rel (%p113) target = $region12
      $region11: #{beta_tc_vae_forward.9} parent=5 // pred_region
        %s117 = ssub.s32 %s9, 1
        // Predicated region
        $region13: #{beta_tc_vae_forward.9} parent=11 // pred_check
          %p118 = pneg %p30
        $region14: #{beta_tc_vae_forward.9} parent=11 // pred_check_branch
          %120 = sbr.rel (%p118) target = $region16
        $region15: #{beta_tc_vae_forward.9} parent=11 // pred_region
          _
        $region16: #{beta_tc_vae_forward.9} parent=11 // pred_fallthru
          _
        // Predicated region
        $region17: #{beta_tc_vae_forward.9} parent=11 // pred_check
          %p121 = pneg %p77
        $region18: #{beta_tc_vae_forward.9} parent=11 // pred_check_branch
          %123 = sbr.rel (%p121) target = $region20
        $region19: #{beta_tc_vae_forward.9} parent=11 // pred_region
          _
        $region20: #{beta_tc_vae_forward.9} parent=11 // pred_fallthru
          _
      $region12: #{beta_tc_vae_forward.9} parent=5 // pred_fallthru
        _
      %p124 = scmp.lt.s32.totalorder %s9, 2
      // Predicated region
      $region21: #{beta_tc_vae_forward.9} parent=5 // pred_check
        %p125 = pneg %p124
      $region22: #{beta_tc_vae_forward.9} parent=5 // pred_check_branch
        %127 = sbr.rel (%p125) target = $region24
      $region23: #{beta_tc_vae_forward.9} parent=5 // pred_region
        // Predicated region
        $region25: #{beta_tc_vae_forward.9} parent=23 // pred_check
          %p128 = pneg %p50
        $region26: #{beta_tc_vae_forward.9} parent=23 // pred_check_branch
          %130 = sbr.rel (%p128) target = $region28
        $region27: #{beta_tc_vae_forward.9} parent=23 // pred_region
          %s131 = sand.u32 %s40, 1
          %s132 = sand.u32 %s40, 1
          %s133 = smul.addr %s132, 64
          %s134 = scalar_lea.vmem [#allocation2], %s133
          %s135 = smul.u32 8, %s9
          %s136 = smul.addr %s135, 4
          %s137 = scalar_lea.vmem %s1, %s136
          // Predicated region
          $region29: #{beta_tc_vae_forward.9} parent=27 // pred_check
            _
          $region30: #{beta_tc_vae_forward.9} parent=27 // pred_check_branch
            %139 = sbr.rel (0) target = $region32
          $region31: #{beta_tc_vae_forward.9} parent=27 // pred_region
            // Predicated region
            $region33: #{beta_tc_vae_forward.9} parent=31 // pred_check
              _
            $region34: #{beta_tc_vae_forward.9} parent=31 // pred_check_branch
              %141 = sbr.rel (0) target = $region36
            $region35: #{beta_tc_vae_forward.9} parent=31 // pred_region
              loop: start=0, step=1, limit=1
              $region37: #{beta_tc_vae_forward.9} parent=35 // loop_pre_header
                _
              $region38: #{beta_tc_vae_forward.9} parent=35 // loop_header
                %s143 = sphi 0, %s147
                %p144 = scmp.ge.s32.totalorder %s143, 1
                %s148 = sphi %s137, %s137
                %s149 = sphi %s134, %s134
              $region39: #{beta_tc_vae_forward.9} parent=35 // loop_header_branch
                %146 = sbr.rel (%p144) target = $region43
              $region40: #{beta_tc_vae_forward.9} parent=35 // loop_body
                %v150 = vld [vmem:[%s148] sm:$0xff]
                %151 = vst [vmem:[%s149] sm:$0xff] %v150
                %v152 = vld [vmem:[%s148 + $0x8] sm:$0xff]
                %153 = vst [vmem:[%s149 + $0x8] sm:$0xff] %v152
                %v154 = vld [vmem:[%s148 + $0x10] sm:$0xff]
                %155 = vst [vmem:[%s149 + $0x10] sm:$0xff] %v154
                %v156 = vld [vmem:[%s148 + $0x18] sm:$0xff]
                %157 = vst [vmem:[%s149 + $0x18] sm:$0xff] %v156
                %v158 = vld [vmem:[%s148 + $0x40] sm:$0xff]
                %159 = vst [vmem:[%s149 + $0x20] sm:$0xff] %v158
                %v160 = vld [vmem:[%s148 + $0x48] sm:$0xff]
                %161 = vst [vmem:[%s149 + $0x28] sm:$0xff] %v160
                %v162 = vld [vmem:[%s148 + $0x50] sm:$0xff]
                %163 = vst [vmem:[%s149 + $0x30] sm:$0xff] %v162
                %v164 = vld [vmem:[%s148 + $0x58] sm:$0xff]
                %165 = vst [vmem:[%s149 + $0x38] sm:$0xff] %v164
              $region41: #{beta_tc_vae_forward.9} parent=35 // loop_footer
                %s147 = sadd.s32 1, %s143
              $region42: #{beta_tc_vae_forward.9} parent=35 // loop_footer_branch
                %142 = sbr.rel target = $region38
              $region43: #{beta_tc_vae_forward.9} parent=35 // loop_exit
                _
            $region36: #{beta_tc_vae_forward.9} parent=31 // pred_fallthru
              _
            // Predicated region
            $region44: #{beta_tc_vae_forward.9} parent=31 // pred_check
              _
            $region45: #{beta_tc_vae_forward.9} parent=31 // pred_check_branch
              %167 = sbr.rel target = $region47
            $region46: #{beta_tc_vae_forward.9} parent=31 // pred_region
              _
            $region47: #{beta_tc_vae_forward.9} parent=31 // pred_fallthru
              _
          $region32: #{beta_tc_vae_forward.9} parent=27 // pred_fallthru
            _
          %168 = vnop
        $region28: #{beta_tc_vae_forward.9} parent=23 // pred_fallthru
          _
      $region24: #{beta_tc_vae_forward.9} parent=5 // pred_fallthru
        _
      %p169 = scmp.le.s32.totalorder 1, %s9
      %p170 = scmp.lt.s32.totalorder %s9, 3
      %p171 = pnand %p169, %p170
      %p172 = pneg %p171
      // Predicated region
      $region48: #{beta_tc_vae_forward.9} parent=5 // pred_check
        _
      $region49: #{beta_tc_vae_forward.9} parent=5 // pred_check_branch
        %174 = sbr.rel (%p171) target = $region51
      $region50: #{beta_tc_vae_forward.9} parent=5 // pred_region
        %s175 = ssub.s32 %s9, 1
        %s176 = sand.u32 %s43, 1
        %s177 = sand.u32 %s43, 1
        %s178 = smul.addr %s177, 64
        %s179 = scalar_lea.vmem [#allocation2], %s178
        // Predicated region
        $region52: #{beta_tc_vae_forward.9} parent=50 // pred_check
          %p180 = pneg %p56
        $region53: #{beta_tc_vae_forward.9} parent=50 // pred_check_branch
          %182 = sbr.rel (%p180) target = $region55
        $region54: #{beta_tc_vae_forward.9} parent=50 // pred_region
          _
        $region55: #{beta_tc_vae_forward.9} parent=50 // pred_fallthru
          _
        %p183 = pneg %p30
        %p184 = pneg %p27
        %s185 = sand.u32 %s43, 1
        %s186 = sand.u32 %s43, 1
        %s187 = smul.addr %s186, 64
        %s188 = scalar_lea.vmem [#allocation2], %s187
        %p189 = pneg %p56
        %p190 = pneg %p53
        %p191 = pneg %p77
        %p192 = pneg %p74
        %p193 = pneg %p103
        %p194 = pneg %p100
        %s195 = sand.u32 %s90, 1
        %s196 = sand.u32 %s90, 1
        %s197 = smul.addr %s196, 128
        %s198 = scalar_lea.vmem [#allocation3], %s197
        %s199 = smul.u32 8, %s14
        %s200 = smul.u32 8, %s14
        %v202 = vld [vmem:[%s0] sm:$0xf]
        %v203 = vld [vmem:[%s0 + $0x4] sm:$0xf]
        %v204 = vld [vmem:[%s0 + $0x8] sm:$0xf]
        %v205 = vld [vmem:[%s0 + $0xc] sm:$0xf]
        %v206 = vld [vmem:[%s179] sm:$0xff]
        %v207 = vld [vmem:[%s179 + $0x8] sm:$0xff]
        %v208 = vld [vmem:[%s179 + $0x10] sm:$0xff]
        %v209 = vld [vmem:[%s179 + $0x18] sm:$0xff]
        %v210 = vld [vmem:[%s179 + $0x20] sm:$0xff]
        %v211 = vld [vmem:[%s179 + $0x28] sm:$0xff]
        %v212 = vld [vmem:[%s179 + $0x30] sm:$0xff]
        %v213 = vld [vmem:[%s179 + $0x38] sm:$0xff]
        %v214 = vld [vmem:[%s2] sm:$0xff]
        %v215 = vld [vmem:[%s2 + $0x8] sm:$0xff]
        %v216 = vld [vmem:[%s2 + $0x10] sm:$0xff]
        %v217 = vld [vmem:[%s2 + $0x18] sm:$0xff]
        %219 = vset.pattern.permute.xlu0 0
        %220 = vperm.xlu0 %219, %v214
        %v221 = vpop.permute.xlu0 %220
        %224 = vset.pattern.permute.xlu0 0
        %225 = vperm.xlu0 %224, %v215
        %v226 = vpop.permute.xlu0 %225
        %229 = vset.pattern.permute.xlu0 0
        %230 = vperm.xlu0 %229, %v216
        %v231 = vpop.permute.xlu0 %230
        %234 = vset.pattern.permute.xlu0 0
        %235 = vperm.xlu0 %234, %v217
        %v236 = vpop.permute.xlu0 %235
        %v242 = vunpack.c.l.b16 %v202
        %v243 = vunpack.c.l.b16 %v203
        %v244 = vunpack.c.l.b16 %v204
        %v245 = vunpack.c.l.b16 %v205
        %v246 = vpack.c.b16 %v243, %v242
        %v247 = vpack.c.b16 %v245, %v244
        %v256 = vunpack.c.l.b16 %v206
        %v257 = vunpack.c.h.b16 %v206
        %v258 = vunpack.c.l.b16 %v207
        %v259 = vunpack.c.h.b16 %v207
        %v260 = vunpack.c.l.b16 %v208
        %v261 = vunpack.c.h.b16 %v208
        %v262 = vunpack.c.l.b16 %v209
        %v263 = vunpack.c.h.b16 %v209
        %v264 = vunpack.c.l.b16 %v210
        %v265 = vunpack.c.h.b16 %v210
        %v266 = vunpack.c.l.b16 %v211
        %v267 = vunpack.c.h.b16 %v211
        %v268 = vunpack.c.l.b16 %v212
        %v269 = vunpack.c.h.b16 %v212
        %v270 = vunpack.c.l.b16 %v213
        %v271 = vunpack.c.h.b16 %v213
        %v272 = vpack.c.b16 %v264, %v256
        %v273 = vpack.c.b16 %v265, %v257
        %v274 = vpack.c.b16 %v266, %v258
        %v275 = vpack.c.b16 %v267, %v259
        %v276 = vpack.c.b16 %v268, %v260
        %v277 = vpack.c.b16 %v269, %v261
        %v278 = vpack.c.b16 %v270, %v262
        %v279 = vpack.c.b16 %v271, %v263
        %vm288 = vcmask 130048
        %v290 = vsel %vm288, %v246, 0
        %v293 = vsel %vm288, %v247, 0
        %295 = vmatprep.subr.bf16.mxu0 %v273
        %296 = vmatpush1.bf16.msra.mxu0 %v272
        %297 = vmatprep.subr.bf16.mxu0 0
        %298 = vmatpush1.bf16.msra.mxu0 0
        %299 = vmatprep.subr.bf16.mxu0 0
        %300 = vmatpush1.bf16.msra.mxu0 0
        %301 = vmatprep.subr.bf16.mxu0 0
        %302 = vmatpush1.bf16.msra.mxu0 0
        %303 = vmatprep.subr.bf16.mxu0 0
        %304 = vmatpush1.bf16.msra.mxu0 0
        %305 = vmatprep.subr.bf16.mxu0 0
        %306 = vmatpush1.bf16.msra.mxu0 0
        %307 = vmatprep.subr.bf16.mxu0 0
        %308 = vmatpush1.bf16.msra.mxu0 0
        %309 = vmatprep.subr.bf16.mxu0 0
        %310 = vmatpush1.bf16.msra.mxu0 0
        %311 = vmatprep.subr.bf16.mxu0 0
        %312 = vmatpush1.bf16.msra.mxu0 0
        %313 = vmatprep.subr.bf16.mxu0 0
        %314 = vmatpush1.bf16.msra.mxu0 0
        %315 = vmatprep.subr.bf16.mxu0 0
        %316 = vmatpush1.bf16.msra.mxu0 0
        %317 = vmatprep.subr.bf16.mxu0 0
        %318 = vmatpush1.bf16.msra.mxu0 0
        %319 = vmatprep.subr.bf16.mxu0 0
        %320 = vmatpush1.bf16.msra.mxu0 0
        %321 = vmatprep.subr.bf16.mxu0 0
        %322 = vmatpush1.bf16.msra.mxu0 0
        %323 = vmatprep.subr.bf16.mxu0 0
        %324 = vmatpush1.bf16.msra.mxu0 0
        %325 = vmatprep.subr.bf16.mxu0 0
        %326 = vmatpush1.bf16.msra.mxu0 0
        %327 = vmatprep.mubr.bf16.mxu0 0
        %328 = vmatmul.mubr.bf16.gmra.mrb[0].mxu0 %v290
        %v329 = vpop.f32.mrb[0].mxu0
        %v330 = vadd.f32 %v221, %v329
        %v331 = vpop.f32.mrb[0].mxu0
        %v332 = vadd.f32 %v221, %v331
        %v333 = vpop.f32.mrb[0].mxu0
        %v334 = vadd.f32 %v226, %v333
        %v335 = vpop.f32.mrb[0].mxu0
        %v336 = vadd.f32 %v226, %v335
        %337 = vmatprep.mubr.bf16.mxu0 0
        %338 = vmatmul.mubr.bf16.gmra.mrb[0].mxu0 %v293
        %v339 = vpop.f32.mrb[0].mxu0
        %v340 = vadd.f32 %v231, %v339
        %v341 = vpop.f32.mrb[0].mxu0
        %v342 = vadd.f32 %v231, %v341
        %v343 = vpop.f32.mrb[0].mxu0
        %v344 = vadd.f32 %v236, %v343
        %v345 = vpop.f32.mrb[0].mxu0
        %v346 = vadd.f32 %v236, %v345
        %347 = vdwg.mxu0
        %348 = vmatprep.subr.bf16.mxu0 %v275
        %349 = vmatpush1.bf16.msra.mxu0 %v274
        %350 = vmatprep.subr.bf16.mxu0 0
        %351 = vmatpush1.bf16.msra.mxu0 0
        %352 = vmatprep.subr.bf16.mxu0 0
        %353 = vmatpush1.bf16.msra.mxu0 0
        %354 = vmatprep.subr.bf16.mxu0 0
        %355 = vmatpush1.bf16.msra.mxu0 0
        %356 = vmatprep.subr.bf16.mxu0 0
        %357 = vmatpush1.bf16.msra.mxu0 0
        %358 = vmatprep.subr.bf16.mxu0 0
        %359 = vmatpush1.bf16.msra.mxu0 0
        %360 = vmatprep.subr.bf16.mxu0 0
        %361 = vmatpush1.bf16.msra.mxu0 0
        %362 = vmatprep.subr.bf16.mxu0 0
        %363 = vmatpush1.bf16.msra.mxu0 0
        %364 = vmatprep.subr.bf16.mxu0 0
        %365 = vmatpush1.bf16.msra.mxu0 0
        %366 = vmatprep.subr.bf16.mxu0 0
        %367 = vmatpush1.bf16.msra.mxu0 0
        %368 = vmatprep.subr.bf16.mxu0 0
        %369 = vmatpush1.bf16.msra.mxu0 0
        %370 = vmatprep.subr.bf16.mxu0 0
        %371 = vmatpush1.bf16.msra.mxu0 0
        %372 = vmatprep.subr.bf16.mxu0 0
        %373 = vmatpush1.bf16.msra.mxu0 0
        %374 = vmatprep.subr.bf16.mxu0 0
        %375 = vmatpush1.bf16.msra.mxu0 0
        %376 = vmatprep.subr.bf16.mxu0 0
        %377 = vmatpush1.bf16.msra.mxu0 0
        %378 = vmatprep.subr.bf16.mxu0 0
        %379 = vmatpush1.bf16.msra.mxu0 0
        %380 = vmatprep.mubr.bf16.mxu0 0
        %381 = vmatmul.mubr.bf16.gmra.mrb[0].mxu0 %v290
        %v382 = vpop.f32.mrb[0].mxu0
        %v383 = vadd.f32 %v221, %v382
        %v384 = vpop.f32.mrb[0].mxu0
        %v385 = vadd.f32 %v221, %v384
        %v386 = vpop.f32.mrb[0].mxu0
        %v387 = vadd.f32 %v226, %v386
        %v388 = vpop.f32.mrb[0].mxu0
        %v389 = vadd.f32 %v226, %v388
        %390 = vmatprep.mubr.bf16.mxu0 0
        %391 = vmatmul.mubr.bf16.gmra.mrb[0].mxu0 %v293
        %v392 = vpop.f32.mrb[0].mxu0
        %v393 = vadd.f32 %v231, %v392
        %v394 = vpop.f32.mrb[0].mxu0
        %v395 = vadd.f32 %v231, %v394
        %v396 = vpop.f32.mrb[0].mxu0
        %v397 = vadd.f32 %v236, %v396
        %v398 = vpop.f32.mrb[0].mxu0
        %v399 = vadd.f32 %v236, %v398
        %400 = vdwg.mxu0
        %401 = vmatprep.subr.bf16.mxu0 %v277
        %402 = vmatpush1.bf16.msra.mxu0 %v276
        %403 = vmatprep.subr.bf16.mxu0 0
        %404 = vmatpush1.bf16.msra.mxu0 0
        %405 = vmatprep.subr.bf16.mxu0 0
        %406 = vmatpush1.bf16.msra.mxu0 0
        %407 = vmatprep.subr.bf16.mxu0 0
        %408 = vmatpush1.bf16.msra.mxu0 0
        %409 = vmatprep.subr.bf16.mxu0 0
        %410 = vmatpush1.bf16.msra.mxu0 0
        %411 = vmatprep.subr.bf16.mxu0 0
        %412 = vmatpush1.bf16.msra.mxu0 0
        %413 = vmatprep.subr.bf16.mxu0 0
        %414 = vmatpush1.bf16.msra.mxu0 0
        %415 = vmatprep.subr.bf16.mxu0 0
        %416 = vmatpush1.bf16.msra.mxu0 0
        %417 = vmatprep.subr.bf16.mxu0 0
        %418 = vmatpush1.bf16.msra.mxu0 0
        %419 = vmatprep.subr.bf16.mxu0 0
        %420 = vmatpush1.bf16.msra.mxu0 0
        %421 = vmatprep.subr.bf16.mxu0 0
        %422 = vmatpush1.bf16.msra.mxu0 0
        %423 = vmatprep.subr.bf16.mxu0 0
        %424 = vmatpush1.bf16.msra.mxu0 0
        %425 = vmatprep.subr.bf16.mxu0 0
        %426 = vmatpush1.bf16.msra.mxu0 0
        %427 = vmatprep.subr.bf16.mxu0 0
        %428 = vmatpush1.bf16.msra.mxu0 0
        %429 = vmatprep.subr.bf16.mxu0 0
        %430 = vmatpush1.bf16.msra.mxu0 0
        %431 = vmatprep.subr.bf16.mxu0 0
        %432 = vmatpush1.bf16.msra.mxu0 0
        %433 = vmatprep.mubr.bf16.mxu0 0
        %434 = vmatmul.mubr.bf16.gmra.mrb[0].mxu0 %v290
        %v435 = vpop.f32.mrb[0].mxu0
        %v436 = vadd.f32 %v221, %v435
        %v437 = vpop.f32.mrb[0].mxu0
        %v438 = vadd.f32 %v221, %v437
        %v439 = vpop.f32.mrb[0].mxu0
        %v440 = vadd.f32 %v226, %v439
        %v441 = vpop.f32.mrb[0].mxu0
        %v442 = vadd.f32 %v226, %v441
        %443 = vmatprep.mubr.bf16.mxu0 0
        %444 = vmatmul.mubr.bf16.gmra.mrb[0].mxu0 %v293
        %v445 = vpop.f32.mrb[0].mxu0
        %v446 = vadd.f32 %v231, %v445
        %v447 = vpop.f32.mrb[0].mxu0
        %v448 = vadd.f32 %v231, %v447
        %v449 = vpop.f32.mrb[0].mxu0
        %v450 = vadd.f32 %v236, %v449
        %v451 = vpop.f32.mrb[0].mxu0
        %v452 = vadd.f32 %v236, %v451
        %453 = vdwg.mxu0
        %454 = vmatprep.subr.bf16.mxu0 %v279
        %455 = vmatpush1.bf16.msra.mxu0 %v278
        %456 = vmatprep.subr.bf16.mxu0 0
        %457 = vmatpush1.bf16.msra.mxu0 0
        %458 = vmatprep.subr.bf16.mxu0 0
        %459 = vmatpush1.bf16.msra.mxu0 0
        %460 = vmatprep.subr.bf16.mxu0 0
        %461 = vmatpush1.bf16.msra.mxu0 0
        %462 = vmatprep.subr.bf16.mxu0 0
        %463 = vmatpush1.bf16.msra.mxu0 0
        %464 = vmatprep.subr.bf16.mxu0 0
        %465 = vmatpush1.bf16.msra.mxu0 0
        %466 = vmatprep.subr.bf16.mxu0 0
        %467 = vmatpush1.bf16.msra.mxu0 0
        %468 = vmatprep.subr.bf16.mxu0 0
        %469 = vmatpush1.bf16.msra.mxu0 0
        %470 = vmatprep.subr.bf16.mxu0 0
        %471 = vmatpush1.bf16.msra.mxu0 0
        %472 = vmatprep.subr.bf16.mxu0 0
        %473 = vmatpush1.bf16.msra.mxu0 0
        %474 = vmatprep.subr.bf16.mxu0 0
        %475 = vmatpush1.bf16.msra.mxu0 0
        %476 = vmatprep.subr.bf16.mxu0 0
        %477 = vmatpush1.bf16.msra.mxu0 0
        %478 = vmatprep.subr.bf16.mxu0 0
        %479 = vmatpush1.bf16.msra.mxu0 0
        %480 = vmatprep.subr.bf16.mxu0 0
        %481 = vmatpush1.bf16.msra.mxu0 0
        %482 = vmatprep.subr.bf16.mxu0 0
        %483 = vmatpush1.bf16.msra.mxu0 0
        %484 = vmatprep.subr.bf16.mxu0 0
        %485 = vmatpush1.bf16.msra.mxu0 0
        %486 = vmatprep.mubr.bf16.mxu0 0
        %487 = vmatmul.mubr.bf16.gmra.mrb[0].mxu0 %v290
        %v488 = vpop.f32.mrb[0].mxu0
        %v489 = vadd.f32 %v221, %v488
        %v490 = vpop.f32.mrb[0].mxu0
        %v491 = vadd.f32 %v221, %v490
        %v492 = vpop.f32.mrb[0].mxu0
        %v493 = vadd.f32 %v226, %v492
        %v494 = vpop.f32.mrb[0].mxu0
        %v495 = vadd.f32 %v226, %v494
        %496 = vmatprep.mubr.bf16.mxu0 0
        %497 = vmatmul.mubr.bf16.gmra.mrb[0].mxu0 %v293
        %v498 = vpop.f32.mrb[0].mxu0
        %v499 = vadd.f32 %v231, %v498
        %v500 = vpop.f32.mrb[0].mxu0
        %v501 = vadd.f32 %v231, %v500
        %v502 = vpop.f32.mrb[0].mxu0
        %v503 = vadd.f32 %v236, %v502
        %v504 = vpop.f32.mrb[0].mxu0
        %v505 = vadd.f32 %v236, %v504
        %506 = vdwg.mxu0
        %v507 = vmax.f32 %v330, 0.0
        %v508 = vmax.f32 %v332, 0.0
        %v509 = vmax.f32 %v383, 0.0
        %v510 = vmax.f32 %v385, 0.0
        %v511 = vmax.f32 %v436, 0.0
        %v512 = vmax.f32 %v438, 0.0
        %v513 = vmax.f32 %v489, 0.0
        %v514 = vmax.f32 %v491, 0.0
        %v515 = vmax.f32 %v334, 0.0
        %v516 = vmax.f32 %v336, 0.0
        %v517 = vmax.f32 %v387, 0.0
        %v518 = vmax.f32 %v389, 0.0
        %v519 = vmax.f32 %v440, 0.0
        %v520 = vmax.f32 %v442, 0.0
        %v521 = vmax.f32 %v493, 0.0
        %v522 = vmax.f32 %v495, 0.0
        %v523 = vmax.f32 %v340, 0.0
        %v524 = vmax.f32 %v342, 0.0
        %v525 = vmax.f32 %v393, 0.0
        %v526 = vmax.f32 %v395, 0.0
        %v527 = vmax.f32 %v446, 0.0
        %v528 = vmax.f32 %v448, 0.0
        %v529 = vmax.f32 %v499, 0.0
        %v530 = vmax.f32 %v501, 0.0
        %v531 = vmax.f32 %v344, 0.0
        %v532 = vmax.f32 %v346, 0.0
        %v533 = vmax.f32 %v397, 0.0
        %v534 = vmax.f32 %v399, 0.0
        %v535 = vmax.f32 %v450, 0.0
        %v536 = vmax.f32 %v452, 0.0
        %v537 = vmax.f32 %v503, 0.0
        %v538 = vmax.f32 %v505, 0.0
        %v539 = vpack.c.bf16 %v515, %v507
        %v540 = vpack.c.bf16 %v516, %v508
        %v541 = vpack.c.bf16 %v517, %v509
        %v542 = vpack.c.bf16 %v518, %v510
        %v543 = vpack.c.bf16 %v519, %v511
        %v544 = vpack.c.bf16 %v520, %v512
        %v545 = vpack.c.bf16 %v521, %v513
        %v546 = vpack.c.bf16 %v522, %v514
        %v547 = vpack.c.bf16 %v531, %v523
        %v548 = vpack.c.bf16 %v532, %v524
        %v549 = vpack.c.bf16 %v533, %v525
        %v550 = vpack.c.bf16 %v534, %v526
        %v551 = vpack.c.bf16 %v535, %v527
        %v552 = vpack.c.bf16 %v536, %v528
        %v553 = vpack.c.bf16 %v537, %v529
        %v554 = vpack.c.bf16 %v538, %v530
        %v571 = vunpack.c.l.b16 %v539
        %v572 = vunpack.c.l.b16 %v540
        %v573 = vunpack.c.l.b16 %v541
        %v574 = vunpack.c.l.b16 %v542
        %v575 = vunpack.c.l.b16 %v543
        %v576 = vunpack.c.l.b16 %v544
        %v577 = vunpack.c.l.b16 %v545
        %v578 = vunpack.c.l.b16 %v546
        %v579 = vunpack.c.h.b16 %v539
        %v580 = vunpack.c.h.b16 %v540
        %v581 = vunpack.c.h.b16 %v541
        %v582 = vunpack.c.h.b16 %v542
        %v583 = vunpack.c.h.b16 %v543
        %v584 = vunpack.c.h.b16 %v544
        %v585 = vunpack.c.h.b16 %v545
        %v586 = vunpack.c.h.b16 %v546
        %v587 = vunpack.c.l.b16 %v547
        %v588 = vunpack.c.l.b16 %v548
        %v589 = vunpack.c.l.b16 %v549
        %v590 = vunpack.c.l.b16 %v550
        %v591 = vunpack.c.l.b16 %v551
        %v592 = vunpack.c.l.b16 %v552
        %v593 = vunpack.c.l.b16 %v553
        %v594 = vunpack.c.l.b16 %v554
        %v595 = vunpack.c.h.b16 %v547
        %v596 = vunpack.c.h.b16 %v548
        %v597 = vunpack.c.h.b16 %v549
        %v598 = vunpack.c.h.b16 %v550
        %v599 = vunpack.c.h.b16 %v551
        %v600 = vunpack.c.h.b16 %v552
        %v601 = vunpack.c.h.b16 %v553
        %v602 = vunpack.c.h.b16 %v554
        %v603 = vpack.c.b16 %v572, %v571
        %v604 = vpack.c.b16 %v574, %v573
        %v605 = vpack.c.b16 %v576, %v575
        %v606 = vpack.c.b16 %v578, %v577
        %v607 = vpack.c.b16 %v580, %v579
        %v608 = vpack.c.b16 %v582, %v581
        %v609 = vpack.c.b16 %v584, %v583
        %v610 = vpack.c.b16 %v586, %v585
        %v611 = vpack.c.b16 %v588, %v587
        %v612 = vpack.c.b16 %v590, %v589
        %v613 = vpack.c.b16 %v592, %v591
        %v614 = vpack.c.b16 %v594, %v593
        %v615 = vpack.c.b16 %v596, %v595
        %v616 = vpack.c.b16 %v598, %v597
        %v617 = vpack.c.b16 %v600, %v599
        %v618 = vpack.c.b16 %v602, %v601
        %635 = vst [vmem:[%s198] sm:$0xff] %v603
        %636 = vst [vmem:[%s198 + $0x8] sm:$0xff] %v604
        %637 = vst [vmem:[%s198 + $0x10] sm:$0xff] %v605
        %638 = vst [vmem:[%s198 + $0x18] sm:$0xff] %v606
        %639 = vst [vmem:[%s198 + $0x20] sm:$0xff] %v607
        %640 = vst [vmem:[%s198 + $0x28] sm:$0xff] %v608
        %641 = vst [vmem:[%s198 + $0x30] sm:$0xff] %v609
        %642 = vst [vmem:[%s198 + $0x38] sm:$0xff] %v610
        %643 = vst [vmem:[%s198 + $0x40] sm:$0xff] %v611
        %644 = vst [vmem:[%s198 + $0x48] sm:$0xff] %v612
        %645 = vst [vmem:[%s198 + $0x50] sm:$0xff] %v613
        %646 = vst [vmem:[%s198 + $0x58] sm:$0xff] %v614
        %647 = vst [vmem:[%s198 + $0x60] sm:$0xff] %v615
        %648 = vst [vmem:[%s198 + $0x68] sm:$0xff] %v616
        %649 = vst [vmem:[%s198 + $0x70] sm:$0xff] %v617
        %650 = vst [vmem:[%s198 + $0x78] sm:$0xff] %v618
        %s651 = sand.u32 %s90, 1
        %s652 = sand.u32 %s90, 1
        %s653 = smul.addr %s652, 128
        %s654 = scalar_lea.vmem [#allocation3], %s653
        // Predicated region
        $region56: #{beta_tc_vae_forward.9} parent=50 // pred_check
          %p655 = pneg %p100
        $region57: #{beta_tc_vae_forward.9} parent=50 // pred_check_branch
          %657 = sbr.rel (%p655) target = $region59
        $region58: #{beta_tc_vae_forward.9} parent=50 // pred_region
          %s658 = smul.u32 8, %s14
          %s659 = smul.addr %s658, 4
          %s660 = scalar_lea.vmem %s3, %s659
          // Predicated region
          $region60: #{beta_tc_vae_forward.9} parent=58 // pred_check
            _
          $region61: #{beta_tc_vae_forward.9} parent=58 // pred_check_branch
            %662 = sbr.rel (0) target = $region63
          $region62: #{beta_tc_vae_forward.9} parent=58 // pred_region
            // Predicated region
            $region64: #{beta_tc_vae_forward.9} parent=62 // pred_check
              _
            $region65: #{beta_tc_vae_forward.9} parent=62 // pred_check_branch
              %664 = sbr.rel (0) target = $region67
            $region66: #{beta_tc_vae_forward.9} parent=62 // pred_region
              loop: start=0, step=1, limit=1
              $region68: #{beta_tc_vae_forward.9} parent=66 // loop_pre_header
                _
              $region69: #{beta_tc_vae_forward.9} parent=66 // loop_header
                %s666 = sphi 0, %s670
                %p667 = scmp.ge.s32.totalorder %s666, 1
                %s671 = sphi %s654, %s654
                %s672 = sphi %s660, %s660
              $region70: #{beta_tc_vae_forward.9} parent=66 // loop_header_branch
                %669 = sbr.rel (%p667) target = $region74
              $region71: #{beta_tc_vae_forward.9} parent=66 // loop_body
                %v673 = vld [vmem:[%s671] sm:$0xff]
                %674 = vst [vmem:[%s672] sm:$0xff] %v673
                %v675 = vld [vmem:[%s671 + $0x8] sm:$0xff]
                %676 = vst [vmem:[%s672 + $0x8] sm:$0xff] %v675
                %v677 = vld [vmem:[%s671 + $0x10] sm:$0xff]
                %678 = vst [vmem:[%s672 + $0x10] sm:$0xff] %v677
                %v679 = vld [vmem:[%s671 + $0x18] sm:$0xff]
                %680 = vst [vmem:[%s672 + $0x18] sm:$0xff] %v679
                %v681 = vld [vmem:[%s671 + $0x20] sm:$0xff]
                %682 = vst [vmem:[%s672 + $0x40] sm:$0xff] %v681
                %v683 = vld [vmem:[%s671 + $0x28] sm:$0xff]
                %684 = vst [vmem:[%s672 + $0x48] sm:$0xff] %v683
                %v685 = vld [vmem:[%s671 + $0x30] sm:$0xff]
                %686 = vst [vmem:[%s672 + $0x50] sm:$0xff] %v685
                %v687 = vld [vmem:[%s671 + $0x38] sm:$0xff]
                %688 = vst [vmem:[%s672 + $0x58] sm:$0xff] %v687
                %v689 = vld [vmem:[%s671 + $0x40] sm:$0xff]
                %690 = vst [vmem:[%s672 + $0x80] sm:$0xff] %v689
                %v691 = vld [vmem:[%s671 + $0x48] sm:$0xff]
                %692 = vst [vmem:[%s672 + $0x88] sm:$0xff] %v691
                %v693 = vld [vmem:[%s671 + $0x50] sm:$0xff]
                %694 = vst [vmem:[%s672 + $0x90] sm:$0xff] %v693
                %v695 = vld [vmem:[%s671 + $0x58] sm:$0xff]
                %696 = vst [vmem:[%s672 + $0x98] sm:$0xff] %v695
                %v697 = vld [vmem:[%s671 + $0x60] sm:$0xff]
                %698 = vst [vmem:[%s672 + $0xc0] sm:$0xff] %v697
                %v699 = vld [vmem:[%s671 + $0x68] sm:$0xff]
                %700 = vst [vmem:[%s672 + $0xc8] sm:$0xff] %v699
                %v701 = vld [vmem:[%s671 + $0x70] sm:$0xff]
                %702 = vst [vmem:[%s672 + $0xd0] sm:$0xff] %v701
                %v703 = vld [vmem:[%s671 + $0x78] sm:$0xff]
                %704 = vst [vmem:[%s672 + $0xd8] sm:$0xff] %v703
              $region72: #{beta_tc_vae_forward.9} parent=66 // loop_footer
                %s670 = sadd.s32 1, %s666
              $region73: #{beta_tc_vae_forward.9} parent=66 // loop_footer_branch
                %665 = sbr.rel target = $region69
              $region74: #{beta_tc_vae_forward.9} parent=66 // loop_exit
                _
            $region67: #{beta_tc_vae_forward.9} parent=62 // pred_fallthru
              _
            // Predicated region
            $region75: #{beta_tc_vae_forward.9} parent=62 // pred_check
              _
            $region76: #{beta_tc_vae_forward.9} parent=62 // pred_check_branch
              %706 = sbr.rel target = $region78
            $region77: #{beta_tc_vae_forward.9} parent=62 // pred_region
              _
            $region78: #{beta_tc_vae_forward.9} parent=62 // pred_fallthru
              _
          $region63: #{beta_tc_vae_forward.9} parent=58 // pred_fallthru
            _
          %707 = vnop
        $region59: #{beta_tc_vae_forward.9} parent=50 // pred_fallthru
          _
      $region51: #{beta_tc_vae_forward.9} parent=5 // pred_fallthru
        _
      %p708 = scmp.le.s32.totalorder 2, %s9
      // Predicated region
      $region79: #{beta_tc_vae_forward.9} parent=5 // pred_check
        %p709 = pneg %p708
      $region80: #{beta_tc_vae_forward.9} parent=5 // pred_check_branch
        %711 = sbr.rel (%p709) target = $region82
      $region81: #{beta_tc_vae_forward.9} parent=5 // pred_region
        %s712 = ssub.s32 %s9, 2
        // Predicated region
        $region83: #{beta_tc_vae_forward.9} parent=81 // pred_check
          %p713 = pneg %p106
        $region84: #{beta_tc_vae_forward.9} parent=81 // pred_check_branch
          %715 = sbr.rel (%p713) target = $region86
        $region85: #{beta_tc_vae_forward.9} parent=81 // pred_region
          %s716 = sand.u32 %s91, 1
          %s717 = sand.u32 %s91, 1
          %s718 = smul.addr %s717, 128
          %s719 = scalar_lea.vmem [#allocation3], %s718
        $region86: #{beta_tc_vae_forward.9} parent=81 // pred_fallthru
          _
      $region82: #{beta_tc_vae_forward.9} parent=5 // pred_fallthru
        _
    $region6: #{beta_tc_vae_forward.9} parent=1 // loop_footer
      %s13 = sadd.s32 1, %s9
    $region7: #{beta_tc_vae_forward.9} parent=1 // loop_footer_branch
      %8 = sbr.rel target = $region3
    $region8: #{beta_tc_vae_forward.9} parent=1 // loop_exit
      _

// kernel: beta_tc_vae_forward.10
$region0: #{beta_tc_vae_forward.10}
  #allocation0 [shape = 'u32[]', space=smem, size = 0x4, offset = 0x4, fixed_abs, tag = 'smem constant byte address 0x4 - core index']
  #allocation1 [shape = 'u32[144,128]{1,0:T(1,128)}', space=vmem, size = 0x12000, scoped, tag = 'internal scratch']
  %s0 = inlined_call_operand.vmem [shape: bf16[32,512], index: 0, kind: input, shape index: {}]
  %s1 = inlined_call_operand.vmem [shape: bf16[512,512], index: 1, kind: input, shape index: {}]
  %s2 = inlined_call_operand.vmem [shape: f32[32,1], index: 2, kind: input, shape index: {}]
  %s3 = inlined_call_operand.vmem [shape: bf16[32,512], index: 3, kind: output, shape index: {}]
  %s4 = sld [smem:[#allocation0]]
  $region117: #{beta_tc_vae_forward.10} parent=0
    _
  %s6 = ssub.s32 1, %s4
  %s7 = scalar_select 0, %s6, %s4
  $region1: #{beta_tc_vae_forward.10} parent=0
    #allocation2 [shape = 'u8[524288]{0}', space=vmem, size = 0x80000, scoped, tag = 'input window, operand 1']
    #allocation3 [shape = 'u8[32768]{0}', space=vmem, size = 0x8000, scoped, tag = 'output window, operand 0']
    loop: start=0, step=1, limit=4
    $region2: #{beta_tc_vae_forward.10} parent=1 // loop_pre_header
      _
    $region3: #{beta_tc_vae_forward.10} parent=1 // loop_header
      %s9 = sphi 0, %s13
      %p10 = scmp.ge.s32.totalorder %s9, 4
      %s17 = sphi 0, %s17
      %s19 = sphi 0, %s17
      %s20 = sphi 0, %s19
      %s34 = sphi 0, %s20
      %s40 = sphi 0, %s42
      %s43 = sphi 0, %s40
      %s44 = sphi 0, %s43
      %s60 = sphi 0, %s44
      %s64 = sphi 0, %s64
      %s66 = sphi 0, %s64
      %s67 = sphi 0, %s66
      %s81 = sphi 0, %s67
      %s87 = sphi 0, %s89
      %s90 = sphi 0, %s87
      %s91 = sphi 0, %s90
      %s107 = sphi 0, %s91
    $region4: #{beta_tc_vae_forward.10} parent=1 // loop_header_branch
      %12 = sbr.rel (%p10) target = $region8
    $region5: #{beta_tc_vae_forward.10} parent=1 // loop_body
      %s14 = ssub.s32 %s9, 1
      %s15 = ssub.s32 %s9, 2
      %s16 = sadd.s32 %s9, 1
      %s18 = sadd.s32 %s17, 1
      %p21 = scmp.eq.s32.totalorder %s9, 1
      %p22 = scmp.ne.s32.totalorder %s17, %s19
      %p23 = scmp.eq.s32.totalorder %s9, 0
      %p24 = por %p22, %p23
      %p25 = scmp.ne.s32.totalorder %s17, %s19
      %p26 = scmp.eq.s32.totalorder %s14, 1
      %p27 = por %p25, %p26
      %p28 = scmp.ne.s32.totalorder %s19, %s20
      %p29 = scmp.eq.s32.totalorder %s14, 0
      %p30 = por %p28, %p29
      %p31 = scmp.ne.s32.totalorder %s19, %s20
      %p32 = scmp.eq.s32.totalorder %s15, 1
      %p33 = por %p31, %p32
      %p35 = scmp.ne.s32.totalorder %s20, %s34
      %p36 = scmp.eq.s32.totalorder %s15, 0
      %p37 = por %p35, %p36
      %s38 = ssub.s32 %s9, %s16
      %p39 = scmp.eq.s32.totalorder %s38, 0
      %s41 = sadd.s32 %s40, 1
      %s42 = scalar_select %p39, %s40, %s41
      %p45 = pneg %p39
      %p46 = scmp.eq.s32.totalorder %s9, 1
      %p47 = por %p45, %p46
      %p48 = scmp.ne.s32.totalorder %s40, %s43
      %p49 = scmp.eq.s32.totalorder %s9, 0
      %p50 = por %p48, %p49
      %p51 = scmp.ne.s32.totalorder %s40, %s43
      %p52 = scmp.eq.s32.totalorder %s14, 1
      %p53 = por %p51, %p52
      %p54 = scmp.ne.s32.totalorder %s43, %s44
      %p55 = scmp.eq.s32.totalorder %s14, 0
      %p56 = por %p54, %p55
      %p57 = scmp.ne.s32.totalorder %s43, %s44
      %p58 = scmp.eq.s32.totalorder %s15, 1
      %p59 = por %p57, %p58
      %p61 = scmp.ne.s32.totalorder %s44, %s60
      %p62 = scmp.eq.s32.totalorder %s15, 0
      %p63 = por %p61, %p62
      %s65 = sadd.s32 %s64, 1
      %p68 = scmp.eq.s32.totalorder %s9, 1
      %p69 = scmp.ne.s32.totalorder %s64, %s66
      %p70 = scmp.eq.s32.totalorder %s9, 0
      %p71 = por %p69, %p70
      %p72 = scmp.ne.s32.totalorder %s64, %s66
      %p73 = scmp.eq.s32.totalorder %s14, 1
      %p74 = por %p72, %p73
      %p75 = scmp.ne.s32.totalorder %s66, %s67
      %p76 = scmp.eq.s32.totalorder %s14, 0
      %p77 = por %p75, %p76
      %p78 = scmp.ne.s32.totalorder %s66, %s67
      %p79 = scmp.eq.s32.totalorder %s15, 1
      %p80 = por %p78, %p79
      %p82 = scmp.ne.s32.totalorder %s67, %s81
      %p83 = scmp.eq.s32.totalorder %s15, 0
      %p84 = por %p82, %p83
      %s85 = ssub.s32 %s9, %s16
      %p86 = scmp.eq.s32.totalorder %s85, 0
      %s88 = sadd.s32 %s87, 1
      %s89 = scalar_select %p86, %s87, %s88
      %p92 = pneg %p86
      %p93 = scmp.eq.s32.totalorder %s9, 1
      %p94 = por %p92, %p93
      %p95 = scmp.ne.s32.totalorder %s87, %s90
      %p96 = scmp.eq.s32.totalorder %s9, 0
      %p97 = por %p95, %p96
      %p98 = scmp.ne.s32.totalorder %s87, %s90
      %p99 = scmp.eq.s32.totalorder %s14, 1
      %p100 = por %p98, %p99
      %p101 = scmp.ne.s32.totalorder %s90, %s91
      %p102 = scmp.eq.s32.totalorder %s14, 0
      %p103 = por %p101, %p102
      %p104 = scmp.ne.s32.totalorder %s90, %s91
      %p105 = scmp.eq.s32.totalorder %s15, 1
      %p106 = por %p104, %p105
      %p108 = scmp.ne.s32.totalorder %s91, %s107
      %p109 = scmp.eq.s32.totalorder %s15, 0
      %p110 = por %p108, %p109
      %p111 = scmp.le.s32.totalorder 1, %s9
      %p112 = scmp.lt.s32.totalorder %s9, 3
      %p113 = pnand %p111, %p112
      %p114 = pneg %p113
      // Predicated region
      $region9: #{beta_tc_vae_forward.10} parent=5 // pred_check
        _
      $region10: #{beta_tc_vae_forward.10} parent=5 // pred_check_branch
        %116 = sbr.rel (%p113) target = $region12
      $region11: #{beta_tc_vae_forward.10} parent=5 // pred_region
        %s117 = ssub.s32 %s9, 1
        // Predicated region
        $region13: #{beta_tc_vae_forward.10} parent=11 // pred_check
          %p118 = pneg %p30
        $region14: #{beta_tc_vae_forward.10} parent=11 // pred_check_branch
          %120 = sbr.rel (%p118) target = $region16
        $region15: #{beta_tc_vae_forward.10} parent=11 // pred_region
          _
        $region16: #{beta_tc_vae_forward.10} parent=11 // pred_fallthru
          _
        // Predicated region
        $region17: #{beta_tc_vae_forward.10} parent=11 // pred_check
          %p121 = pneg %p77
        $region18: #{beta_tc_vae_forward.10} parent=11 // pred_check_branch
          %123 = sbr.rel (%p121) target = $region20
        $region19: #{beta_tc_vae_forward.10} parent=11 // pred_region
          _
        $region20: #{beta_tc_vae_forward.10} parent=11 // pred_fallthru
          _
      $region12: #{beta_tc_vae_forward.10} parent=5 // pred_fallthru
        _
      %p124 = scmp.lt.s32.totalorder %s9, 2
      // Predicated region
      $region21: #{beta_tc_vae_forward.10} parent=5 // pred_check
        %p125 = pneg %p124
      $region22: #{beta_tc_vae_forward.10} parent=5 // pred_check_branch
        %127 = sbr.rel (%p125) target = $region24
      $region23: #{beta_tc_vae_forward.10} parent=5 // pred_region
        // Predicated region
        $region25: #{beta_tc_vae_forward.10} parent=23 // pred_check
          %p128 = pneg %p50
        $region26: #{beta_tc_vae_forward.10} parent=23 // pred_check_branch
          %130 = sbr.rel (%p128) target = $region28
        $region27: #{beta_tc_vae_forward.10} parent=23 // pred_region
          %s131 = sand.u32 %s40, 1
          %s132 = sand.u32 %s40, 1
          %s133 = smul.addr %s132, 512
          %s134 = scalar_lea.vmem [#allocation2], %s133
          %s135 = smul.u32 2, %s9
          %s136 = smul.addr %s135, 4
          %s137 = scalar_lea.vmem %s1, %s136
          // Predicated region
          $region29: #{beta_tc_vae_forward.10} parent=27 // pred_check
            _
          $region30: #{beta_tc_vae_forward.10} parent=27 // pred_check_branch
            %139 = sbr.rel (0) target = $region32
          $region31: #{beta_tc_vae_forward.10} parent=27 // pred_region
            // Predicated region
            $region33: #{beta_tc_vae_forward.10} parent=31 // pred_check
              _
            $region34: #{beta_tc_vae_forward.10} parent=31 // pred_check_branch
              %141 = sbr.rel (0) target = $region36
            $region35: #{beta_tc_vae_forward.10} parent=31 // pred_region
              // Predicated region
              $region48: #{beta_tc_vae_forward.10} parent=35 // pred_check
                _
              $region49: #{beta_tc_vae_forward.10} parent=35 // pred_check_branch
                %282 = sbr.rel (0) target = $region51
              $region50: #{beta_tc_vae_forward.10} parent=35 // pred_region
                loop: start=0, step=1, limit=1
                $region52: #{beta_tc_vae_forward.10} parent=50 // loop_pre_header
                  _
                $region53: #{beta_tc_vae_forward.10} parent=50 // loop_header
                  %s284 = sphi 0, %s288
                  %p285 = scmp.ge.s32.totalorder %s284, 1
                  %s289 = sphi %s137, %s137
                  %s290 = sphi %s134, %s134
                $region54: #{beta_tc_vae_forward.10} parent=50 // loop_header_branch
                  %287 = sbr.rel (%p285) target = $region58
                $region55: #{beta_tc_vae_forward.10} parent=50 // loop_body
                  %v291 = vld [vmem:[%s289] sm:$0xff]
                  %292 = vst [vmem:[%s290] sm:$0xff] %v291
                  %v293 = vld [vmem:[%s289 + $0x10] sm:$0xff]
                  %294 = vst [vmem:[%s290 + $0x8] sm:$0xff] %v293
                  %v295 = vld [vmem:[%s289 + $0x20] sm:$0xff]
                  %296 = vst [vmem:[%s290 + $0x10] sm:$0xff] %v295
                  %v297 = vld [vmem:[%s289 + $0x30] sm:$0xff]
                  %298 = vst [vmem:[%s290 + $0x18] sm:$0xff] %v297
                  %v299 = vld [vmem:[%s289 + $0x40] sm:$0xff]
                  %300 = vst [vmem:[%s290 + $0x20] sm:$0xff] %v299
                  %v301 = vld [vmem:[%s289 + $0x50] sm:$0xff]
                  %302 = vst [vmem:[%s290 + $0x28] sm:$0xff] %v301
                  %v303 = vld [vmem:[%s289 + $0x60] sm:$0xff]
                  %304 = vst [vmem:[%s290 + $0x30] sm:$0xff] %v303
                  %v305 = vld [vmem:[%s289 + $0x70] sm:$0xff]
                  %306 = vst [vmem:[%s290 + $0x38] sm:$0xff] %v305
                  %v307 = vld [vmem:[%s289 + $0x80] sm:$0xff]
                  %308 = vst [vmem:[%s290 + $0x40] sm:$0xff] %v307
                  %v309 = vld [vmem:[%s289 + $0x90] sm:$0xff]
                  %310 = vst [vmem:[%s290 + $0x48] sm:$0xff] %v309
                  %v311 = vld [vmem:[%s289 + $0xa0] sm:$0xff]
                  %312 = vst [vmem:[%s290 + $0x50] sm:$0xff] %v311
                  %v313 = vld [vmem:[%s289 + $0xb0] sm:$0xff]
                  %314 = vst [vmem:[%s290 + $0x58] sm:$0xff] %v313
                  %v315 = vld [vmem:[%s289 + $0xc0] sm:$0xff]
                  %316 = vst [vmem:[%s290 + $0x60] sm:$0xff] %v315
                  %v317 = vld [vmem:[%s289 + $0xd0] sm:$0xff]
                  %318 = vst [vmem:[%s290 + $0x68] sm:$0xff] %v317
                  %v319 = vld [vmem:[%s289 + $0xe0] sm:$0xff]
                  %320 = vst [vmem:[%s290 + $0x70] sm:$0xff] %v319
                  %v321 = vld [vmem:[%s289 + $0xf0] sm:$0xff]
                  %322 = vst [vmem:[%s290 + $0x78] sm:$0xff] %v321
                  %v323 = vld [vmem:[%s289 + $0x100] sm:$0xff]
                  %324 = vst [vmem:[%s290 + $0x80] sm:$0xff] %v323
                  %v325 = vld [vmem:[%s289 + $0x110] sm:$0xff]
                  %326 = vst [vmem:[%s290 + $0x88] sm:$0xff] %v325
                  %v327 = vld [vmem:[%s289 + $0x120] sm:$0xff]
                  %328 = vst [vmem:[%s290 + $0x90] sm:$0xff] %v327
                  %v329 = vld [vmem:[%s289 + $0x130] sm:$0xff]
                  %330 = vst [vmem:[%s290 + $0x98] sm:$0xff] %v329
                  %v331 = vld [vmem:[%s289 + $0x140] sm:$0xff]
                  %332 = vst [vmem:[%s290 + $0xa0] sm:$0xff] %v331
                  %v333 = vld [vmem:[%s289 + $0x150] sm:$0xff]
                  %334 = vst [vmem:[%s290 + $0xa8] sm:$0xff] %v333
                  %v335 = vld [vmem:[%s289 + $0x160] sm:$0xff]
                  %336 = vst [vmem:[%s290 + $0xb0] sm:$0xff] %v335
                  %v337 = vld [vmem:[%s289 + $0x170] sm:$0xff]
                  %338 = vst [vmem:[%s290 + $0xb8] sm:$0xff] %v337
                  %v339 = vld [vmem:[%s289 + $0x180] sm:$0xff]
                  %340 = vst [vmem:[%s290 + $0xc0] sm:$0xff] %v339
                  %v341 = vld [vmem:[%s289 + $0x190] sm:$0xff]
                  %342 = vst [vmem:[%s290 + $0xc8] sm:$0xff] %v341
                  %v343 = vld [vmem:[%s289 + $0x1a0] sm:$0xff]
                  %344 = vst [vmem:[%s290 + $0xd0] sm:$0xff] %v343
                  %v345 = vld [vmem:[%s289 + $0x1b0] sm:$0xff]
                  %346 = vst [vmem:[%s290 + $0xd8] sm:$0xff] %v345
                  %v347 = vld [vmem:[%s289 + $0x1c0] sm:$0xff]
                  %348 = vst [vmem:[%s290 + $0xe0] sm:$0xff] %v347
                  %v349 = vld [vmem:[%s289 + $0x1d0] sm:$0xff]
                  %350 = vst [vmem:[%s290 + $0xe8] sm:$0xff] %v349
                  %v351 = vld [vmem:[%s289 + $0x1e0] sm:$0xff]
                  %352 = vst [vmem:[%s290 + $0xf0] sm:$0xff] %v351
                  %v353 = vld [vmem:[%s289 + $0x1f0] sm:$0xff]
                  %354 = vst [vmem:[%s290 + $0xf8] sm:$0xff] %v353
                  %v355 = vld [vmem:[%s289 + $0x200] sm:$0xff]
                  %356 = vst [vmem:[%s290 + $0x100] sm:$0xff] %v355
                  %v357 = vld [vmem:[%s289 + $0x210] sm:$0xff]
                  %358 = vst [vmem:[%s290 + $0x108] sm:$0xff] %v357
                  %v359 = vld [vmem:[%s289 + $0x220] sm:$0xff]
                  %360 = vst [vmem:[%s290 + $0x110] sm:$0xff] %v359
                  %v361 = vld [vmem:[%s289 + $0x230] sm:$0xff]
                  %362 = vst [vmem:[%s290 + $0x118] sm:$0xff] %v361
                  %v363 = vld [vmem:[%s289 + $0x240] sm:$0xff]
                  %364 = vst [vmem:[%s290 + $0x120] sm:$0xff] %v363
                  %v365 = vld [vmem:[%s289 + $0x250] sm:$0xff]
                  %366 = vst [vmem:[%s290 + $0x128] sm:$0xff] %v365
                  %v367 = vld [vmem:[%s289 + $0x260] sm:$0xff]
                  %368 = vst [vmem:[%s290 + $0x130] sm:$0xff] %v367
                  %v369 = vld [vmem:[%s289 + $0x270] sm:$0xff]
                  %370 = vst [vmem:[%s290 + $0x138] sm:$0xff] %v369
                  %v371 = vld [vmem:[%s289 + $0x280] sm:$0xff]
                  %372 = vst [vmem:[%s290 + $0x140] sm:$0xff] %v371
                  %v373 = vld [vmem:[%s289 + $0x290] sm:$0xff]
                  %374 = vst [vmem:[%s290 + $0x148] sm:$0xff] %v373
                  %v375 = vld [vmem:[%s289 + $0x2a0] sm:$0xff]
                  %376 = vst [vmem:[%s290 + $0x150] sm:$0xff] %v375
                  %v377 = vld [vmem:[%s289 + $0x2b0] sm:$0xff]
                  %378 = vst [vmem:[%s290 + $0x158] sm:$0xff] %v377
                  %v379 = vld [vmem:[%s289 + $0x2c0] sm:$0xff]
                  %380 = vst [vmem:[%s290 + $0x160] sm:$0xff] %v379
                  %v381 = vld [vmem:[%s289 + $0x2d0] sm:$0xff]
                  %382 = vst [vmem:[%s290 + $0x168] sm:$0xff] %v381
                  %v383 = vld [vmem:[%s289 + $0x2e0] sm:$0xff]
                  %384 = vst [vmem:[%s290 + $0x170] sm:$0xff] %v383
                  %v385 = vld [vmem:[%s289 + $0x2f0] sm:$0xff]
                  %386 = vst [vmem:[%s290 + $0x178] sm:$0xff] %v385
                  %v387 = vld [vmem:[%s289 + $0x300] sm:$0xff]
                  %388 = vst [vmem:[%s290 + $0x180] sm:$0xff] %v387
                  %v389 = vld [vmem:[%s289 + $0x310] sm:$0xff]
                  %390 = vst [vmem:[%s290 + $0x188] sm:$0xff] %v389
                  %v391 = vld [vmem:[%s289 + $0x320] sm:$0xff]
                  %392 = vst [vmem:[%s290 + $0x190] sm:$0xff] %v391
                  %v393 = vld [vmem:[%s289 + $0x330] sm:$0xff]
                  %394 = vst [vmem:[%s290 + $0x198] sm:$0xff] %v393
                  %v395 = vld [vmem:[%s289 + $0x340] sm:$0xff]
                  %396 = vst [vmem:[%s290 + $0x1a0] sm:$0xff] %v395
                  %v397 = vld [vmem:[%s289 + $0x350] sm:$0xff]
                  %398 = vst [vmem:[%s290 + $0x1a8] sm:$0xff] %v397
                  %v399 = vld [vmem:[%s289 + $0x360] sm:$0xff]
                  %400 = vst [vmem:[%s290 + $0x1b0] sm:$0xff] %v399
                  %v401 = vld [vmem:[%s289 + $0x370] sm:$0xff]
                  %402 = vst [vmem:[%s290 + $0x1b8] sm:$0xff] %v401
                  %v403 = vld [vmem:[%s289 + $0x380] sm:$0xff]
                  %404 = vst [vmem:[%s290 + $0x1c0] sm:$0xff] %v403
                  %v405 = vld [vmem:[%s289 + $0x390] sm:$0xff]
                  %406 = vst [vmem:[%s290 + $0x1c8] sm:$0xff] %v405
                  %v407 = vld [vmem:[%s289 + $0x3a0] sm:$0xff]
                  %408 = vst [vmem:[%s290 + $0x1d0] sm:$0xff] %v407
                  %v409 = vld [vmem:[%s289 + $0x3b0] sm:$0xff]
                  %410 = vst [vmem:[%s290 + $0x1d8] sm:$0xff] %v409
                  %v411 = vld [vmem:[%s289 + $0x3c0] sm:$0xff]
                  %412 = vst [vmem:[%s290 + $0x1e0] sm:$0xff] %v411
                  %v413 = vld [vmem:[%s289 + $0x3d0] sm:$0xff]
                  %414 = vst [vmem:[%s290 + $0x1e8] sm:$0xff] %v413
                  %v415 = vld [vmem:[%s289 + $0x3e0] sm:$0xff]
                  %416 = vst [vmem:[%s290 + $0x1f0] sm:$0xff] %v415
                  %v417 = vld [vmem:[%s289 + $0x3f0] sm:$0xff]
                  %418 = vst [vmem:[%s290 + $0x1f8] sm:$0xff] %v417
                $region56: #{beta_tc_vae_forward.10} parent=50 // loop_footer
                  %s288 = sadd.s32 1, %s284
                $region57: #{beta_tc_vae_forward.10} parent=50 // loop_footer_branch
                  %283 = sbr.rel target = $region53
                $region58: #{beta_tc_vae_forward.10} parent=50 // loop_exit
                  _
              $region51: #{beta_tc_vae_forward.10} parent=35 // pred_fallthru
                _
              // Predicated region
              $region59: #{beta_tc_vae_forward.10} parent=35 // pred_check
                _
              $region60: #{beta_tc_vae_forward.10} parent=35 // pred_check_branch
                %420 = sbr.rel target = $region62
              $region61: #{beta_tc_vae_forward.10} parent=35 // pred_region
                _
              $region62: #{beta_tc_vae_forward.10} parent=35 // pred_fallthru
                _
            $region36: #{beta_tc_vae_forward.10} parent=31 // pred_fallthru
              _
            // Predicated region
            $region37: #{beta_tc_vae_forward.10} parent=31 // pred_check
              _
            $region38: #{beta_tc_vae_forward.10} parent=31 // pred_check_branch
              %143 = sbr.rel target = $region40
            $region39: #{beta_tc_vae_forward.10} parent=31 // pred_region
              loop: start=0, step=1, limit=1
              $region41: #{beta_tc_vae_forward.10} parent=39 // loop_pre_header
                _
              $region42: #{beta_tc_vae_forward.10} parent=39 // loop_header
                %s146 = sphi 0, %s150
                %p147 = scmp.ge.s32.totalorder %s146, 1
                %s151 = sphi %s137, %s137
                %s152 = sphi %s134, %s134
              $region43: #{beta_tc_vae_forward.10} parent=39 // loop_header_branch
                %149 = sbr.rel (%p147) target = $region47
              $region44: #{beta_tc_vae_forward.10} parent=39 // loop_body
                %v153 = vld [vmem:[%s151] sm:$0xff]
                %154 = vst [vmem:[%s152] sm:$0xff] %v153
                %v155 = vld [vmem:[%s151 + $0x10] sm:$0xff]
                %156 = vst [vmem:[%s152 + $0x8] sm:$0xff] %v155
                %v157 = vld [vmem:[%s151 + $0x20] sm:$0xff]
                %158 = vst [vmem:[%s152 + $0x10] sm:$0xff] %v157
                %v159 = vld [vmem:[%s151 + $0x30] sm:$0xff]
                %160 = vst [vmem:[%s152 + $0x18] sm:$0xff] %v159
                %v161 = vld [vmem:[%s151 + $0x40] sm:$0xff]
                %162 = vst [vmem:[%s152 + $0x20] sm:$0xff] %v161
                %v163 = vld [vmem:[%s151 + $0x50] sm:$0xff]
                %164 = vst [vmem:[%s152 + $0x28] sm:$0xff] %v163
                %v165 = vld [vmem:[%s151 + $0x60] sm:$0xff]
                %166 = vst [vmem:[%s152 + $0x30] sm:$0xff] %v165
                %v167 = vld [vmem:[%s151 + $0x70] sm:$0xff]
                %168 = vst [vmem:[%s152 + $0x38] sm:$0xff] %v167
                %v169 = vld [vmem:[%s151 + $0x80] sm:$0xff]
                %170 = vst [vmem:[%s152 + $0x40] sm:$0xff] %v169
                %v171 = vld [vmem:[%s151 + $0x90] sm:$0xff]
                %172 = vst [vmem:[%s152 + $0x48] sm:$0xff] %v171
                %v173 = vld [vmem:[%s151 + $0xa0] sm:$0xff]
                %174 = vst [vmem:[%s152 + $0x50] sm:$0xff] %v173
                %v175 = vld [vmem:[%s151 + $0xb0] sm:$0xff]
                %176 = vst [vmem:[%s152 + $0x58] sm:$0xff] %v175
                %v177 = vld [vmem:[%s151 + $0xc0] sm:$0xff]
                %178 = vst [vmem:[%s152 + $0x60] sm:$0xff] %v177
                %v179 = vld [vmem:[%s151 + $0xd0] sm:$0xff]
                %180 = vst [vmem:[%s152 + $0x68] sm:$0xff] %v179
                %v181 = vld [vmem:[%s151 + $0xe0] sm:$0xff]
                %182 = vst [vmem:[%s152 + $0x70] sm:$0xff] %v181
                %v183 = vld [vmem:[%s151 + $0xf0] sm:$0xff]
                %184 = vst [vmem:[%s152 + $0x78] sm:$0xff] %v183
                %v185 = vld [vmem:[%s151 + $0x100] sm:$0xff]
                %186 = vst [vmem:[%s152 + $0x80] sm:$0xff] %v185
                %v187 = vld [vmem:[%s151 + $0x110] sm:$0xff]
                %188 = vst [vmem:[%s152 + $0x88] sm:$0xff] %v187
                %v189 = vld [vmem:[%s151 + $0x120] sm:$0xff]
                %190 = vst [vmem:[%s152 + $0x90] sm:$0xff] %v189
                %v191 = vld [vmem:[%s151 + $0x130] sm:$0xff]
                %192 = vst [vmem:[%s152 + $0x98] sm:$0xff] %v191
                %v193 = vld [vmem:[%s151 + $0x140] sm:$0xff]
                %194 = vst [vmem:[%s152 + $0xa0] sm:$0xff] %v193
                %v195 = vld [vmem:[%s151 + $0x150] sm:$0xff]
                %196 = vst [vmem:[%s152 + $0xa8] sm:$0xff] %v195
                %v197 = vld [vmem:[%s151 + $0x160] sm:$0xff]
                %198 = vst [vmem:[%s152 + $0xb0] sm:$0xff] %v197
                %v199 = vld [vmem:[%s151 + $0x170] sm:$0xff]
                %200 = vst [vmem:[%s152 + $0xb8] sm:$0xff] %v199
                %v201 = vld [vmem:[%s151 + $0x180] sm:$0xff]
                %202 = vst [vmem:[%s152 + $0xc0] sm:$0xff] %v201
                %v203 = vld [vmem:[%s151 + $0x190] sm:$0xff]
                %204 = vst [vmem:[%s152 + $0xc8] sm:$0xff] %v203
                %v205 = vld [vmem:[%s151 + $0x1a0] sm:$0xff]
                %206 = vst [vmem:[%s152 + $0xd0] sm:$0xff] %v205
                %v207 = vld [vmem:[%s151 + $0x1b0] sm:$0xff]
                %208 = vst [vmem:[%s152 + $0xd8] sm:$0xff] %v207
                %v209 = vld [vmem:[%s151 + $0x1c0] sm:$0xff]
                %210 = vst [vmem:[%s152 + $0xe0] sm:$0xff] %v209
                %v211 = vld [vmem:[%s151 + $0x1d0] sm:$0xff]
                %212 = vst [vmem:[%s152 + $0xe8] sm:$0xff] %v211
                %v213 = vld [vmem:[%s151 + $0x1e0] sm:$0xff]
                %214 = vst [vmem:[%s152 + $0xf0] sm:$0xff] %v213
                %v215 = vld [vmem:[%s151 + $0x1f0] sm:$0xff]
                %216 = vst [vmem:[%s152 + $0xf8] sm:$0xff] %v215
                %v217 = vld [vmem:[%s151 + $0x200] sm:$0xff]
                %218 = vst [vmem:[%s152 + $0x100] sm:$0xff] %v217
                %v219 = vld [vmem:[%s151 + $0x210] sm:$0xff]
                %220 = vst [vmem:[%s152 + $0x108] sm:$0xff] %v219
                %v221 = vld [vmem:[%s151 + $0x220] sm:$0xff]
                %222 = vst [vmem:[%s152 + $0x110] sm:$0xff] %v221
                %v223 = vld [vmem:[%s151 + $0x230] sm:$0xff]
                %224 = vst [vmem:[%s152 + $0x118] sm:$0xff] %v223
                %v225 = vld [vmem:[%s151 + $0x240] sm:$0xff]
                %226 = vst [vmem:[%s152 + $0x120] sm:$0xff] %v225
                %v227 = vld [vmem:[%s151 + $0x250] sm:$0xff]
                %228 = vst [vmem:[%s152 + $0x128] sm:$0xff] %v227
                %v229 = vld [vmem:[%s151 + $0x260] sm:$0xff]
                %230 = vst [vmem:[%s152 + $0x130] sm:$0xff] %v229
                %v231 = vld [vmem:[%s151 + $0x270] sm:$0xff]
                %232 = vst [vmem:[%s152 + $0x138] sm:$0xff] %v231
                %v233 = vld [vmem:[%s151 + $0x280] sm:$0xff]
                %234 = vst [vmem:[%s152 + $0x140] sm:$0xff] %v233
                %v235 = vld [vmem:[%s151 + $0x290] sm:$0xff]
                %236 = vst [vmem:[%s152 + $0x148] sm:$0xff] %v235
                %v237 = vld [vmem:[%s151 + $0x2a0] sm:$0xff]
                %238 = vst [vmem:[%s152 + $0x150] sm:$0xff] %v237
                %v239 = vld [vmem:[%s151 + $0x2b0] sm:$0xff]
                %240 = vst [vmem:[%s152 + $0x158] sm:$0xff] %v239
                %v241 = vld [vmem:[%s151 + $0x2c0] sm:$0xff]
                %242 = vst [vmem:[%s152 + $0x160] sm:$0xff] %v241
                %v243 = vld [vmem:[%s151 + $0x2d0] sm:$0xff]
                %244 = vst [vmem:[%s152 + $0x168] sm:$0xff] %v243
                %v245 = vld [vmem:[%s151 + $0x2e0] sm:$0xff]
                %246 = vst [vmem:[%s152 + $0x170] sm:$0xff] %v245
                %v247 = vld [vmem:[%s151 + $0x2f0] sm:$0xff]
                %248 = vst [vmem:[%s152 + $0x178] sm:$0xff] %v247
                %v249 = vld [vmem:[%s151 + $0x300] sm:$0xff]
                %250 = vst [vmem:[%s152 + $0x180] sm:$0xff] %v249
                %v251 = vld [vmem:[%s151 + $0x310] sm:$0xff]
                %252 = vst [vmem:[%s152 + $0x188] sm:$0xff] %v251
                %v253 = vld [vmem:[%s151 + $0x320] sm:$0xff]
                %254 = vst [vmem:[%s152 + $0x190] sm:$0xff] %v253
                %v255 = vld [vmem:[%s151 + $0x330] sm:$0xff]
                %256 = vst [vmem:[%s152 + $0x198] sm:$0xff] %v255
                %v257 = vld [vmem:[%s151 + $0x340] sm:$0xff]
                %258 = vst [vmem:[%s152 + $0x1a0] sm:$0xff] %v257
                %v259 = vld [vmem:[%s151 + $0x350] sm:$0xff]
                %260 = vst [vmem:[%s152 + $0x1a8] sm:$0xff] %v259
                %v261 = vld [vmem:[%s151 + $0x360] sm:$0xff]
                %262 = vst [vmem:[%s152 + $0x1b0] sm:$0xff] %v261
                %v263 = vld [vmem:[%s151 + $0x370] sm:$0xff]
                %264 = vst [vmem:[%s152 + $0x1b8] sm:$0xff] %v263
                %v265 = vld [vmem:[%s151 + $0x380] sm:$0xff]
                %266 = vst [vmem:[%s152 + $0x1c0] sm:$0xff] %v265
                %v267 = vld [vmem:[%s151 + $0x390] sm:$0xff]
                %268 = vst [vmem:[%s152 + $0x1c8] sm:$0xff] %v267
                %v269 = vld [vmem:[%s151 + $0x3a0] sm:$0xff]
                %270 = vst [vmem:[%s152 + $0x1d0] sm:$0xff] %v269
                %v271 = vld [vmem:[%s151 + $0x3b0] sm:$0xff]
                %272 = vst [vmem:[%s152 + $0x1d8] sm:$0xff] %v271
                %v273 = vld [vmem:[%s151 + $0x3c0] sm:$0xff]
                %274 = vst [vmem:[%s152 + $0x1e0] sm:$0xff] %v273
                %v275 = vld [vmem:[%s151 + $0x3d0] sm:$0xff]
                %276 = vst [vmem:[%s152 + $0x1e8] sm:$0xff] %v275
                %v277 = vld [vmem:[%s151 + $0x3e0] sm:$0xff]
                %278 = vst [vmem:[%s152 + $0x1f0] sm:$0xff] %v277
                %v279 = vld [vmem:[%s151 + $0x3f0] sm:$0xff]
                %280 = vst [vmem:[%s152 + $0x1f8] sm:$0xff] %v279
              $region45: #{beta_tc_vae_forward.10} parent=39 // loop_footer
                %s150 = sadd.s32 1, %s146
              $region46: #{beta_tc_vae_forward.10} parent=39 // loop_footer_branch
                %145 = sbr.rel target = $region42
              $region47: #{beta_tc_vae_forward.10} parent=39 // loop_exit
                _
            $region40: #{beta_tc_vae_forward.10} parent=31 // pred_fallthru
              _
          $region32: #{beta_tc_vae_forward.10} parent=27 // pred_fallthru
            _
          %421 = vnop
        $region28: #{beta_tc_vae_forward.10} parent=23 // pred_fallthru
          _
      $region24: #{beta_tc_vae_forward.10} parent=5 // pred_fallthru
        _
      %p422 = scmp.le.s32.totalorder 1, %s9
      %p423 = scmp.lt.s32.totalorder %s9, 3
      %p424 = pnand %p422, %p423
      %p425 = pneg %p424
      // Predicated region
      $region63: #{beta_tc_vae_forward.10} parent=5 // pred_check
        _
      $region64: #{beta_tc_vae_forward.10} parent=5 // pred_check_branch
        %427 = sbr.rel (%p424) target = $region66
      $region65: #{beta_tc_vae_forward.10} parent=5 // pred_region
        %s428 = ssub.s32 %s9, 1
        %s429 = sand.u32 %s43, 1
        %s430 = sand.u32 %s43, 1
        %s431 = smul.addr %s430, 512
        %s432 = scalar_lea.vmem [#allocation2], %s431
        // Predicated region
        $region67: #{beta_tc_vae_forward.10} parent=65 // pred_check
          %p433 = pneg %p56
        $region68: #{beta_tc_vae_forward.10} parent=65 // pred_check_branch
          %435 = sbr.rel (%p433) target = $region70
        $region69: #{beta_tc_vae_forward.10} parent=65 // pred_region
          _
        $region70: #{beta_tc_vae_forward.10} parent=65 // pred_fallthru
          _
        %p436 = pneg %p30
        %p437 = pneg %p27
        %s438 = sand.u32 %s43, 1
        %s439 = sand.u32 %s43, 1
        %s440 = smul.addr %s439, 512
        %s441 = scalar_lea.vmem [#allocation2], %s440
        %p442 = pneg %p56
        %p443 = pneg %p53
        %p444 = pneg %p77
        %p445 = pneg %p74
        %p446 = pneg %p103
        %p447 = pneg %p100
        %s448 = sand.u32 %s90, 1
        %s449 = sand.u32 %s90, 1
        %s450 = smul.addr %s449, 32
        %s451 = scalar_lea.vmem [#allocation3], %s450
        %s452 = smul.u32 2, %s14
        %s453 = smul.u32 2, %s14
        %v454 = vld [vmem:[%s0] sm:$0xff]
        %v455 = vld [vmem:[%s0 + $0x8] sm:$0xff]
        %v456 = vld [vmem:[%s0 + $0x10] sm:$0xff]
        %v457 = vld [vmem:[%s0 + $0x18] sm:$0xff]
        %v458 = vld [vmem:[%s0 + $0x20] sm:$0xff]
        %v459 = vld [vmem:[%s0 + $0x28] sm:$0xff]
        %v460 = vld [vmem:[%s0 + $0x30] sm:$0xff]
        %v461 = vld [vmem:[%s0 + $0x38] sm:$0xff]
        %v462 = vld [vmem:[%s432] sm:$0xff]
        %v463 = vld [vmem:[%s432 + $0x8] sm:$0xff]
        %v464 = vld [vmem:[%s432 + $0x10] sm:$0xff]
        %v465 = vld [vmem:[%s432 + $0x18] sm:$0xff]
        %v466 = vld [vmem:[%s432 + $0x20] sm:$0xff]
        %v467 = vld [vmem:[%s432 + $0x28] sm:$0xff]
        %v468 = vld [vmem:[%s432 + $0x30] sm:$0xff]
        %v469 = vld [vmem:[%s432 + $0x38] sm:$0xff]
        %v470 = vld [vmem:[%s432 + $0x40] sm:$0xff]
        %v471 = vld [vmem:[%s432 + $0x48] sm:$0xff]
        %v472 = vld [vmem:[%s432 + $0x50] sm:$0xff]
        %v473 = vld [vmem:[%s432 + $0x58] sm:$0xff]
        %v474 = vld [vmem:[%s432 + $0x60] sm:$0xff]
        %v475 = vld [vmem:[%s432 + $0x68] sm:$0xff]
        %v476 = vld [vmem:[%s432 + $0x70] sm:$0xff]
        %v477 = vld [vmem:[%s432 + $0x78] sm:$0xff]
        %v478 = vld [vmem:[%s432 + $0x80] sm:$0xff]
        %v479 = vld [vmem:[%s432 + $0x88] sm:$0xff]
        %v480 = vld [vmem:[%s432 + $0x90] sm:$0xff]
        %v481 = vld [vmem:[%s432 + $0x98] sm:$0xff]
        %v482 = vld [vmem:[%s432 + $0xa0] sm:$0xff]
        %v483 = vld [vmem:[%s432 + $0xa8] sm:$0xff]
        %v484 = vld [vmem:[%s432 + $0xb0] sm:$0xff]
        %v485 = vld [vmem:[%s432 + $0xb8] sm:$0xff]
        %v486 = vld [vmem:[%s432 + $0xc0] sm:$0xff]
        %v487 = vld [vmem:[%s432 + $0xc8] sm:$0xff]
        %v488 = vld [vmem:[%s432 + $0xd0] sm:$0xff]
        %v489 = vld [vmem:[%s432 + $0xd8] sm:$0xff]
        %v490 = vld [vmem:[%s432 + $0xe0] sm:$0xff]
        %v491 = vld [vmem:[%s432 + $0xe8] sm:$0xff]
        %v492 = vld [vmem:[%s432 + $0xf0] sm:$0xff]
        %v493 = vld [vmem:[%s432 + $0xf8] sm:$0xff]
        %v494 = vld [vmem:[%s432 + $0x100] sm:$0xff]
        %v495 = vld [vmem:[%s432 + $0x108] sm:$0xff]
        %v496 = vld [vmem:[%s432 + $0x110] sm:$0xff]
        %v497 = vld [vmem:[%s432 + $0x118] sm:$0xff]
        %v498 = vld [vmem:[%s432 + $0x120] sm:$0xff]
        %v499 = vld [vmem:[%s432 + $0x128] sm:$0xff]
        %v500 = vld [vmem:[%s432 + $0x130] sm:$0xff]
        %v501 = vld [vmem:[%s432 + $0x138] sm:$0xff]
        %v502 = vld [vmem:[%s432 + $0x140] sm:$0xff]
        %v503 = vld [vmem:[%s432 + $0x148] sm:$0xff]
        %v504 = vld [vmem:[%s432 + $0x150] sm:$0xff]
        %v505 = vld [vmem:[%s432 + $0x158] sm:$0xff]
        %v506 = vld [vmem:[%s432 + $0x160] sm:$0xff]
        %v507 = vld [vmem:[%s432 + $0x168] sm:$0xff]
        %v508 = vld [vmem:[%s432 + $0x170] sm:$0xff]
        %v509 = vld [vmem:[%s432 + $0x178] sm:$0xff]
        %v510 = vld [vmem:[%s432 + $0x180] sm:$0xff]
        %v511 = vld [vmem:[%s432 + $0x188] sm:$0xff]
        %v512 = vld [vmem:[%s432 + $0x190] sm:$0xff]
        %v513 = vld [vmem:[%s432 + $0x198] sm:$0xff]
        %v514 = vld [vmem:[%s432 + $0x1a0] sm:$0xff]
        %v515 = vld [vmem:[%s432 + $0x1a8] sm:$0xff]
        %v516 = vld [vmem:[%s432 + $0x1b0] sm:$0xff]
        %v517 = vld [vmem:[%s432 + $0x1b8] sm:$0xff]
        %v518 = vld [vmem:[%s432 + $0x1c0] sm:$0xff]
        %v519 = vld [vmem:[%s432 + $0x1c8] sm:$0xff]
        %v520 = vld [vmem:[%s432 + $0x1d0] sm:$0xff]
        %v521 = vld [vmem:[%s432 + $0x1d8] sm:$0xff]
        %v522 = vld [vmem:[%s432 + $0x1e0] sm:$0xff]
        %v523 = vld [vmem:[%s432 + $0x1e8] sm:$0xff]
        %v524 = vld [vmem:[%s432 + $0x1f0] sm:$0xff]
        %v525 = vld [vmem:[%s432 + $0x1f8] sm:$0xff]
        %v526 = vld [vmem:[%s2] sm:$0xff]
        %v527 = vld [vmem:[%s2 + $0x8] sm:$0xff]
        %v528 = vld [vmem:[%s2 + $0x10] sm:$0xff]
        %v529 = vld [vmem:[%s2 + $0x18] sm:$0xff]
        %531 = vset.pattern.permute.xlu0 0
        %532 = vperm.xlu0 %531, %v526
        %v533 = vpop.permute.xlu0 %532
        %536 = vset.pattern.permute.xlu0 0
        %537 = vperm.xlu0 %536, %v527
        %v538 = vpop.permute.xlu0 %537
        %541 = vset.pattern.permute.xlu0 0
        %542 = vperm.xlu0 %541, %v528
        %v543 = vpop.permute.xlu0 %542
        %546 = vset.pattern.permute.xlu0 0
        %547 = vperm.xlu0 %546, %v529
        %v548 = vpop.permute.xlu0 %547
        %v558 = vunpack.c.l.b16 %v454
        %v559 = vunpack.c.h.b16 %v454
        %v560 = vunpack.c.l.b16 %v455
        %v561 = vunpack.c.h.b16 %v455
        %v562 = vunpack.c.l.b16 %v456
        %v563 = vunpack.c.h.b16 %v456
        %v564 = vunpack.c.l.b16 %v457
        %v565 = vunpack.c.h.b16 %v457
        %v566 = vunpack.c.l.b16 %v458
        %v567 = vunpack.c.h.b16 %v458
        %v568 = vunpack.c.l.b16 %v459
        %v569 = vunpack.c.h.b16 %v459
        %v570 = vunpack.c.l.b16 %v460
        %v571 = vunpack.c.h.b16 %v460
        %v572 = vunpack.c.l.b16 %v461
        %v573 = vunpack.c.h.b16 %v461
        %v574 = vpack.c.b16 %v562, %v558
        %v575 = vpack.c.b16 %v563, %v559
        %v576 = vpack.c.b16 %v564, %v560
        %v577 = vpack.c.b16 %v565, %v561
        %v578 = vpack.c.b16 %v570, %v566
        %v579 = vpack.c.b16 %v571, %v567
        %v580 = vpack.c.b16 %v572, %v568
        %v581 = vpack.c.b16 %v573, %v569
        %v654 = vunpack.c.l.b16 %v462
        %v655 = vunpack.c.h.b16 %v462
        %v656 = vunpack.c.l.b16 %v463
        %v657 = vunpack.c.h.b16 %v463
        %v658 = vunpack.c.l.b16 %v464
        %v659 = vunpack.c.h.b16 %v464
        %v660 = vunpack.c.l.b16 %v465
        %v661 = vunpack.c.h.b16 %v465
        %v662 = vunpack.c.l.b16 %v466
        %v663 = vunpack.c.h.b16 %v466
        %v664 = vunpack.c.l.b16 %v467
        %v665 = vunpack.c.h.b16 %v467
        %v666 = vunpack.c.l.b16 %v468
        %v667 = vunpack.c.h.b16 %v468
        %v668 = vunpack.c.l.b16 %v469
        %v669 = vunpack.c.h.b16 %v469
        %v670 = vunpack.c.l.b16 %v470
        %v671 = vunpack.c.h.b16 %v470
        %v672 = vunpack.c.l.b16 %v471
        %v673 = vunpack.c.h.b16 %v471
        %v674 = vunpack.c.l.b16 %v472
        %v675 = vunpack.c.h.b16 %v472
        %v676 = vunpack.c.l.b16 %v473
        %v677 = vunpack.c.h.b16 %v473
        %v678 = vunpack.c.l.b16 %v474
        %v679 = vunpack.c.h.b16 %v474
        %v680 = vunpack.c.l.b16 %v475
        %v681 = vunpack.c.h.b16 %v475
        %v682 = vunpack.c.l.b16 %v476
        %v683 = vunpack.c.h.b16 %v476
        %v684 = vunpack.c.l.b16 %v477
        %v685 = vunpack.c.h.b16 %v477
        %v686 = vunpack.c.l.b16 %v478
        %v687 = vunpack.c.h.b16 %v478
        %v688 = vunpack.c.l.b16 %v479
        %v689 = vunpack.c.h.b16 %v479
        %v690 = vunpack.c.l.b16 %v480
        %v691 = vunpack.c.h.b16 %v480
        %v692 = vunpack.c.l.b16 %v481
        %v693 = vunpack.c.h.b16 %v481
        %v694 = vunpack.c.l.b16 %v482
        %v695 = vunpack.c.h.b16 %v482
        %v696 = vunpack.c.l.b16 %v483
        %v697 = vunpack.c.h.b16 %v483
        %v698 = vunpack.c.l.b16 %v484
        %v699 = vunpack.c.h.b16 %v484
        %v700 = vunpack.c.l.b16 %v485
        %v701 = vunpack.c.h.b16 %v485
        %v702 = vunpack.c.l.b16 %v486
        %v703 = vunpack.c.h.b16 %v486
        %v704 = vunpack.c.l.b16 %v487
        %v705 = vunpack.c.h.b16 %v487
        %v706 = vunpack.c.l.b16 %v488
        %v707 = vunpack.c.h.b16 %v488
        %v708 = vunpack.c.l.b16 %v489
        %v709 = vunpack.c.h.b16 %v489
        %v710 = vunpack.c.l.b16 %v490
        %v711 = vunpack.c.h.b16 %v490
        %v712 = vunpack.c.l.b16 %v491
        %v713 = vunpack.c.h.b16 %v491
        %v714 = vunpack.c.l.b16 %v492
        %v715 = vunpack.c.h.b16 %v492
        %v716 = vunpack.c.l.b16 %v493
        %v717 = vunpack.c.h.b16 %v493
        %v718 = vunpack.c.l.b16 %v494
        %v719 = vunpack.c.h.b16 %v494
        %v720 = vunpack.c.l.b16 %v495
        %v721 = vunpack.c.h.b16 %v495
        %v722 = vunpack.c.l.b16 %v496
        %v723 = vunpack.c.h.b16 %v496
        %v724 = vunpack.c.l.b16 %v497
        %v725 = vunpack.c.h.b16 %v497
        %v726 = vunpack.c.l.b16 %v498
        %v727 = vunpack.c.h.b16 %v498
        %v728 = vunpack.c.l.b16 %v499
        %v729 = vunpack.c.h.b16 %v499
        %v730 = vunpack.c.l.b16 %v500
        %v731 = vunpack.c.h.b16 %v500
        %v732 = vunpack.c.l.b16 %v501
        %v733 = vunpack.c.h.b16 %v501
        %v734 = vunpack.c.l.b16 %v502
        %v735 = vunpack.c.h.b16 %v502
        %v736 = vunpack.c.l.b16 %v503
        %v737 = vunpack.c.h.b16 %v503
        %v738 = vunpack.c.l.b16 %v504
        %v739 = vunpack.c.h.b16 %v504
        %v740 = vunpack.c.l.b16 %v505
        %v741 = vunpack.c.h.b16 %v505
        %v742 = vunpack.c.l.b16 %v506
        %v743 = vunpack.c.h.b16 %v506
        %v744 = vunpack.c.l.b16 %v507
        %v745 = vunpack.c.h.b16 %v507
        %v746 = vunpack.c.l.b16 %v508
        %v747 = vunpack.c.h.b16 %v508
        %v748 = vunpack.c.l.b16 %v509
        %v749 = vunpack.c.h.b16 %v509
        %v750 = vunpack.c.l.b16 %v510
        %v751 = vunpack.c.h.b16 %v510
        %v752 = vunpack.c.l.b16 %v511
        %v753 = vunpack.c.h.b16 %v511
        %v754 = vunpack.c.l.b16 %v512
        %v755 = vunpack.c.h.b16 %v512
        %v756 = vunpack.c.l.b16 %v513
        %v757 = vunpack.c.h.b16 %v513
        %v758 = vunpack.c.l.b16 %v514
        %v759 = vunpack.c.h.b16 %v514
        %v760 = vunpack.c.l.b16 %v515
        %v761 = vunpack.c.h.b16 %v515
        %v762 = vunpack.c.l.b16 %v516
        %v763 = vunpack.c.h.b16 %v516
        %v764 = vunpack.c.l.b16 %v517
        %v765 = vunpack.c.h.b16 %v517
        %v766 = vunpack.c.l.b16 %v518
        %v767 = vunpack.c.h.b16 %v518
        %v768 = vunpack.c.l.b16 %v519
        %v769 = vunpack.c.h.b16 %v519
        %v770 = vunpack.c.l.b16 %v520
        %v771 = vunpack.c.h.b16 %v520
        %v772 = vunpack.c.l.b16 %v521
        %v773 = vunpack.c.h.b16 %v521
        %v774 = vunpack.c.l.b16 %v522
        %v775 = vunpack.c.h.b16 %v522
        %v776 = vunpack.c.l.b16 %v523
        %v777 = vunpack.c.h.b16 %v523
        %v778 = vunpack.c.l.b16 %v524
        %v779 = vunpack.c.h.b16 %v524
        %v780 = vunpack.c.l.b16 %v525
        %v781 = vunpack.c.h.b16 %v525
        %v782 = vpack.c.b16 %v656, %v654
        %v783 = vpack.c.b16 %v657, %v655
        %v784 = vpack.c.b16 %v660, %v658
        %v785 = vpack.c.b16 %v661, %v659
        %v786 = vpack.c.b16 %v664, %v662
        %v787 = vpack.c.b16 %v665, %v663
        %v788 = vpack.c.b16 %v668, %v666
        %v789 = vpack.c.b16 %v669, %v667
        %v790 = vpack.c.b16 %v672, %v670
        %v791 = vpack.c.b16 %v673, %v671
        %v792 = vpack.c.b16 %v676, %v674
        %v793 = vpack.c.b16 %v677, %v675
        %v794 = vpack.c.b16 %v680, %v678
        %v795 = vpack.c.b16 %v681, %v679
        %v796 = vpack.c.b16 %v684, %v682
        %v797 = vpack.c.b16 %v685, %v683
        %v798 = vpack.c.b16 %v688, %v686
        %v799 = vpack.c.b16 %v689, %v687
        %v800 = vpack.c.b16 %v692, %v690
        %v801 = vpack.c.b16 %v693, %v691
        %v802 = vpack.c.b16 %v696, %v694
        %v803 = vpack.c.b16 %v697, %v695
        %v804 = vpack.c.b16 %v700, %v698
        %v805 = vpack.c.b16 %v701, %v699
        %v806 = vpack.c.b16 %v704, %v702
        %v807 = vpack.c.b16 %v705, %v703
        %v808 = vpack.c.b16 %v708, %v706
        %v809 = vpack.c.b16 %v709, %v707
        %v810 = vpack.c.b16 %v712, %v710
        %v811 = vpack.c.b16 %v713, %v711
        %v812 = vpack.c.b16 %v716, %v714
        %v813 = vpack.c.b16 %v717, %v715
        %v814 = vpack.c.b16 %v720, %v718
        %v815 = vpack.c.b16 %v721, %v719
        %v816 = vpack.c.b16 %v724, %v722
        %v817 = vpack.c.b16 %v725, %v723
        %v818 = vpack.c.b16 %v728, %v726
        %v819 = vpack.c.b16 %v729, %v727
        %v820 = vpack.c.b16 %v732, %v730
        %v821 = vpack.c.b16 %v733, %v731
        %v822 = vpack.c.b16 %v736, %v734
        %v823 = vpack.c.b16 %v737, %v735
        %v824 = vpack.c.b16 %v740, %v738
        %v825 = vpack.c.b16 %v741, %v739
        %v826 = vpack.c.b16 %v744, %v742
        %v827 = vpack.c.b16 %v745, %v743
        %v828 = vpack.c.b16 %v748, %v746
        %v829 = vpack.c.b16 %v749, %v747
        %v830 = vpack.c.b16 %v752, %v750
        %v831 = vpack.c.b16 %v753, %v751
        %v832 = vpack.c.b16 %v756, %v754
        %v833 = vpack.c.b16 %v757, %v755
        %v834 = vpack.c.b16 %v760, %v758
        %v835 = vpack.c.b16 %v761, %v759
        %v836 = vpack.c.b16 %v764, %v762
        %v837 = vpack.c.b16 %v765, %v763
        %v838 = vpack.c.b16 %v768, %v766
        %v839 = vpack.c.b16 %v769, %v767
        %v840 = vpack.c.b16 %v772, %v770
        %v841 = vpack.c.b16 %v773, %v771
        %v842 = vpack.c.b16 %v776, %v774
        %v843 = vpack.c.b16 %v777, %v775
        %v844 = vpack.c.b16 %v780, %v778
        %v845 = vpack.c.b16 %v781, %v779
        %910 = vmatprep.subr.bf16.mxu0 %v783
        %911 = vmatpush1.bf16.msra.mxu0 %v782
        %912 = vmatprep.subr.bf16.mxu0 %v785
        %913 = vmatpush1.bf16.msra.mxu0 %v784
        %914 = vmatprep.subr.bf16.mxu0 %v787
        %915 = vmatpush1.bf16.msra.mxu0 %v786
        %916 = vmatprep.subr.bf16.mxu0 %v789
        %917 = vmatpush1.bf16.msra.mxu0 %v788
        %918 = vmatprep.subr.bf16.mxu0 %v791
        %919 = vmatpush1.bf16.msra.mxu0 %v790
        %920 = vmatprep.subr.bf16.mxu0 %v793
        %921 = vmatpush1.bf16.msra.mxu0 %v792
        %922 = vmatprep.subr.bf16.mxu0 %v795
        %923 = vmatpush1.bf16.msra.mxu0 %v794
        %924 = vmatprep.subr.bf16.mxu0 %v797
        %925 = vmatpush1.bf16.msra.mxu0 %v796
        %926 = vmatprep.subr.bf16.mxu0 %v799
        %927 = vmatpush1.bf16.msra.mxu0 %v798
        %928 = vmatprep.subr.bf16.mxu0 %v801
        %929 = vmatpush1.bf16.msra.mxu0 %v800
        %930 = vmatprep.subr.bf16.mxu0 %v803
        %931 = vmatpush1.bf16.msra.mxu0 %v802
        %932 = vmatprep.subr.bf16.mxu0 %v805
        %933 = vmatpush1.bf16.msra.mxu0 %v804
        %934 = vmatprep.subr.bf16.mxu0 %v807
        %935 = vmatpush1.bf16.msra.mxu0 %v806
        %936 = vmatprep.subr.bf16.mxu0 %v809
        %937 = vmatpush1.bf16.msra.mxu0 %v808
        %938 = vmatprep.subr.bf16.mxu0 %v811
        %939 = vmatpush1.bf16.msra.mxu0 %v810
        %940 = vmatprep.subr.bf16.mxu0 %v813
        %941 = vmatpush1.bf16.msra.mxu0 %v812
        %942 = vmatprep.mubr.bf16.mxu0 %v575
        %943 = vmatmul.mubr.bf16.gmra.mrb[0].mxu0 %v574
        %v944 = vpop.f32.mrb[0].mxu0
        %v945 = vadd.f32 %v533, %v944
        %v946 = vpop.f32.mrb[0].mxu0
        %v947 = vadd.f32 %v533, %v946
        %v948 = vpop.f32.mrb[0].mxu0
        %v949 = vadd.f32 %v538, %v948
        %v950 = vpop.f32.mrb[0].mxu0
        %v951 = vadd.f32 %v538, %v950
        %952 = vmatprep.mubr.bf16.mxu0 %v579
        %953 = vmatmul.mubr.bf16.gmra.mrb[0].mxu0 %v578
        %v954 = vpop.f32.mrb[0].mxu0
        %v955 = vadd.f32 %v543, %v954
        %v956 = vpop.f32.mrb[0].mxu0
        %v957 = vadd.f32 %v543, %v956
        %v958 = vpop.f32.mrb[0].mxu0
        %v959 = vadd.f32 %v548, %v958
        %v960 = vpop.f32.mrb[0].mxu0
        %v961 = vadd.f32 %v548, %v960
        %962 = vdwg.mxu0
        %963 = vmatprep.subr.bf16.mxu0 %v815
        %964 = vmatpush1.bf16.msra.mxu0 %v814
        %965 = vmatprep.subr.bf16.mxu0 %v817
        %966 = vmatpush1.bf16.msra.mxu0 %v816
        %967 = vmatprep.subr.bf16.mxu0 %v819
        %968 = vmatpush1.bf16.msra.mxu0 %v818
        %969 = vmatprep.subr.bf16.mxu0 %v821
        %970 = vmatpush1.bf16.msra.mxu0 %v820
        %971 = vmatprep.subr.bf16.mxu0 %v823
        %972 = vmatpush1.bf16.msra.mxu0 %v822
        %973 = vmatprep.subr.bf16.mxu0 %v825
        %974 = vmatpush1.bf16.msra.mxu0 %v824
        %975 = vmatprep.subr.bf16.mxu0 %v827
        %976 = vmatpush1.bf16.msra.mxu0 %v826
        %977 = vmatprep.subr.bf16.mxu0 %v829
        %978 = vmatpush1.bf16.msra.mxu0 %v828
        %979 = vmatprep.subr.bf16.mxu0 %v831
        %980 = vmatpush1.bf16.msra.mxu0 %v830
        %981 = vmatprep.subr.bf16.mxu0 %v833
        %982 = vmatpush1.bf16.msra.mxu0 %v832
        %983 = vmatprep.subr.bf16.mxu0 %v835
        %984 = vmatpush1.bf16.msra.mxu0 %v834
        %985 = vmatprep.subr.bf16.mxu0 %v837
        %986 = vmatpush1.bf16.msra.mxu0 %v836
        %987 = vmatprep.subr.bf16.mxu0 %v839
        %988 = vmatpush1.bf16.msra.mxu0 %v838
        %989 = vmatprep.subr.bf16.mxu0 %v841
        %990 = vmatpush1.bf16.msra.mxu0 %v840
        %991 = vmatprep.subr.bf16.mxu0 %v843
        %992 = vmatpush1.bf16.msra.mxu0 %v842
        %993 = vmatprep.subr.bf16.mxu0 %v845
        %994 = vmatpush1.bf16.msra.mxu0 %v844
        %995 = vmatprep.mubr.bf16.mxu0 %v577
        %996 = vmatmul.mubr.bf16.gmra.mrb[0].mxu0 %v576
        %v997 = vpop.f32.mrb[0].mxu0
        %v998 = vadd.f32 %v945, %v997
        %v999 = vpop.f32.mrb[0].mxu0
        %v1000 = vadd.f32 %v947, %v999
        %v1001 = vpop.f32.mrb[0].mxu0
        %v1002 = vadd.f32 %v949, %v1001
        %v1003 = vpop.f32.mrb[0].mxu0
        %v1004 = vadd.f32 %v951, %v1003
        %1005 = vmatprep.mubr.bf16.mxu0 %v581
        %1006 = vmatmul.mubr.bf16.gmra.mrb[0].mxu0 %v580
        %v1007 = vpop.f32.mrb[0].mxu0
        %v1008 = vadd.f32 %v955, %v1007
        %v1009 = vpop.f32.mrb[0].mxu0
        %v1010 = vadd.f32 %v957, %v1009
        %v1011 = vpop.f32.mrb[0].mxu0
        %v1012 = vadd.f32 %v959, %v1011
        %v1013 = vpop.f32.mrb[0].mxu0
        %v1014 = vadd.f32 %v961, %v1013
        %1015 = vdwg.mxu0
        %v1016 = vmax.f32 %v998, 0.0
        %v1017 = vmax.f32 %v1000, 0.0
        %v1018 = vmax.f32 %v1002, 0.0
        %v1019 = vmax.f32 %v1004, 0.0
        %v1020 = vmax.f32 %v1008, 0.0
        %v1021 = vmax.f32 %v1010, 0.0
        %v1022 = vmax.f32 %v1012, 0.0
        %v1023 = vmax.f32 %v1014, 0.0
        %v1024 = vpack.c.bf16 %v1018, %v1016
        %v1025 = vpack.c.bf16 %v1019, %v1017
        %v1026 = vpack.c.bf16 %v1022, %v1020
        %v1027 = vpack.c.bf16 %v1023, %v1021
        %v1032 = vunpack.c.l.b16 %v1024
        %v1033 = vunpack.c.l.b16 %v1025
        %v1034 = vunpack.c.h.b16 %v1024
        %v1035 = vunpack.c.h.b16 %v1025
        %v1036 = vunpack.c.l.b16 %v1026
        %v1037 = vunpack.c.l.b16 %v1027
        %v1038 = vunpack.c.h.b16 %v1026
        %v1039 = vunpack.c.h.b16 %v1027
        %v1040 = vpack.c.b16 %v1033, %v1032
        %v1041 = vpack.c.b16 %v1035, %v1034
        %v1042 = vpack.c.b16 %v1037, %v1036
        %v1043 = vpack.c.b16 %v1039, %v1038
        %1048 = vst [vmem:[%s451] sm:$0xff] %v1040
        %1049 = vst [vmem:[%s451 + $0x8] sm:$0xff] %v1041
        %1050 = vst [vmem:[%s451 + $0x10] sm:$0xff] %v1042
        %1051 = vst [vmem:[%s451 + $0x18] sm:$0xff] %v1043
        %s1052 = sand.u32 %s90, 1
        %s1053 = sand.u32 %s90, 1
        %s1054 = smul.addr %s1053, 32
        %s1055 = scalar_lea.vmem [#allocation3], %s1054
        // Predicated region
        $region71: #{beta_tc_vae_forward.10} parent=65 // pred_check
          %p1056 = pneg %p100
        $region72: #{beta_tc_vae_forward.10} parent=65 // pred_check_branch
          %1058 = sbr.rel (%p1056) target = $region74
        $region73: #{beta_tc_vae_forward.10} parent=65 // pred_region
          %s1059 = smul.u32 2, %s14
          %s1060 = smul.addr %s1059, 4
          %s1061 = scalar_lea.vmem %s3, %s1060
          // Predicated region
          $region75: #{beta_tc_vae_forward.10} parent=73 // pred_check
            _
          $region76: #{beta_tc_vae_forward.10} parent=73 // pred_check_branch
            %1063 = sbr.rel (0) target = $region78
          $region77: #{beta_tc_vae_forward.10} parent=73 // pred_region
            // Predicated region
            $region79: #{beta_tc_vae_forward.10} parent=77 // pred_check
              _
            $region80: #{beta_tc_vae_forward.10} parent=77 // pred_check_branch
              %1065 = sbr.rel (0) target = $region82
            $region81: #{beta_tc_vae_forward.10} parent=77 // pred_region
              // Predicated region
              $region94: #{beta_tc_vae_forward.10} parent=81 // pred_check
                _
              $region95: #{beta_tc_vae_forward.10} parent=81 // pred_check_branch
                %1086 = sbr.rel (0) target = $region97
              $region96: #{beta_tc_vae_forward.10} parent=81 // pred_region
                loop: start=0, step=1, limit=1
                $region98: #{beta_tc_vae_forward.10} parent=96 // loop_pre_header
                  _
                $region99: #{beta_tc_vae_forward.10} parent=96 // loop_header
                  %s1088 = sphi 0, %s1092
                  %p1089 = scmp.ge.s32.totalorder %s1088, 1
                  %s1093 = sphi %s1055, %s1055
                  %s1094 = sphi %s1061, %s1061
                $region100: #{beta_tc_vae_forward.10} parent=96 // loop_header_branch
                  %1091 = sbr.rel (%p1089) target = $region104
                $region101: #{beta_tc_vae_forward.10} parent=96 // loop_body
                  %v1095 = vld [vmem:[%s1093] sm:$0xff]
                  %1096 = vst [vmem:[%s1094] sm:$0xff] %v1095
                  %v1097 = vld [vmem:[%s1093 + $0x8] sm:$0xff]
                  %1098 = vst [vmem:[%s1094 + $0x10] sm:$0xff] %v1097
                  %v1099 = vld [vmem:[%s1093 + $0x10] sm:$0xff]
                  %1100 = vst [vmem:[%s1094 + $0x20] sm:$0xff] %v1099
                  %v1101 = vld [vmem:[%s1093 + $0x18] sm:$0xff]
                  %1102 = vst [vmem:[%s1094 + $0x30] sm:$0xff] %v1101
                $region102: #{beta_tc_vae_forward.10} parent=96 // loop_footer
                  %s1092 = sadd.s32 1, %s1088
                $region103: #{beta_tc_vae_forward.10} parent=96 // loop_footer_branch
                  %1087 = sbr.rel target = $region99
                $region104: #{beta_tc_vae_forward.10} parent=96 // loop_exit
                  _
              $region97: #{beta_tc_vae_forward.10} parent=81 // pred_fallthru
                _
              // Predicated region
              $region105: #{beta_tc_vae_forward.10} parent=81 // pred_check
                _
              $region106: #{beta_tc_vae_forward.10} parent=81 // pred_check_branch
                %1104 = sbr.rel target = $region108
              $region107: #{beta_tc_vae_forward.10} parent=81 // pred_region
                _
              $region108: #{beta_tc_vae_forward.10} parent=81 // pred_fallthru
                _
            $region82: #{beta_tc_vae_forward.10} parent=77 // pred_fallthru
              _
            // Predicated region
            $region83: #{beta_tc_vae_forward.10} parent=77 // pred_check
              _
            $region84: #{beta_tc_vae_forward.10} parent=77 // pred_check_branch
              %1067 = sbr.rel target = $region86
            $region85: #{beta_tc_vae_forward.10} parent=77 // pred_region
              loop: start=0, step=1, limit=1
              $region87: #{beta_tc_vae_forward.10} parent=85 // loop_pre_header
                _
              $region88: #{beta_tc_vae_forward.10} parent=85 // loop_header
                %s1070 = sphi 0, %s1074
                %p1071 = scmp.ge.s32.totalorder %s1070, 1
                %s1075 = sphi %s1055, %s1055
                %s1076 = sphi %s1061, %s1061
              $region89: #{beta_tc_vae_forward.10} parent=85 // loop_header_branch
                %1073 = sbr.rel (%p1071) target = $region93
              $region90: #{beta_tc_vae_forward.10} parent=85 // loop_body
                %v1077 = vld [vmem:[%s1075] sm:$0xff]
                %1078 = vst [vmem:[%s1076] sm:$0xff] %v1077
                %v1079 = vld [vmem:[%s1075 + $0x8] sm:$0xff]
                %1080 = vst [vmem:[%s1076 + $0x10] sm:$0xff] %v1079
                %v1081 = vld [vmem:[%s1075 + $0x10] sm:$0xff]
                %1082 = vst [vmem:[%s1076 + $0x20] sm:$0xff] %v1081
                %v1083 = vld [vmem:[%s1075 + $0x18] sm:$0xff]
                %1084 = vst [vmem:[%s1076 + $0x30] sm:$0xff] %v1083
              $region91: #{beta_tc_vae_forward.10} parent=85 // loop_footer
                %s1074 = sadd.s32 1, %s1070
              $region92: #{beta_tc_vae_forward.10} parent=85 // loop_footer_branch
                %1069 = sbr.rel target = $region88
              $region93: #{beta_tc_vae_forward.10} parent=85 // loop_exit
                _
            $region86: #{beta_tc_vae_forward.10} parent=77 // pred_fallthru
              _
          $region78: #{beta_tc_vae_forward.10} parent=73 // pred_fallthru
            _
          %1105 = vnop
        $region74: #{beta_tc_vae_forward.10} parent=65 // pred_fallthru
          _
      $region66: #{beta_tc_vae_forward.10} parent=5 // pred_fallthru
        _
      %p1106 = scmp.le.s32.totalorder 2, %s9
      // Predicated region
      $region109: #{beta_tc_vae_forward.10} parent=5 // pred_check
        %p1107 = pneg %p1106
      $region110: #{beta_tc_vae_forward.10} parent=5 // pred_check_branch
        %1109 = sbr.rel (%p1107) target = $region112
      $region111: #{beta_tc_vae_forward.10} parent=5 // pred_region
        %s1110 = ssub.s32 %s9, 2
        // Predicated region
        $region113: #{beta_tc_vae_forward.10} parent=111 // pred_check
          %p1111 = pneg %p106
        $region114: #{beta_tc_vae_forward.10} parent=111 // pred_check_branch
          %1113 = sbr.rel (%p1111) target = $region116
        $region115: #{beta_tc_vae_forward.10} parent=111 // pred_region
          %s1114 = sand.u32 %s91, 1
          %s1115 = sand.u32 %s91, 1
          %s1116 = smul.addr %s1115, 32
          %s1117 = scalar_lea.vmem [#allocation3], %s1116
        $region116: #{beta_tc_vae_forward.10} parent=111 // pred_fallthru
          _
      $region112: #{beta_tc_vae_forward.10} parent=5 // pred_fallthru
        _
    $region6: #{beta_tc_vae_forward.10} parent=1 // loop_footer
      %s13 = sadd.s32 1, %s9
    $region7: #{beta_tc_vae_forward.10} parent=1 // loop_footer_branch
      %8 = sbr.rel target = $region3
    $region8: #{beta_tc_vae_forward.10} parent=1 // loop_exit
      _

// kernel: beta_tc_vae_forward.11
$region0: #{beta_tc_vae_forward.11}
  #allocation0 [shape = 'u32[]', space=smem, size = 0x4, offset = 0x4, fixed_abs, tag = 'smem constant byte address 0x4 - core index']
  #allocation1 [shape = 'u32[144,128]{1,0:T(1,128)}', space=vmem, size = 0x12000, scoped, tag = 'internal scratch']
  %s0 = inlined_call_operand.vmem [shape: bf16[64,512], index: 0, kind: input, shape index: {}]
  %s1 = inlined_call_operand.vmem [shape: bf16[512,128], index: 1, kind: input, shape index: {}]
  %s2 = inlined_call_operand.vmem [shape: f32[64,1], index: 2, kind: input, shape index: {}]
  %s3 = inlined_call_operand.vmem [shape: bf16[64,128], index: 3, kind: output, shape index: {}]
  %s4 = sld [smem:[#allocation0]]
  $region22: #{beta_tc_vae_forward.11} parent=0
    _
  %s6 = ssub.s32 1, %s4
  %s7 = scalar_select 0, %s6, %s4
  // Predicated region
  $region2: #{beta_tc_vae_forward.11} parent=0 // pred_check
    _
  $region3: #{beta_tc_vae_forward.11} parent=0 // pred_check_branch
    %9 = sbr.rel (0) target = $region5
  $region4: #{beta_tc_vae_forward.11} parent=0 // pred_region
    _
  $region5: #{beta_tc_vae_forward.11} parent=0 // pred_fallthru
    _
  // Predicated region
  $region6: #{beta_tc_vae_forward.11} parent=0 // pred_check
    _
  $region7: #{beta_tc_vae_forward.11} parent=0 // pred_check_branch
    %11 = sbr.rel (0) target = $region9
  $region8: #{beta_tc_vae_forward.11} parent=0 // pred_region
    _
  $region9: #{beta_tc_vae_forward.11} parent=0 // pred_fallthru
    _
  // Predicated region
  $region10: #{beta_tc_vae_forward.11} parent=0 // pred_check
    _
  $region11: #{beta_tc_vae_forward.11} parent=0 // pred_check_branch
    %13 = sbr.rel (0) target = $region13
  $region12: #{beta_tc_vae_forward.11} parent=0 // pred_region
    _
  $region13: #{beta_tc_vae_forward.11} parent=0 // pred_fallthru
    _
  %v15 = vld [vmem:[%s0] sm:$0xff]
  %v16 = vld [vmem:[%s0 + $0x8] sm:$0xff]
  %v17 = vld [vmem:[%s0 + $0x10] sm:$0xff]
  %v18 = vld [vmem:[%s0 + $0x18] sm:$0xff]
  %v19 = vld [vmem:[%s0 + $0x20] sm:$0xff]
  %v20 = vld [vmem:[%s0 + $0x28] sm:$0xff]
  %v21 = vld [vmem:[%s0 + $0x30] sm:$0xff]
  %v22 = vld [vmem:[%s0 + $0x38] sm:$0xff]
  %v23 = vld [vmem:[%s0 + $0x40] sm:$0xff]
  %v24 = vld [vmem:[%s0 + $0x48] sm:$0xff]
  %v25 = vld [vmem:[%s0 + $0x50] sm:$0xff]
  %v26 = vld [vmem:[%s0 + $0x58] sm:$0xff]
  %v27 = vld [vmem:[%s0 + $0x60] sm:$0xff]
  %v28 = vld [vmem:[%s0 + $0x68] sm:$0xff]
  %v29 = vld [vmem:[%s0 + $0x70] sm:$0xff]
  %v30 = vld [vmem:[%s0 + $0x78] sm:$0xff]
  %v31 = vld [vmem:[%s1] sm:$0xf]
  %v32 = vld [vmem:[%s1 + $0x4] sm:$0xf]
  %v33 = vld [vmem:[%s1 + $0x8] sm:$0xf]
  %v34 = vld [vmem:[%s1 + $0xc] sm:$0xf]
  %v35 = vld [vmem:[%s1 + $0x10] sm:$0xf]
  %v36 = vld [vmem:[%s1 + $0x14] sm:$0xf]
  %v37 = vld [vmem:[%s1 + $0x18] sm:$0xf]
  %v38 = vld [vmem:[%s1 + $0x1c] sm:$0xf]
  %v39 = vld [vmem:[%s1 + $0x20] sm:$0xf]
  %v40 = vld [vmem:[%s1 + $0x24] sm:$0xf]
  %v41 = vld [vmem:[%s1 + $0x28] sm:$0xf]
  %v42 = vld [vmem:[%s1 + $0x2c] sm:$0xf]
  %v43 = vld [vmem:[%s1 + $0x30] sm:$0xf]
  %v44 = vld [vmem:[%s1 + $0x34] sm:$0xf]
  %v45 = vld [vmem:[%s1 + $0x38] sm:$0xf]
  %v46 = vld [vmem:[%s1 + $0x3c] sm:$0xf]
  %v47 = vld [vmem:[%s1 + $0x40] sm:$0xf]
  %v48 = vld [vmem:[%s1 + $0x44] sm:$0xf]
  %v49 = vld [vmem:[%s1 + $0x48] sm:$0xf]
  %v50 = vld [vmem:[%s1 + $0x4c] sm:$0xf]
  %v51 = vld [vmem:[%s1 + $0x50] sm:$0xf]
  %v52 = vld [vmem:[%s1 + $0x54] sm:$0xf]
  %v53 = vld [vmem:[%s1 + $0x58] sm:$0xf]
  %v54 = vld [vmem:[%s1 + $0x5c] sm:$0xf]
  %v55 = vld [vmem:[%s1 + $0x60] sm:$0xf]
  %v56 = vld [vmem:[%s1 + $0x64] sm:$0xf]
  %v57 = vld [vmem:[%s1 + $0x68] sm:$0xf]
  %v58 = vld [vmem:[%s1 + $0x6c] sm:$0xf]
  %v59 = vld [vmem:[%s1 + $0x70] sm:$0xf]
  %v60 = vld [vmem:[%s1 + $0x74] sm:$0xf]
  %v61 = vld [vmem:[%s1 + $0x78] sm:$0xf]
  %v62 = vld [vmem:[%s1 + $0x7c] sm:$0xf]
  %v63 = vld [vmem:[%s1 + $0x80] sm:$0xf]
  %v64 = vld [vmem:[%s1 + $0x84] sm:$0xf]
  %v65 = vld [vmem:[%s1 + $0x88] sm:$0xf]
  %v66 = vld [vmem:[%s1 + $0x8c] sm:$0xf]
  %v67 = vld [vmem:[%s1 + $0x90] sm:$0xf]
  %v68 = vld [vmem:[%s1 + $0x94] sm:$0xf]
  %v69 = vld [vmem:[%s1 + $0x98] sm:$0xf]
  %v70 = vld [vmem:[%s1 + $0x9c] sm:$0xf]
  %v71 = vld [vmem:[%s1 + $0xa0] sm:$0xf]
  %v72 = vld [vmem:[%s1 + $0xa4] sm:$0xf]
  %v73 = vld [vmem:[%s1 + $0xa8] sm:$0xf]
  %v74 = vld [vmem:[%s1 + $0xac] sm:$0xf]
  %v75 = vld [vmem:[%s1 + $0xb0] sm:$0xf]
  %v76 = vld [vmem:[%s1 + $0xb4] sm:$0xf]
  %v77 = vld [vmem:[%s1 + $0xb8] sm:$0xf]
  %v78 = vld [vmem:[%s1 + $0xbc] sm:$0xf]
  %v79 = vld [vmem:[%s1 + $0xc0] sm:$0xf]
  %v80 = vld [vmem:[%s1 + $0xc4] sm:$0xf]
  %v81 = vld [vmem:[%s1 + $0xc8] sm:$0xf]
  %v82 = vld [vmem:[%s1 + $0xcc] sm:$0xf]
  %v83 = vld [vmem:[%s1 + $0xd0] sm:$0xf]
  %v84 = vld [vmem:[%s1 + $0xd4] sm:$0xf]
  %v85 = vld [vmem:[%s1 + $0xd8] sm:$0xf]
  %v86 = vld [vmem:[%s1 + $0xdc] sm:$0xf]
  %v87 = vld [vmem:[%s1 + $0xe0] sm:$0xf]
  %v88 = vld [vmem:[%s1 + $0xe4] sm:$0xf]
  %v89 = vld [vmem:[%s1 + $0xe8] sm:$0xf]
  %v90 = vld [vmem:[%s1 + $0xec] sm:$0xf]
  %v91 = vld [vmem:[%s1 + $0xf0] sm:$0xf]
  %v92 = vld [vmem:[%s1 + $0xf4] sm:$0xf]
  %v93 = vld [vmem:[%s1 + $0xf8] sm:$0xf]
  %v94 = vld [vmem:[%s1 + $0xfc] sm:$0xf]
  %v95 = vld [vmem:[%s2] sm:$0xff]
  %v96 = vld [vmem:[%s2 + $0x8] sm:$0xff]
  %v97 = vld [vmem:[%s2 + $0x10] sm:$0xff]
  %v98 = vld [vmem:[%s2 + $0x18] sm:$0xff]
  %v99 = vld [vmem:[%s2 + $0x20] sm:$0xff]
  %v100 = vld [vmem:[%s2 + $0x28] sm:$0xff]
  %v101 = vld [vmem:[%s2 + $0x30] sm:$0xff]
  %v102 = vld [vmem:[%s2 + $0x38] sm:$0xff]
  %104 = vset.pattern.permute.xlu0 0
  %105 = vperm.xlu0 %104, %v95
  %v106 = vpop.permute.xlu0 %105
  %109 = vset.pattern.permute.xlu0 0
  %110 = vperm.xlu0 %109, %v96
  %v111 = vpop.permute.xlu0 %110
  %114 = vset.pattern.permute.xlu0 0
  %115 = vperm.xlu0 %114, %v97
  %v116 = vpop.permute.xlu0 %115
  %119 = vset.pattern.permute.xlu0 0
  %120 = vperm.xlu0 %119, %v98
  %v121 = vpop.permute.xlu0 %120
  %124 = vset.pattern.permute.xlu0 0
  %125 = vperm.xlu0 %124, %v99
  %v126 = vpop.permute.xlu0 %125
  %129 = vset.pattern.permute.xlu0 0
  %130 = vperm.xlu0 %129, %v100
  %v131 = vpop.permute.xlu0 %130
  %134 = vset.pattern.permute.xlu0 0
  %135 = vperm.xlu0 %134, %v101
  %v136 = vpop.permute.xlu0 %135
  %139 = vset.pattern.permute.xlu0 0
  %140 = vperm.xlu0 %139, %v102
  %v141 = vpop.permute.xlu0 %140
  %v159 = vunpack.c.l.b16 %v15
  %v160 = vunpack.c.h.b16 %v15
  %v161 = vunpack.c.l.b16 %v16
  %v162 = vunpack.c.h.b16 %v16
  %v163 = vunpack.c.l.b16 %v17
  %v164 = vunpack.c.h.b16 %v17
  %v165 = vunpack.c.l.b16 %v18
  %v166 = vunpack.c.h.b16 %v18
  %v167 = vunpack.c.l.b16 %v19
  %v168 = vunpack.c.h.b16 %v19
  %v169 = vunpack.c.l.b16 %v20
  %v170 = vunpack.c.h.b16 %v20
  %v171 = vunpack.c.l.b16 %v21
  %v172 = vunpack.c.h.b16 %v21
  %v173 = vunpack.c.l.b16 %v22
  %v174 = vunpack.c.h.b16 %v22
  %v175 = vunpack.c.l.b16 %v23
  %v176 = vunpack.c.h.b16 %v23
  %v177 = vunpack.c.l.b16 %v24
  %v178 = vunpack.c.h.b16 %v24
  %v179 = vunpack.c.l.b16 %v25
  %v180 = vunpack.c.h.b16 %v25
  %v181 = vunpack.c.l.b16 %v26
  %v182 = vunpack.c.h.b16 %v26
  %v183 = vunpack.c.l.b16 %v27
  %v184 = vunpack.c.h.b16 %v27
  %v185 = vunpack.c.l.b16 %v28
  %v186 = vunpack.c.h.b16 %v28
  %v187 = vunpack.c.l.b16 %v29
  %v188 = vunpack.c.h.b16 %v29
  %v189 = vunpack.c.l.b16 %v30
  %v190 = vunpack.c.h.b16 %v30
  %v191 = vpack.c.b16 %v163, %v159
  %v192 = vpack.c.b16 %v164, %v160
  %v193 = vpack.c.b16 %v165, %v161
  %v194 = vpack.c.b16 %v166, %v162
  %v195 = vpack.c.b16 %v171, %v167
  %v196 = vpack.c.b16 %v172, %v168
  %v197 = vpack.c.b16 %v173, %v169
  %v198 = vpack.c.b16 %v174, %v170
  %v199 = vpack.c.b16 %v179, %v175
  %v200 = vpack.c.b16 %v180, %v176
  %v201 = vpack.c.b16 %v181, %v177
  %v202 = vpack.c.b16 %v182, %v178
  %v203 = vpack.c.b16 %v187, %v183
  %v204 = vpack.c.b16 %v188, %v184
  %v205 = vpack.c.b16 %v189, %v185
  %v206 = vpack.c.b16 %v190, %v186
  %v287 = vunpack.c.l.b16 %v31
  %v288 = vunpack.c.l.b16 %v32
  %v289 = vunpack.c.l.b16 %v33
  %v290 = vunpack.c.l.b16 %v34
  %v291 = vunpack.c.l.b16 %v35
  %v292 = vunpack.c.l.b16 %v36
  %v293 = vunpack.c.l.b16 %v37
  %v294 = vunpack.c.l.b16 %v38
  %v295 = vunpack.c.l.b16 %v39
  %v296 = vunpack.c.l.b16 %v40
  %v297 = vunpack.c.l.b16 %v41
  %v298 = vunpack.c.l.b16 %v42
  %v299 = vunpack.c.l.b16 %v43
  %v300 = vunpack.c.l.b16 %v44
  %v301 = vunpack.c.l.b16 %v45
  %v302 = vunpack.c.l.b16 %v46
  %v303 = vunpack.c.l.b16 %v47
  %v304 = vunpack.c.l.b16 %v48
  %v305 = vunpack.c.l.b16 %v49
  %v306 = vunpack.c.l.b16 %v50
  %v307 = vunpack.c.l.b16 %v51
  %v308 = vunpack.c.l.b16 %v52
  %v309 = vunpack.c.l.b16 %v53
  %v310 = vunpack.c.l.b16 %v54
  %v311 = vunpack.c.l.b16 %v55
  %v312 = vunpack.c.l.b16 %v56
  %v313 = vunpack.c.l.b16 %v57
  %v314 = vunpack.c.l.b16 %v58
  %v315 = vunpack.c.l.b16 %v59
  %v316 = vunpack.c.l.b16 %v60
  %v317 = vunpack.c.l.b16 %v61
  %v318 = vunpack.c.l.b16 %v62
  %v319 = vunpack.c.l.b16 %v63
  %v320 = vunpack.c.l.b16 %v64
  %v321 = vunpack.c.l.b16 %v65
  %v322 = vunpack.c.l.b16 %v66
  %v323 = vunpack.c.l.b16 %v67
  %v324 = vunpack.c.l.b16 %v68
  %v325 = vunpack.c.l.b16 %v69
  %v326 = vunpack.c.l.b16 %v70
  %v327 = vunpack.c.l.b16 %v71
  %v328 = vunpack.c.l.b16 %v72
  %v329 = vunpack.c.l.b16 %v73
  %v330 = vunpack.c.l.b16 %v74
  %v331 = vunpack.c.l.b16 %v75
  %v332 = vunpack.c.l.b16 %v76
  %v333 = vunpack.c.l.b16 %v77
  %v334 = vunpack.c.l.b16 %v78
  %v335 = vunpack.c.l.b16 %v79
  %v336 = vunpack.c.l.b16 %v80
  %v337 = vunpack.c.l.b16 %v81
  %v338 = vunpack.c.l.b16 %v82
  %v339 = vunpack.c.l.b16 %v83
  %v340 = vunpack.c.l.b16 %v84
  %v341 = vunpack.c.l.b16 %v85
  %v342 = vunpack.c.l.b16 %v86
  %v343 = vunpack.c.l.b16 %v87
  %v344 = vunpack.c.l.b16 %v88
  %v345 = vunpack.c.l.b16 %v89
  %v346 = vunpack.c.l.b16 %v90
  %v347 = vunpack.c.l.b16 %v91
  %v348 = vunpack.c.l.b16 %v92
  %v349 = vunpack.c.l.b16 %v93
  %v350 = vunpack.c.l.b16 %v94
  %v351 = vpack.c.b16 %v288, %v287
  %v352 = vpack.c.b16 %v290, %v289
  %v353 = vpack.c.b16 %v292, %v291
  %v354 = vpack.c.b16 %v294, %v293
  %v355 = vpack.c.b16 %v296, %v295
  %v356 = vpack.c.b16 %v298, %v297
  %v357 = vpack.c.b16 %v300, %v299
  %v358 = vpack.c.b16 %v302, %v301
  %v359 = vpack.c.b16 %v304, %v303
  %v360 = vpack.c.b16 %v306, %v305
  %v361 = vpack.c.b16 %v308, %v307
  %v362 = vpack.c.b16 %v310, %v309
  %v363 = vpack.c.b16 %v312, %v311
  %v364 = vpack.c.b16 %v314, %v313
  %v365 = vpack.c.b16 %v316, %v315
  %v366 = vpack.c.b16 %v318, %v317
  %v367 = vpack.c.b16 %v320, %v319
  %v368 = vpack.c.b16 %v322, %v321
  %v369 = vpack.c.b16 %v324, %v323
  %v370 = vpack.c.b16 %v326, %v325
  %v371 = vpack.c.b16 %v328, %v327
  %v372 = vpack.c.b16 %v330, %v329
  %v373 = vpack.c.b16 %v332, %v331
  %v374 = vpack.c.b16 %v334, %v333
  %v375 = vpack.c.b16 %v336, %v335
  %v376 = vpack.c.b16 %v338, %v337
  %v377 = vpack.c.b16 %v340, %v339
  %v378 = vpack.c.b16 %v342, %v341
  %v379 = vpack.c.b16 %v344, %v343
  %v380 = vpack.c.b16 %v346, %v345
  %v381 = vpack.c.b16 %v348, %v347
  %v382 = vpack.c.b16 %v350, %v349
  %415 = vmatprep.subr.bf16.mxu0 0
  %416 = vmatpush1.bf16.msra.mxu0 %v351
  %417 = vmatprep.subr.bf16.mxu0 0
  %418 = vmatpush1.bf16.msra.mxu0 %v352
  %419 = vmatprep.subr.bf16.mxu0 0
  %420 = vmatpush1.bf16.msra.mxu0 %v353
  %421 = vmatprep.subr.bf16.mxu0 0
  %422 = vmatpush1.bf16.msra.mxu0 %v354
  %423 = vmatprep.subr.bf16.mxu0 0
  %424 = vmatpush1.bf16.msra.mxu0 %v355
  %425 = vmatprep.subr.bf16.mxu0 0
  %426 = vmatpush1.bf16.msra.mxu0 %v356
  %427 = vmatprep.subr.bf16.mxu0 0
  %428 = vmatpush1.bf16.msra.mxu0 %v357
  %429 = vmatprep.subr.bf16.mxu0 0
  %430 = vmatpush1.bf16.msra.mxu0 %v358
  %431 = vmatprep.subr.bf16.mxu0 0
  %432 = vmatpush1.bf16.msra.mxu0 %v359
  %433 = vmatprep.subr.bf16.mxu0 0
  %434 = vmatpush1.bf16.msra.mxu0 %v360
  %435 = vmatprep.subr.bf16.mxu0 0
  %436 = vmatpush1.bf16.msra.mxu0 %v361
  %437 = vmatprep.subr.bf16.mxu0 0
  %438 = vmatpush1.bf16.msra.mxu0 %v362
  %439 = vmatprep.subr.bf16.mxu0 0
  %440 = vmatpush1.bf16.msra.mxu0 %v363
  %441 = vmatprep.subr.bf16.mxu0 0
  %442 = vmatpush1.bf16.msra.mxu0 %v364
  %443 = vmatprep.subr.bf16.mxu0 0
  %444 = vmatpush1.bf16.msra.mxu0 %v365
  %445 = vmatprep.subr.bf16.mxu0 0
  %446 = vmatpush1.bf16.msra.mxu0 %v366
  %447 = vmatprep.mubr.bf16.mxu0 %v192
  %448 = vmatmul.mubr.bf16.gmra.mrb[0].mxu0 %v191
  %v449 = vpop.f32.mrb[0].mxu0
  %v450 = vadd.f32 %v106, %v449
  %v451 = vpop.f32.mrb[0].mxu0
  %v452 = vpop.f32.mrb[0].mxu0
  %v453 = vadd.f32 %v111, %v452
  %v454 = vpop.f32.mrb[0].mxu0
  %455 = vmatprep.mubr.bf16.mxu0 %v196
  %456 = vmatmul.mubr.bf16.gmra.mrb[0].mxu0 %v195
  %v457 = vpop.f32.mrb[0].mxu0
  %v458 = vadd.f32 %v116, %v457
  %v459 = vpop.f32.mrb[0].mxu0
  %v460 = vpop.f32.mrb[0].mxu0
  %v461 = vadd.f32 %v121, %v460
  %v462 = vpop.f32.mrb[0].mxu0
  %463 = vmatprep.mubr.bf16.mxu0 %v200
  %464 = vmatmul.mubr.bf16.gmra.mrb[0].mxu0 %v199
  %v465 = vpop.f32.mrb[0].mxu0
  %v466 = vadd.f32 %v126, %v465
  %v467 = vpop.f32.mrb[0].mxu0
  %v468 = vpop.f32.mrb[0].mxu0
  %v469 = vadd.f32 %v131, %v468
  %v470 = vpop.f32.mrb[0].mxu0
  %471 = vmatprep.mubr.bf16.mxu0 %v204
  %472 = vmatmul.mubr.bf16.gmra.mrb[0].mxu0 %v203
  %v473 = vpop.f32.mrb[0].mxu0
  %v474 = vadd.f32 %v136, %v473
  %v475 = vpop.f32.mrb[0].mxu0
  %v476 = vpop.f32.mrb[0].mxu0
  %v477 = vadd.f32 %v141, %v476
  %v478 = vpop.f32.mrb[0].mxu0
  %479 = vdwg.mxu0
  %480 = vmatprep.subr.bf16.mxu0 0
  %481 = vmatpush1.bf16.msra.mxu0 %v367
  %482 = vmatprep.subr.bf16.mxu0 0
  %483 = vmatpush1.bf16.msra.mxu0 %v368
  %484 = vmatprep.subr.bf16.mxu0 0
  %485 = vmatpush1.bf16.msra.mxu0 %v369
  %486 = vmatprep.subr.bf16.mxu0 0
  %487 = vmatpush1.bf16.msra.mxu0 %v370
  %488 = vmatprep.subr.bf16.mxu0 0
  %489 = vmatpush1.bf16.msra.mxu0 %v371
  %490 = vmatprep.subr.bf16.mxu0 0
  %491 = vmatpush1.bf16.msra.mxu0 %v372
  %492 = vmatprep.subr.bf16.mxu0 0
  %493 = vmatpush1.bf16.msra.mxu0 %v373
  %494 = vmatprep.subr.bf16.mxu0 0
  %495 = vmatpush1.bf16.msra.mxu0 %v374
  %496 = vmatprep.subr.bf16.mxu0 0
  %497 = vmatpush1.bf16.msra.mxu0 %v375
  %498 = vmatprep.subr.bf16.mxu0 0
  %499 = vmatpush1.bf16.msra.mxu0 %v376
  %500 = vmatprep.subr.bf16.mxu0 0
  %501 = vmatpush1.bf16.msra.mxu0 %v377
  %502 = vmatprep.subr.bf16.mxu0 0
  %503 = vmatpush1.bf16.msra.mxu0 %v378
  %504 = vmatprep.subr.bf16.mxu0 0
  %505 = vmatpush1.bf16.msra.mxu0 %v379
  %506 = vmatprep.subr.bf16.mxu0 0
  %507 = vmatpush1.bf16.msra.mxu0 %v380
  %508 = vmatprep.subr.bf16.mxu0 0
  %509 = vmatpush1.bf16.msra.mxu0 %v381
  %510 = vmatprep.subr.bf16.mxu0 0
  %511 = vmatpush1.bf16.msra.mxu0 %v382
  %512 = vmatprep.mubr.bf16.mxu0 %v194
  %513 = vmatmul.mubr.bf16.gmra.mrb[0].mxu0 %v193
  %v514 = vpop.f32.mrb[0].mxu0
  %v515 = vadd.f32 %v450, %v514
  %v516 = vpop.f32.mrb[0].mxu0
  %v517 = vpop.f32.mrb[0].mxu0
  %v518 = vadd.f32 %v453, %v517
  %v519 = vpop.f32.mrb[0].mxu0
  %520 = vmatprep.mubr.bf16.mxu0 %v198
  %521 = vmatmul.mubr.bf16.gmra.mrb[0].mxu0 %v197
  %v522 = vpop.f32.mrb[0].mxu0
  %v523 = vadd.f32 %v458, %v522
  %v524 = vpop.f32.mrb[0].mxu0
  %v525 = vpop.f32.mrb[0].mxu0
  %v526 = vadd.f32 %v461, %v525
  %v527 = vpop.f32.mrb[0].mxu0
  %528 = vmatprep.mubr.bf16.mxu0 %v202
  %529 = vmatmul.mubr.bf16.gmra.mrb[0].mxu0 %v201
  %v530 = vpop.f32.mrb[0].mxu0
  %v531 = vadd.f32 %v466, %v530
  %v532 = vpop.f32.mrb[0].mxu0
  %v533 = vpop.f32.mrb[0].mxu0
  %v534 = vadd.f32 %v469, %v533
  %v535 = vpop.f32.mrb[0].mxu0
  %536 = vmatprep.mubr.bf16.mxu0 %v206
  %537 = vmatmul.mubr.bf16.gmra.mrb[0].mxu0 %v205
  %v538 = vpop.f32.mrb[0].mxu0
  %v539 = vadd.f32 %v474, %v538
  %v540 = vpop.f32.mrb[0].mxu0
  %v541 = vpop.f32.mrb[0].mxu0
  %v542 = vadd.f32 %v477, %v541
  %v543 = vpop.f32.mrb[0].mxu0
  %544 = vdwg.mxu0
  %v545 = vmax.f32 %v515, 0.0
  %v546 = vmax.f32 %v518, 0.0
  %v547 = vmax.f32 %v523, 0.0
  %v548 = vmax.f32 %v526, 0.0
  %v549 = vmax.f32 %v531, 0.0
  %v550 = vmax.f32 %v534, 0.0
  %v551 = vmax.f32 %v539, 0.0
  %v552 = vmax.f32 %v542, 0.0
  %v553 = vpack.c.bf16 %v546, %v545
  %v554 = vpack.c.bf16 %v548, %v547
  %v555 = vpack.c.bf16 %v550, %v549
  %v556 = vpack.c.bf16 %v552, %v551
  %v561 = vunpack.c.l.b16 %v553
  %v562 = vunpack.c.h.b16 %v553
  %v563 = vunpack.c.l.b16 %v554
  %v564 = vunpack.c.h.b16 %v554
  %v565 = vunpack.c.l.b16 %v555
  %v566 = vunpack.c.h.b16 %v555
  %v567 = vunpack.c.l.b16 %v556
  %v568 = vunpack.c.h.b16 %v556
  %v569 = vpack.c.b16 %v561, %v561
  %v570 = vpack.c.b16 %v562, %v562
  %v571 = vpack.c.b16 %v563, %v563
  %v572 = vpack.c.b16 %v564, %v564
  %v573 = vpack.c.b16 %v565, %v565
  %v574 = vpack.c.b16 %v566, %v566
  %v575 = vpack.c.b16 %v567, %v567
  %v576 = vpack.c.b16 %v568, %v568
  %585 = vst [vmem:[%s3] sm:$0xf] %v569
  %586 = vst [vmem:[%s3 + $0x4] sm:$0xf] %v570
  %587 = vst [vmem:[%s3 + $0x8] sm:$0xf] %v571
  %588 = vst [vmem:[%s3 + $0xc] sm:$0xf] %v572
  %589 = vst [vmem:[%s3 + $0x10] sm:$0xf] %v573
  %590 = vst [vmem:[%s3 + $0x14] sm:$0xf] %v574
  %591 = vst [vmem:[%s3 + $0x18] sm:$0xf] %v575
  %592 = vst [vmem:[%s3 + $0x1c] sm:$0xf] %v576
  // Predicated region
  $region14: #{beta_tc_vae_forward.11} parent=0 // pred_check
    _
  $region15: #{beta_tc_vae_forward.11} parent=0 // pred_check_branch
    %594 = sbr.rel (0) target = $region17
  $region16: #{beta_tc_vae_forward.11} parent=0 // pred_region
    _
  $region17: #{beta_tc_vae_forward.11} parent=0 // pred_fallthru
    _
  // Predicated region
  $region18: #{beta_tc_vae_forward.11} parent=0 // pred_check
    _
  $region19: #{beta_tc_vae_forward.11} parent=0 // pred_check_branch
    %596 = sbr.rel (0) target = $region21
  $region20: #{beta_tc_vae_forward.11} parent=0 // pred_region
    _
  $region21: #{beta_tc_vae_forward.11} parent=0 // pred_fallthru
    _

// kernel: beta_tc_vae_forward.12
$region0: #{beta_tc_vae_forward.12}
  #allocation0 [shape = 'u32[]', space=smem, size = 0x4, offset = 0x4, fixed_abs, tag = 'smem constant byte address 0x4 - core index']
  #allocation1 [shape = 'u32[144,128]{1,0:T(1,128)}', space=vmem, size = 0x12000, scoped, tag = 'internal scratch']
  %s0 = inlined_call_operand.vmem [shape: bf16[64,1024], index: 0, kind: input, shape index: {}]
  %s1 = inlined_call_operand.vmem [shape: bf16[1024,128], index: 1, kind: input, shape index: {}]
  %s2 = inlined_call_operand.vmem [shape: f32[64,1], index: 2, kind: input, shape index: {}]
  %s3 = inlined_call_operand.vmem [shape: bf16[64,128], index: 3, kind: output, shape index: {}]
  %s4 = sld [smem:[#allocation0]]
  $region22: #{beta_tc_vae_forward.12} parent=0
    _
  %s6 = ssub.s32 1, %s4
  %s7 = scalar_select 0, %s6, %s4
  // Predicated region
  $region2: #{beta_tc_vae_forward.12} parent=0 // pred_check
    _
  $region3: #{beta_tc_vae_forward.12} parent=0 // pred_check_branch
    %9 = sbr.rel (0) target = $region5
  $region4: #{beta_tc_vae_forward.12} parent=0 // pred_region
    _
  $region5: #{beta_tc_vae_forward.12} parent=0 // pred_fallthru
    _
  // Predicated region
  $region6: #{beta_tc_vae_forward.12} parent=0 // pred_check
    _
  $region7: #{beta_tc_vae_forward.12} parent=0 // pred_check_branch
    %11 = sbr.rel (0) target = $region9
  $region8: #{beta_tc_vae_forward.12} parent=0 // pred_region
    _
  $region9: #{beta_tc_vae_forward.12} parent=0 // pred_fallthru
    _
  // Predicated region
  $region10: #{beta_tc_vae_forward.12} parent=0 // pred_check
    _
  $region11: #{beta_tc_vae_forward.12} parent=0 // pred_check_branch
    %13 = sbr.rel (0) target = $region13
  $region12: #{beta_tc_vae_forward.12} parent=0 // pred_region
    _
  $region13: #{beta_tc_vae_forward.12} parent=0 // pred_fallthru
    _
  %v15 = vld [vmem:[%s0] sm:$0xff]
  %v16 = vld [vmem:[%s0 + $0x8] sm:$0xff]
  %v17 = vld [vmem:[%s0 + $0x10] sm:$0xff]
  %v18 = vld [vmem:[%s0 + $0x18] sm:$0xff]
  %v19 = vld [vmem:[%s0 + $0x20] sm:$0xff]
  %v20 = vld [vmem:[%s0 + $0x28] sm:$0xff]
  %v21 = vld [vmem:[%s0 + $0x30] sm:$0xff]
  %v22 = vld [vmem:[%s0 + $0x38] sm:$0xff]
  %v23 = vld [vmem:[%s0 + $0x40] sm:$0xff]
  %v24 = vld [vmem:[%s0 + $0x48] sm:$0xff]
  %v25 = vld [vmem:[%s0 + $0x50] sm:$0xff]
  %v26 = vld [vmem:[%s0 + $0x58] sm:$0xff]
  %v27 = vld [vmem:[%s0 + $0x60] sm:$0xff]
  %v28 = vld [vmem:[%s0 + $0x68] sm:$0xff]
  %v29 = vld [vmem:[%s0 + $0x70] sm:$0xff]
  %v30 = vld [vmem:[%s0 + $0x78] sm:$0xff]
  %v31 = vld [vmem:[%s0 + $0x80] sm:$0xff]
  %v32 = vld [vmem:[%s0 + $0x88] sm:$0xff]
  %v33 = vld [vmem:[%s0 + $0x90] sm:$0xff]
  %v34 = vld [vmem:[%s0 + $0x98] sm:$0xff]
  %v35 = vld [vmem:[%s0 + $0xa0] sm:$0xff]
  %v36 = vld [vmem:[%s0 + $0xa8] sm:$0xff]
  %v37 = vld [vmem:[%s0 + $0xb0] sm:$0xff]
  %v38 = vld [vmem:[%s0 + $0xb8] sm:$0xff]
  %v39 = vld [vmem:[%s0 + $0xc0] sm:$0xff]
  %v40 = vld [vmem:[%s0 + $0xc8] sm:$0xff]
  %v41 = vld [vmem:[%s0 + $0xd0] sm:$0xff]
  %v42 = vld [vmem:[%s0 + $0xd8] sm:$0xff]
  %v43 = vld [vmem:[%s0 + $0xe0] sm:$0xff]
  %v44 = vld [vmem:[%s0 + $0xe8] sm:$0xff]
  %v45 = vld [vmem:[%s0 + $0xf0] sm:$0xff]
  %v46 = vld [vmem:[%s0 + $0xf8] sm:$0xff]
  %v47 = vld [vmem:[%s1] sm:$0xf]
  %v48 = vld [vmem:[%s1 + $0x4] sm:$0xf]
  %v49 = vld [vmem:[%s1 + $0x8] sm:$0xf]
  %v50 = vld [vmem:[%s1 + $0xc] sm:$0xf]
  %v51 = vld [vmem:[%s1 + $0x10] sm:$0xf]
  %v52 = vld [vmem:[%s1 + $0x14] sm:$0xf]
  %v53 = vld [vmem:[%s1 + $0x18] sm:$0xf]
  %v54 = vld [vmem:[%s1 + $0x1c] sm:$0xf]
  %v55 = vld [vmem:[%s1 + $0x20] sm:$0xf]
  %v56 = vld [vmem:[%s1 + $0x24] sm:$0xf]
  %v57 = vld [vmem:[%s1 + $0x28] sm:$0xf]
  %v58 = vld [vmem:[%s1 + $0x2c] sm:$0xf]
  %v59 = vld [vmem:[%s1 + $0x30] sm:$0xf]
  %v60 = vld [vmem:[%s1 + $0x34] sm:$0xf]
  %v61 = vld [vmem:[%s1 + $0x38] sm:$0xf]
  %v62 = vld [vmem:[%s1 + $0x3c] sm:$0xf]
  %v63 = vld [vmem:[%s1 + $0x40] sm:$0xf]
  %v64 = vld [vmem:[%s1 + $0x44] sm:$0xf]
  %v65 = vld [vmem:[%s1 + $0x48] sm:$0xf]
  %v66 = vld [vmem:[%s1 + $0x4c] sm:$0xf]
  %v67 = vld [vmem:[%s1 + $0x50] sm:$0xf]
  %v68 = vld [vmem:[%s1 + $0x54] sm:$0xf]
  %v69 = vld [vmem:[%s1 + $0x58] sm:$0xf]
  %v70 = vld [vmem:[%s1 + $0x5c] sm:$0xf]
  %v71 = vld [vmem:[%s1 + $0x60] sm:$0xf]
  %v72 = vld [vmem:[%s1 + $0x64] sm:$0xf]
  %v73 = vld [vmem:[%s1 + $0x68] sm:$0xf]
  %v74 = vld [vmem:[%s1 + $0x6c] sm:$0xf]
  %v75 = vld [vmem:[%s1 + $0x70] sm:$0xf]
  %v76 = vld [vmem:[%s1 + $0x74] sm:$0xf]
  %v77 = vld [vmem:[%s1 + $0x78] sm:$0xf]
  %v78 = vld [vmem:[%s1 + $0x7c] sm:$0xf]
  %v79 = vld [vmem:[%s1 + $0x80] sm:$0xf]
  %v80 = vld [vmem:[%s1 + $0x84] sm:$0xf]
  %v81 = vld [vmem:[%s1 + $0x88] sm:$0xf]
  %v82 = vld [vmem:[%s1 + $0x8c] sm:$0xf]
  %v83 = vld [vmem:[%s1 + $0x90] sm:$0xf]
  %v84 = vld [vmem:[%s1 + $0x94] sm:$0xf]
  %v85 = vld [vmem:[%s1 + $0x98] sm:$0xf]
  %v86 = vld [vmem:[%s1 + $0x9c] sm:$0xf]
  %v87 = vld [vmem:[%s1 + $0xa0] sm:$0xf]
  %v88 = vld [vmem:[%s1 + $0xa4] sm:$0xf]
  %v89 = vld [vmem:[%s1 + $0xa8] sm:$0xf]
  %v90 = vld [vmem:[%s1 + $0xac] sm:$0xf]
  %v91 = vld [vmem:[%s1 + $0xb0] sm:$0xf]
  %v92 = vld [vmem:[%s1 + $0xb4] sm:$0xf]
  %v93 = vld [vmem:[%s1 + $0xb8] sm:$0xf]
  %v94 = vld [vmem:[%s1 + $0xbc] sm:$0xf]
  %v95 = vld [vmem:[%s1 + $0xc0] sm:$0xf]
  %v96 = vld [vmem:[%s1 + $0xc4] sm:$0xf]
  %v97 = vld [vmem:[%s1 + $0xc8] sm:$0xf]
  %v98 = vld [vmem:[%s1 + $0xcc] sm:$0xf]
  %v99 = vld [vmem:[%s1 + $0xd0] sm:$0xf]
  %v100 = vld [vmem:[%s1 + $0xd4] sm:$0xf]
  %v101 = vld [vmem:[%s1 + $0xd8] sm:$0xf]
  %v102 = vld [vmem:[%s1 + $0xdc] sm:$0xf]
  %v103 = vld [vmem:[%s1 + $0xe0] sm:$0xf]
  %v104 = vld [vmem:[%s1 + $0xe4] sm:$0xf]
  %v105 = vld [vmem:[%s1 + $0xe8] sm:$0xf]
  %v106 = vld [vmem:[%s1 + $0xec] sm:$0xf]
  %v107 = vld [vmem:[%s1 + $0xf0] sm:$0xf]
  %v108 = vld [vmem:[%s1 + $0xf4] sm:$0xf]
  %v109 = vld [vmem:[%s1 + $0xf8] sm:$0xf]
  %v110 = vld [vmem:[%s1 + $0xfc] sm:$0xf]
  %v111 = vld [vmem:[%s1 + $0x100] sm:$0xf]
  %v112 = vld [vmem:[%s1 + $0x104] sm:$0xf]
  %v113 = vld [vmem:[%s1 + $0x108] sm:$0xf]
  %v114 = vld [vmem:[%s1 + $0x10c] sm:$0xf]
  %v115 = vld [vmem:[%s1 + $0x110] sm:$0xf]
  %v116 = vld [vmem:[%s1 + $0x114] sm:$0xf]
  %v117 = vld [vmem:[%s1 + $0x118] sm:$0xf]
  %v118 = vld [vmem:[%s1 + $0x11c] sm:$0xf]
  %v119 = vld [vmem:[%s1 + $0x120] sm:$0xf]
  %v120 = vld [vmem:[%s1 + $0x124] sm:$0xf]
  %v121 = vld [vmem:[%s1 + $0x128] sm:$0xf]
  %v122 = vld [vmem:[%s1 + $0x12c] sm:$0xf]
  %v123 = vld [vmem:[%s1 + $0x130] sm:$0xf]
  %v124 = vld [vmem:[%s1 + $0x134] sm:$0xf]
  %v125 = vld [vmem:[%s1 + $0x138] sm:$0xf]
  %v126 = vld [vmem:[%s1 + $0x13c] sm:$0xf]
  %v127 = vld [vmem:[%s1 + $0x140] sm:$0xf]
  %v128 = vld [vmem:[%s1 + $0x144] sm:$0xf]
  %v129 = vld [vmem:[%s1 + $0x148] sm:$0xf]
  %v130 = vld [vmem:[%s1 + $0x14c] sm:$0xf]
  %v131 = vld [vmem:[%s1 + $0x150] sm:$0xf]
  %v132 = vld [vmem:[%s1 + $0x154] sm:$0xf]
  %v133 = vld [vmem:[%s1 + $0x158] sm:$0xf]
  %v134 = vld [vmem:[%s1 + $0x15c] sm:$0xf]
  %v135 = vld [vmem:[%s1 + $0x160] sm:$0xf]
  %v136 = vld [vmem:[%s1 + $0x164] sm:$0xf]
  %v137 = vld [vmem:[%s1 + $0x168] sm:$0xf]
  %v138 = vld [vmem:[%s1 + $0x16c] sm:$0xf]
  %v139 = vld [vmem:[%s1 + $0x170] sm:$0xf]
  %v140 = vld [vmem:[%s1 + $0x174] sm:$0xf]
  %v141 = vld [vmem:[%s1 + $0x178] sm:$0xf]
  %v142 = vld [vmem:[%s1 + $0x17c] sm:$0xf]
  %v143 = vld [vmem:[%s1 + $0x180] sm:$0xf]
  %v144 = vld [vmem:[%s1 + $0x184] sm:$0xf]
  %v145 = vld [vmem:[%s1 + $0x188] sm:$0xf]
  %v146 = vld [vmem:[%s1 + $0x18c] sm:$0xf]
  %v147 = vld [vmem:[%s1 + $0x190] sm:$0xf]
  %v148 = vld [vmem:[%s1 + $0x194] sm:$0xf]
  %v149 = vld [vmem:[%s1 + $0x198] sm:$0xf]
  %v150 = vld [vmem:[%s1 + $0x19c] sm:$0xf]
  %v151 = vld [vmem:[%s1 + $0x1a0] sm:$0xf]
  %v152 = vld [vmem:[%s1 + $0x1a4] sm:$0xf]
  %v153 = vld [vmem:[%s1 + $0x1a8] sm:$0xf]
  %v154 = vld [vmem:[%s1 + $0x1ac] sm:$0xf]
  %v155 = vld [vmem:[%s1 + $0x1b0] sm:$0xf]
  %v156 = vld [vmem:[%s1 + $0x1b4] sm:$0xf]
  %v157 = vld [vmem:[%s1 + $0x1b8] sm:$0xf]
  %v158 = vld [vmem:[%s1 + $0x1bc] sm:$0xf]
  %v159 = vld [vmem:[%s1 + $0x1c0] sm:$0xf]
  %v160 = vld [vmem:[%s1 + $0x1c4] sm:$0xf]
  %v161 = vld [vmem:[%s1 + $0x1c8] sm:$0xf]
  %v162 = vld [vmem:[%s1 + $0x1cc] sm:$0xf]
  %v163 = vld [vmem:[%s1 + $0x1d0] sm:$0xf]
  %v164 = vld [vmem:[%s1 + $0x1d4] sm:$0xf]
  %v165 = vld [vmem:[%s1 + $0x1d8] sm:$0xf]
  %v166 = vld [vmem:[%s1 + $0x1dc] sm:$0xf]
  %v167 = vld [vmem:[%s1 + $0x1e0] sm:$0xf]
  %v168 = vld [vmem:[%s1 + $0x1e4] sm:$0xf]
  %v169 = vld [vmem:[%s1 + $0x1e8] sm:$0xf]
  %v170 = vld [vmem:[%s1 + $0x1ec] sm:$0xf]
  %v171 = vld [vmem:[%s1 + $0x1f0] sm:$0xf]
  %v172 = vld [vmem:[%s1 + $0x1f4] sm:$0xf]
  %v173 = vld [vmem:[%s1 + $0x1f8] sm:$0xf]
  %v174 = vld [vmem:[%s1 + $0x1fc] sm:$0xf]
  %v175 = vld [vmem:[%s2] sm:$0xff]
  %v176 = vld [vmem:[%s2 + $0x8] sm:$0xff]
  %v177 = vld [vmem:[%s2 + $0x10] sm:$0xff]
  %v178 = vld [vmem:[%s2 + $0x18] sm:$0xff]
  %v179 = vld [vmem:[%s2 + $0x20] sm:$0xff]
  %v180 = vld [vmem:[%s2 + $0x28] sm:$0xff]
  %v181 = vld [vmem:[%s2 + $0x30] sm:$0xff]
  %v182 = vld [vmem:[%s2 + $0x38] sm:$0xff]
  %184 = vset.pattern.permute.xlu0 0
  %185 = vperm.xlu0 %184, %v175
  %v186 = vpop.permute.xlu0 %185
  %189 = vset.pattern.permute.xlu0 0
  %190 = vperm.xlu0 %189, %v176
  %v191 = vpop.permute.xlu0 %190
  %194 = vset.pattern.permute.xlu0 0
  %195 = vperm.xlu0 %194, %v177
  %v196 = vpop.permute.xlu0 %195
  %199 = vset.pattern.permute.xlu0 0
  %200 = vperm.xlu0 %199, %v178
  %v201 = vpop.permute.xlu0 %200
  %204 = vset.pattern.permute.xlu0 0
  %205 = vperm.xlu0 %204, %v179
  %v206 = vpop.permute.xlu0 %205
  %209 = vset.pattern.permute.xlu0 0
  %210 = vperm.xlu0 %209, %v180
  %v211 = vpop.permute.xlu0 %210
  %214 = vset.pattern.permute.xlu0 0
  %215 = vperm.xlu0 %214, %v181
  %v216 = vpop.permute.xlu0 %215
  %219 = vset.pattern.permute.xlu0 0
  %220 = vperm.xlu0 %219, %v182
  %v221 = vpop.permute.xlu0 %220
  %v255 = vunpack.c.l.b16 %v15
  %v256 = vunpack.c.h.b16 %v15
  %v257 = vunpack.c.l.b16 %v16
  %v258 = vunpack.c.h.b16 %v16
  %v259 = vunpack.c.l.b16 %v17
  %v260 = vunpack.c.h.b16 %v17
  %v261 = vunpack.c.l.b16 %v18
  %v262 = vunpack.c.h.b16 %v18
  %v263 = vunpack.c.l.b16 %v19
  %v264 = vunpack.c.h.b16 %v19
  %v265 = vunpack.c.l.b16 %v20
  %v266 = vunpack.c.h.b16 %v20
  %v267 = vunpack.c.l.b16 %v21
  %v268 = vunpack.c.h.b16 %v21
  %v269 = vunpack.c.l.b16 %v22
  %v270 = vunpack.c.h.b16 %v22
  %v271 = vunpack.c.l.b16 %v23
  %v272 = vunpack.c.h.b16 %v23
  %v273 = vunpack.c.l.b16 %v24
  %v274 = vunpack.c.h.b16 %v24
  %v275 = vunpack.c.l.b16 %v25
  %v276 = vunpack.c.h.b16 %v25
  %v277 = vunpack.c.l.b16 %v26
  %v278 = vunpack.c.h.b16 %v26
  %v279 = vunpack.c.l.b16 %v27
  %v280 = vunpack.c.h.b16 %v27
  %v281 = vunpack.c.l.b16 %v28
  %v282 = vunpack.c.h.b16 %v28
  %v283 = vunpack.c.l.b16 %v29
  %v284 = vunpack.c.h.b16 %v29
  %v285 = vunpack.c.l.b16 %v30
  %v286 = vunpack.c.h.b16 %v30
  %v287 = vunpack.c.l.b16 %v31
  %v288 = vunpack.c.h.b16 %v31
  %v289 = vunpack.c.l.b16 %v32
  %v290 = vunpack.c.h.b16 %v32
  %v291 = vunpack.c.l.b16 %v33
  %v292 = vunpack.c.h.b16 %v33
  %v293 = vunpack.c.l.b16 %v34
  %v294 = vunpack.c.h.b16 %v34
  %v295 = vunpack.c.l.b16 %v35
  %v296 = vunpack.c.h.b16 %v35
  %v297 = vunpack.c.l.b16 %v36
  %v298 = vunpack.c.h.b16 %v36
  %v299 = vunpack.c.l.b16 %v37
  %v300 = vunpack.c.h.b16 %v37
  %v301 = vunpack.c.l.b16 %v38
  %v302 = vunpack.c.h.b16 %v38
  %v303 = vunpack.c.l.b16 %v39
  %v304 = vunpack.c.h.b16 %v39
  %v305 = vunpack.c.l.b16 %v40
  %v306 = vunpack.c.h.b16 %v40
  %v307 = vunpack.c.l.b16 %v41
  %v308 = vunpack.c.h.b16 %v41
  %v309 = vunpack.c.l.b16 %v42
  %v310 = vunpack.c.h.b16 %v42
  %v311 = vunpack.c.l.b16 %v43
  %v312 = vunpack.c.h.b16 %v43
  %v313 = vunpack.c.l.b16 %v44
  %v314 = vunpack.c.h.b16 %v44
  %v315 = vunpack.c.l.b16 %v45
  %v316 = vunpack.c.h.b16 %v45
  %v317 = vunpack.c.l.b16 %v46
  %v318 = vunpack.c.h.b16 %v46
  %v319 = vpack.c.b16 %v263, %v255
  %v320 = vpack.c.b16 %v264, %v256
  %v321 = vpack.c.b16 %v265, %v257
  %v322 = vpack.c.b16 %v266, %v258
  %v323 = vpack.c.b16 %v267, %v259
  %v324 = vpack.c.b16 %v268, %v260
  %v325 = vpack.c.b16 %v269, %v261
  %v326 = vpack.c.b16 %v270, %v262
  %v327 = vpack.c.b16 %v279, %v271
  %v328 = vpack.c.b16 %v280, %v272
  %v329 = vpack.c.b16 %v281, %v273
  %v330 = vpack.c.b16 %v282, %v274
  %v331 = vpack.c.b16 %v283, %v275
  %v332 = vpack.c.b16 %v284, %v276
  %v333 = vpack.c.b16 %v285, %v277
  %v334 = vpack.c.b16 %v286, %v278
  %v335 = vpack.c.b16 %v295, %v287
  %v336 = vpack.c.b16 %v296, %v288
  %v337 = vpack.c.b16 %v297, %v289
  %v338 = vpack.c.b16 %v298, %v290
  %v339 = vpack.c.b16 %v299, %v291
  %v340 = vpack.c.b16 %v300, %v292
  %v341 = vpack.c.b16 %v301, %v293
  %v342 = vpack.c.b16 %v302, %v294
  %v343 = vpack.c.b16 %v311, %v303
  %v344 = vpack.c.b16 %v312, %v304
  %v345 = vpack.c.b16 %v313, %v305
  %v346 = vpack.c.b16 %v314, %v306
  %v347 = vpack.c.b16 %v315, %v307
  %v348 = vpack.c.b16 %v316, %v308
  %v349 = vpack.c.b16 %v317, %v309
  %v350 = vpack.c.b16 %v318, %v310
  %v511 = vunpack.c.l.b16 %v47
  %v512 = vunpack.c.l.b16 %v48
  %v513 = vunpack.c.l.b16 %v49
  %v514 = vunpack.c.l.b16 %v50
  %v515 = vunpack.c.l.b16 %v51
  %v516 = vunpack.c.l.b16 %v52
  %v517 = vunpack.c.l.b16 %v53
  %v518 = vunpack.c.l.b16 %v54
  %v519 = vunpack.c.l.b16 %v55
  %v520 = vunpack.c.l.b16 %v56
  %v521 = vunpack.c.l.b16 %v57
  %v522 = vunpack.c.l.b16 %v58
  %v523 = vunpack.c.l.b16 %v59
  %v524 = vunpack.c.l.b16 %v60
  %v525 = vunpack.c.l.b16 %v61
  %v526 = vunpack.c.l.b16 %v62
  %v527 = vunpack.c.l.b16 %v63
  %v528 = vunpack.c.l.b16 %v64
  %v529 = vunpack.c.l.b16 %v65
  %v530 = vunpack.c.l.b16 %v66
  %v531 = vunpack.c.l.b16 %v67
  %v532 = vunpack.c.l.b16 %v68
  %v533 = vunpack.c.l.b16 %v69
  %v534 = vunpack.c.l.b16 %v70
  %v535 = vunpack.c.l.b16 %v71
  %v536 = vunpack.c.l.b16 %v72
  %v537 = vunpack.c.l.b16 %v73
  %v538 = vunpack.c.l.b16 %v74
  %v539 = vunpack.c.l.b16 %v75
  %v540 = vunpack.c.l.b16 %v76
  %v541 = vunpack.c.l.b16 %v77
  %v542 = vunpack.c.l.b16 %v78
  %v543 = vunpack.c.l.b16 %v79
  %v544 = vunpack.c.l.b16 %v80
  %v545 = vunpack.c.l.b16 %v81
  %v546 = vunpack.c.l.b16 %v82
  %v547 = vunpack.c.l.b16 %v83
  %v548 = vunpack.c.l.b16 %v84
  %v549 = vunpack.c.l.b16 %v85
  %v550 = vunpack.c.l.b16 %v86
  %v551 = vunpack.c.l.b16 %v87
  %v552 = vunpack.c.l.b16 %v88
  %v553 = vunpack.c.l.b16 %v89
  %v554 = vunpack.c.l.b16 %v90
  %v555 = vunpack.c.l.b16 %v91
  %v556 = vunpack.c.l.b16 %v92
  %v557 = vunpack.c.l.b16 %v93
  %v558 = vunpack.c.l.b16 %v94
  %v559 = vunpack.c.l.b16 %v95
  %v560 = vunpack.c.l.b16 %v96
  %v561 = vunpack.c.l.b16 %v97
  %v562 = vunpack.c.l.b16 %v98
  %v563 = vunpack.c.l.b16 %v99
  %v564 = vunpack.c.l.b16 %v100
  %v565 = vunpack.c.l.b16 %v101
  %v566 = vunpack.c.l.b16 %v102
  %v567 = vunpack.c.l.b16 %v103
  %v568 = vunpack.c.l.b16 %v104
  %v569 = vunpack.c.l.b16 %v105
  %v570 = vunpack.c.l.b16 %v106
  %v571 = vunpack.c.l.b16 %v107
  %v572 = vunpack.c.l.b16 %v108
  %v573 = vunpack.c.l.b16 %v109
  %v574 = vunpack.c.l.b16 %v110
  %v575 = vunpack.c.l.b16 %v111
  %v576 = vunpack.c.l.b16 %v112
  %v577 = vunpack.c.l.b16 %v113
  %v578 = vunpack.c.l.b16 %v114
  %v579 = vunpack.c.l.b16 %v115
  %v580 = vunpack.c.l.b16 %v116
  %v581 = vunpack.c.l.b16 %v117
  %v582 = vunpack.c.l.b16 %v118
  %v583 = vunpack.c.l.b16 %v119
  %v584 = vunpack.c.l.b16 %v120
  %v585 = vunpack.c.l.b16 %v121
  %v586 = vunpack.c.l.b16 %v122
  %v587 = vunpack.c.l.b16 %v123
  %v588 = vunpack.c.l.b16 %v124
  %v589 = vunpack.c.l.b16 %v125
  %v590 = vunpack.c.l.b16 %v126
  %v591 = vunpack.c.l.b16 %v127
  %v592 = vunpack.c.l.b16 %v128
  %v593 = vunpack.c.l.b16 %v129
  %v594 = vunpack.c.l.b16 %v130
  %v595 = vunpack.c.l.b16 %v131
  %v596 = vunpack.c.l.b16 %v132
  %v597 = vunpack.c.l.b16 %v133
  %v598 = vunpack.c.l.b16 %v134
  %v599 = vunpack.c.l.b16 %v135
  %v600 = vunpack.c.l.b16 %v136
  %v601 = vunpack.c.l.b16 %v137
  %v602 = vunpack.c.l.b16 %v138
  %v603 = vunpack.c.l.b16 %v139
  %v604 = vunpack.c.l.b16 %v140
  %v605 = vunpack.c.l.b16 %v141
  %v606 = vunpack.c.l.b16 %v142
  %v607 = vunpack.c.l.b16 %v143
  %v608 = vunpack.c.l.b16 %v144
  %v609 = vunpack.c.l.b16 %v145
  %v610 = vunpack.c.l.b16 %v146
  %v611 = vunpack.c.l.b16 %v147
  %v612 = vunpack.c.l.b16 %v148
  %v613 = vunpack.c.l.b16 %v149
  %v614 = vunpack.c.l.b16 %v150
  %v615 = vunpack.c.l.b16 %v151
  %v616 = vunpack.c.l.b16 %v152
  %v617 = vunpack.c.l.b16 %v153
  %v618 = vunpack.c.l.b16 %v154
  %v619 = vunpack.c.l.b16 %v155
  %v620 = vunpack.c.l.b16 %v156
  %v621 = vunpack.c.l.b16 %v157
  %v622 = vunpack.c.l.b16 %v158
  %v623 = vunpack.c.l.b16 %v159
  %v624 = vunpack.c.l.b16 %v160
  %v625 = vunpack.c.l.b16 %v161
  %v626 = vunpack.c.l.b16 %v162
  %v627 = vunpack.c.l.b16 %v163
  %v628 = vunpack.c.l.b16 %v164
  %v629 = vunpack.c.l.b16 %v165
  %v630 = vunpack.c.l.b16 %v166
  %v631 = vunpack.c.l.b16 %v167
  %v632 = vunpack.c.l.b16 %v168
  %v633 = vunpack.c.l.b16 %v169
  %v634 = vunpack.c.l.b16 %v170
  %v635 = vunpack.c.l.b16 %v171
  %v636 = vunpack.c.l.b16 %v172
  %v637 = vunpack.c.l.b16 %v173
  %v638 = vunpack.c.l.b16 %v174
  %v639 = vpack.c.b16 %v512, %v511
  %v640 = vpack.c.b16 %v514, %v513
  %v641 = vpack.c.b16 %v516, %v515
  %v642 = vpack.c.b16 %v518, %v517
  %v643 = vpack.c.b16 %v520, %v519
  %v644 = vpack.c.b16 %v522, %v521
  %v645 = vpack.c.b16 %v524, %v523
  %v646 = vpack.c.b16 %v526, %v525
  %v647 = vpack.c.b16 %v528, %v527
  %v648 = vpack.c.b16 %v530, %v529
  %v649 = vpack.c.b16 %v532, %v531
  %v650 = vpack.c.b16 %v534, %v533
  %v651 = vpack.c.b16 %v536, %v535
  %v652 = vpack.c.b16 %v538, %v537
  %v653 = vpack.c.b16 %v540, %v539
  %v654 = vpack.c.b16 %v542, %v541
  %v655 = vpack.c.b16 %v544, %v543
  %v656 = vpack.c.b16 %v546, %v545
  %v657 = vpack.c.b16 %v548, %v547
  %v658 = vpack.c.b16 %v550, %v549
  %v659 = vpack.c.b16 %v552, %v551
  %v660 = vpack.c.b16 %v554, %v553
  %v661 = vpack.c.b16 %v556, %v555
  %v662 = vpack.c.b16 %v558, %v557
  %v663 = vpack.c.b16 %v560, %v559
  %v664 = vpack.c.b16 %v562, %v561
  %v665 = vpack.c.b16 %v564, %v563
  %v666 = vpack.c.b16 %v566, %v565
  %v667 = vpack.c.b16 %v568, %v567
  %v668 = vpack.c.b16 %v570, %v569
  %v669 = vpack.c.b16 %v572, %v571
  %v670 = vpack.c.b16 %v574, %v573
  %v671 = vpack.c.b16 %v576, %v575
  %v672 = vpack.c.b16 %v578, %v577
  %v673 = vpack.c.b16 %v580, %v579
  %v674 = vpack.c.b16 %v582, %v581
  %v675 = vpack.c.b16 %v584, %v583
  %v676 = vpack.c.b16 %v586, %v585
  %v677 = vpack.c.b16 %v588, %v587
  %v678 = vpack.c.b16 %v590, %v589
  %v679 = vpack.c.b16 %v592, %v591
  %v680 = vpack.c.b16 %v594, %v593
  %v681 = vpack.c.b16 %v596, %v595
  %v682 = vpack.c.b16 %v598, %v597
  %v683 = vpack.c.b16 %v600, %v599
  %v684 = vpack.c.b16 %v602, %v601
  %v685 = vpack.c.b16 %v604, %v603
  %v686 = vpack.c.b16 %v606, %v605
  %v687 = vpack.c.b16 %v608, %v607
  %v688 = vpack.c.b16 %v610, %v609
  %v689 = vpack.c.b16 %v612, %v611
  %v690 = vpack.c.b16 %v614, %v613
  %v691 = vpack.c.b16 %v616, %v615
  %v692 = vpack.c.b16 %v618, %v617
  %v693 = vpack.c.b16 %v620, %v619
  %v694 = vpack.c.b16 %v622, %v621
  %v695 = vpack.c.b16 %v624, %v623
  %v696 = vpack.c.b16 %v626, %v625
  %v697 = vpack.c.b16 %v628, %v627
  %v698 = vpack.c.b16 %v630, %v629
  %v699 = vpack.c.b16 %v632, %v631
  %v700 = vpack.c.b16 %v634, %v633
  %v701 = vpack.c.b16 %v636, %v635
  %v702 = vpack.c.b16 %v638, %v637
  %767 = vmatprep.subr.bf16.mxu0 0
  %768 = vmatpush1.bf16.msra.mxu0 %v639
  %769 = vmatprep.subr.bf16.mxu0 0
  %770 = vmatpush1.bf16.msra.mxu0 %v640
  %771 = vmatprep.subr.bf16.mxu0 0
  %772 = vmatpush1.bf16.msra.mxu0 %v641
  %773 = vmatprep.subr.bf16.mxu0 0
  %774 = vmatpush1.bf16.msra.mxu0 %v642
  %775 = vmatprep.subr.bf16.mxu0 0
  %776 = vmatpush1.bf16.msra.mxu0 %v643
  %777 = vmatprep.subr.bf16.mxu0 0
  %778 = vmatpush1.bf16.msra.mxu0 %v644
  %779 = vmatprep.subr.bf16.mxu0 0
  %780 = vmatpush1.bf16.msra.mxu0 %v645
  %781 = vmatprep.subr.bf16.mxu0 0
  %782 = vmatpush1.bf16.msra.mxu0 %v646
  %783 = vmatprep.subr.bf16.mxu0 0
  %784 = vmatpush1.bf16.msra.mxu0 %v647
  %785 = vmatprep.subr.bf16.mxu0 0
  %786 = vmatpush1.bf16.msra.mxu0 %v648
  %787 = vmatprep.subr.bf16.mxu0 0
  %788 = vmatpush1.bf16.msra.mxu0 %v649
  %789 = vmatprep.subr.bf16.mxu0 0
  %790 = vmatpush1.bf16.msra.mxu0 %v650
  %791 = vmatprep.subr.bf16.mxu0 0
  %792 = vmatpush1.bf16.msra.mxu0 %v651
  %793 = vmatprep.subr.bf16.mxu0 0
  %794 = vmatpush1.bf16.msra.mxu0 %v652
  %795 = vmatprep.subr.bf16.mxu0 0
  %796 = vmatpush1.bf16.msra.mxu0 %v653
  %797 = vmatprep.subr.bf16.mxu0 0
  %798 = vmatpush1.bf16.msra.mxu0 %v654
  %799 = vmatprep.mubr.bf16.mxu0 %v320
  %800 = vmatmul.mubr.bf16.gmra.mrb[0].mxu0 %v319
  %v801 = vpop.f32.mrb[0].mxu0
  %v802 = vadd.f32 %v186, %v801
  %v803 = vpop.f32.mrb[0].mxu0
  %v804 = vpop.f32.mrb[0].mxu0
  %v805 = vadd.f32 %v191, %v804
  %v806 = vpop.f32.mrb[0].mxu0
  %807 = vmatprep.mubr.bf16.mxu0 %v328
  %808 = vmatmul.mubr.bf16.gmra.mrb[0].mxu0 %v327
  %v809 = vpop.f32.mrb[0].mxu0
  %v810 = vadd.f32 %v196, %v809
  %v811 = vpop.f32.mrb[0].mxu0
  %v812 = vpop.f32.mrb[0].mxu0
  %v813 = vadd.f32 %v201, %v812
  %v814 = vpop.f32.mrb[0].mxu0
  %815 = vmatprep.mubr.bf16.mxu0 %v336
  %816 = vmatmul.mubr.bf16.gmra.mrb[0].mxu0 %v335
  %v817 = vpop.f32.mrb[0].mxu0
  %v818 = vadd.f32 %v206, %v817
  %v819 = vpop.f32.mrb[0].mxu0
  %v820 = vpop.f32.mrb[0].mxu0
  %v821 = vadd.f32 %v211, %v820
  %v822 = vpop.f32.mrb[0].mxu0
  %823 = vmatprep.mubr.bf16.mxu0 %v344
  %824 = vmatmul.mubr.bf16.gmra.mrb[0].mxu0 %v343
  %v825 = vpop.f32.mrb[0].mxu0
  %v826 = vadd.f32 %v216, %v825
  %v827 = vpop.f32.mrb[0].mxu0
  %v828 = vpop.f32.mrb[0].mxu0
  %v829 = vadd.f32 %v221, %v828
  %v830 = vpop.f32.mrb[0].mxu0
  %831 = vdwg.mxu0
  %832 = vmatprep.subr.bf16.mxu0 0
  %833 = vmatpush1.bf16.msra.mxu0 %v655
  %834 = vmatprep.subr.bf16.mxu0 0
  %835 = vmatpush1.bf16.msra.mxu0 %v656
  %836 = vmatprep.subr.bf16.mxu0 0
  %837 = vmatpush1.bf16.msra.mxu0 %v657
  %838 = vmatprep.subr.bf16.mxu0 0
  %839 = vmatpush1.bf16.msra.mxu0 %v658
  %840 = vmatprep.subr.bf16.mxu0 0
  %841 = vmatpush1.bf16.msra.mxu0 %v659
  %842 = vmatprep.subr.bf16.mxu0 0
  %843 = vmatpush1.bf16.msra.mxu0 %v660
  %844 = vmatprep.subr.bf16.mxu0 0
  %845 = vmatpush1.bf16.msra.mxu0 %v661
  %846 = vmatprep.subr.bf16.mxu0 0
  %847 = vmatpush1.bf16.msra.mxu0 %v662
  %848 = vmatprep.subr.bf16.mxu0 0
  %849 = vmatpush1.bf16.msra.mxu0 %v663
  %850 = vmatprep.subr.bf16.mxu0 0
  %851 = vmatpush1.bf16.msra.mxu0 %v664
  %852 = vmatprep.subr.bf16.mxu0 0
  %853 = vmatpush1.bf16.msra.mxu0 %v665
  %854 = vmatprep.subr.bf16.mxu0 0
  %855 = vmatpush1.bf16.msra.mxu0 %v666
  %856 = vmatprep.subr.bf16.mxu0 0
  %857 = vmatpush1.bf16.msra.mxu0 %v667
  %858 = vmatprep.subr.bf16.mxu0 0
  %859 = vmatpush1.bf16.msra.mxu0 %v668
  %860 = vmatprep.subr.bf16.mxu0 0
  %861 = vmatpush1.bf16.msra.mxu0 %v669
  %862 = vmatprep.subr.bf16.mxu0 0
  %863 = vmatpush1.bf16.msra.mxu0 %v670
  %864 = vmatprep.mubr.bf16.mxu0 %v322
  %865 = vmatmul.mubr.bf16.gmra.mrb[0].mxu0 %v321
  %v866 = vpop.f32.mrb[0].mxu0
  %v867 = vadd.f32 %v802, %v866
  %v868 = vpop.f32.mrb[0].mxu0
  %v869 = vpop.f32.mrb[0].mxu0
  %v870 = vadd.f32 %v805, %v869
  %v871 = vpop.f32.mrb[0].mxu0
  %872 = vmatprep.mubr.bf16.mxu0 %v330
  %873 = vmatmul.mubr.bf16.gmra.mrb[0].mxu0 %v329
  %v874 = vpop.f32.mrb[0].mxu0
  %v875 = vadd.f32 %v810, %v874
  %v876 = vpop.f32.mrb[0].mxu0
  %v877 = vpop.f32.mrb[0].mxu0
  %v878 = vadd.f32 %v813, %v877
  %v879 = vpop.f32.mrb[0].mxu0
  %880 = vmatprep.mubr.bf16.mxu0 %v338
  %881 = vmatmul.mubr.bf16.gmra.mrb[0].mxu0 %v337
  %v882 = vpop.f32.mrb[0].mxu0
  %v883 = vadd.f32 %v818, %v882
  %v884 = vpop.f32.mrb[0].mxu0
  %v885 = vpop.f32.mrb[0].mxu0
  %v886 = vadd.f32 %v821, %v885
  %v887 = vpop.f32.mrb[0].mxu0
  %888 = vmatprep.mubr.bf16.mxu0 %v346
  %889 = vmatmul.mubr.bf16.gmra.mrb[0].mxu0 %v345
  %v890 = vpop.f32.mrb[0].mxu0
  %v891 = vadd.f32 %v826, %v890
  %v892 = vpop.f32.mrb[0].mxu0
  %v893 = vpop.f32.mrb[0].mxu0
  %v894 = vadd.f32 %v829, %v893
  %v895 = vpop.f32.mrb[0].mxu0
  %896 = vdwg.mxu0
  %897 = vmatprep.subr.bf16.mxu0 0
  %898 = vmatpush1.bf16.msra.mxu0 %v671
  %899 = vmatprep.subr.bf16.mxu0 0
  %900 = vmatpush1.bf16.msra.mxu0 %v672
  %901 = vmatprep.subr.bf16.mxu0 0
  %902 = vmatpush1.bf16.msra.mxu0 %v673
  %903 = vmatprep.subr.bf16.mxu0 0
  %904 = vmatpush1.bf16.msra.mxu0 %v674
  %905 = vmatprep.subr.bf16.mxu0 0
  %906 = vmatpush1.bf16.msra.mxu0 %v675
  %907 = vmatprep.subr.bf16.mxu0 0
  %908 = vmatpush1.bf16.msra.mxu0 %v676
  %909 = vmatprep.subr.bf16.mxu0 0
  %910 = vmatpush1.bf16.msra.mxu0 %v677
  %911 = vmatprep.subr.bf16.mxu0 0
  %912 = vmatpush1.bf16.msra.mxu0 %v678
  %913 = vmatprep.subr.bf16.mxu0 0
  %914 = vmatpush1.bf16.msra.mxu0 %v679
  %915 = vmatprep.subr.bf16.mxu0 0
  %916 = vmatpush1.bf16.msra.mxu0 %v680
  %917 = vmatprep.subr.bf16.mxu0 0
  %918 = vmatpush1.bf16.msra.mxu0 %v681
  %919 = vmatprep.subr.bf16.mxu0 0
  %920 = vmatpush1.bf16.msra.mxu0 %v682
  %921 = vmatprep.subr.bf16.mxu0 0
  %922 = vmatpush1.bf16.msra.mxu0 %v683
  %923 = vmatprep.subr.bf16.mxu0 0
  %924 = vmatpush1.bf16.msra.mxu0 %v684
  %925 = vmatprep.subr.bf16.mxu0 0
  %926 = vmatpush1.bf16.msra.mxu0 %v685
  %927 = vmatprep.subr.bf16.mxu0 0
  %928 = vmatpush1.bf16.msra.mxu0 %v686
  %929 = vmatprep.mubr.bf16.mxu0 %v324
  %930 = vmatmul.mubr.bf16.gmra.mrb[0].mxu0 %v323
  %v931 = vpop.f32.mrb[0].mxu0
  %v932 = vadd.f32 %v867, %v931
  %v933 = vpop.f32.mrb[0].mxu0
  %v934 = vpop.f32.mrb[0].mxu0
  %v935 = vadd.f32 %v870, %v934
  %v936 = vpop.f32.mrb[0].mxu0
  %937 = vmatprep.mubr.bf16.mxu0 %v332
  %938 = vmatmul.mubr.bf16.gmra.mrb[0].mxu0 %v331
  %v939 = vpop.f32.mrb[0].mxu0
  %v940 = vadd.f32 %v875, %v939
  %v941 = vpop.f32.mrb[0].mxu0
  %v942 = vpop.f32.mrb[0].mxu0
  %v943 = vadd.f32 %v878, %v942
  %v944 = vpop.f32.mrb[0].mxu0
  %945 = vmatprep.mubr.bf16.mxu0 %v340
  %946 = vmatmul.mubr.bf16.gmra.mrb[0].mxu0 %v339
  %v947 = vpop.f32.mrb[0].mxu0
  %v948 = vadd.f32 %v883, %v947
  %v949 = vpop.f32.mrb[0].mxu0
  %v950 = vpop.f32.mrb[0].mxu0
  %v951 = vadd.f32 %v886, %v950
  %v952 = vpop.f32.mrb[0].mxu0
  %953 = vmatprep.mubr.bf16.mxu0 %v348
  %954 = vmatmul.mubr.bf16.gmra.mrb[0].mxu0 %v347
  %v955 = vpop.f32.mrb[0].mxu0
  %v956 = vadd.f32 %v891, %v955
  %v957 = vpop.f32.mrb[0].mxu0
  %v958 = vpop.f32.mrb[0].mxu0
  %v959 = vadd.f32 %v894, %v958
  %v960 = vpop.f32.mrb[0].mxu0
  %961 = vdwg.mxu0
  %962 = vmatprep.subr.bf16.mxu0 0
  %963 = vmatpush1.bf16.msra.mxu0 %v687
  %964 = vmatprep.subr.bf16.mxu0 0
  %965 = vmatpush1.bf16.msra.mxu0 %v688
  %966 = vmatprep.subr.bf16.mxu0 0
  %967 = vmatpush1.bf16.msra.mxu0 %v689
  %968 = vmatprep.subr.bf16.mxu0 0
  %969 = vmatpush1.bf16.msra.mxu0 %v690
  %970 = vmatprep.subr.bf16.mxu0 0
  %971 = vmatpush1.bf16.msra.mxu0 %v691
  %972 = vmatprep.subr.bf16.mxu0 0
  %973 = vmatpush1.bf16.msra.mxu0 %v692
  %974 = vmatprep.subr.bf16.mxu0 0
  %975 = vmatpush1.bf16.msra.mxu0 %v693
  %976 = vmatprep.subr.bf16.mxu0 0
  %977 = vmatpush1.bf16.msra.mxu0 %v694
  %978 = vmatprep.subr.bf16.mxu0 0
  %979 = vmatpush1.bf16.msra.mxu0 %v695
  %980 = vmatprep.subr.bf16.mxu0 0
  %981 = vmatpush1.bf16.msra.mxu0 %v696
  %982 = vmatprep.subr.bf16.mxu0 0
  %983 = vmatpush1.bf16.msra.mxu0 %v697
  %984 = vmatprep.subr.bf16.mxu0 0
  %985 = vmatpush1.bf16.msra.mxu0 %v698
  %986 = vmatprep.subr.bf16.mxu0 0
  %987 = vmatpush1.bf16.msra.mxu0 %v699
  %988 = vmatprep.subr.bf16.mxu0 0
  %989 = vmatpush1.bf16.msra.mxu0 %v700
  %990 = vmatprep.subr.bf16.mxu0 0
  %991 = vmatpush1.bf16.msra.mxu0 %v701
  %992 = vmatprep.subr.bf16.mxu0 0
  %993 = vmatpush1.bf16.msra.mxu0 %v702
  %994 = vmatprep.mubr.bf16.mxu0 %v326
  %995 = vmatmul.mubr.bf16.gmra.mrb[0].mxu0 %v325
  %v996 = vpop.f32.mrb[0].mxu0
  %v997 = vadd.f32 %v932, %v996
  %v998 = vpop.f32.mrb[0].mxu0
  %v999 = vpop.f32.mrb[0].mxu0
  %v1000 = vadd.f32 %v935, %v999
  %v1001 = vpop.f32.mrb[0].mxu0
  %1002 = vmatprep.mubr.bf16.mxu0 %v334
  %1003 = vmatmul.mubr.bf16.gmra.mrb[0].mxu0 %v333
  %v1004 = vpop.f32.mrb[0].mxu0
  %v1005 = vadd.f32 %v940, %v1004
  %v1006 = vpop.f32.mrb[0].mxu0
  %v1007 = vpop.f32.mrb[0].mxu0
  %v1008 = vadd.f32 %v943, %v1007
  %v1009 = vpop.f32.mrb[0].mxu0
  %1010 = vmatprep.mubr.bf16.mxu0 %v342
  %1011 = vmatmul.mubr.bf16.gmra.mrb[0].mxu0 %v341
  %v1012 = vpop.f32.mrb[0].mxu0
  %v1013 = vadd.f32 %v948, %v1012
  %v1014 = vpop.f32.mrb[0].mxu0
  %v1015 = vpop.f32.mrb[0].mxu0
  %v1016 = vadd.f32 %v951, %v1015
  %v1017 = vpop.f32.mrb[0].mxu0
  %1018 = vmatprep.mubr.bf16.mxu0 %v350
  %1019 = vmatmul.mubr.bf16.gmra.mrb[0].mxu0 %v349
  %v1020 = vpop.f32.mrb[0].mxu0
  %v1021 = vadd.f32 %v956, %v1020
  %v1022 = vpop.f32.mrb[0].mxu0
  %v1023 = vpop.f32.mrb[0].mxu0
  %v1024 = vadd.f32 %v959, %v1023
  %v1025 = vpop.f32.mrb[0].mxu0
  %1026 = vdwg.mxu0
  %v1027 = vmax.f32 %v997, 0.0
  %v1028 = vmax.f32 %v1000, 0.0
  %v1029 = vmax.f32 %v1005, 0.0
  %v1030 = vmax.f32 %v1008, 0.0
  %v1031 = vmax.f32 %v1013, 0.0
  %v1032 = vmax.f32 %v1016, 0.0
  %v1033 = vmax.f32 %v1021, 0.0
  %v1034 = vmax.f32 %v1024, 0.0
  %v1035 = vpack.c.bf16 %v1028, %v1027
  %v1036 = vpack.c.bf16 %v1030, %v1029
  %v1037 = vpack.c.bf16 %v1032, %v1031
  %v1038 = vpack.c.bf16 %v1034, %v1033
  %v1043 = vunpack.c.l.b16 %v1035
  %v1044 = vunpack.c.h.b16 %v1035
  %v1045 = vunpack.c.l.b16 %v1036
  %v1046 = vunpack.c.h.b16 %v1036
  %v1047 = vunpack.c.l.b16 %v1037
  %v1048 = vunpack.c.h.b16 %v1037
  %v1049 = vunpack.c.l.b16 %v1038
  %v1050 = vunpack.c.h.b16 %v1038
  %v1051 = vpack.c.b16 %v1043, %v1043
  %v1052 = vpack.c.b16 %v1044, %v1044
  %v1053 = vpack.c.b16 %v1045, %v1045
  %v1054 = vpack.c.b16 %v1046, %v1046
  %v1055 = vpack.c.b16 %v1047, %v1047
  %v1056 = vpack.c.b16 %v1048, %v1048
  %v1057 = vpack.c.b16 %v1049, %v1049
  %v1058 = vpack.c.b16 %v1050, %v1050
  %1067 = vst [vmem:[%s3] sm:$0xf] %v1051
  %1068 = vst [vmem:[%s3 + $0x4] sm:$0xf] %v1052
  %1069 = vst [vmem:[%s3 + $0x8] sm:$0xf] %v1053
  %1070 = vst [vmem:[%s3 + $0xc] sm:$0xf] %v1054
  %1071 = vst [vmem:[%s3 + $0x10] sm:$0xf] %v1055
  %1072 = vst [vmem:[%s3 + $0x14] sm:$0xf] %v1056
  %1073 = vst [vmem:[%s3 + $0x18] sm:$0xf] %v1057
  %1074 = vst [vmem:[%s3 + $0x1c] sm:$0xf] %v1058
  // Predicated region
  $region14: #{beta_tc_vae_forward.12} parent=0 // pred_check
    _
  $region15: #{beta_tc_vae_forward.12} parent=0 // pred_check_branch
    %1076 = sbr.rel (0) target = $region17
  $region16: #{beta_tc_vae_forward.12} parent=0 // pred_region
    _
  $region17: #{beta_tc_vae_forward.12} parent=0 // pred_fallthru
    _
  // Predicated region
  $region18: #{beta_tc_vae_forward.12} parent=0 // pred_check
    _
  $region19: #{beta_tc_vae_forward.12} parent=0 // pred_check_branch
    %1078 = sbr.rel (0) target = $region21
  $region20: #{beta_tc_vae_forward.12} parent=0 // pred_region
    _
  $region21: #{beta_tc_vae_forward.12} parent=0 // pred_fallthru
    _

// kernel: beta_tc_vae_forward.13
$region0: #{beta_tc_vae_forward.13}
  #allocation0 [shape = 'u32[]', space=smem, size = 0x4, offset = 0x4, fixed_abs, tag = 'smem constant byte address 0x4 - core index']
  #allocation1 [shape = 'u32[144,128]{1,0:T(1,128)}', space=vmem, size = 0x12000, scoped, tag = 'internal scratch']
  %s0 = inlined_call_operand.vmem [shape: bf16[2,1024], index: 0, kind: input, shape index: {}]
  %s1 = inlined_call_operand.vmem [shape: f32[2,8], index: 1, kind: input, shape index: {}]
  %s2 = inlined_call_operand.vmem [shape: bf16[1024,256], index: 2, kind: input, shape index: {}]
  %s3 = inlined_call_operand.vmem [shape: f32[1,256], index: 3, kind: input, shape index: {}]
  %s4 = inlined_call_operand.vmem [shape: f32[256,16], index: 4, kind: input, shape index: {}]
  %s5 = inlined_call_operand.vmem [shape: f32[1,16], index: 5, kind: input, shape index: {}]
  %s6 = inlined_call_operand.vmem [shape: f32[8,256], index: 6, kind: input, shape index: {}]
  %s7 = inlined_call_operand.vmem [shape: f32[1,256], index: 7, kind: input, shape index: {}]
  %s8 = inlined_call_operand.vmem [shape: bf16[256,1024], index: 8, kind: input, shape index: {}]
  %s9 = inlined_call_operand.vmem [shape: f32[1,1024], index: 9, kind: input, shape index: {}]
  %s10 = inlined_call_operand.vmem [shape: f32[2,24], index: 10, kind: output, shape index: {0}]
  %s11 = inlined_call_operand.vmem [shape: bf16[2,1024], index: 11, kind: output, shape index: {1}]
  %12 = xla_tuple %s10, %s11
  %s13 = sld [smem:[#allocation0]]
  $region58: #{beta_tc_vae_forward.13} parent=0
    _
  %s15 = ssub.s32 1, %s13
  %s16 = scalar_select 0, %s15, %s13
  // Predicated region
  $region2: #{beta_tc_vae_forward.13} parent=0 // pred_check
    _
  $region3: #{beta_tc_vae_forward.13} parent=0 // pred_check_branch
    %18 = sbr.rel (0) target = $region5
  $region4: #{beta_tc_vae_forward.13} parent=0 // pred_region
    _
  $region5: #{beta_tc_vae_forward.13} parent=0 // pred_fallthru
    _
  // Predicated region
  $region6: #{beta_tc_vae_forward.13} parent=0 // pred_check
    _
  $region7: #{beta_tc_vae_forward.13} parent=0 // pred_check_branch
    %20 = sbr.rel (0) target = $region9
  $region8: #{beta_tc_vae_forward.13} parent=0 // pred_region
    _
  $region9: #{beta_tc_vae_forward.13} parent=0 // pred_fallthru
    _
  // Predicated region
  $region10: #{beta_tc_vae_forward.13} parent=0 // pred_check
    _
  $region11: #{beta_tc_vae_forward.13} parent=0 // pred_check_branch
    %22 = sbr.rel (0) target = $region13
  $region12: #{beta_tc_vae_forward.13} parent=0 // pred_region
    _
  $region13: #{beta_tc_vae_forward.13} parent=0 // pred_fallthru
    _
  // Predicated region
  $region14: #{beta_tc_vae_forward.13} parent=0 // pred_check
    _
  $region15: #{beta_tc_vae_forward.13} parent=0 // pred_check_branch
    %24 = sbr.rel (0) target = $region17
  $region16: #{beta_tc_vae_forward.13} parent=0 // pred_region
    _
  $region17: #{beta_tc_vae_forward.13} parent=0 // pred_fallthru
    _
  // Predicated region
  $region18: #{beta_tc_vae_forward.13} parent=0 // pred_check
    _
  $region19: #{beta_tc_vae_forward.13} parent=0 // pred_check_branch
    %26 = sbr.rel (0) target = $region21
  $region20: #{beta_tc_vae_forward.13} parent=0 // pred_region
    _
  $region21: #{beta_tc_vae_forward.13} parent=0 // pred_fallthru
    _
  // Predicated region
  $region22: #{beta_tc_vae_forward.13} parent=0 // pred_check
    _
  $region23: #{beta_tc_vae_forward.13} parent=0 // pred_check_branch
    %28 = sbr.rel (0) target = $region25
  $region24: #{beta_tc_vae_forward.13} parent=0 // pred_region
    _
  $region25: #{beta_tc_vae_forward.13} parent=0 // pred_fallthru
    _
  // Predicated region
  $region26: #{beta_tc_vae_forward.13} parent=0 // pred_check
    _
  $region27: #{beta_tc_vae_forward.13} parent=0 // pred_check_branch
    %30 = sbr.rel (0) target = $region29
  $region28: #{beta_tc_vae_forward.13} parent=0 // pred_region
    _
  $region29: #{beta_tc_vae_forward.13} parent=0 // pred_fallthru
    _
  // Predicated region
  $region30: #{beta_tc_vae_forward.13} parent=0 // pred_check
    _
  $region31: #{beta_tc_vae_forward.13} parent=0 // pred_check_branch
    %32 = sbr.rel (0) target = $region33
  $region32: #{beta_tc_vae_forward.13} parent=0 // pred_region
    _
  $region33: #{beta_tc_vae_forward.13} parent=0 // pred_fallthru
    _
  // Predicated region
  $region34: #{beta_tc_vae_forward.13} parent=0 // pred_check
    _
  $region35: #{beta_tc_vae_forward.13} parent=0 // pred_check_branch
    %34 = sbr.rel (0) target = $region37
  $region36: #{beta_tc_vae_forward.13} parent=0 // pred_region
    _
  $region37: #{beta_tc_vae_forward.13} parent=0 // pred_fallthru
    _
  // Predicated region
  $region38: #{beta_tc_vae_forward.13} parent=0 // pred_check
    _
  $region39: #{beta_tc_vae_forward.13} parent=0 // pred_check_branch
    %36 = sbr.rel (0) target = $region41
  $region40: #{beta_tc_vae_forward.13} parent=0 // pred_region
    _
  $region41: #{beta_tc_vae_forward.13} parent=0 // pred_fallthru
    _
  %v37 = vld [vmem:[%s0] sm:$0xff]
  %v38 = vld [vmem:[%s2] sm:$0xff]
  %v39 = vld [vmem:[%s2 + $0x8] sm:$0xff]
  %v40 = vld [vmem:[%s2 + $0x10] sm:$0xff]
  %v41 = vld [vmem:[%s2 + $0x18] sm:$0xff]
  %v42 = vld [vmem:[%s2 + $0x20] sm:$0xff]
  %v43 = vld [vmem:[%s2 + $0x28] sm:$0xff]
  %v44 = vld [vmem:[%s2 + $0x30] sm:$0xff]
  %v45 = vld [vmem:[%s2 + $0x38] sm:$0xff]
  %v46 = vld [vmem:[%s2 + $0x40] sm:$0xff]
  %v47 = vld [vmem:[%s2 + $0x48] sm:$0xff]
  %v48 = vld [vmem:[%s2 + $0x50] sm:$0xff]
  %v49 = vld [vmem:[%s2 + $0x58] sm:$0xff]
  %v50 = vld [vmem:[%s2 + $0x60] sm:$0xff]
  %v51 = vld [vmem:[%s2 + $0x68] sm:$0xff]
  %v52 = vld [vmem:[%s2 + $0x70] sm:$0xff]
  %v53 = vld [vmem:[%s2 + $0x78] sm:$0xff]
  %v54 = vld [vmem:[%s2 + $0x80] sm:$0xff]
  %v55 = vld [vmem:[%s2 + $0x88] sm:$0xff]
  %v56 = vld [vmem:[%s2 + $0x90] sm:$0xff]
  %v57 = vld [vmem:[%s2 + $0x98] sm:$0xff]
  %v58 = vld [vmem:[%s2 + $0xa0] sm:$0xff]
  %v59 = vld [vmem:[%s2 + $0xa8] sm:$0xff]
  %v60 = vld [vmem:[%s2 + $0xb0] sm:$0xff]
  %v61 = vld [vmem:[%s2 + $0xb8] sm:$0xff]
  %v62 = vld [vmem:[%s2 + $0xc0] sm:$0xff]
  %v63 = vld [vmem:[%s2 + $0xc8] sm:$0xff]
  %v64 = vld [vmem:[%s2 + $0xd0] sm:$0xff]
  %v65 = vld [vmem:[%s2 + $0xd8] sm:$0xff]
  %v66 = vld [vmem:[%s2 + $0xe0] sm:$0xff]
  %v67 = vld [vmem:[%s2 + $0xe8] sm:$0xff]
  %v68 = vld [vmem:[%s2 + $0xf0] sm:$0xff]
  %v69 = vld [vmem:[%s2 + $0xf8] sm:$0xff]
  %v70 = vld [vmem:[%s2 + $0x100] sm:$0xff]
  %v71 = vld [vmem:[%s2 + $0x108] sm:$0xff]
  %v72 = vld [vmem:[%s2 + $0x110] sm:$0xff]
  %v73 = vld [vmem:[%s2 + $0x118] sm:$0xff]
  %v74 = vld [vmem:[%s2 + $0x120] sm:$0xff]
  %v75 = vld [vmem:[%s2 + $0x128] sm:$0xff]
  %v76 = vld [vmem:[%s2 + $0x130] sm:$0xff]
  %v77 = vld [vmem:[%s2 + $0x138] sm:$0xff]
  %v78 = vld [vmem:[%s2 + $0x140] sm:$0xff]
  %v79 = vld [vmem:[%s2 + $0x148] sm:$0xff]
  %v80 = vld [vmem:[%s2 + $0x150] sm:$0xff]
  %v81 = vld [vmem:[%s2 + $0x158] sm:$0xff]
  %v82 = vld [vmem:[%s2 + $0x160] sm:$0xff]
  %v83 = vld [vmem:[%s2 + $0x168] sm:$0xff]
  %v84 = vld [vmem:[%s2 + $0x170] sm:$0xff]
  %v85 = vld [vmem:[%s2 + $0x178] sm:$0xff]
  %v86 = vld [vmem:[%s2 + $0x180] sm:$0xff]
  %v87 = vld [vmem:[%s2 + $0x188] sm:$0xff]
  %v88 = vld [vmem:[%s2 + $0x190] sm:$0xff]
  %v89 = vld [vmem:[%s2 + $0x198] sm:$0xff]
  %v90 = vld [vmem:[%s2 + $0x1a0] sm:$0xff]
  %v91 = vld [vmem:[%s2 + $0x1a8] sm:$0xff]
  %v92 = vld [vmem:[%s2 + $0x1b0] sm:$0xff]
  %v93 = vld [vmem:[%s2 + $0x1b8] sm:$0xff]
  %v94 = vld [vmem:[%s2 + $0x1c0] sm:$0xff]
  %v95 = vld [vmem:[%s2 + $0x1c8] sm:$0xff]
  %v96 = vld [vmem:[%s2 + $0x1d0] sm:$0xff]
  %v97 = vld [vmem:[%s2 + $0x1d8] sm:$0xff]
  %v98 = vld [vmem:[%s2 + $0x1e0] sm:$0xff]
  %v99 = vld [vmem:[%s2 + $0x1e8] sm:$0xff]
  %v100 = vld [vmem:[%s2 + $0x1f0] sm:$0xff]
  %v101 = vld [vmem:[%s2 + $0x1f8] sm:$0xff]
  %v102 = vld [vmem:[%s2 + $0x200] sm:$0xff]
  %v103 = vld [vmem:[%s2 + $0x208] sm:$0xff]
  %v104 = vld [vmem:[%s2 + $0x210] sm:$0xff]
  %v105 = vld [vmem:[%s2 + $0x218] sm:$0xff]
  %v106 = vld [vmem:[%s2 + $0x220] sm:$0xff]
  %v107 = vld [vmem:[%s2 + $0x228] sm:$0xff]
  %v108 = vld [vmem:[%s2 + $0x230] sm:$0xff]
  %v109 = vld [vmem:[%s2 + $0x238] sm:$0xff]
  %v110 = vld [vmem:[%s2 + $0x240] sm:$0xff]
  %v111 = vld [vmem:[%s2 + $0x248] sm:$0xff]
  %v112 = vld [vmem:[%s2 + $0x250] sm:$0xff]
  %v113 = vld [vmem:[%s2 + $0x258] sm:$0xff]
  %v114 = vld [vmem:[%s2 + $0x260] sm:$0xff]
  %v115 = vld [vmem:[%s2 + $0x268] sm:$0xff]
  %v116 = vld [vmem:[%s2 + $0x270] sm:$0xff]
  %v117 = vld [vmem:[%s2 + $0x278] sm:$0xff]
  %v118 = vld [vmem:[%s2 + $0x280] sm:$0xff]
  %v119 = vld [vmem:[%s2 + $0x288] sm:$0xff]
  %v120 = vld [vmem:[%s2 + $0x290] sm:$0xff]
  %v121 = vld [vmem:[%s2 + $0x298] sm:$0xff]
  %v122 = vld [vmem:[%s2 + $0x2a0] sm:$0xff]
  %v123 = vld [vmem:[%s2 + $0x2a8] sm:$0xff]
  %v124 = vld [vmem:[%s2 + $0x2b0] sm:$0xff]
  %v125 = vld [vmem:[%s2 + $0x2b8] sm:$0xff]
  %v126 = vld [vmem:[%s2 + $0x2c0] sm:$0xff]
  %v127 = vld [vmem:[%s2 + $0x2c8] sm:$0xff]
  %v128 = vld [vmem:[%s2 + $0x2d0] sm:$0xff]
  %v129 = vld [vmem:[%s2 + $0x2d8] sm:$0xff]
  %v130 = vld [vmem:[%s2 + $0x2e0] sm:$0xff]
  %v131 = vld [vmem:[%s2 + $0x2e8] sm:$0xff]
  %v132 = vld [vmem:[%s2 + $0x2f0] sm:$0xff]
  %v133 = vld [vmem:[%s2 + $0x2f8] sm:$0xff]
  %v134 = vld [vmem:[%s2 + $0x300] sm:$0xff]
  %v135 = vld [vmem:[%s2 + $0x308] sm:$0xff]
  %v136 = vld [vmem:[%s2 + $0x310] sm:$0xff]
  %v137 = vld [vmem:[%s2 + $0x318] sm:$0xff]
  %v138 = vld [vmem:[%s2 + $0x320] sm:$0xff]
  %v139 = vld [vmem:[%s2 + $0x328] sm:$0xff]
  %v140 = vld [vmem:[%s2 + $0x330] sm:$0xff]
  %v141 = vld [vmem:[%s2 + $0x338] sm:$0xff]
  %v142 = vld [vmem:[%s2 + $0x340] sm:$0xff]
  %v143 = vld [vmem:[%s2 + $0x348] sm:$0xff]
  %v144 = vld [vmem:[%s2 + $0x350] sm:$0xff]
  %v145 = vld [vmem:[%s2 + $0x358] sm:$0xff]
  %v146 = vld [vmem:[%s2 + $0x360] sm:$0xff]
  %v147 = vld [vmem:[%s2 + $0x368] sm:$0xff]
  %v148 = vld [vmem:[%s2 + $0x370] sm:$0xff]
  %v149 = vld [vmem:[%s2 + $0x378] sm:$0xff]
  %v150 = vld [vmem:[%s2 + $0x380] sm:$0xff]
  %v151 = vld [vmem:[%s2 + $0x388] sm:$0xff]
  %v152 = vld [vmem:[%s2 + $0x390] sm:$0xff]
  %v153 = vld [vmem:[%s2 + $0x398] sm:$0xff]
  %v154 = vld [vmem:[%s2 + $0x3a0] sm:$0xff]
  %v155 = vld [vmem:[%s2 + $0x3a8] sm:$0xff]
  %v156 = vld [vmem:[%s2 + $0x3b0] sm:$0xff]
  %v157 = vld [vmem:[%s2 + $0x3b8] sm:$0xff]
  %v158 = vld [vmem:[%s2 + $0x3c0] sm:$0xff]
  %v159 = vld [vmem:[%s2 + $0x3c8] sm:$0xff]
  %v160 = vld [vmem:[%s2 + $0x3d0] sm:$0xff]
  %v161 = vld [vmem:[%s2 + $0x3d8] sm:$0xff]
  %v162 = vld [vmem:[%s2 + $0x3e0] sm:$0xff]
  %v163 = vld [vmem:[%s2 + $0x3e8] sm:$0xff]
  %v164 = vld [vmem:[%s2 + $0x3f0] sm:$0xff]
  %v165 = vld [vmem:[%s2 + $0x3f8] sm:$0xff]
  %v166 = vld [vmem:[%s3] sm:$0x3]
  %v168 = vlaneseq
  %v169 = vshrl.u32 %v168, 7
  %v170 = vsub.s32 0, %v169
  %v171 = vrot.slane %v166, %v170
  %v172 = vlaneseq
  %v173 = vshrl.u32 %v172, 7
  %v174 = vsub.s32 1, %v173
  %v175 = vrot.slane %v166, %v174
  %v179 = vcombine.high %v37, %v37
  %v181 = vunpack.c.l.s4 1966171168
  %v182 = vunpack.c.0.s8 %v181
  %v183 = vlaneseq
  %v184 = vshrl.u32 %v183, 7
  %v185 = vsub.s32 %v182, %v184
  %v186 = vrot.slane %v37, %v185
  %v188 = vunpack.c.l.s4 1966171168
  %v189 = vunpack.c.0.s8 %v188
  %v190 = vlaneseq
  %v191 = vshrl.u32 %v190, 7
  %v192 = vsub.s32 %v189, %v191
  %v193 = vrot.slane %v179, %v192
  %v194 = vcombine.high %v186, %v186
  %v195 = vcombine.high %v193, %v193
  %v197 = vunpack.c.l.s4 1966171168
  %v198 = vunpack.c.0.s8 %v197
  %v199 = vlaneseq
  %v200 = vshrl.u32 %v199, 7
  %v201 = vsub.s32 %v198, %v200
  %v202 = vrot.slane %v186, %v201
  %v204 = vunpack.c.l.s4 1966171168
  %v205 = vunpack.c.0.s8 %v204
  %v206 = vlaneseq
  %v207 = vshrl.u32 %v206, 7
  %v208 = vsub.s32 %v205, %v207
  %v209 = vrot.slane %v193, %v208
  %v211 = vunpack.c.l.s4 1966171168
  %v212 = vunpack.c.0.s8 %v211
  %v213 = vlaneseq
  %v214 = vshrl.u32 %v213, 7
  %v215 = vsub.s32 %v212, %v214
  %v216 = vrot.slane %v194, %v215
  %v218 = vunpack.c.l.s4 1966171168
  %v219 = vunpack.c.0.s8 %v218
  %v220 = vlaneseq
  %v221 = vshrl.u32 %v220, 7
  %v222 = vsub.s32 %v219, %v221
  %v223 = vrot.slane %v195, %v222
  %v224 = vcombine.high %v202, %v202
  %v225 = vcombine.high %v209, %v209
  %v226 = vcombine.high %v216, %v216
  %v227 = vcombine.high %v223, %v223
  %v364 = vunpack.c.l.b16 %v38
  %v365 = vunpack.c.h.b16 %v38
  %v366 = vunpack.c.l.b16 %v39
  %v367 = vunpack.c.h.b16 %v39
  %v368 = vunpack.c.l.b16 %v40
  %v369 = vunpack.c.h.b16 %v40
  %v370 = vunpack.c.l.b16 %v41
  %v371 = vunpack.c.h.b16 %v41
  %v372 = vunpack.c.l.b16 %v42
  %v373 = vunpack.c.h.b16 %v42
  %v374 = vunpack.c.l.b16 %v43
  %v375 = vunpack.c.h.b16 %v43
  %v376 = vunpack.c.l.b16 %v44
  %v377 = vunpack.c.h.b16 %v44
  %v378 = vunpack.c.l.b16 %v45
  %v379 = vunpack.c.h.b16 %v45
  %v380 = vunpack.c.l.b16 %v46
  %v381 = vunpack.c.h.b16 %v46
  %v382 = vunpack.c.l.b16 %v47
  %v383 = vunpack.c.h.b16 %v47
  %v384 = vunpack.c.l.b16 %v48
  %v385 = vunpack.c.h.b16 %v48
  %v386 = vunpack.c.l.b16 %v49
  %v387 = vunpack.c.h.b16 %v49
  %v388 = vunpack.c.l.b16 %v50
  %v389 = vunpack.c.h.b16 %v50
  %v390 = vunpack.c.l.b16 %v51
  %v391 = vunpack.c.h.b16 %v51
  %v392 = vunpack.c.l.b16 %v52
  %v393 = vunpack.c.h.b16 %v52
  %v394 = vunpack.c.l.b16 %v53
  %v395 = vunpack.c.h.b16 %v53
  %v396 = vunpack.c.l.b16 %v54
  %v397 = vunpack.c.h.b16 %v54
  %v398 = vunpack.c.l.b16 %v55
  %v399 = vunpack.c.h.b16 %v55
  %v400 = vunpack.c.l.b16 %v56
  %v401 = vunpack.c.h.b16 %v56
  %v402 = vunpack.c.l.b16 %v57
  %v403 = vunpack.c.h.b16 %v57
  %v404 = vunpack.c.l.b16 %v58
  %v405 = vunpack.c.h.b16 %v58
  %v406 = vunpack.c.l.b16 %v59
  %v407 = vunpack.c.h.b16 %v59
  %v408 = vunpack.c.l.b16 %v60
  %v409 = vunpack.c.h.b16 %v60
  %v410 = vunpack.c.l.b16 %v61
  %v411 = vunpack.c.h.b16 %v61
  %v412 = vunpack.c.l.b16 %v62
  %v413 = vunpack.c.h.b16 %v62
  %v414 = vunpack.c.l.b16 %v63
  %v415 = vunpack.c.h.b16 %v63
  %v416 = vunpack.c.l.b16 %v64
  %v417 = vunpack.c.h.b16 %v64
  %v418 = vunpack.c.l.b16 %v65
  %v419 = vunpack.c.h.b16 %v65
  %v420 = vunpack.c.l.b16 %v66
  %v421 = vunpack.c.h.b16 %v66
  %v422 = vunpack.c.l.b16 %v67
  %v423 = vunpack.c.h.b16 %v67
  %v424 = vunpack.c.l.b16 %v68
  %v425 = vunpack.c.h.b16 %v68
  %v426 = vunpack.c.l.b16 %v69
  %v427 = vunpack.c.h.b16 %v69
  %v428 = vunpack.c.l.b16 %v70
  %v429 = vunpack.c.h.b16 %v70
  %v430 = vunpack.c.l.b16 %v71
  %v431 = vunpack.c.h.b16 %v71
  %v432 = vunpack.c.l.b16 %v72
  %v433 = vunpack.c.h.b16 %v72
  %v434 = vunpack.c.l.b16 %v73
  %v435 = vunpack.c.h.b16 %v73
  %v436 = vunpack.c.l.b16 %v74
  %v437 = vunpack.c.h.b16 %v74
  %v438 = vunpack.c.l.b16 %v75
  %v439 = vunpack.c.h.b16 %v75
  %v440 = vunpack.c.l.b16 %v76
  %v441 = vunpack.c.h.b16 %v76
  %v442 = vunpack.c.l.b16 %v77
  %v443 = vunpack.c.h.b16 %v77
  %v444 = vunpack.c.l.b16 %v78
  %v445 = vunpack.c.h.b16 %v78
  %v446 = vunpack.c.l.b16 %v79
  %v447 = vunpack.c.h.b16 %v79
  %v448 = vunpack.c.l.b16 %v80
  %v449 = vunpack.c.h.b16 %v80
  %v450 = vunpack.c.l.b16 %v81
  %v451 = vunpack.c.h.b16 %v81
  %v452 = vunpack.c.l.b16 %v82
  %v453 = vunpack.c.h.b16 %v82
  %v454 = vunpack.c.l.b16 %v83
  %v455 = vunpack.c.h.b16 %v83
  %v456 = vunpack.c.l.b16 %v84
  %v457 = vunpack.c.h.b16 %v84
  %v458 = vunpack.c.l.b16 %v85
  %v459 = vunpack.c.h.b16 %v85
  %v460 = vunpack.c.l.b16 %v86
  %v461 = vunpack.c.h.b16 %v86
  %v462 = vunpack.c.l.b16 %v87
  %v463 = vunpack.c.h.b16 %v87
  %v464 = vunpack.c.l.b16 %v88
  %v465 = vunpack.c.h.b16 %v88
  %v466 = vunpack.c.l.b16 %v89
  %v467 = vunpack.c.h.b16 %v89
  %v468 = vunpack.c.l.b16 %v90
  %v469 = vunpack.c.h.b16 %v90
  %v470 = vunpack.c.l.b16 %v91
  %v471 = vunpack.c.h.b16 %v91
  %v472 = vunpack.c.l.b16 %v92
  %v473 = vunpack.c.h.b16 %v92
  %v474 = vunpack.c.l.b16 %v93
  %v475 = vunpack.c.h.b16 %v93
  %v476 = vunpack.c.l.b16 %v94
  %v477 = vunpack.c.h.b16 %v94
  %v478 = vunpack.c.l.b16 %v95
  %v479 = vunpack.c.h.b16 %v95
  %v480 = vunpack.c.l.b16 %v96
  %v481 = vunpack.c.h.b16 %v96
  %v482 = vunpack.c.l.b16 %v97
  %v483 = vunpack.c.h.b16 %v97
  %v484 = vunpack.c.l.b16 %v98
  %v485 = vunpack.c.h.b16 %v98
  %v486 = vunpack.c.l.b16 %v99
  %v487 = vunpack.c.h.b16 %v99
  %v488 = vunpack.c.l.b16 %v100
  %v489 = vunpack.c.h.b16 %v100
  %v490 = vunpack.c.l.b16 %v101
  %v491 = vunpack.c.h.b16 %v101
  %v492 = vunpack.c.l.b16 %v102
  %v493 = vunpack.c.h.b16 %v102
  %v494 = vunpack.c.l.b16 %v103
  %v495 = vunpack.c.h.b16 %v103
  %v496 = vunpack.c.l.b16 %v104
  %v497 = vunpack.c.h.b16 %v104
  %v498 = vunpack.c.l.b16 %v105
  %v499 = vunpack.c.h.b16 %v105
  %v500 = vunpack.c.l.b16 %v106
  %v501 = vunpack.c.h.b16 %v106
  %v502 = vunpack.c.l.b16 %v107
  %v503 = vunpack.c.h.b16 %v107
  %v504 = vunpack.c.l.b16 %v108
  %v505 = vunpack.c.h.b16 %v108
  %v506 = vunpack.c.l.b16 %v109
  %v507 = vunpack.c.h.b16 %v109
  %v508 = vunpack.c.l.b16 %v110
  %v509 = vunpack.c.h.b16 %v110
  %v510 = vunpack.c.l.b16 %v111
  %v511 = vunpack.c.h.b16 %v111
  %v512 = vunpack.c.l.b16 %v112
  %v513 = vunpack.c.h.b16 %v112
  %v514 = vunpack.c.l.b16 %v113
  %v515 = vunpack.c.h.b16 %v113
  %v516 = vunpack.c.l.b16 %v114
  %v517 = vunpack.c.h.b16 %v114
  %v518 = vunpack.c.l.b16 %v115
  %v519 = vunpack.c.h.b16 %v115
  %v520 = vunpack.c.l.b16 %v116
  %v521 = vunpack.c.h.b16 %v116
  %v522 = vunpack.c.l.b16 %v117
  %v523 = vunpack.c.h.b16 %v117
  %v524 = vunpack.c.l.b16 %v118
  %v525 = vunpack.c.h.b16 %v118
  %v526 = vunpack.c.l.b16 %v119
  %v527 = vunpack.c.h.b16 %v119
  %v528 = vunpack.c.l.b16 %v120
  %v529 = vunpack.c.h.b16 %v120
  %v530 = vunpack.c.l.b16 %v121
  %v531 = vunpack.c.h.b16 %v121
  %v532 = vunpack.c.l.b16 %v122
  %v533 = vunpack.c.h.b16 %v122
  %v534 = vunpack.c.l.b16 %v123
  %v535 = vunpack.c.h.b16 %v123
  %v536 = vunpack.c.l.b16 %v124
  %v537 = vunpack.c.h.b16 %v124
  %v538 = vunpack.c.l.b16 %v125
  %v539 = vunpack.c.h.b16 %v125
  %v540 = vunpack.c.l.b16 %v126
  %v541 = vunpack.c.h.b16 %v126
  %v542 = vunpack.c.l.b16 %v127
  %v543 = vunpack.c.h.b16 %v127
  %v544 = vunpack.c.l.b16 %v128
  %v545 = vunpack.c.h.b16 %v128
  %v546 = vunpack.c.l.b16 %v129
  %v547 = vunpack.c.h.b16 %v129
  %v548 = vunpack.c.l.b16 %v130
  %v549 = vunpack.c.h.b16 %v130
  %v550 = vunpack.c.l.b16 %v131
  %v551 = vunpack.c.h.b16 %v131
  %v552 = vunpack.c.l.b16 %v132
  %v553 = vunpack.c.h.b16 %v132
  %v554 = vunpack.c.l.b16 %v133
  %v555 = vunpack.c.h.b16 %v133
  %v556 = vunpack.c.l.b16 %v134
  %v557 = vunpack.c.h.b16 %v134
  %v558 = vunpack.c.l.b16 %v135
  %v559 = vunpack.c.h.b16 %v135
  %v560 = vunpack.c.l.b16 %v136
  %v561 = vunpack.c.h.b16 %v136
  %v562 = vunpack.c.l.b16 %v137
  %v563 = vunpack.c.h.b16 %v137
  %v564 = vunpack.c.l.b16 %v138
  %v565 = vunpack.c.h.b16 %v138
  %v566 = vunpack.c.l.b16 %v139
  %v567 = vunpack.c.h.b16 %v139
  %v568 = vunpack.c.l.b16 %v140
  %v569 = vunpack.c.h.b16 %v140
  %v570 = vunpack.c.l.b16 %v141
  %v571 = vunpack.c.h.b16 %v141
  %v572 = vunpack.c.l.b16 %v142
  %v573 = vunpack.c.h.b16 %v142
  %v574 = vunpack.c.l.b16 %v143
  %v575 = vunpack.c.h.b16 %v143
  %v576 = vunpack.c.l.b16 %v144
  %v577 = vunpack.c.h.b16 %v144
  %v578 = vunpack.c.l.b16 %v145
  %v579 = vunpack.c.h.b16 %v145
  %v580 = vunpack.c.l.b16 %v146
  %v581 = vunpack.c.h.b16 %v146
  %v582 = vunpack.c.l.b16 %v147
  %v583 = vunpack.c.h.b16 %v147
  %v584 = vunpack.c.l.b16 %v148
  %v585 = vunpack.c.h.b16 %v148
  %v586 = vunpack.c.l.b16 %v149
  %v587 = vunpack.c.h.b16 %v149
  %v588 = vunpack.c.l.b16 %v150
  %v589 = vunpack.c.h.b16 %v150
  %v590 = vunpack.c.l.b16 %v151
  %v591 = vunpack.c.h.b16 %v151
  %v592 = vunpack.c.l.b16 %v152
  %v593 = vunpack.c.h.b16 %v152
  %v594 = vunpack.c.l.b16 %v153
  %v595 = vunpack.c.h.b16 %v153
  %v596 = vunpack.c.l.b16 %v154
  %v597 = vunpack.c.h.b16 %v154
  %v598 = vunpack.c.l.b16 %v155
  %v599 = vunpack.c.h.b16 %v155
  %v600 = vunpack.c.l.b16 %v156
  %v601 = vunpack.c.h.b16 %v156
  %v602 = vunpack.c.l.b16 %v157
  %v603 = vunpack.c.h.b16 %v157
  %v604 = vunpack.c.l.b16 %v158
  %v605 = vunpack.c.h.b16 %v158
  %v606 = vunpack.c.l.b16 %v159
  %v607 = vunpack.c.h.b16 %v159
  %v608 = vunpack.c.l.b16 %v160
  %v609 = vunpack.c.h.b16 %v160
  %v610 = vunpack.c.l.b16 %v161
  %v611 = vunpack.c.h.b16 %v161
  %v612 = vunpack.c.l.b16 %v162
  %v613 = vunpack.c.h.b16 %v162
  %v614 = vunpack.c.l.b16 %v163
  %v615 = vunpack.c.h.b16 %v163
  %v616 = vunpack.c.l.b16 %v164
  %v617 = vunpack.c.h.b16 %v164
  %v618 = vunpack.c.l.b16 %v165
  %v619 = vunpack.c.h.b16 %v165
  %v620 = vpack.c.b16 %v366, %v364
  %v621 = vpack.c.b16 %v367, %v365
  %v622 = vpack.c.b16 %v370, %v368
  %v623 = vpack.c.b16 %v371, %v369
  %v624 = vpack.c.b16 %v374, %v372
  %v625 = vpack.c.b16 %v375, %v373
  %v626 = vpack.c.b16 %v378, %v376
  %v627 = vpack.c.b16 %v379, %v377
  %v628 = vpack.c.b16 %v382, %v380
  %v629 = vpack.c.b16 %v383, %v381
  %v630 = vpack.c.b16 %v386, %v384
  %v631 = vpack.c.b16 %v387, %v385
  %v632 = vpack.c.b16 %v390, %v388
  %v633 = vpack.c.b16 %v391, %v389
  %v634 = vpack.c.b16 %v394, %v392
  %v635 = vpack.c.b16 %v395, %v393
  %v636 = vpack.c.b16 %v398, %v396
  %v637 = vpack.c.b16 %v399, %v397
  %v638 = vpack.c.b16 %v402, %v400
  %v639 = vpack.c.b16 %v403, %v401
  %v640 = vpack.c.b16 %v406, %v404
  %v641 = vpack.c.b16 %v407, %v405
  %v642 = vpack.c.b16 %v410, %v408
  %v643 = vpack.c.b16 %v411, %v409
  %v644 = vpack.c.b16 %v414, %v412
  %v645 = vpack.c.b16 %v415, %v413
  %v646 = vpack.c.b16 %v418, %v416
  %v647 = vpack.c.b16 %v419, %v417
  %v648 = vpack.c.b16 %v422, %v420
  %v649 = vpack.c.b16 %v423, %v421
  %v650 = vpack.c.b16 %v426, %v424
  %v651 = vpack.c.b16 %v427, %v425
  %v652 = vpack.c.b16 %v430, %v428
  %v653 = vpack.c.b16 %v431, %v429
  %v654 = vpack.c.b16 %v434, %v432
  %v655 = vpack.c.b16 %v435, %v433
  %v656 = vpack.c.b16 %v438, %v436
  %v657 = vpack.c.b16 %v439, %v437
  %v658 = vpack.c.b16 %v442, %v440
  %v659 = vpack.c.b16 %v443, %v441
  %v660 = vpack.c.b16 %v446, %v444
  %v661 = vpack.c.b16 %v447, %v445
  %v662 = vpack.c.b16 %v450, %v448
  %v663 = vpack.c.b16 %v451, %v449
  %v664 = vpack.c.b16 %v454, %v452
  %v665 = vpack.c.b16 %v455, %v453
  %v666 = vpack.c.b16 %v458, %v456
  %v667 = vpack.c.b16 %v459, %v457
  %v668 = vpack.c.b16 %v462, %v460
  %v669 = vpack.c.b16 %v463, %v461
  %v670 = vpack.c.b16 %v466, %v464
  %v671 = vpack.c.b16 %v467, %v465
  %v672 = vpack.c.b16 %v470, %v468
  %v673 = vpack.c.b16 %v471, %v469
  %v674 = vpack.c.b16 %v474, %v472
  %v675 = vpack.c.b16 %v475, %v473
  %v676 = vpack.c.b16 %v478, %v476
  %v677 = vpack.c.b16 %v479, %v477
  %v678 = vpack.c.b16 %v482, %v480
  %v679 = vpack.c.b16 %v483, %v481
  %v680 = vpack.c.b16 %v486, %v484
  %v681 = vpack.c.b16 %v487, %v485
  %v682 = vpack.c.b16 %v490, %v488
  %v683 = vpack.c.b16 %v491, %v489
  %v684 = vpack.c.b16 %v494, %v492
  %v685 = vpack.c.b16 %v495, %v493
  %v686 = vpack.c.b16 %v498, %v496
  %v687 = vpack.c.b16 %v499, %v497
  %v688 = vpack.c.b16 %v502, %v500
  %v689 = vpack.c.b16 %v503, %v501
  %v690 = vpack.c.b16 %v506, %v504
  %v691 = vpack.c.b16 %v507, %v505
  %v692 = vpack.c.b16 %v510, %v508
  %v693 = vpack.c.b16 %v511, %v509
  %v694 = vpack.c.b16 %v514, %v512
  %v695 = vpack.c.b16 %v515, %v513
  %v696 = vpack.c.b16 %v518, %v516
  %v697 = vpack.c.b16 %v519, %v517
  %v698 = vpack.c.b16 %v522, %v520
  %v699 = vpack.c.b16 %v523, %v521
  %v700 = vpack.c.b16 %v526, %v524
  %v701 = vpack.c.b16 %v527, %v525
  %v702 = vpack.c.b16 %v530, %v528
  %v703 = vpack.c.b16 %v531, %v529
  %v704 = vpack.c.b16 %v534, %v532
  %v705 = vpack.c.b16 %v535, %v533
  %v706 = vpack.c.b16 %v538, %v536
  %v707 = vpack.c.b16 %v539, %v537
  %v708 = vpack.c.b16 %v542, %v540
  %v709 = vpack.c.b16 %v543, %v541
  %v710 = vpack.c.b16 %v546, %v544
  %v711 = vpack.c.b16 %v547, %v545
  %v712 = vpack.c.b16 %v550, %v548
  %v713 = vpack.c.b16 %v551, %v549
  %v714 = vpack.c.b16 %v554, %v552
  %v715 = vpack.c.b16 %v555, %v553
  %v716 = vpack.c.b16 %v558, %v556
  %v717 = vpack.c.b16 %v559, %v557
  %v718 = vpack.c.b16 %v562, %v560
  %v719 = vpack.c.b16 %v563, %v561
  %v720 = vpack.c.b16 %v566, %v564
  %v721 = vpack.c.b16 %v567, %v565
  %v722 = vpack.c.b16 %v570, %v568
  %v723 = vpack.c.b16 %v571, %v569
  %v724 = vpack.c.b16 %v574, %v572
  %v725 = vpack.c.b16 %v575, %v573
  %v726 = vpack.c.b16 %v578, %v576
  %v727 = vpack.c.b16 %v579, %v577
  %v728 = vpack.c.b16 %v582, %v580
  %v729 = vpack.c.b16 %v583, %v581
  %v730 = vpack.c.b16 %v586, %v584
  %v731 = vpack.c.b16 %v587, %v585
  %v732 = vpack.c.b16 %v590, %v588
  %v733 = vpack.c.b16 %v591, %v589
  %v734 = vpack.c.b16 %v594, %v592
  %v735 = vpack.c.b16 %v595, %v593
  %v736 = vpack.c.b16 %v598, %v596
  %v737 = vpack.c.b16 %v599, %v597
  %v738 = vpack.c.b16 %v602, %v600
  %v739 = vpack.c.b16 %v603, %v601
  %v740 = vpack.c.b16 %v606, %v604
  %v741 = vpack.c.b16 %v607, %v605
  %v742 = vpack.c.b16 %v610, %v608
  %v743 = vpack.c.b16 %v611, %v609
  %v744 = vpack.c.b16 %v614, %v612
  %v745 = vpack.c.b16 %v615, %v613
  %v746 = vpack.c.b16 %v618, %v616
  %v747 = vpack.c.b16 %v619, %v617
  %876 = vmatprep.subr.bf16.mxu0 %v621
  %877 = vmatpush1.bf16.msra.mxu0 %v620
  %878 = vmatprep.subr.bf16.mxu0 %v623
  %879 = vmatpush1.bf16.msra.mxu0 %v622
  %880 = vmatprep.subr.bf16.mxu0 %v625
  %881 = vmatpush1.bf16.msra.mxu0 %v624
  %882 = vmatprep.subr.bf16.mxu0 %v627
  %883 = vmatpush1.bf16.msra.mxu0 %v626
  %884 = vmatprep.subr.bf16.mxu0 %v629
  %885 = vmatpush1.bf16.msra.mxu0 %v628
  %886 = vmatprep.subr.bf16.mxu0 %v631
  %887 = vmatpush1.bf16.msra.mxu0 %v630
  %888 = vmatprep.subr.bf16.mxu0 %v633
  %889 = vmatpush1.bf16.msra.mxu0 %v632
  %890 = vmatprep.subr.bf16.mxu0 %v635
  %891 = vmatpush1.bf16.msra.mxu0 %v634
  %892 = vmatprep.subr.bf16.mxu0 %v637
  %893 = vmatpush1.bf16.msra.mxu0 %v636
  %894 = vmatprep.subr.bf16.mxu0 %v639
  %895 = vmatpush1.bf16.msra.mxu0 %v638
  %896 = vmatprep.subr.bf16.mxu0 %v641
  %897 = vmatpush1.bf16.msra.mxu0 %v640
  %898 = vmatprep.subr.bf16.mxu0 %v643
  %899 = vmatpush1.bf16.msra.mxu0 %v642
  %900 = vmatprep.subr.bf16.mxu0 %v645
  %901 = vmatpush1.bf16.msra.mxu0 %v644
  %902 = vmatprep.subr.bf16.mxu0 %v647
  %903 = vmatpush1.bf16.msra.mxu0 %v646
  %904 = vmatprep.subr.bf16.mxu0 %v649
  %905 = vmatpush1.bf16.msra.mxu0 %v648
  %906 = vmatprep.subr.bf16.mxu0 %v651
  %907 = vmatpush1.bf16.msra.mxu0 %v650
  %908 = vmatprep.mubr.bf16.mxu0 %v216
  %909 = vmatmul.mubr.bf16.gmra.mrb[0].mxu0 %v202
  %v910 = vpop.f32.mrb[0].mxu0
  %v911 = vadd.f32 %v171, %v910
  %v912 = vpop.f32.mrb[0].mxu0
  %v913 = vadd.f32 %v175, %v912
  %v914 = vpop.f32.mrb[0].mxu0
  %v915 = vpop.f32.mrb[0].mxu0
  %916 = vdwg.mxu0
  %917 = vmatprep.subr.bf16.mxu0 %v653
  %918 = vmatpush1.bf16.msra.mxu0 %v652
  %919 = vmatprep.subr.bf16.mxu0 %v655
  %920 = vmatpush1.bf16.msra.mxu0 %v654
  %921 = vmatprep.subr.bf16.mxu0 %v657
  %922 = vmatpush1.bf16.msra.mxu0 %v656
  %923 = vmatprep.subr.bf16.mxu0 %v659
  %924 = vmatpush1.bf16.msra.mxu0 %v658
  %925 = vmatprep.subr.bf16.mxu0 %v661
  %926 = vmatpush1.bf16.msra.mxu0 %v660
  %927 = vmatprep.subr.bf16.mxu0 %v663
  %928 = vmatpush1.bf16.msra.mxu0 %v662
  %929 = vmatprep.subr.bf16.mxu0 %v665
  %930 = vmatpush1.bf16.msra.mxu0 %v664
  %931 = vmatprep.subr.bf16.mxu0 %v667
  %932 = vmatpush1.bf16.msra.mxu0 %v666
  %933 = vmatprep.subr.bf16.mxu0 %v669
  %934 = vmatpush1.bf16.msra.mxu0 %v668
  %935 = vmatprep.subr.bf16.mxu0 %v671
  %936 = vmatpush1.bf16.msra.mxu0 %v670
  %937 = vmatprep.subr.bf16.mxu0 %v673
  %938 = vmatpush1.bf16.msra.mxu0 %v672
  %939 = vmatprep.subr.bf16.mxu0 %v675
  %940 = vmatpush1.bf16.msra.mxu0 %v674
  %941 = vmatprep.subr.bf16.mxu0 %v677
  %942 = vmatpush1.bf16.msra.mxu0 %v676
  %943 = vmatprep.subr.bf16.mxu0 %v679
  %944 = vmatpush1.bf16.msra.mxu0 %v678
  %945 = vmatprep.subr.bf16.mxu0 %v681
  %946 = vmatpush1.bf16.msra.mxu0 %v680
  %947 = vmatprep.subr.bf16.mxu0 %v683
  %948 = vmatpush1.bf16.msra.mxu0 %v682
  %949 = vmatprep.mubr.bf16.mxu0 %v226
  %950 = vmatmul.mubr.bf16.gmra.mrb[0].mxu0 %v224
  %v951 = vpop.f32.mrb[0].mxu0
  %v952 = vadd.f32 %v911, %v951
  %v953 = vpop.f32.mrb[0].mxu0
  %v954 = vadd.f32 %v913, %v953
  %v955 = vpop.f32.mrb[0].mxu0
  %v956 = vpop.f32.mrb[0].mxu0
  %957 = vdwg.mxu0
  %958 = vmatprep.subr.bf16.mxu0 %v685
  %959 = vmatpush1.bf16.msra.mxu0 %v684
  %960 = vmatprep.subr.bf16.mxu0 %v687
  %961 = vmatpush1.bf16.msra.mxu0 %v686
  %962 = vmatprep.subr.bf16.mxu0 %v689
  %963 = vmatpush1.bf16.msra.mxu0 %v688
  %964 = vmatprep.subr.bf16.mxu0 %v691
  %965 = vmatpush1.bf16.msra.mxu0 %v690
  %966 = vmatprep.subr.bf16.mxu0 %v693
  %967 = vmatpush1.bf16.msra.mxu0 %v692
  %968 = vmatprep.subr.bf16.mxu0 %v695
  %969 = vmatpush1.bf16.msra.mxu0 %v694
  %970 = vmatprep.subr.bf16.mxu0 %v697
  %971 = vmatpush1.bf16.msra.mxu0 %v696
  %972 = vmatprep.subr.bf16.mxu0 %v699
  %973 = vmatpush1.bf16.msra.mxu0 %v698
  %974 = vmatprep.subr.bf16.mxu0 %v701
  %975 = vmatpush1.bf16.msra.mxu0 %v700
  %976 = vmatprep.subr.bf16.mxu0 %v703
  %977 = vmatpush1.bf16.msra.mxu0 %v702
  %978 = vmatprep.subr.bf16.mxu0 %v705
  %979 = vmatpush1.bf16.msra.mxu0 %v704
  %980 = vmatprep.subr.bf16.mxu0 %v707
  %981 = vmatpush1.bf16.msra.mxu0 %v706
  %982 = vmatprep.subr.bf16.mxu0 %v709
  %983 = vmatpush1.bf16.msra.mxu0 %v708
  %984 = vmatprep.subr.bf16.mxu0 %v711
  %985 = vmatpush1.bf16.msra.mxu0 %v710
  %986 = vmatprep.subr.bf16.mxu0 %v713
  %987 = vmatpush1.bf16.msra.mxu0 %v712
  %988 = vmatprep.subr.bf16.mxu0 %v715
  %989 = vmatpush1.bf16.msra.mxu0 %v714
  %990 = vmatprep.mubr.bf16.mxu0 %v223
  %991 = vmatmul.mubr.bf16.gmra.mrb[0].mxu0 %v209
  %v992 = vpop.f32.mrb[0].mxu0
  %v993 = vadd.f32 %v952, %v992
  %v994 = vpop.f32.mrb[0].mxu0
  %v995 = vadd.f32 %v954, %v994
  %v996 = vpop.f32.mrb[0].mxu0
  %v997 = vpop.f32.mrb[0].mxu0
  %998 = vdwg.mxu0
  %999 = vmatprep.subr.bf16.mxu0 %v717
  %1000 = vmatpush1.bf16.msra.mxu0 %v716
  %1001 = vmatprep.subr.bf16.mxu0 %v719
  %1002 = vmatpush1.bf16.msra.mxu0 %v718
  %1003 = vmatprep.subr.bf16.mxu0 %v721
  %1004 = vmatpush1.bf16.msra.mxu0 %v720
  %1005 = vmatprep.subr.bf16.mxu0 %v723
  %1006 = vmatpush1.bf16.msra.mxu0 %v722
  %1007 = vmatprep.subr.bf16.mxu0 %v725
  %1008 = vmatpush1.bf16.msra.mxu0 %v724
  %1009 = vmatprep.subr.bf16.mxu0 %v727
  %1010 = vmatpush1.bf16.msra.mxu0 %v726
  %1011 = vmatprep.subr.bf16.mxu0 %v729
  %1012 = vmatpush1.bf16.msra.mxu0 %v728
  %1013 = vmatprep.subr.bf16.mxu0 %v731
  %1014 = vmatpush1.bf16.msra.mxu0 %v730
  %1015 = vmatprep.subr.bf16.mxu0 %v733
  %1016 = vmatpush1.bf16.msra.mxu0 %v732
  %1017 = vmatprep.subr.bf16.mxu0 %v735
  %1018 = vmatpush1.bf16.msra.mxu0 %v734
  %1019 = vmatprep.subr.bf16.mxu0 %v737
  %1020 = vmatpush1.bf16.msra.mxu0 %v736
  %1021 = vmatprep.subr.bf16.mxu0 %v739
  %1022 = vmatpush1.bf16.msra.mxu0 %v738
  %1023 = vmatprep.subr.bf16.mxu0 %v741
  %1024 = vmatpush1.bf16.msra.mxu0 %v740
  %1025 = vmatprep.subr.bf16.mxu0 %v743
  %1026 = vmatpush1.bf16.msra.mxu0 %v742
  %1027 = vmatprep.subr.bf16.mxu0 %v745
  %1028 = vmatpush1.bf16.msra.mxu0 %v744
  %1029 = vmatprep.subr.bf16.mxu0 %v747
  %1030 = vmatpush1.bf16.msra.mxu0 %v746
  %1031 = vmatprep.mubr.bf16.mxu0 %v227
  %1032 = vmatmul.mubr.bf16.gmra.mrb[0].mxu0 %v225
  %v1033 = vpop.f32.mrb[0].mxu0
  %v1034 = vadd.f32 %v993, %v1033
  %v1035 = vpop.f32.mrb[0].mxu0
  %v1036 = vadd.f32 %v995, %v1035
  %v1037 = vpop.f32.mrb[0].mxu0
  %v1038 = vpop.f32.mrb[0].mxu0
  %1039 = vdwg.mxu0
  %v1040 = vmax.f32 %v1034, 0.0
  %v1041 = vmax.f32 %v1036, 0.0
  %v1042 = vld [vmem:[%s4] sm:$0xff]
  %v1043 = vld [vmem:[%s4 + $0x8] sm:$0xff]
  %v1044 = vld [vmem:[%s4 + $0x10] sm:$0xff]
  %v1045 = vld [vmem:[%s4 + $0x18] sm:$0xff]
  %v1046 = vld [vmem:[%s4 + $0x20] sm:$0xff]
  %v1047 = vld [vmem:[%s4 + $0x28] sm:$0xff]
  %v1048 = vld [vmem:[%s4 + $0x30] sm:$0xff]
  %v1049 = vld [vmem:[%s4 + $0x38] sm:$0xff]
  %v1050 = vld [vmem:[%s4 + $0x40] sm:$0xff]
  %v1051 = vld [vmem:[%s4 + $0x48] sm:$0xff]
  %v1052 = vld [vmem:[%s4 + $0x50] sm:$0xff]
  %v1053 = vld [vmem:[%s4 + $0x58] sm:$0xff]
  %v1054 = vld [vmem:[%s4 + $0x60] sm:$0xff]
  %v1055 = vld [vmem:[%s4 + $0x68] sm:$0xff]
  %v1056 = vld [vmem:[%s4 + $0x70] sm:$0xff]
  %v1057 = vld [vmem:[%s4 + $0x78] sm:$0xff]
  %v1058 = vld [vmem:[%s4 + $0x80] sm:$0xff]
  %v1059 = vld [vmem:[%s4 + $0x88] sm:$0xff]
  %v1060 = vld [vmem:[%s4 + $0x90] sm:$0xff]
  %v1061 = vld [vmem:[%s4 + $0x98] sm:$0xff]
  %v1062 = vld [vmem:[%s4 + $0xa0] sm:$0xff]
  %v1063 = vld [vmem:[%s4 + $0xa8] sm:$0xff]
  %v1064 = vld [vmem:[%s4 + $0xb0] sm:$0xff]
  %v1065 = vld [vmem:[%s4 + $0xb8] sm:$0xff]
  %v1066 = vld [vmem:[%s4 + $0xc0] sm:$0xff]
  %v1067 = vld [vmem:[%s4 + $0xc8] sm:$0xff]
  %v1068 = vld [vmem:[%s4 + $0xd0] sm:$0xff]
  %v1069 = vld [vmem:[%s4 + $0xd8] sm:$0xff]
  %v1070 = vld [vmem:[%s4 + $0xe0] sm:$0xff]
  %v1071 = vld [vmem:[%s4 + $0xe8] sm:$0xff]
  %v1072 = vld [vmem:[%s4 + $0xf0] sm:$0xff]
  %v1073 = vld [vmem:[%s4 + $0xf8] sm:$0xff]
  %v1074 = vld [vmem:[%s5] sm:$0x1]
  %v1076 = vlaneseq
  %v1077 = vshrl.u32 %v1076, 7
  %v1078 = vsub.s32 0, %v1077
  %v1079 = vrot.slane %v1074, %v1078
  %1081 = vmatprep.subr.mxu0 0.0
  %1082 = vmatpush1.msra.mxu0 %v1042
  %1083 = vmatprep.subr.mxu0 0.0
  %1084 = vmatpush1.msra.mxu0 %v1043
  %1085 = vmatprep.subr.mxu0 0.0
  %1086 = vmatpush1.msra.mxu0 %v1044
  %1087 = vmatprep.subr.mxu0 0.0
  %1088 = vmatpush1.msra.mxu0 %v1045
  %1089 = vmatprep.subr.mxu0 0.0
  %1090 = vmatpush1.msra.mxu0 %v1046
  %1091 = vmatprep.subr.mxu0 0.0
  %1092 = vmatpush1.msra.mxu0 %v1047
  %1093 = vmatprep.subr.mxu0 0.0
  %1094 = vmatpush1.msra.mxu0 %v1048
  %1095 = vmatprep.subr.mxu0 0.0
  %1096 = vmatpush1.msra.mxu0 %v1049
  %1097 = vmatprep.subr.mxu0 0.0
  %1098 = vmatpush1.msra.mxu0 %v1050
  %1099 = vmatprep.subr.mxu0 0.0
  %1100 = vmatpush1.msra.mxu0 %v1051
  %1101 = vmatprep.subr.mxu0 0.0
  %1102 = vmatpush1.msra.mxu0 %v1052
  %1103 = vmatprep.subr.mxu0 0.0
  %1104 = vmatpush1.msra.mxu0 %v1053
  %1105 = vmatprep.subr.mxu0 0.0
  %1106 = vmatpush1.msra.mxu0 %v1054
  %1107 = vmatprep.subr.mxu0 0.0
  %1108 = vmatpush1.msra.mxu0 %v1055
  %1109 = vmatprep.subr.mxu0 0.0
  %1110 = vmatpush1.msra.mxu0 %v1056
  %1111 = vmatprep.subr.mxu0 0.0
  %1112 = vmatpush1.msra.mxu0 %v1057
  %1113 = vmatprep.subr.mxu0 0.0
  %1114 = vmatpush1.msra.mxu0 %v1058
  %1115 = vmatprep.subr.mxu0 0.0
  %1116 = vmatpush1.msra.mxu0 %v1059
  %1117 = vmatprep.subr.mxu0 0.0
  %1118 = vmatpush1.msra.mxu0 %v1060
  %1119 = vmatprep.subr.mxu0 0.0
  %1120 = vmatpush1.msra.mxu0 %v1061
  %1121 = vmatprep.subr.mxu0 0.0
  %1122 = vmatpush1.msra.mxu0 %v1062
  %1123 = vmatprep.subr.mxu0 0.0
  %1124 = vmatpush1.msra.mxu0 %v1063
  %1125 = vmatprep.subr.mxu0 0.0
  %1126 = vmatpush1.msra.mxu0 %v1064
  %1127 = vmatprep.subr.mxu0 0.0
  %1128 = vmatpush1.msra.mxu0 %v1065
  %1129 = vmatprep.subr.mxu0 0.0
  %1130 = vmatpush1.msra.mxu0 %v1066
  %1131 = vmatprep.subr.mxu0 0.0
  %1132 = vmatpush1.msra.mxu0 %v1067
  %1133 = vmatprep.subr.mxu0 0.0
  %1134 = vmatpush1.msra.mxu0 %v1068
  %1135 = vmatprep.subr.mxu0 0.0
  %1136 = vmatpush1.msra.mxu0 %v1069
  %1137 = vmatprep.subr.mxu0 0.0
  %1138 = vmatpush1.msra.mxu0 %v1070
  %1139 = vmatprep.subr.mxu0 0.0
  %1140 = vmatpush1.msra.mxu0 %v1071
  %1141 = vmatprep.subr.mxu0 0.0
  %1142 = vmatpush1.msra.mxu0 %v1072
  %1143 = vmatprep.subr.mxu0 0.0
  %1144 = vmatpush1.msra.mxu0 %v1073
  %1145 = vmatprep.mubr.f32.mxu0 %v1041
  %1146 = vmatmul.mubr.f32.gmra.mrb[0].mxu0 %v1040
  %v1147 = vpop.f32.mrb[0].mxu0
  %v1148 = vadd.f32 %v1079, %v1147
  %v1149 = vpop.f32.mrb[0].mxu0
  %1150 = vdwg.mxu0
  %v1151 = vld [vmem:[%s1] sm:$0x3]
  %v1152 = vmul.f32 %v1148, 0.5
  %v1153 = vmul.f32 %v1152, 1.442695
  %v1154 = vpow.pop %v1153
  %1156 = vrot.lane.b32.xlu0 %v1154, 120
  %v1157 = vpop.permute.xlu0 %1156
  %v1159 = vmul.f32 %v1151, %v1157
  %v1160 = vadd.f32 %v1159, %v1148
  %v1161 = vld [vmem:[%s6] sm:$0xff]
  %v1162 = vld [vmem:[%s6 + $0x8] sm:$0xff]
  %v1163 = vld [vmem:[%s7] sm:$0x3]
  %v1165 = vlaneseq
  %v1166 = vshrl.u32 %v1165, 7
  %v1167 = vsub.s32 0, %v1166
  %v1168 = vrot.slane %v1163, %v1167
  %v1169 = vlaneseq
  %v1170 = vshrl.u32 %v1169, 7
  %v1171 = vsub.s32 1, %v1170
  %v1172 = vrot.slane %v1163, %v1171
  %vm1175 = vcmask 64512
  %v1177 = vsel %vm1175, %v1160, 0
  %1179 = vmatprep.subr.mxu0 %v1162
  %1180 = vmatpush1.msra.mxu0 %v1161
  %1181 = vmatprep.subr.mxu0 0.0
  %1182 = vmatpush1.msra.mxu0 0.0
  %1183 = vmatprep.subr.mxu0 0.0
  %1184 = vmatpush1.msra.mxu0 0.0
  %1185 = vmatprep.subr.mxu0 0.0
  %1186 = vmatpush1.msra.mxu0 0.0
  %1187 = vmatprep.subr.mxu0 0.0
  %1188 = vmatpush1.msra.mxu0 0.0
  %1189 = vmatprep.subr.mxu0 0.0
  %1190 = vmatpush1.msra.mxu0 0.0
  %1191 = vmatprep.subr.mxu0 0.0
  %1192 = vmatpush1.msra.mxu0 0.0
  %1193 = vmatprep.subr.mxu0 0.0
  %1194 = vmatpush1.msra.mxu0 0.0
  %1195 = vmatprep.subr.mxu0 0.0
  %1196 = vmatpush1.msra.mxu0 0.0
  %1197 = vmatprep.subr.mxu0 0.0
  %1198 = vmatpush1.msra.mxu0 0.0
  %1199 = vmatprep.subr.mxu0 0.0
  %1200 = vmatpush1.msra.mxu0 0.0
  %1201 = vmatprep.subr.mxu0 0.0
  %1202 = vmatpush1.msra.mxu0 0.0
  %1203 = vmatprep.subr.mxu0 0.0
  %1204 = vmatpush1.msra.mxu0 0.0
  %1205 = vmatprep.subr.mxu0 0.0
  %1206 = vmatpush1.msra.mxu0 0.0
  %1207 = vmatprep.subr.mxu0 0.0
  %1208 = vmatpush1.msra.mxu0 0.0
  %1209 = vmatprep.subr.mxu0 0.0
  %1210 = vmatpush1.msra.mxu0 0.0
  %1211 = vmatprep.subr.mxu0 0.0
  %1212 = vmatpush1.msra.mxu0 0.0
  %1213 = vmatprep.subr.mxu0 0.0
  %1214 = vmatpush1.msra.mxu0 0.0
  %1215 = vmatprep.subr.mxu0 0.0
  %1216 = vmatpush1.msra.mxu0 0.0
  %1217 = vmatprep.subr.mxu0 0.0
  %1218 = vmatpush1.msra.mxu0 0.0
  %1219 = vmatprep.subr.mxu0 0.0
  %1220 = vmatpush1.msra.mxu0 0.0
  %1221 = vmatprep.subr.mxu0 0.0
  %1222 = vmatpush1.msra.mxu0 0.0
  %1223 = vmatprep.subr.mxu0 0.0
  %1224 = vmatpush1.msra.mxu0 0.0
  %1225 = vmatprep.subr.mxu0 0.0
  %1226 = vmatpush1.msra.mxu0 0.0
  %1227 = vmatprep.subr.mxu0 0.0
  %1228 = vmatpush1.msra.mxu0 0.0
  %1229 = vmatprep.subr.mxu0 0.0
  %1230 = vmatpush1.msra.mxu0 0.0
  %1231 = vmatprep.subr.mxu0 0.0
  %1232 = vmatpush1.msra.mxu0 0.0
  %1233 = vmatprep.subr.mxu0 0.0
  %1234 = vmatpush1.msra.mxu0 0.0
  %1235 = vmatprep.subr.mxu0 0.0
  %1236 = vmatpush1.msra.mxu0 0.0
  %1237 = vmatprep.subr.mxu0 0.0
  %1238 = vmatpush1.msra.mxu0 0.0
  %1239 = vmatprep.subr.mxu0 0.0
  %1240 = vmatpush1.msra.mxu0 0.0
  %1241 = vmatprep.subr.mxu0 0.0
  %1242 = vmatpush1.msra.mxu0 0.0
  %1243 = vmatprep.mubr.f32.mxu0 0.0
  %1244 = vmatmul.mubr.f32.gmra.mrb[0].mxu0 %v1177
  %v1245 = vpop.f32.mrb[0].mxu0
  %v1246 = vadd.f32 %v1168, %v1245
  %v1247 = vpop.f32.mrb[0].mxu0
  %v1248 = vadd.f32 %v1172, %v1247
  %1249 = vdwg.mxu0
  %v1250 = vmax.f32 %v1246, 0.0
  %v1251 = vmax.f32 %v1248, 0.0
  %v1252 = vpack.c.bf16 %v1250, %v1250
  %v1253 = vpack.c.bf16 %v1251, %v1251
  %v1254 = vld [vmem:[%s8] sm:$0xff]
  %v1255 = vld [vmem:[%s8 + $0x8] sm:$0xff]
  %v1256 = vld [vmem:[%s8 + $0x10] sm:$0xff]
  %v1257 = vld [vmem:[%s8 + $0x18] sm:$0xff]
  %v1258 = vld [vmem:[%s8 + $0x20] sm:$0xff]
  %v1259 = vld [vmem:[%s8 + $0x28] sm:$0xff]
  %v1260 = vld [vmem:[%s8 + $0x30] sm:$0xff]
  %v1261 = vld [vmem:[%s8 + $0x38] sm:$0xff]
  %v1262 = vld [vmem:[%s8 + $0x40] sm:$0xff]
  %v1263 = vld [vmem:[%s8 + $0x48] sm:$0xff]
  %v1264 = vld [vmem:[%s8 + $0x50] sm:$0xff]
  %v1265 = vld [vmem:[%s8 + $0x58] sm:$0xff]
  %v1266 = vld [vmem:[%s8 + $0x60] sm:$0xff]
  %v1267 = vld [vmem:[%s8 + $0x68] sm:$0xff]
  %v1268 = vld [vmem:[%s8 + $0x70] sm:$0xff]
  %v1269 = vld [vmem:[%s8 + $0x78] sm:$0xff]
  %v1270 = vld [vmem:[%s8 + $0x80] sm:$0xff]
  %v1271 = vld [vmem:[%s8 + $0x88] sm:$0xff]
  %v1272 = vld [vmem:[%s8 + $0x90] sm:$0xff]
  %v1273 = vld [vmem:[%s8 + $0x98] sm:$0xff]
  %v1274 = vld [vmem:[%s8 + $0xa0] sm:$0xff]
  %v1275 = vld [vmem:[%s8 + $0xa8] sm:$0xff]
  %v1276 = vld [vmem:[%s8 + $0xb0] sm:$0xff]
  %v1277 = vld [vmem:[%s8 + $0xb8] sm:$0xff]
  %v1278 = vld [vmem:[%s8 + $0xc0] sm:$0xff]
  %v1279 = vld [vmem:[%s8 + $0xc8] sm:$0xff]
  %v1280 = vld [vmem:[%s8 + $0xd0] sm:$0xff]
  %v1281 = vld [vmem:[%s8 + $0xd8] sm:$0xff]
  %v1282 = vld [vmem:[%s8 + $0xe0] sm:$0xff]
  %v1283 = vld [vmem:[%s8 + $0xe8] sm:$0xff]
  %v1284 = vld [vmem:[%s8 + $0xf0] sm:$0xff]
  %v1285 = vld [vmem:[%s8 + $0xf8] sm:$0xff]
  %v1286 = vld [vmem:[%s8 + $0x100] sm:$0xff]
  %v1287 = vld [vmem:[%s8 + $0x108] sm:$0xff]
  %v1288 = vld [vmem:[%s8 + $0x110] sm:$0xff]
  %v1289 = vld [vmem:[%s8 + $0x118] sm:$0xff]
  %v1290 = vld [vmem:[%s8 + $0x120] sm:$0xff]
  %v1291 = vld [vmem:[%s8 + $0x128] sm:$0xff]
  %v1292 = vld [vmem:[%s8 + $0x130] sm:$0xff]
  %v1293 = vld [vmem:[%s8 + $0x138] sm:$0xff]
  %v1294 = vld [vmem:[%s8 + $0x140] sm:$0xff]
  %v1295 = vld [vmem:[%s8 + $0x148] sm:$0xff]
  %v1296 = vld [vmem:[%s8 + $0x150] sm:$0xff]
  %v1297 = vld [vmem:[%s8 + $0x158] sm:$0xff]
  %v1298 = vld [vmem:[%s8 + $0x160] sm:$0xff]
  %v1299 = vld [vmem:[%s8 + $0x168] sm:$0xff]
  %v1300 = vld [vmem:[%s8 + $0x170] sm:$0xff]
  %v1301 = vld [vmem:[%s8 + $0x178] sm:$0xff]
  %v1302 = vld [vmem:[%s8 + $0x180] sm:$0xff]
  %v1303 = vld [vmem:[%s8 + $0x188] sm:$0xff]
  %v1304 = vld [vmem:[%s8 + $0x190] sm:$0xff]
  %v1305 = vld [vmem:[%s8 + $0x198] sm:$0xff]
  %v1306 = vld [vmem:[%s8 + $0x1a0] sm:$0xff]
  %v1307 = vld [vmem:[%s8 + $0x1a8] sm:$0xff]
  %v1308 = vld [vmem:[%s8 + $0x1b0] sm:$0xff]
  %v1309 = vld [vmem:[%s8 + $0x1b8] sm:$0xff]
  %v1310 = vld [vmem:[%s8 + $0x1c0] sm:$0xff]
  %v1311 = vld [vmem:[%s8 + $0x1c8] sm:$0xff]
  %v1312 = vld [vmem:[%s8 + $0x1d0] sm:$0xff]
  %v1313 = vld [vmem:[%s8 + $0x1d8] sm:$0xff]
  %v1314 = vld [vmem:[%s8 + $0x1e0] sm:$0xff]
  %v1315 = vld [vmem:[%s8 + $0x1e8] sm:$0xff]
  %v1316 = vld [vmem:[%s8 + $0x1f0] sm:$0xff]
  %v1317 = vld [vmem:[%s8 + $0x1f8] sm:$0xff]
  %v1318 = vld [vmem:[%s8 + $0x200] sm:$0xff]
  %v1319 = vld [vmem:[%s8 + $0x208] sm:$0xff]
  %v1320 = vld [vmem:[%s8 + $0x210] sm:$0xff]
  %v1321 = vld [vmem:[%s8 + $0x218] sm:$0xff]
  %v1322 = vld [vmem:[%s8 + $0x220] sm:$0xff]
  %v1323 = vld [vmem:[%s8 + $0x228] sm:$0xff]
  %v1324 = vld [vmem:[%s8 + $0x230] sm:$0xff]
  %v1325 = vld [vmem:[%s8 + $0x238] sm:$0xff]
  %v1326 = vld [vmem:[%s8 + $0x240] sm:$0xff]
  %v1327 = vld [vmem:[%s8 + $0x248] sm:$0xff]
  %v1328 = vld [vmem:[%s8 + $0x250] sm:$0xff]
  %v1329 = vld [vmem:[%s8 + $0x258] sm:$0xff]
  %v1330 = vld [vmem:[%s8 + $0x260] sm:$0xff]
  %v1331 = vld [vmem:[%s8 + $0x268] sm:$0xff]
  %v1332 = vld [vmem:[%s8 + $0x270] sm:$0xff]
  %v1333 = vld [vmem:[%s8 + $0x278] sm:$0xff]
  %v1334 = vld [vmem:[%s8 + $0x280] sm:$0xff]
  %v1335 = vld [vmem:[%s8 + $0x288] sm:$0xff]
  %v1336 = vld [vmem:[%s8 + $0x290] sm:$0xff]
  %v1337 = vld [vmem:[%s8 + $0x298] sm:$0xff]
  %v1338 = vld [vmem:[%s8 + $0x2a0] sm:$0xff]
  %v1339 = vld [vmem:[%s8 + $0x2a8] sm:$0xff]
  %v1340 = vld [vmem:[%s8 + $0x2b0] sm:$0xff]
  %v1341 = vld [vmem:[%s8 + $0x2b8] sm:$0xff]
  %v1342 = vld [vmem:[%s8 + $0x2c0] sm:$0xff]
  %v1343 = vld [vmem:[%s8 + $0x2c8] sm:$0xff]
  %v1344 = vld [vmem:[%s8 + $0x2d0] sm:$0xff]
  %v1345 = vld [vmem:[%s8 + $0x2d8] sm:$0xff]
  %v1346 = vld [vmem:[%s8 + $0x2e0] sm:$0xff]
  %v1347 = vld [vmem:[%s8 + $0x2e8] sm:$0xff]
  %v1348 = vld [vmem:[%s8 + $0x2f0] sm:$0xff]
  %v1349 = vld [vmem:[%s8 + $0x2f8] sm:$0xff]
  %v1350 = vld [vmem:[%s8 + $0x300] sm:$0xff]
  %v1351 = vld [vmem:[%s8 + $0x308] sm:$0xff]
  %v1352 = vld [vmem:[%s8 + $0x310] sm:$0xff]
  %v1353 = vld [vmem:[%s8 + $0x318] sm:$0xff]
  %v1354 = vld [vmem:[%s8 + $0x320] sm:$0xff]
  %v1355 = vld [vmem:[%s8 + $0x328] sm:$0xff]
  %v1356 = vld [vmem:[%s8 + $0x330] sm:$0xff]
  %v1357 = vld [vmem:[%s8 + $0x338] sm:$0xff]
  %v1358 = vld [vmem:[%s8 + $0x340] sm:$0xff]
  %v1359 = vld [vmem:[%s8 + $0x348] sm:$0xff]
  %v1360 = vld [vmem:[%s8 + $0x350] sm:$0xff]
  %v1361 = vld [vmem:[%s8 + $0x358] sm:$0xff]
  %v1362 = vld [vmem:[%s8 + $0x360] sm:$0xff]
  %v1363 = vld [vmem:[%s8 + $0x368] sm:$0xff]
  %v1364 = vld [vmem:[%s8 + $0x370] sm:$0xff]
  %v1365 = vld [vmem:[%s8 + $0x378] sm:$0xff]
  %v1366 = vld [vmem:[%s8 + $0x380] sm:$0xff]
  %v1367 = vld [vmem:[%s8 + $0x388] sm:$0xff]
  %v1368 = vld [vmem:[%s8 + $0x390] sm:$0xff]
  %v1369 = vld [vmem:[%s8 + $0x398] sm:$0xff]
  %v1370 = vld [vmem:[%s8 + $0x3a0] sm:$0xff]
  %v1371 = vld [vmem:[%s8 + $0x3a8] sm:$0xff]
  %v1372 = vld [vmem:[%s8 + $0x3b0] sm:$0xff]
  %v1373 = vld [vmem:[%s8 + $0x3b8] sm:$0xff]
  %v1374 = vld [vmem:[%s8 + $0x3c0] sm:$0xff]
  %v1375 = vld [vmem:[%s8 + $0x3c8] sm:$0xff]
  %v1376 = vld [vmem:[%s8 + $0x3d0] sm:$0xff]
  %v1377 = vld [vmem:[%s8 + $0x3d8] sm:$0xff]
  %v1378 = vld [vmem:[%s8 + $0x3e0] sm:$0xff]
  %v1379 = vld [vmem:[%s8 + $0x3e8] sm:$0xff]
  %v1380 = vld [vmem:[%s8 + $0x3f0] sm:$0xff]
  %v1381 = vld [vmem:[%s8 + $0x3f8] sm:$0xff]
  %v1382 = vld [vmem:[%s9] sm:$0xff]
  %v1384 = vlaneseq
  %v1385 = vshrl.u32 %v1384, 7
  %v1386 = vsub.s32 0, %v1385
  %v1387 = vrot.slane %v1382, %v1386
  %v1388 = vlaneseq
  %v1389 = vshrl.u32 %v1388, 7
  %v1390 = vsub.s32 1, %v1389
  %v1391 = vrot.slane %v1382, %v1390
  %v1392 = vlaneseq
  %v1393 = vshrl.u32 %v1392, 7
  %v1394 = vsub.s32 2, %v1393
  %v1395 = vrot.slane %v1382, %v1394
  %v1396 = vlaneseq
  %v1397 = vshrl.u32 %v1396, 7
  %v1398 = vsub.s32 3, %v1397
  %v1399 = vrot.slane %v1382, %v1398
  %v1400 = vlaneseq
  %v1401 = vshrl.u32 %v1400, 7
  %v1402 = vsub.s32 4, %v1401
  %v1403 = vrot.slane %v1382, %v1402
  %v1404 = vlaneseq
  %v1405 = vshrl.u32 %v1404, 7
  %v1406 = vsub.s32 5, %v1405
  %v1407 = vrot.slane %v1382, %v1406
  %v1408 = vlaneseq
  %v1409 = vshrl.u32 %v1408, 7
  %v1410 = vsub.s32 6, %v1409
  %v1411 = vrot.slane %v1382, %v1410
  %v1412 = vlaneseq
  %v1413 = vshrl.u32 %v1412, 7
  %v1414 = vsub.s32 7, %v1413
  %v1415 = vrot.slane %v1382, %v1414
  %v1552 = vunpack.c.l.b16 %v1254
  %v1553 = vunpack.c.h.b16 %v1254
  %v1554 = vunpack.c.l.b16 %v1255
  %v1555 = vunpack.c.h.b16 %v1255
  %v1556 = vunpack.c.l.b16 %v1256
  %v1557 = vunpack.c.h.b16 %v1256
  %v1558 = vunpack.c.l.b16 %v1257
  %v1559 = vunpack.c.h.b16 %v1257
  %v1560 = vunpack.c.l.b16 %v1258
  %v1561 = vunpack.c.h.b16 %v1258
  %v1562 = vunpack.c.l.b16 %v1259
  %v1563 = vunpack.c.h.b16 %v1259
  %v1564 = vunpack.c.l.b16 %v1260
  %v1565 = vunpack.c.h.b16 %v1260
  %v1566 = vunpack.c.l.b16 %v1261
  %v1567 = vunpack.c.h.b16 %v1261
  %v1568 = vunpack.c.l.b16 %v1262
  %v1569 = vunpack.c.h.b16 %v1262
  %v1570 = vunpack.c.l.b16 %v1263
  %v1571 = vunpack.c.h.b16 %v1263
  %v1572 = vunpack.c.l.b16 %v1264
  %v1573 = vunpack.c.h.b16 %v1264
  %v1574 = vunpack.c.l.b16 %v1265
  %v1575 = vunpack.c.h.b16 %v1265
  %v1576 = vunpack.c.l.b16 %v1266
  %v1577 = vunpack.c.h.b16 %v1266
  %v1578 = vunpack.c.l.b16 %v1267
  %v1579 = vunpack.c.h.b16 %v1267
  %v1580 = vunpack.c.l.b16 %v1268
  %v1581 = vunpack.c.h.b16 %v1268
  %v1582 = vunpack.c.l.b16 %v1269
  %v1583 = vunpack.c.h.b16 %v1269
  %v1584 = vunpack.c.l.b16 %v1270
  %v1585 = vunpack.c.h.b16 %v1270
  %v1586 = vunpack.c.l.b16 %v1271
  %v1587 = vunpack.c.h.b16 %v1271
  %v1588 = vunpack.c.l.b16 %v1272
  %v1589 = vunpack.c.h.b16 %v1272
  %v1590 = vunpack.c.l.b16 %v1273
  %v1591 = vunpack.c.h.b16 %v1273
  %v1592 = vunpack.c.l.b16 %v1274
  %v1593 = vunpack.c.h.b16 %v1274
  %v1594 = vunpack.c.l.b16 %v1275
  %v1595 = vunpack.c.h.b16 %v1275
  %v1596 = vunpack.c.l.b16 %v1276
  %v1597 = vunpack.c.h.b16 %v1276
  %v1598 = vunpack.c.l.b16 %v1277
  %v1599 = vunpack.c.h.b16 %v1277
  %v1600 = vunpack.c.l.b16 %v1278
  %v1601 = vunpack.c.h.b16 %v1278
  %v1602 = vunpack.c.l.b16 %v1279
  %v1603 = vunpack.c.h.b16 %v1279
  %v1604 = vunpack.c.l.b16 %v1280
  %v1605 = vunpack.c.h.b16 %v1280
  %v1606 = vunpack.c.l.b16 %v1281
  %v1607 = vunpack.c.h.b16 %v1281
  %v1608 = vunpack.c.l.b16 %v1282
  %v1609 = vunpack.c.h.b16 %v1282
  %v1610 = vunpack.c.l.b16 %v1283
  %v1611 = vunpack.c.h.b16 %v1283
  %v1612 = vunpack.c.l.b16 %v1284
  %v1613 = vunpack.c.h.b16 %v1284
  %v1614 = vunpack.c.l.b16 %v1285
  %v1615 = vunpack.c.h.b16 %v1285
  %v1616 = vunpack.c.l.b16 %v1286
  %v1617 = vunpack.c.h.b16 %v1286
  %v1618 = vunpack.c.l.b16 %v1287
  %v1619 = vunpack.c.h.b16 %v1287
  %v1620 = vunpack.c.l.b16 %v1288
  %v1621 = vunpack.c.h.b16 %v1288
  %v1622 = vunpack.c.l.b16 %v1289
  %v1623 = vunpack.c.h.b16 %v1289
  %v1624 = vunpack.c.l.b16 %v1290
  %v1625 = vunpack.c.h.b16 %v1290
  %v1626 = vunpack.c.l.b16 %v1291
  %v1627 = vunpack.c.h.b16 %v1291
  %v1628 = vunpack.c.l.b16 %v1292
  %v1629 = vunpack.c.h.b16 %v1292
  %v1630 = vunpack.c.l.b16 %v1293
  %v1631 = vunpack.c.h.b16 %v1293
  %v1632 = vunpack.c.l.b16 %v1294
  %v1633 = vunpack.c.h.b16 %v1294
  %v1634 = vunpack.c.l.b16 %v1295
  %v1635 = vunpack.c.h.b16 %v1295
  %v1636 = vunpack.c.l.b16 %v1296
  %v1637 = vunpack.c.h.b16 %v1296
  %v1638 = vunpack.c.l.b16 %v1297
  %v1639 = vunpack.c.h.b16 %v1297
  %v1640 = vunpack.c.l.b16 %v1298
  %v1641 = vunpack.c.h.b16 %v1298
  %v1642 = vunpack.c.l.b16 %v1299
  %v1643 = vunpack.c.h.b16 %v1299
  %v1644 = vunpack.c.l.b16 %v1300
  %v1645 = vunpack.c.h.b16 %v1300
  %v1646 = vunpack.c.l.b16 %v1301
  %v1647 = vunpack.c.h.b16 %v1301
  %v1648 = vunpack.c.l.b16 %v1302
  %v1649 = vunpack.c.h.b16 %v1302
  %v1650 = vunpack.c.l.b16 %v1303
  %v1651 = vunpack.c.h.b16 %v1303
  %v1652 = vunpack.c.l.b16 %v1304
  %v1653 = vunpack.c.h.b16 %v1304
  %v1654 = vunpack.c.l.b16 %v1305
  %v1655 = vunpack.c.h.b16 %v1305
  %v1656 = vunpack.c.l.b16 %v1306
  %v1657 = vunpack.c.h.b16 %v1306
  %v1658 = vunpack.c.l.b16 %v1307
  %v1659 = vunpack.c.h.b16 %v1307
  %v1660 = vunpack.c.l.b16 %v1308
  %v1661 = vunpack.c.h.b16 %v1308
  %v1662 = vunpack.c.l.b16 %v1309
  %v1663 = vunpack.c.h.b16 %v1309
  %v1664 = vunpack.c.l.b16 %v1310
  %v1665 = vunpack.c.h.b16 %v1310
  %v1666 = vunpack.c.l.b16 %v1311
  %v1667 = vunpack.c.h.b16 %v1311
  %v1668 = vunpack.c.l.b16 %v1312
  %v1669 = vunpack.c.h.b16 %v1312
  %v1670 = vunpack.c.l.b16 %v1313
  %v1671 = vunpack.c.h.b16 %v1313
  %v1672 = vunpack.c.l.b16 %v1314
  %v1673 = vunpack.c.h.b16 %v1314
  %v1674 = vunpack.c.l.b16 %v1315
  %v1675 = vunpack.c.h.b16 %v1315
  %v1676 = vunpack.c.l.b16 %v1316
  %v1677 = vunpack.c.h.b16 %v1316
  %v1678 = vunpack.c.l.b16 %v1317
  %v1679 = vunpack.c.h.b16 %v1317
  %v1680 = vunpack.c.l.b16 %v1318
  %v1681 = vunpack.c.h.b16 %v1318
  %v1682 = vunpack.c.l.b16 %v1319
  %v1683 = vunpack.c.h.b16 %v1319
  %v1684 = vunpack.c.l.b16 %v1320
  %v1685 = vunpack.c.h.b16 %v1320
  %v1686 = vunpack.c.l.b16 %v1321
  %v1687 = vunpack.c.h.b16 %v1321
  %v1688 = vunpack.c.l.b16 %v1322
  %v1689 = vunpack.c.h.b16 %v1322
  %v1690 = vunpack.c.l.b16 %v1323
  %v1691 = vunpack.c.h.b16 %v1323
  %v1692 = vunpack.c.l.b16 %v1324
  %v1693 = vunpack.c.h.b16 %v1324
  %v1694 = vunpack.c.l.b16 %v1325
  %v1695 = vunpack.c.h.b16 %v1325
  %v1696 = vunpack.c.l.b16 %v1326
  %v1697 = vunpack.c.h.b16 %v1326
  %v1698 = vunpack.c.l.b16 %v1327
  %v1699 = vunpack.c.h.b16 %v1327
  %v1700 = vunpack.c.l.b16 %v1328
  %v1701 = vunpack.c.h.b16 %v1328
  %v1702 = vunpack.c.l.b16 %v1329
  %v1703 = vunpack.c.h.b16 %v1329
  %v1704 = vunpack.c.l.b16 %v1330
  %v1705 = vunpack.c.h.b16 %v1330
  %v1706 = vunpack.c.l.b16 %v1331
  %v1707 = vunpack.c.h.b16 %v1331
  %v1708 = vunpack.c.l.b16 %v1332
  %v1709 = vunpack.c.h.b16 %v1332
  %v1710 = vunpack.c.l.b16 %v1333
  %v1711 = vunpack.c.h.b16 %v1333
  %v1712 = vunpack.c.l.b16 %v1334
  %v1713 = vunpack.c.h.b16 %v1334
  %v1714 = vunpack.c.l.b16 %v1335
  %v1715 = vunpack.c.h.b16 %v1335
  %v1716 = vunpack.c.l.b16 %v1336
  %v1717 = vunpack.c.h.b16 %v1336
  %v1718 = vunpack.c.l.b16 %v1337
  %v1719 = vunpack.c.h.b16 %v1337
  %v1720 = vunpack.c.l.b16 %v1338
  %v1721 = vunpack.c.h.b16 %v1338
  %v1722 = vunpack.c.l.b16 %v1339
  %v1723 = vunpack.c.h.b16 %v1339
  %v1724 = vunpack.c.l.b16 %v1340
  %v1725 = vunpack.c.h.b16 %v1340
  %v1726 = vunpack.c.l.b16 %v1341
  %v1727 = vunpack.c.h.b16 %v1341
  %v1728 = vunpack.c.l.b16 %v1342
  %v1729 = vunpack.c.h.b16 %v1342
  %v1730 = vunpack.c.l.b16 %v1343
  %v1731 = vunpack.c.h.b16 %v1343
  %v1732 = vunpack.c.l.b16 %v1344
  %v1733 = vunpack.c.h.b16 %v1344
  %v1734 = vunpack.c.l.b16 %v1345
  %v1735 = vunpack.c.h.b16 %v1345
  %v1736 = vunpack.c.l.b16 %v1346
  %v1737 = vunpack.c.h.b16 %v1346
  %v1738 = vunpack.c.l.b16 %v1347
  %v1739 = vunpack.c.h.b16 %v1347
  %v1740 = vunpack.c.l.b16 %v1348
  %v1741 = vunpack.c.h.b16 %v1348
  %v1742 = vunpack.c.l.b16 %v1349
  %v1743 = vunpack.c.h.b16 %v1349
  %v1744 = vunpack.c.l.b16 %v1350
  %v1745 = vunpack.c.h.b16 %v1350
  %v1746 = vunpack.c.l.b16 %v1351
  %v1747 = vunpack.c.h.b16 %v1351
  %v1748 = vunpack.c.l.b16 %v1352
  %v1749 = vunpack.c.h.b16 %v1352
  %v1750 = vunpack.c.l.b16 %v1353
  %v1751 = vunpack.c.h.b16 %v1353
  %v1752 = vunpack.c.l.b16 %v1354
  %v1753 = vunpack.c.h.b16 %v1354
  %v1754 = vunpack.c.l.b16 %v1355
  %v1755 = vunpack.c.h.b16 %v1355
  %v1756 = vunpack.c.l.b16 %v1356
  %v1757 = vunpack.c.h.b16 %v1356
  %v1758 = vunpack.c.l.b16 %v1357
  %v1759 = vunpack.c.h.b16 %v1357
  %v1760 = vunpack.c.l.b16 %v1358
  %v1761 = vunpack.c.h.b16 %v1358
  %v1762 = vunpack.c.l.b16 %v1359
  %v1763 = vunpack.c.h.b16 %v1359
  %v1764 = vunpack.c.l.b16 %v1360
  %v1765 = vunpack.c.h.b16 %v1360
  %v1766 = vunpack.c.l.b16 %v1361
  %v1767 = vunpack.c.h.b16 %v1361
  %v1768 = vunpack.c.l.b16 %v1362
  %v1769 = vunpack.c.h.b16 %v1362
  %v1770 = vunpack.c.l.b16 %v1363
  %v1771 = vunpack.c.h.b16 %v1363
  %v1772 = vunpack.c.l.b16 %v1364
  %v1773 = vunpack.c.h.b16 %v1364
  %v1774 = vunpack.c.l.b16 %v1365
  %v1775 = vunpack.c.h.b16 %v1365
  %v1776 = vunpack.c.l.b16 %v1366
  %v1777 = vunpack.c.h.b16 %v1366
  %v1778 = vunpack.c.l.b16 %v1367
  %v1779 = vunpack.c.h.b16 %v1367
  %v1780 = vunpack.c.l.b16 %v1368
  %v1781 = vunpack.c.h.b16 %v1368
  %v1782 = vunpack.c.l.b16 %v1369
  %v1783 = vunpack.c.h.b16 %v1369
  %v1784 = vunpack.c.l.b16 %v1370
  %v1785 = vunpack.c.h.b16 %v1370
  %v1786 = vunpack.c.l.b16 %v1371
  %v1787 = vunpack.c.h.b16 %v1371
  %v1788 = vunpack.c.l.b16 %v1372
  %v1789 = vunpack.c.h.b16 %v1372
  %v1790 = vunpack.c.l.b16 %v1373
  %v1791 = vunpack.c.h.b16 %v1373
  %v1792 = vunpack.c.l.b16 %v1374
  %v1793 = vunpack.c.h.b16 %v1374
  %v1794 = vunpack.c.l.b16 %v1375
  %v1795 = vunpack.c.h.b16 %v1375
  %v1796 = vunpack.c.l.b16 %v1376
  %v1797 = vunpack.c.h.b16 %v1376
  %v1798 = vunpack.c.l.b16 %v1377
  %v1799 = vunpack.c.h.b16 %v1377
  %v1800 = vunpack.c.l.b16 %v1378
  %v1801 = vunpack.c.h.b16 %v1378
  %v1802 = vunpack.c.l.b16 %v1379
  %v1803 = vunpack.c.h.b16 %v1379
  %v1804 = vunpack.c.l.b16 %v1380
  %v1805 = vunpack.c.h.b16 %v1380
  %v1806 = vunpack.c.l.b16 %v1381
  %v1807 = vunpack.c.h.b16 %v1381
  %v1808 = vpack.c.b16 %v1560, %v1552
  %v1809 = vpack.c.b16 %v1561, %v1553
  %v1810 = vpack.c.b16 %v1562, %v1554
  %v1811 = vpack.c.b16 %v1563, %v1555
  %v1812 = vpack.c.b16 %v1564, %v1556
  %v1813 = vpack.c.b16 %v1565, %v1557
  %v1814 = vpack.c.b16 %v1566, %v1558
  %v1815 = vpack.c.b16 %v1567, %v1559
  %v1816 = vpack.c.b16 %v1576, %v1568
  %v1817 = vpack.c.b16 %v1577, %v1569
  %v1818 = vpack.c.b16 %v1578, %v1570
  %v1819 = vpack.c.b16 %v1579, %v1571
  %v1820 = vpack.c.b16 %v1580, %v1572
  %v1821 = vpack.c.b16 %v1581, %v1573
  %v1822 = vpack.c.b16 %v1582, %v1574
  %v1823 = vpack.c.b16 %v1583, %v1575
  %v1824 = vpack.c.b16 %v1592, %v1584
  %v1825 = vpack.c.b16 %v1593, %v1585
  %v1826 = vpack.c.b16 %v1594, %v1586
  %v1827 = vpack.c.b16 %v1595, %v1587
  %v1828 = vpack.c.b16 %v1596, %v1588
  %v1829 = vpack.c.b16 %v1597, %v1589
  %v1830 = vpack.c.b16 %v1598, %v1590
  %v1831 = vpack.c.b16 %v1599, %v1591
  %v1832 = vpack.c.b16 %v1608, %v1600
  %v1833 = vpack.c.b16 %v1609, %v1601
  %v1834 = vpack.c.b16 %v1610, %v1602
  %v1835 = vpack.c.b16 %v1611, %v1603
  %v1836 = vpack.c.b16 %v1612, %v1604
  %v1837 = vpack.c.b16 %v1613, %v1605
  %v1838 = vpack.c.b16 %v1614, %v1606
  %v1839 = vpack.c.b16 %v1615, %v1607
  %v1840 = vpack.c.b16 %v1624, %v1616
  %v1841 = vpack.c.b16 %v1625, %v1617
  %v1842 = vpack.c.b16 %v1626, %v1618
  %v1843 = vpack.c.b16 %v1627, %v1619
  %v1844 = vpack.c.b16 %v1628, %v1620
  %v1845 = vpack.c.b16 %v1629, %v1621
  %v1846 = vpack.c.b16 %v1630, %v1622
  %v1847 = vpack.c.b16 %v1631, %v1623
  %v1848 = vpack.c.b16 %v1640, %v1632
  %v1849 = vpack.c.b16 %v1641, %v1633
  %v1850 = vpack.c.b16 %v1642, %v1634
  %v1851 = vpack.c.b16 %v1643, %v1635
  %v1852 = vpack.c.b16 %v1644, %v1636
  %v1853 = vpack.c.b16 %v1645, %v1637
  %v1854 = vpack.c.b16 %v1646, %v1638
  %v1855 = vpack.c.b16 %v1647, %v1639
  %v1856 = vpack.c.b16 %v1656, %v1648
  %v1857 = vpack.c.b16 %v1657, %v1649
  %v1858 = vpack.c.b16 %v1658, %v1650
  %v1859 = vpack.c.b16 %v1659, %v1651
  %v1860 = vpack.c.b16 %v1660, %v1652
  %v1861 = vpack.c.b16 %v1661, %v1653
  %v1862 = vpack.c.b16 %v1662, %v1654
  %v1863 = vpack.c.b16 %v1663, %v1655
  %v1864 = vpack.c.b16 %v1672, %v1664
  %v1865 = vpack.c.b16 %v1673, %v1665
  %v1866 = vpack.c.b16 %v1674, %v1666
  %v1867 = vpack.c.b16 %v1675, %v1667
  %v1868 = vpack.c.b16 %v1676, %v1668
  %v1869 = vpack.c.b16 %v1677, %v1669
  %v1870 = vpack.c.b16 %v1678, %v1670
  %v1871 = vpack.c.b16 %v1679, %v1671
  %v1872 = vpack.c.b16 %v1688, %v1680
  %v1873 = vpack.c.b16 %v1689, %v1681
  %v1874 = vpack.c.b16 %v1690, %v1682
  %v1875 = vpack.c.b16 %v1691, %v1683
  %v1876 = vpack.c.b16 %v1692, %v1684
  %v1877 = vpack.c.b16 %v1693, %v1685
  %v1878 = vpack.c.b16 %v1694, %v1686
  %v1879 = vpack.c.b16 %v1695, %v1687
  %v1880 = vpack.c.b16 %v1704, %v1696
  %v1881 = vpack.c.b16 %v1705, %v1697
  %v1882 = vpack.c.b16 %v1706, %v1698
  %v1883 = vpack.c.b16 %v1707, %v1699
  %v1884 = vpack.c.b16 %v1708, %v1700
  %v1885 = vpack.c.b16 %v1709, %v1701
  %v1886 = vpack.c.b16 %v1710, %v1702
  %v1887 = vpack.c.b16 %v1711, %v1703
  %v1888 = vpack.c.b16 %v1720, %v1712
  %v1889 = vpack.c.b16 %v1721, %v1713
  %v1890 = vpack.c.b16 %v1722, %v1714
  %v1891 = vpack.c.b16 %v1723, %v1715
  %v1892 = vpack.c.b16 %v1724, %v1716
  %v1893 = vpack.c.b16 %v1725, %v1717
  %v1894 = vpack.c.b16 %v1726, %v1718
  %v1895 = vpack.c.b16 %v1727, %v1719
  %v1896 = vpack.c.b16 %v1736, %v1728
  %v1897 = vpack.c.b16 %v1737, %v1729
  %v1898 = vpack.c.b16 %v1738, %v1730
  %v1899 = vpack.c.b16 %v1739, %v1731
  %v1900 = vpack.c.b16 %v1740, %v1732
  %v1901 = vpack.c.b16 %v1741, %v1733
  %v1902 = vpack.c.b16 %v1742, %v1734
  %v1903 = vpack.c.b16 %v1743, %v1735
  %v1904 = vpack.c.b16 %v1752, %v1744
  %v1905 = vpack.c.b16 %v1753, %v1745
  %v1906 = vpack.c.b16 %v1754, %v1746
  %v1907 = vpack.c.b16 %v1755, %v1747
  %v1908 = vpack.c.b16 %v1756, %v1748
  %v1909 = vpack.c.b16 %v1757, %v1749
  %v1910 = vpack.c.b16 %v1758, %v1750
  %v1911 = vpack.c.b16 %v1759, %v1751
  %v1912 = vpack.c.b16 %v1768, %v1760
  %v1913 = vpack.c.b16 %v1769, %v1761
  %v1914 = vpack.c.b16 %v1770, %v1762
  %v1915 = vpack.c.b16 %v1771, %v1763
  %v1916 = vpack.c.b16 %v1772, %v1764
  %v1917 = vpack.c.b16 %v1773, %v1765
  %v1918 = vpack.c.b16 %v1774, %v1766
  %v1919 = vpack.c.b16 %v1775, %v1767
  %v1920 = vpack.c.b16 %v1784, %v1776
  %v1921 = vpack.c.b16 %v1785, %v1777
  %v1922 = vpack.c.b16 %v1786, %v1778
  %v1923 = vpack.c.b16 %v1787, %v1779
  %v1924 = vpack.c.b16 %v1788, %v1780
  %v1925 = vpack.c.b16 %v1789, %v1781
  %v1926 = vpack.c.b16 %v1790, %v1782
  %v1927 = vpack.c.b16 %v1791, %v1783
  %v1928 = vpack.c.b16 %v1800, %v1792
  %v1929 = vpack.c.b16 %v1801, %v1793
  %v1930 = vpack.c.b16 %v1802, %v1794
  %v1931 = vpack.c.b16 %v1803, %v1795
  %v1932 = vpack.c.b16 %v1804, %v1796
  %v1933 = vpack.c.b16 %v1805, %v1797
  %v1934 = vpack.c.b16 %v1806, %v1798
  %v1935 = vpack.c.b16 %v1807, %v1799
  %2064 = vmatprep.subr.bf16.mxu0 %v1809
  %2065 = vmatpush1.bf16.msra.mxu0 %v1808
  %2066 = vmatprep.subr.bf16.mxu0 %v1817
  %2067 = vmatpush1.bf16.msra.mxu0 %v1816
  %2068 = vmatprep.subr.bf16.mxu0 %v1825
  %2069 = vmatpush1.bf16.msra.mxu0 %v1824
  %2070 = vmatprep.subr.bf16.mxu0 %v1833
  %2071 = vmatpush1.bf16.msra.mxu0 %v1832
  %2072 = vmatprep.subr.bf16.mxu0 %v1841
  %2073 = vmatpush1.bf16.msra.mxu0 %v1840
  %2074 = vmatprep.subr.bf16.mxu0 %v1849
  %2075 = vmatpush1.bf16.msra.mxu0 %v1848
  %2076 = vmatprep.subr.bf16.mxu0 %v1857
  %2077 = vmatpush1.bf16.msra.mxu0 %v1856
  %2078 = vmatprep.subr.bf16.mxu0 %v1865
  %2079 = vmatpush1.bf16.msra.mxu0 %v1864
  %2080 = vmatprep.subr.bf16.mxu0 %v1873
  %2081 = vmatpush1.bf16.msra.mxu0 %v1872
  %2082 = vmatprep.subr.bf16.mxu0 %v1881
  %2083 = vmatpush1.bf16.msra.mxu0 %v1880
  %2084 = vmatprep.subr.bf16.mxu0 %v1889
  %2085 = vmatpush1.bf16.msra.mxu0 %v1888
  %2086 = vmatprep.subr.bf16.mxu0 %v1897
  %2087 = vmatpush1.bf16.msra.mxu0 %v1896
  %2088 = vmatprep.subr.bf16.mxu0 %v1905
  %2089 = vmatpush1.bf16.msra.mxu0 %v1904
  %2090 = vmatprep.subr.bf16.mxu0 %v1913
  %2091 = vmatpush1.bf16.msra.mxu0 %v1912
  %2092 = vmatprep.subr.bf16.mxu0 %v1921
  %2093 = vmatpush1.bf16.msra.mxu0 %v1920
  %2094 = vmatprep.subr.bf16.mxu0 %v1929
  %2095 = vmatpush1.bf16.msra.mxu0 %v1928
  %2096 = vmatprep.mubr.bf16.mxu0 %v1253
  %2097 = vmatmul.mubr.bf16.gmra.mrb[0].mxu0 %v1252
  %v2098 = vpop.f32.mrb[0].mxu0
  %v2099 = vadd.f32 %v1387, %v2098
  %v2100 = vpop.f32.mrb[0].mxu0
  %v2101 = vadd.f32 %v1391, %v2100
  %v2102 = vpop.f32.mrb[0].mxu0
  %v2103 = vpop.f32.mrb[0].mxu0
  %2104 = vdwg.mxu0
  %2105 = vmatprep.subr.bf16.mxu0 %v1811
  %2106 = vmatpush1.bf16.msra.mxu0 %v1810
  %2107 = vmatprep.subr.bf16.mxu0 %v1819
  %2108 = vmatpush1.bf16.msra.mxu0 %v1818
  %2109 = vmatprep.subr.bf16.mxu0 %v1827
  %2110 = vmatpush1.bf16.msra.mxu0 %v1826
  %2111 = vmatprep.subr.bf16.mxu0 %v1835
  %2112 = vmatpush1.bf16.msra.mxu0 %v1834
  %2113 = vmatprep.subr.bf16.mxu0 %v1843
  %2114 = vmatpush1.bf16.msra.mxu0 %v1842
  %2115 = vmatprep.subr.bf16.mxu0 %v1851
  %2116 = vmatpush1.bf16.msra.mxu0 %v1850
  %2117 = vmatprep.subr.bf16.mxu0 %v1859
  %2118 = vmatpush1.bf16.msra.mxu0 %v1858
  %2119 = vmatprep.subr.bf16.mxu0 %v1867
  %2120 = vmatpush1.bf16.msra.mxu0 %v1866
  %2121 = vmatprep.subr.bf16.mxu0 %v1875
  %2122 = vmatpush1.bf16.msra.mxu0 %v1874
  %2123 = vmatprep.subr.bf16.mxu0 %v1883
  %2124 = vmatpush1.bf16.msra.mxu0 %v1882
  %2125 = vmatprep.subr.bf16.mxu0 %v1891
  %2126 = vmatpush1.bf16.msra.mxu0 %v1890
  %2127 = vmatprep.subr.bf16.mxu0 %v1899
  %2128 = vmatpush1.bf16.msra.mxu0 %v1898
  %2129 = vmatprep.subr.bf16.mxu0 %v1907
  %2130 = vmatpush1.bf16.msra.mxu0 %v1906
  %2131 = vmatprep.subr.bf16.mxu0 %v1915
  %2132 = vmatpush1.bf16.msra.mxu0 %v1914
  %2133 = vmatprep.subr.bf16.mxu0 %v1923
  %2134 = vmatpush1.bf16.msra.mxu0 %v1922
  %2135 = vmatprep.subr.bf16.mxu0 %v1931
  %2136 = vmatpush1.bf16.msra.mxu0 %v1930
  %2137 = vmatprep.mubr.bf16.mxu0 %v1253
  %2138 = vmatmul.mubr.bf16.gmra.mrb[0].mxu0 %v1252
  %v2139 = vpop.f32.mrb[0].mxu0
  %v2140 = vadd.f32 %v1395, %v2139
  %v2141 = vpop.f32.mrb[0].mxu0
  %v2142 = vadd.f32 %v1399, %v2141
  %v2143 = vpop.f32.mrb[0].mxu0
  %v2144 = vpop.f32.mrb[0].mxu0
  %2145 = vdwg.mxu0
  %2146 = vmatprep.subr.bf16.mxu0 %v1813
  %2147 = vmatpush1.bf16.msra.mxu0 %v1812
  %2148 = vmatprep.subr.bf16.mxu0 %v1821
  %2149 = vmatpush1.bf16.msra.mxu0 %v1820
  %2150 = vmatprep.subr.bf16.mxu0 %v1829
  %2151 = vmatpush1.bf16.msra.mxu0 %v1828
  %2152 = vmatprep.subr.bf16.mxu0 %v1837
  %2153 = vmatpush1.bf16.msra.mxu0 %v1836
  %2154 = vmatprep.subr.bf16.mxu0 %v1845
  %2155 = vmatpush1.bf16.msra.mxu0 %v1844
  %2156 = vmatprep.subr.bf16.mxu0 %v1853
  %2157 = vmatpush1.bf16.msra.mxu0 %v1852
  %2158 = vmatprep.subr.bf16.mxu0 %v1861
  %2159 = vmatpush1.bf16.msra.mxu0 %v1860
  %2160 = vmatprep.subr.bf16.mxu0 %v1869
  %2161 = vmatpush1.bf16.msra.mxu0 %v1868
  %2162 = vmatprep.subr.bf16.mxu0 %v1877
  %2163 = vmatpush1.bf16.msra.mxu0 %v1876
  %2164 = vmatprep.subr.bf16.mxu0 %v1885
  %2165 = vmatpush1.bf16.msra.mxu0 %v1884
  %2166 = vmatprep.subr.bf16.mxu0 %v1893
  %2167 = vmatpush1.bf16.msra.mxu0 %v1892
  %2168 = vmatprep.subr.bf16.mxu0 %v1901
  %2169 = vmatpush1.bf16.msra.mxu0 %v1900
  %2170 = vmatprep.subr.bf16.mxu0 %v1909
  %2171 = vmatpush1.bf16.msra.mxu0 %v1908
  %2172 = vmatprep.subr.bf16.mxu0 %v1917
  %2173 = vmatpush1.bf16.msra.mxu0 %v1916
  %2174 = vmatprep.subr.bf16.mxu0 %v1925
  %2175 = vmatpush1.bf16.msra.mxu0 %v1924
  %2176 = vmatprep.subr.bf16.mxu0 %v1933
  %2177 = vmatpush1.bf16.msra.mxu0 %v1932
  %2178 = vmatprep.mubr.bf16.mxu0 %v1253
  %2179 = vmatmul.mubr.bf16.gmra.mrb[0].mxu0 %v1252
  %v2180 = vpop.f32.mrb[0].mxu0
  %v2181 = vadd.f32 %v1403, %v2180
  %v2182 = vpop.f32.mrb[0].mxu0
  %v2183 = vadd.f32 %v1407, %v2182
  %v2184 = vpop.f32.mrb[0].mxu0
  %v2185 = vpop.f32.mrb[0].mxu0
  %2186 = vdwg.mxu0
  %2187 = vmatprep.subr.bf16.mxu0 %v1815
  %2188 = vmatpush1.bf16.msra.mxu0 %v1814
  %2189 = vmatprep.subr.bf16.mxu0 %v1823
  %2190 = vmatpush1.bf16.msra.mxu0 %v1822
  %2191 = vmatprep.subr.bf16.mxu0 %v1831
  %2192 = vmatpush1.bf16.msra.mxu0 %v1830
  %2193 = vmatprep.subr.bf16.mxu0 %v1839
  %2194 = vmatpush1.bf16.msra.mxu0 %v1838
  %2195 = vmatprep.subr.bf16.mxu0 %v1847
  %2196 = vmatpush1.bf16.msra.mxu0 %v1846
  %2197 = vmatprep.subr.bf16.mxu0 %v1855
  %2198 = vmatpush1.bf16.msra.mxu0 %v1854
  %2199 = vmatprep.subr.bf16.mxu0 %v1863
  %2200 = vmatpush1.bf16.msra.mxu0 %v1862
  %2201 = vmatprep.subr.bf16.mxu0 %v1871
  %2202 = vmatpush1.bf16.msra.mxu0 %v1870
  %2203 = vmatprep.subr.bf16.mxu0 %v1879
  %2204 = vmatpush1.bf16.msra.mxu0 %v1878
  %2205 = vmatprep.subr.bf16.mxu0 %v1887
  %2206 = vmatpush1.bf16.msra.mxu0 %v1886
  %2207 = vmatprep.subr.bf16.mxu0 %v1895
  %2208 = vmatpush1.bf16.msra.mxu0 %v1894
  %2209 = vmatprep.subr.bf16.mxu0 %v1903
  %2210 = vmatpush1.bf16.msra.mxu0 %v1902
  %2211 = vmatprep.subr.bf16.mxu0 %v1911
  %2212 = vmatpush1.bf16.msra.mxu0 %v1910
  %2213 = vmatprep.subr.bf16.mxu0 %v1919
  %2214 = vmatpush1.bf16.msra.mxu0 %v1918
  %2215 = vmatprep.subr.bf16.mxu0 %v1927
  %2216 = vmatpush1.bf16.msra.mxu0 %v1926
  %2217 = vmatprep.subr.bf16.mxu0 %v1935
  %2218 = vmatpush1.bf16.msra.mxu0 %v1934
  %2219 = vmatprep.mubr.bf16.mxu0 %v1253
  %2220 = vmatmul.mubr.bf16.gmra.mrb[0].mxu0 %v1252
  %v2221 = vpop.f32.mrb[0].mxu0
  %v2222 = vadd.f32 %v1411, %v2221
  %v2223 = vpop.f32.mrb[0].mxu0
  %v2224 = vadd.f32 %v1415, %v2223
  %v2225 = vpop.f32.mrb[0].mxu0
  %v2226 = vpop.f32.mrb[0].mxu0
  %2227 = vdwg.mxu0
  %v2228 = vmax.f32 %v2099, 0.0
  %v2229 = vmax.f32 %v2101, 0.0
  %v2230 = vmax.f32 %v2140, 0.0
  %v2231 = vmax.f32 %v2142, 0.0
  %v2232 = vmax.f32 %v2181, 0.0
  %v2233 = vmax.f32 %v2183, 0.0
  %v2234 = vmax.f32 %v2222, 0.0
  %v2235 = vmax.f32 %v2224, 0.0
  %vm2236 = vcmask 58368
  %2237 = vst.msk [vmem:[%s10] sm:$0x3] %vm2236, %v1148
  %vm2238 = vcmask 123968
  %2239 = vst.msk [vmem:[%s10] sm:$0x3] %vm2238, %v1148
  %2240 = vrot.lane.b32.xlu0 %v1160, 16
  %v2241 = vpop.permute.xlu0 %2240
  %vm2243 = vcmask 189568
  %2244 = vst.msk [vmem:[%s10] sm:$0x3] %vm2243, %v2241
  %v2245 = vpack.c.bf16 %v2228, %v2228
  %v2246 = vpack.c.bf16 %v2229, %v2229
  %v2247 = vpack.c.bf16 %v2230, %v2230
  %v2248 = vpack.c.bf16 %v2231, %v2231
  %v2249 = vpack.c.bf16 %v2232, %v2232
  %v2250 = vpack.c.bf16 %v2233, %v2233
  %v2251 = vpack.c.bf16 %v2234, %v2234
  %v2252 = vpack.c.bf16 %v2235, %v2235
  %v2261 = vcombine.low %v2245, %v2246
  %v2262 = vcombine.low %v2247, %v2248
  %v2263 = vcombine.low %v2249, %v2250
  %v2264 = vcombine.low %v2251, %v2252
  %v2266 = vunpack.c.l.s4 1966171168
  %v2267 = vunpack.c.0.s8 %v2266
  %v2268 = vlaneseq
  %v2269 = vshrl.u32 %v2268, 7
  %v2270 = vsub.s32 %v2267, %v2269
  %v2271 = vrot.slane %v2261, %v2270
  %v2273 = vunpack.c.l.s4 1966171168
  %v2274 = vunpack.c.0.s8 %v2273
  %v2275 = vlaneseq
  %v2276 = vshrl.u32 %v2275, 7
  %v2277 = vsub.s32 %v2274, %v2276
  %v2278 = vrot.slane %v2262, %v2277
  %v2280 = vunpack.c.l.s4 1966171168
  %v2281 = vunpack.c.0.s8 %v2280
  %v2282 = vlaneseq
  %v2283 = vshrl.u32 %v2282, 7
  %v2284 = vsub.s32 %v2281, %v2283
  %v2285 = vrot.slane %v2263, %v2284
  %v2287 = vunpack.c.l.s4 1966171168
  %v2288 = vunpack.c.0.s8 %v2287
  %v2289 = vlaneseq
  %v2290 = vshrl.u32 %v2289, 7
  %v2291 = vsub.s32 %v2288, %v2290
  %v2292 = vrot.slane %v2264, %v2291
  %v2293 = vcombine.low %v2271, %v2278
  %v2294 = vcombine.low %v2285, %v2292
  %v2296 = vunpack.c.l.s4 1966171168
  %v2297 = vunpack.c.0.s8 %v2296
  %v2298 = vlaneseq
  %v2299 = vshrl.u32 %v2298, 7
  %v2300 = vsub.s32 %v2297, %v2299
  %v2301 = vrot.slane %v2293, %v2300
  %v2303 = vunpack.c.l.s4 1966171168
  %v2304 = vunpack.c.0.s8 %v2303
  %v2305 = vlaneseq
  %v2306 = vshrl.u32 %v2305, 7
  %v2307 = vsub.s32 %v2304, %v2306
  %v2308 = vrot.slane %v2294, %v2307
  %v2309 = vcombine.low %v2301, %v2308
  %2311 = vst [vmem:[%s11] sm:$0xff] %v2309
  // Predicated region
  $region42: #{beta_tc_vae_forward.13} parent=0 // pred_check
    _
  $region43: #{beta_tc_vae_forward.13} parent=0 // pred_check_branch
    %2313 = sbr.rel (0) target = $region45
  $region44: #{beta_tc_vae_forward.13} parent=0 // pred_region
    _
  $region45: #{beta_tc_vae_forward.13} parent=0 // pred_fallthru
    _
  // Predicated region
  $region46: #{beta_tc_vae_forward.13} parent=0 // pred_check
    _
  $region47: #{beta_tc_vae_forward.13} parent=0 // pred_check_branch
    %2315 = sbr.rel (0) target = $region49
  $region48: #{beta_tc_vae_forward.13} parent=0 // pred_region
    _
  $region49: #{beta_tc_vae_forward.13} parent=0 // pred_fallthru
    _
  // Predicated region
  $region50: #{beta_tc_vae_forward.13} parent=0 // pred_check
    _
  $region51: #{beta_tc_vae_forward.13} parent=0 // pred_check_branch
    %2317 = sbr.rel (0) target = $region53
  $region52: #{beta_tc_vae_forward.13} parent=0 // pred_region
    _
  $region53: #{beta_tc_vae_forward.13} parent=0 // pred_fallthru
    _
  // Predicated region
  $region54: #{beta_tc_vae_forward.13} parent=0 // pred_check
    _
  $region55: #{beta_tc_vae_forward.13} parent=0 // pred_check_branch
    %2319 = sbr.rel (0) target = $region57
  $region56: #{beta_tc_vae_forward.13} parent=0 // pred_region
    _
  $region57: #{beta_tc_vae_forward.13} parent=0 // pred_fallthru
    _

// kernel: beta_tc_vae_forward.14
$region0: #{beta_tc_vae_forward.14}
  #allocation0 [shape = 'u32[]', space=smem, size = 0x4, offset = 0x4, fixed_abs, tag = 'smem constant byte address 0x4 - core index']
  #allocation1 [shape = 'u32[144,128]{1,0:T(1,128)}', space=vmem, size = 0x12000, scoped, tag = 'internal scratch']
  %s0 = inlined_call_operand.vmem [shape: bf16[256,256], index: 0, kind: input, shape index: {}]
  %s1 = inlined_call_operand.vmem [shape: bf16[256,128], index: 1, kind: input, shape index: {}]
  %s2 = inlined_call_operand.vmem [shape: f32[256,1], index: 2, kind: input, shape index: {}]
  %s3 = inlined_call_operand.vmem [shape: bf16[256,128], index: 3, kind: output, shape index: {}]
  %s4 = sld [smem:[#allocation0]]
  $region22: #{beta_tc_vae_forward.14} parent=0
    _
  %s6 = ssub.s32 1, %s4
  %s7 = scalar_select 0, %s6, %s4
  // Predicated region
  $region2: #{beta_tc_vae_forward.14} parent=0 // pred_check
    _
  $region3: #{beta_tc_vae_forward.14} parent=0 // pred_check_branch
    %9 = sbr.rel (0) target = $region5
  $region4: #{beta_tc_vae_forward.14} parent=0 // pred_region
    _
  $region5: #{beta_tc_vae_forward.14} parent=0 // pred_fallthru
    _
  // Predicated region
  $region6: #{beta_tc_vae_forward.14} parent=0 // pred_check
    _
  $region7: #{beta_tc_vae_forward.14} parent=0 // pred_check_branch
    %11 = sbr.rel (0) target = $region9
  $region8: #{beta_tc_vae_forward.14} parent=0 // pred_region
    _
  $region9: #{beta_tc_vae_forward.14} parent=0 // pred_fallthru
    _
  // Predicated region
  $region10: #{beta_tc_vae_forward.14} parent=0 // pred_check
    _
  $region11: #{beta_tc_vae_forward.14} parent=0 // pred_check_branch
    %13 = sbr.rel (0) target = $region13
  $region12: #{beta_tc_vae_forward.14} parent=0 // pred_region
    _
  $region13: #{beta_tc_vae_forward.14} parent=0 // pred_fallthru
    _
  %v15 = vld [vmem:[%s0] sm:$0xff]
  %v16 = vld [vmem:[%s0 + $0x8] sm:$0xff]
  %v17 = vld [vmem:[%s0 + $0x10] sm:$0xff]
  %v18 = vld [vmem:[%s0 + $0x18] sm:$0xff]
  %v19 = vld [vmem:[%s0 + $0x20] sm:$0xff]
  %v20 = vld [vmem:[%s0 + $0x28] sm:$0xff]
  %v21 = vld [vmem:[%s0 + $0x30] sm:$0xff]
  %v22 = vld [vmem:[%s0 + $0x38] sm:$0xff]
  %v23 = vld [vmem:[%s0 + $0x40] sm:$0xff]
  %v24 = vld [vmem:[%s0 + $0x48] sm:$0xff]
  %v25 = vld [vmem:[%s0 + $0x50] sm:$0xff]
  %v26 = vld [vmem:[%s0 + $0x58] sm:$0xff]
  %v27 = vld [vmem:[%s0 + $0x60] sm:$0xff]
  %v28 = vld [vmem:[%s0 + $0x68] sm:$0xff]
  %v29 = vld [vmem:[%s0 + $0x70] sm:$0xff]
  %v30 = vld [vmem:[%s0 + $0x78] sm:$0xff]
  %v31 = vld [vmem:[%s0 + $0x80] sm:$0xff]
  %v32 = vld [vmem:[%s0 + $0x88] sm:$0xff]
  %v33 = vld [vmem:[%s0 + $0x90] sm:$0xff]
  %v34 = vld [vmem:[%s0 + $0x98] sm:$0xff]
  %v35 = vld [vmem:[%s0 + $0xa0] sm:$0xff]
  %v36 = vld [vmem:[%s0 + $0xa8] sm:$0xff]
  %v37 = vld [vmem:[%s0 + $0xb0] sm:$0xff]
  %v38 = vld [vmem:[%s0 + $0xb8] sm:$0xff]
  %v39 = vld [vmem:[%s0 + $0xc0] sm:$0xff]
  %v40 = vld [vmem:[%s0 + $0xc8] sm:$0xff]
  %v41 = vld [vmem:[%s0 + $0xd0] sm:$0xff]
  %v42 = vld [vmem:[%s0 + $0xd8] sm:$0xff]
  %v43 = vld [vmem:[%s0 + $0xe0] sm:$0xff]
  %v44 = vld [vmem:[%s0 + $0xe8] sm:$0xff]
  %v45 = vld [vmem:[%s0 + $0xf0] sm:$0xff]
  %v46 = vld [vmem:[%s0 + $0xf8] sm:$0xff]
  %v47 = vld [vmem:[%s1] sm:$0xf]
  %v48 = vld [vmem:[%s1 + $0x4] sm:$0xf]
  %v49 = vld [vmem:[%s1 + $0x8] sm:$0xf]
  %v50 = vld [vmem:[%s1 + $0xc] sm:$0xf]
  %v51 = vld [vmem:[%s1 + $0x10] sm:$0xf]
  %v52 = vld [vmem:[%s1 + $0x14] sm:$0xf]
  %v53 = vld [vmem:[%s1 + $0x18] sm:$0xf]
  %v54 = vld [vmem:[%s1 + $0x1c] sm:$0xf]
  %v55 = vld [vmem:[%s1 + $0x20] sm:$0xf]
  %v56 = vld [vmem:[%s1 + $0x24] sm:$0xf]
  %v57 = vld [vmem:[%s1 + $0x28] sm:$0xf]
  %v58 = vld [vmem:[%s1 + $0x2c] sm:$0xf]
  %v59 = vld [vmem:[%s1 + $0x30] sm:$0xf]
  %v60 = vld [vmem:[%s1 + $0x34] sm:$0xf]
  %v61 = vld [vmem:[%s1 + $0x38] sm:$0xf]
  %v62 = vld [vmem:[%s1 + $0x3c] sm:$0xf]
  %v63 = vld [vmem:[%s1 + $0x40] sm:$0xf]
  %v64 = vld [vmem:[%s1 + $0x44] sm:$0xf]
  %v65 = vld [vmem:[%s1 + $0x48] sm:$0xf]
  %v66 = vld [vmem:[%s1 + $0x4c] sm:$0xf]
  %v67 = vld [vmem:[%s1 + $0x50] sm:$0xf]
  %v68 = vld [vmem:[%s1 + $0x54] sm:$0xf]
  %v69 = vld [vmem:[%s1 + $0x58] sm:$0xf]
  %v70 = vld [vmem:[%s1 + $0x5c] sm:$0xf]
  %v71 = vld [vmem:[%s1 + $0x60] sm:$0xf]
  %v72 = vld [vmem:[%s1 + $0x64] sm:$0xf]
  %v73 = vld [vmem:[%s1 + $0x68] sm:$0xf]
  %v74 = vld [vmem:[%s1 + $0x6c] sm:$0xf]
  %v75 = vld [vmem:[%s1 + $0x70] sm:$0xf]
  %v76 = vld [vmem:[%s1 + $0x74] sm:$0xf]
  %v77 = vld [vmem:[%s1 + $0x78] sm:$0xf]
  %v78 = vld [vmem:[%s1 + $0x7c] sm:$0xf]
  %v79 = vld [vmem:[%s2] sm:$0xff]
  %v80 = vld [vmem:[%s2 + $0x8] sm:$0xff]
  %v81 = vld [vmem:[%s2 + $0x10] sm:$0xff]
  %v82 = vld [vmem:[%s2 + $0x18] sm:$0xff]
  %v83 = vld [vmem:[%s2 + $0x20] sm:$0xff]
  %v84 = vld [vmem:[%s2 + $0x28] sm:$0xff]
  %v85 = vld [vmem:[%s2 + $0x30] sm:$0xff]
  %v86 = vld [vmem:[%s2 + $0x38] sm:$0xff]
  %v87 = vld [vmem:[%s2 + $0x40] sm:$0xff]
  %v88 = vld [vmem:[%s2 + $0x48] sm:$0xff]
  %v89 = vld [vmem:[%s2 + $0x50] sm:$0xff]
  %v90 = vld [vmem:[%s2 + $0x58] sm:$0xff]
  %v91 = vld [vmem:[%s2 + $0x60] sm:$0xff]
  %v92 = vld [vmem:[%s2 + $0x68] sm:$0xff]
  %v93 = vld [vmem:[%s2 + $0x70] sm:$0xff]
  %v94 = vld [vmem:[%s2 + $0x78] sm:$0xff]
  %v95 = vld [vmem:[%s2 + $0x80] sm:$0xff]
  %v96 = vld [vmem:[%s2 + $0x88] sm:$0xff]
  %v97 = vld [vmem:[%s2 + $0x90] sm:$0xff]
  %v98 = vld [vmem:[%s2 + $0x98] sm:$0xff]
  %v99 = vld [vmem:[%s2 + $0xa0] sm:$0xff]
  %v100 = vld [vmem:[%s2 + $0xa8] sm:$0xff]
  %v101 = vld [vmem:[%s2 + $0xb0] sm:$0xff]
  %v102 = vld [vmem:[%s2 + $0xb8] sm:$0xff]
  %v103 = vld [vmem:[%s2 + $0xc0] sm:$0xff]
  %v104 = vld [vmem:[%s2 + $0xc8] sm:$0xff]
  %v105 = vld [vmem:[%s2 + $0xd0] sm:$0xff]
  %v106 = vld [vmem:[%s2 + $0xd8] sm:$0xff]
  %v107 = vld [vmem:[%s2 + $0xe0] sm:$0xff]
  %v108 = vld [vmem:[%s2 + $0xe8] sm:$0xff]
  %v109 = vld [vmem:[%s2 + $0xf0] sm:$0xff]
  %v110 = vld [vmem:[%s2 + $0xf8] sm:$0xff]
  %112 = vset.pattern.permute.xlu0 0
  %113 = vperm.xlu0 %112, %v79
  %v114 = vpop.permute.xlu0 %113
  %117 = vset.pattern.permute.xlu0 0
  %118 = vperm.xlu0 %117, %v80
  %v119 = vpop.permute.xlu0 %118
  %122 = vset.pattern.permute.xlu0 0
  %123 = vperm.xlu0 %122, %v81
  %v124 = vpop.permute.xlu0 %123
  %127 = vset.pattern.permute.xlu0 0
  %128 = vperm.xlu0 %127, %v82
  %v129 = vpop.permute.xlu0 %128
  %132 = vset.pattern.permute.xlu0 0
  %133 = vperm.xlu0 %132, %v83
  %v134 = vpop.permute.xlu0 %133
  %137 = vset.pattern.permute.xlu0 0
  %138 = vperm.xlu0 %137, %v84
  %v139 = vpop.permute.xlu0 %138
  %142 = vset.pattern.permute.xlu0 0
  %143 = vperm.xlu0 %142, %v85
  %v144 = vpop.permute.xlu0 %143
  %147 = vset.pattern.permute.xlu0 0
  %148 = vperm.xlu0 %147, %v86
  %v149 = vpop.permute.xlu0 %148
  %152 = vset.pattern.permute.xlu0 0
  %153 = vperm.xlu0 %152, %v87
  %v154 = vpop.permute.xlu0 %153
  %157 = vset.pattern.permute.xlu0 0
  %158 = vperm.xlu0 %157, %v88
  %v159 = vpop.permute.xlu0 %158
  %162 = vset.pattern.permute.xlu0 0
  %163 = vperm.xlu0 %162, %v89
  %v164 = vpop.permute.xlu0 %163
  %167 = vset.pattern.permute.xlu0 0
  %168 = vperm.xlu0 %167, %v90
  %v169 = vpop.permute.xlu0 %168
  %172 = vset.pattern.permute.xlu0 0
  %173 = vperm.xlu0 %172, %v91
  %v174 = vpop.permute.xlu0 %173
  %177 = vset.pattern.permute.xlu0 0
  %178 = vperm.xlu0 %177, %v92
  %v179 = vpop.permute.xlu0 %178
  %182 = vset.pattern.permute.xlu0 0
  %183 = vperm.xlu0 %182, %v93
  %v184 = vpop.permute.xlu0 %183
  %187 = vset.pattern.permute.xlu0 0
  %188 = vperm.xlu0 %187, %v94
  %v189 = vpop.permute.xlu0 %188
  %192 = vset.pattern.permute.xlu0 0
  %193 = vperm.xlu0 %192, %v95
  %v194 = vpop.permute.xlu0 %193
  %197 = vset.pattern.permute.xlu0 0
  %198 = vperm.xlu0 %197, %v96
  %v199 = vpop.permute.xlu0 %198
  %202 = vset.pattern.permute.xlu0 0
  %203 = vperm.xlu0 %202, %v97
  %v204 = vpop.permute.xlu0 %203
  %207 = vset.pattern.permute.xlu0 0
  %208 = vperm.xlu0 %207, %v98
  %v209 = vpop.permute.xlu0 %208
  %212 = vset.pattern.permute.xlu0 0
  %213 = vperm.xlu0 %212, %v99
  %v214 = vpop.permute.xlu0 %213
  %217 = vset.pattern.permute.xlu0 0
  %218 = vperm.xlu0 %217, %v100
  %v219 = vpop.permute.xlu0 %218
  %222 = vset.pattern.permute.xlu0 0
  %223 = vperm.xlu0 %222, %v101
  %v224 = vpop.permute.xlu0 %223
  %227 = vset.pattern.permute.xlu0 0
  %228 = vperm.xlu0 %227, %v102
  %v229 = vpop.permute.xlu0 %228
  %232 = vset.pattern.permute.xlu0 0
  %233 = vperm.xlu0 %232, %v103
  %v234 = vpop.permute.xlu0 %233
  %237 = vset.pattern.permute.xlu0 0
  %238 = vperm.xlu0 %237, %v104
  %v239 = vpop.permute.xlu0 %238
  %242 = vset.pattern.permute.xlu0 0
  %243 = vperm.xlu0 %242, %v105
  %v244 = vpop.permute.xlu0 %243
  %247 = vset.pattern.permute.xlu0 0
  %248 = vperm.xlu0 %247, %v106
  %v249 = vpop.permute.xlu0 %248
  %252 = vset.pattern.permute.xlu0 0
  %253 = vperm.xlu0 %252, %v107
  %v254 = vpop.permute.xlu0 %253
  %257 = vset.pattern.permute.xlu0 0
  %258 = vperm.xlu0 %257, %v108
  %v259 = vpop.permute.xlu0 %258
  %262 = vset.pattern.permute.xlu0 0
  %263 = vperm.xlu0 %262, %v109
  %v264 = vpop.permute.xlu0 %263
  %267 = vset.pattern.permute.xlu0 0
  %268 = vperm.xlu0 %267, %v110
  %v269 = vpop.permute.xlu0 %268
  %v303 = vunpack.c.l.b16 %v15
  %v304 = vunpack.c.h.b16 %v15
  %v305 = vunpack.c.l.b16 %v16
  %v306 = vunpack.c.h.b16 %v16
  %v307 = vunpack.c.l.b16 %v17
  %v308 = vunpack.c.h.b16 %v17
  %v309 = vunpack.c.l.b16 %v18
  %v310 = vunpack.c.h.b16 %v18
  %v311 = vunpack.c.l.b16 %v19
  %v312 = vunpack.c.h.b16 %v19
  %v313 = vunpack.c.l.b16 %v20
  %v314 = vunpack.c.h.b16 %v20
  %v315 = vunpack.c.l.b16 %v21
  %v316 = vunpack.c.h.b16 %v21
  %v317 = vunpack.c.l.b16 %v22
  %v318 = vunpack.c.h.b16 %v22
  %v319 = vunpack.c.l.b16 %v23
  %v320 = vunpack.c.h.b16 %v23
  %v321 = vunpack.c.l.b16 %v24
  %v322 = vunpack.c.h.b16 %v24
  %v323 = vunpack.c.l.b16 %v25
  %v324 = vunpack.c.h.b16 %v25
  %v325 = vunpack.c.l.b16 %v26
  %v326 = vunpack.c.h.b16 %v26
  %v327 = vunpack.c.l.b16 %v27
  %v328 = vunpack.c.h.b16 %v27
  %v329 = vunpack.c.l.b16 %v28
  %v330 = vunpack.c.h.b16 %v28
  %v331 = vunpack.c.l.b16 %v29
  %v332 = vunpack.c.h.b16 %v29
  %v333 = vunpack.c.l.b16 %v30
  %v334 = vunpack.c.h.b16 %v30
  %v335 = vunpack.c.l.b16 %v31
  %v336 = vunpack.c.h.b16 %v31
  %v337 = vunpack.c.l.b16 %v32
  %v338 = vunpack.c.h.b16 %v32
  %v339 = vunpack.c.l.b16 %v33
  %v340 = vunpack.c.h.b16 %v33
  %v341 = vunpack.c.l.b16 %v34
  %v342 = vunpack.c.h.b16 %v34
  %v343 = vunpack.c.l.b16 %v35
  %v344 = vunpack.c.h.b16 %v35
  %v345 = vunpack.c.l.b16 %v36
  %v346 = vunpack.c.h.b16 %v36
  %v347 = vunpack.c.l.b16 %v37
  %v348 = vunpack.c.h.b16 %v37
  %v349 = vunpack.c.l.b16 %v38
  %v350 = vunpack.c.h.b16 %v38
  %v351 = vunpack.c.l.b16 %v39
  %v352 = vunpack.c.h.b16 %v39
  %v353 = vunpack.c.l.b16 %v40
  %v354 = vunpack.c.h.b16 %v40
  %v355 = vunpack.c.l.b16 %v41
  %v356 = vunpack.c.h.b16 %v41
  %v357 = vunpack.c.l.b16 %v42
  %v358 = vunpack.c.h.b16 %v42
  %v359 = vunpack.c.l.b16 %v43
  %v360 = vunpack.c.h.b16 %v43
  %v361 = vunpack.c.l.b16 %v44
  %v362 = vunpack.c.h.b16 %v44
  %v363 = vunpack.c.l.b16 %v45
  %v364 = vunpack.c.h.b16 %v45
  %v365 = vunpack.c.l.b16 %v46
  %v366 = vunpack.c.h.b16 %v46
  %v367 = vpack.c.b16 %v305, %v303
  %v368 = vpack.c.b16 %v306, %v304
  %v369 = vpack.c.b16 %v309, %v307
  %v370 = vpack.c.b16 %v310, %v308
  %v371 = vpack.c.b16 %v313, %v311
  %v372 = vpack.c.b16 %v314, %v312
  %v373 = vpack.c.b16 %v317, %v315
  %v374 = vpack.c.b16 %v318, %v316
  %v375 = vpack.c.b16 %v321, %v319
  %v376 = vpack.c.b16 %v322, %v320
  %v377 = vpack.c.b16 %v325, %v323
  %v378 = vpack.c.b16 %v326, %v324
  %v379 = vpack.c.b16 %v329, %v327
  %v380 = vpack.c.b16 %v330, %v328
  %v381 = vpack.c.b16 %v333, %v331
  %v382 = vpack.c.b16 %v334, %v332
  %v383 = vpack.c.b16 %v337, %v335
  %v384 = vpack.c.b16 %v338, %v336
  %v385 = vpack.c.b16 %v341, %v339
  %v386 = vpack.c.b16 %v342, %v340
  %v387 = vpack.c.b16 %v345, %v343
  %v388 = vpack.c.b16 %v346, %v344
  %v389 = vpack.c.b16 %v349, %v347
  %v390 = vpack.c.b16 %v350, %v348
  %v391 = vpack.c.b16 %v353, %v351
  %v392 = vpack.c.b16 %v354, %v352
  %v393 = vpack.c.b16 %v357, %v355
  %v394 = vpack.c.b16 %v358, %v356
  %v395 = vpack.c.b16 %v361, %v359
  %v396 = vpack.c.b16 %v362, %v360
  %v397 = vpack.c.b16 %v365, %v363
  %v398 = vpack.c.b16 %v366, %v364
  %v463 = vunpack.c.l.b16 %v47
  %v464 = vunpack.c.l.b16 %v48
  %v465 = vunpack.c.l.b16 %v49
  %v466 = vunpack.c.l.b16 %v50
  %v467 = vunpack.c.l.b16 %v51
  %v468 = vunpack.c.l.b16 %v52
  %v469 = vunpack.c.l.b16 %v53
  %v470 = vunpack.c.l.b16 %v54
  %v471 = vunpack.c.l.b16 %v55
  %v472 = vunpack.c.l.b16 %v56
  %v473 = vunpack.c.l.b16 %v57
  %v474 = vunpack.c.l.b16 %v58
  %v475 = vunpack.c.l.b16 %v59
  %v476 = vunpack.c.l.b16 %v60
  %v477 = vunpack.c.l.b16 %v61
  %v478 = vunpack.c.l.b16 %v62
  %v479 = vunpack.c.l.b16 %v63
  %v480 = vunpack.c.l.b16 %v64
  %v481 = vunpack.c.l.b16 %v65
  %v482 = vunpack.c.l.b16 %v66
  %v483 = vunpack.c.l.b16 %v67
  %v484 = vunpack.c.l.b16 %v68
  %v485 = vunpack.c.l.b16 %v69
  %v486 = vunpack.c.l.b16 %v70
  %v487 = vunpack.c.l.b16 %v71
  %v488 = vunpack.c.l.b16 %v72
  %v489 = vunpack.c.l.b16 %v73
  %v490 = vunpack.c.l.b16 %v74
  %v491 = vunpack.c.l.b16 %v75
  %v492 = vunpack.c.l.b16 %v76
  %v493 = vunpack.c.l.b16 %v77
  %v494 = vunpack.c.l.b16 %v78
  %v495 = vpack.c.b16 %v464, %v463
  %v496 = vpack.c.b16 %v466, %v465
  %v497 = vpack.c.b16 %v468, %v467
  %v498 = vpack.c.b16 %v470, %v469
  %v499 = vpack.c.b16 %v472, %v471
  %v500 = vpack.c.b16 %v474, %v473
  %v501 = vpack.c.b16 %v476, %v475
  %v502 = vpack.c.b16 %v478, %v477
  %v503 = vpack.c.b16 %v480, %v479
  %v504 = vpack.c.b16 %v482, %v481
  %v505 = vpack.c.b16 %v484, %v483
  %v506 = vpack.c.b16 %v486, %v485
  %v507 = vpack.c.b16 %v488, %v487
  %v508 = vpack.c.b16 %v490, %v489
  %v509 = vpack.c.b16 %v492, %v491
  %v510 = vpack.c.b16 %v494, %v493
  %527 = vmatprep.subr.bf16.mxu0 0
  %528 = vmatpush1.bf16.msra.mxu0 %v495
  %529 = vmatprep.subr.bf16.mxu0 0
  %530 = vmatpush1.bf16.msra.mxu0 %v496
  %531 = vmatprep.subr.bf16.mxu0 0
  %532 = vmatpush1.bf16.msra.mxu0 %v497
  %533 = vmatprep.subr.bf16.mxu0 0
  %534 = vmatpush1.bf16.msra.mxu0 %v498
  %535 = vmatprep.subr.bf16.mxu0 0
  %536 = vmatpush1.bf16.msra.mxu0 %v499
  %537 = vmatprep.subr.bf16.mxu0 0
  %538 = vmatpush1.bf16.msra.mxu0 %v500
  %539 = vmatprep.subr.bf16.mxu0 0
  %540 = vmatpush1.bf16.msra.mxu0 %v501
  %541 = vmatprep.subr.bf16.mxu0 0
  %542 = vmatpush1.bf16.msra.mxu0 %v502
  %543 = vmatprep.subr.bf16.mxu0 0
  %544 = vmatpush1.bf16.msra.mxu0 %v503
  %545 = vmatprep.subr.bf16.mxu0 0
  %546 = vmatpush1.bf16.msra.mxu0 %v504
  %547 = vmatprep.subr.bf16.mxu0 0
  %548 = vmatpush1.bf16.msra.mxu0 %v505
  %549 = vmatprep.subr.bf16.mxu0 0
  %550 = vmatpush1.bf16.msra.mxu0 %v506
  %551 = vmatprep.subr.bf16.mxu0 0
  %552 = vmatpush1.bf16.msra.mxu0 %v507
  %553 = vmatprep.subr.bf16.mxu0 0
  %554 = vmatpush1.bf16.msra.mxu0 %v508
  %555 = vmatprep.subr.bf16.mxu0 0
  %556 = vmatpush1.bf16.msra.mxu0 %v509
  %557 = vmatprep.subr.bf16.mxu0 0
  %558 = vmatpush1.bf16.msra.mxu0 %v510
  %559 = vmatprep.mubr.bf16.mxu0 %v368
  %560 = vmatmul.mubr.bf16.gmra.mrb[0].mxu0 %v367
  %v561 = vpop.f32.mrb[0].mxu0
  %v562 = vadd.f32 %v114, %v561
  %v563 = vpop.f32.mrb[0].mxu0
  %v564 = vpop.f32.mrb[0].mxu0
  %v565 = vadd.f32 %v119, %v564
  %v566 = vpop.f32.mrb[0].mxu0
  %567 = vmatprep.mubr.bf16.mxu0 %v370
  %568 = vmatmul.mubr.bf16.gmra.mrb[0].mxu0 %v369
  %v569 = vpop.f32.mrb[0].mxu0
  %v570 = vadd.f32 %v124, %v569
  %v571 = vpop.f32.mrb[0].mxu0
  %v572 = vpop.f32.mrb[0].mxu0
  %v573 = vadd.f32 %v129, %v572
  %v574 = vpop.f32.mrb[0].mxu0
  %575 = vmatprep.mubr.bf16.mxu0 %v372
  %576 = vmatmul.mubr.bf16.gmra.mrb[0].mxu0 %v371
  %v577 = vpop.f32.mrb[0].mxu0
  %v578 = vadd.f32 %v134, %v577
  %v579 = vpop.f32.mrb[0].mxu0
  %v580 = vpop.f32.mrb[0].mxu0
  %v581 = vadd.f32 %v139, %v580
  %v582 = vpop.f32.mrb[0].mxu0
  %583 = vmatprep.mubr.bf16.mxu0 %v374
  %584 = vmatmul.mubr.bf16.gmra.mrb[0].mxu0 %v373
  %v585 = vpop.f32.mrb[0].mxu0
  %v586 = vadd.f32 %v144, %v585
  %v587 = vpop.f32.mrb[0].mxu0
  %v588 = vpop.f32.mrb[0].mxu0
  %v589 = vadd.f32 %v149, %v588
  %v590 = vpop.f32.mrb[0].mxu0
  %591 = vmatprep.mubr.bf16.mxu0 %v376
  %592 = vmatmul.mubr.bf16.gmra.mrb[0].mxu0 %v375
  %v593 = vpop.f32.mrb[0].mxu0
  %v594 = vadd.f32 %v154, %v593
  %v595 = vpop.f32.mrb[0].mxu0
  %v596 = vpop.f32.mrb[0].mxu0
  %v597 = vadd.f32 %v159, %v596
  %v598 = vpop.f32.mrb[0].mxu0
  %599 = vmatprep.mubr.bf16.mxu0 %v378
  %600 = vmatmul.mubr.bf16.gmra.mrb[0].mxu0 %v377
  %v601 = vpop.f32.mrb[0].mxu0
  %v602 = vadd.f32 %v164, %v601
  %v603 = vpop.f32.mrb[0].mxu0
  %v604 = vpop.f32.mrb[0].mxu0
  %v605 = vadd.f32 %v169, %v604
  %v606 = vpop.f32.mrb[0].mxu0
  %607 = vmatprep.mubr.bf16.mxu0 %v380
  %608 = vmatmul.mubr.bf16.gmra.mrb[0].mxu0 %v379
  %v609 = vpop.f32.mrb[0].mxu0
  %v610 = vadd.f32 %v174, %v609
  %v611 = vpop.f32.mrb[0].mxu0
  %v612 = vpop.f32.mrb[0].mxu0
  %v613 = vadd.f32 %v179, %v612
  %v614 = vpop.f32.mrb[0].mxu0
  %615 = vmatprep.mubr.bf16.mxu0 %v382
  %616 = vmatmul.mubr.bf16.gmra.mrb[0].mxu0 %v381
  %v617 = vpop.f32.mrb[0].mxu0
  %v618 = vadd.f32 %v184, %v617
  %v619 = vpop.f32.mrb[0].mxu0
  %v620 = vpop.f32.mrb[0].mxu0
  %v621 = vadd.f32 %v189, %v620
  %v622 = vpop.f32.mrb[0].mxu0
  %623 = vmatprep.mubr.bf16.mxu0 %v384
  %624 = vmatmul.mubr.bf16.gmra.mrb[0].mxu0 %v383
  %v625 = vpop.f32.mrb[0].mxu0
  %v626 = vadd.f32 %v194, %v625
  %v627 = vpop.f32.mrb[0].mxu0
  %v628 = vpop.f32.mrb[0].mxu0
  %v629 = vadd.f32 %v199, %v628
  %v630 = vpop.f32.mrb[0].mxu0
  %631 = vmatprep.mubr.bf16.mxu0 %v386
  %632 = vmatmul.mubr.bf16.gmra.mrb[0].mxu0 %v385
  %v633 = vpop.f32.mrb[0].mxu0
  %v634 = vadd.f32 %v204, %v633
  %v635 = vpop.f32.mrb[0].mxu0
  %v636 = vpop.f32.mrb[0].mxu0
  %v637 = vadd.f32 %v209, %v636
  %v638 = vpop.f32.mrb[0].mxu0
  %639 = vmatprep.mubr.bf16.mxu0 %v388
  %640 = vmatmul.mubr.bf16.gmra.mrb[0].mxu0 %v387
  %v641 = vpop.f32.mrb[0].mxu0
  %v642 = vadd.f32 %v214, %v641
  %v643 = vpop.f32.mrb[0].mxu0
  %v644 = vpop.f32.mrb[0].mxu0
  %v645 = vadd.f32 %v219, %v644
  %v646 = vpop.f32.mrb[0].mxu0
  %647 = vmatprep.mubr.bf16.mxu0 %v390
  %648 = vmatmul.mubr.bf16.gmra.mrb[0].mxu0 %v389
  %v649 = vpop.f32.mrb[0].mxu0
  %v650 = vadd.f32 %v224, %v649
  %v651 = vpop.f32.mrb[0].mxu0
  %v652 = vpop.f32.mrb[0].mxu0
  %v653 = vadd.f32 %v229, %v652
  %v654 = vpop.f32.mrb[0].mxu0
  %655 = vmatprep.mubr.bf16.mxu0 %v392
  %656 = vmatmul.mubr.bf16.gmra.mrb[0].mxu0 %v391
  %v657 = vpop.f32.mrb[0].mxu0
  %v658 = vadd.f32 %v234, %v657
  %v659 = vpop.f32.mrb[0].mxu0
  %v660 = vpop.f32.mrb[0].mxu0
  %v661 = vadd.f32 %v239, %v660
  %v662 = vpop.f32.mrb[0].mxu0
  %663 = vmatprep.mubr.bf16.mxu0 %v394
  %664 = vmatmul.mubr.bf16.gmra.mrb[0].mxu0 %v393
  %v665 = vpop.f32.mrb[0].mxu0
  %v666 = vadd.f32 %v244, %v665
  %v667 = vpop.f32.mrb[0].mxu0
  %v668 = vpop.f32.mrb[0].mxu0
  %v669 = vadd.f32 %v249, %v668
  %v670 = vpop.f32.mrb[0].mxu0
  %671 = vmatprep.mubr.bf16.mxu0 %v396
  %672 = vmatmul.mubr.bf16.gmra.mrb[0].mxu0 %v395
  %v673 = vpop.f32.mrb[0].mxu0
  %v674 = vadd.f32 %v254, %v673
  %v675 = vpop.f32.mrb[0].mxu0
  %v676 = vpop.f32.mrb[0].mxu0
  %v677 = vadd.f32 %v259, %v676
  %v678 = vpop.f32.mrb[0].mxu0
  %679 = vmatprep.mubr.bf16.mxu0 %v398
  %680 = vmatmul.mubr.bf16.gmra.mrb[0].mxu0 %v397
  %v681 = vpop.f32.mrb[0].mxu0
  %v682 = vadd.f32 %v264, %v681
  %v683 = vpop.f32.mrb[0].mxu0
  %v684 = vpop.f32.mrb[0].mxu0
  %v685 = vadd.f32 %v269, %v684
  %v686 = vpop.f32.mrb[0].mxu0
  %687 = vdwg.mxu0
  %v688 = vmax.f32 %v562, 0.0
  %v689 = vmax.f32 %v565, 0.0
  %v690 = vmax.f32 %v570, 0.0
  %v691 = vmax.f32 %v573, 0.0
  %v692 = vmax.f32 %v578, 0.0
  %v693 = vmax.f32 %v581, 0.0
  %v694 = vmax.f32 %v586, 0.0
  %v695 = vmax.f32 %v589, 0.0
  %v696 = vmax.f32 %v594, 0.0
  %v697 = vmax.f32 %v597, 0.0
  %v698 = vmax.f32 %v602, 0.0
  %v699 = vmax.f32 %v605, 0.0
  %v700 = vmax.f32 %v610, 0.0
  %v701 = vmax.f32 %v613, 0.0
  %v702 = vmax.f32 %v618, 0.0
  %v703 = vmax.f32 %v621, 0.0
  %v704 = vmax.f32 %v626, 0.0
  %v705 = vmax.f32 %v629, 0.0
  %v706 = vmax.f32 %v634, 0.0
  %v707 = vmax.f32 %v637, 0.0
  %v708 = vmax.f32 %v642, 0.0
  %v709 = vmax.f32 %v645, 0.0
  %v710 = vmax.f32 %v650, 0.0
  %v711 = vmax.f32 %v653, 0.0
  %v712 = vmax.f32 %v658, 0.0
  %v713 = vmax.f32 %v661, 0.0
  %v714 = vmax.f32 %v666, 0.0
  %v715 = vmax.f32 %v669, 0.0
  %v716 = vmax.f32 %v674, 0.0
  %v717 = vmax.f32 %v677, 0.0
  %v718 = vmax.f32 %v682, 0.0
  %v719 = vmax.f32 %v685, 0.0
  %v720 = vpack.c.bf16 %v689, %v688
  %v721 = vpack.c.bf16 %v691, %v690
  %v722 = vpack.c.bf16 %v693, %v692
  %v723 = vpack.c.bf16 %v695, %v694
  %v724 = vpack.c.bf16 %v697, %v696
  %v725 = vpack.c.bf16 %v699, %v698
  %v726 = vpack.c.bf16 %v701, %v700
  %v727 = vpack.c.bf16 %v703, %v702
  %v728 = vpack.c.bf16 %v705, %v704
  %v729 = vpack.c.bf16 %v707, %v706
  %v730 = vpack.c.bf16 %v709, %v708
  %v731 = vpack.c.bf16 %v711, %v710
  %v732 = vpack.c.bf16 %v713, %v712
  %v733 = vpack.c.bf16 %v715, %v714
  %v734 = vpack.c.bf16 %v717, %v716
  %v735 = vpack.c.bf16 %v719, %v718
  %v752 = vunpack.c.l.b16 %v720
  %v753 = vunpack.c.h.b16 %v720
  %v754 = vunpack.c.l.b16 %v721
  %v755 = vunpack.c.h.b16 %v721
  %v756 = vunpack.c.l.b16 %v722
  %v757 = vunpack.c.h.b16 %v722
  %v758 = vunpack.c.l.b16 %v723
  %v759 = vunpack.c.h.b16 %v723
  %v760 = vunpack.c.l.b16 %v724
  %v761 = vunpack.c.h.b16 %v724
  %v762 = vunpack.c.l.b16 %v725
  %v763 = vunpack.c.h.b16 %v725
  %v764 = vunpack.c.l.b16 %v726
  %v765 = vunpack.c.h.b16 %v726
  %v766 = vunpack.c.l.b16 %v727
  %v767 = vunpack.c.h.b16 %v727
  %v768 = vunpack.c.l.b16 %v728
  %v769 = vunpack.c.h.b16 %v728
  %v770 = vunpack.c.l.b16 %v729
  %v771 = vunpack.c.h.b16 %v729
  %v772 = vunpack.c.l.b16 %v730
  %v773 = vunpack.c.h.b16 %v730
  %v774 = vunpack.c.l.b16 %v731
  %v775 = vunpack.c.h.b16 %v731
  %v776 = vunpack.c.l.b16 %v732
  %v777 = vunpack.c.h.b16 %v732
  %v778 = vunpack.c.l.b16 %v733
  %v779 = vunpack.c.h.b16 %v733
  %v780 = vunpack.c.l.b16 %v734
  %v781 = vunpack.c.h.b16 %v734
  %v782 = vunpack.c.l.b16 %v735
  %v783 = vunpack.c.h.b16 %v735
  %v784 = vpack.c.b16 %v752, %v752
  %v785 = vpack.c.b16 %v753, %v753
  %v786 = vpack.c.b16 %v754, %v754
  %v787 = vpack.c.b16 %v755, %v755
  %v788 = vpack.c.b16 %v756, %v756
  %v789 = vpack.c.b16 %v757, %v757
  %v790 = vpack.c.b16 %v758, %v758
  %v791 = vpack.c.b16 %v759, %v759
  %v792 = vpack.c.b16 %v760, %v760
  %v793 = vpack.c.b16 %v761, %v761
  %v794 = vpack.c.b16 %v762, %v762
  %v795 = vpack.c.b16 %v763, %v763
  %v796 = vpack.c.b16 %v764, %v764
  %v797 = vpack.c.b16 %v765, %v765
  %v798 = vpack.c.b16 %v766, %v766
  %v799 = vpack.c.b16 %v767, %v767
  %v800 = vpack.c.b16 %v768, %v768
  %v801 = vpack.c.b16 %v769, %v769
  %v802 = vpack.c.b16 %v770, %v770
  %v803 = vpack.c.b16 %v771, %v771
  %v804 = vpack.c.b16 %v772, %v772
  %v805 = vpack.c.b16 %v773, %v773
  %v806 = vpack.c.b16 %v774, %v774
  %v807 = vpack.c.b16 %v775, %v775
  %v808 = vpack.c.b16 %v776, %v776
  %v809 = vpack.c.b16 %v777, %v777
  %v810 = vpack.c.b16 %v778, %v778
  %v811 = vpack.c.b16 %v779, %v779
  %v812 = vpack.c.b16 %v780, %v780
  %v813 = vpack.c.b16 %v781, %v781
  %v814 = vpack.c.b16 %v782, %v782
  %v815 = vpack.c.b16 %v783, %v783
  %848 = vst [vmem:[%s3] sm:$0xf] %v784
  %849 = vst [vmem:[%s3 + $0x4] sm:$0xf] %v785
  %850 = vst [vmem:[%s3 + $0x8] sm:$0xf] %v786
  %851 = vst [vmem:[%s3 + $0xc] sm:$0xf] %v787
  %852 = vst [vmem:[%s3 + $0x10] sm:$0xf] %v788
  %853 = vst [vmem:[%s3 + $0x14] sm:$0xf] %v789
  %854 = vst [vmem:[%s3 + $0x18] sm:$0xf] %v790
  %855 = vst [vmem:[%s3 + $0x1c] sm:$0xf] %v791
  %856 = vst [vmem:[%s3 + $0x20] sm:$0xf] %v792
  %857 = vst [vmem:[%s3 + $0x24] sm:$0xf] %v793
  %858 = vst [vmem:[%s3 + $0x28] sm:$0xf] %v794
  %859 = vst [vmem:[%s3 + $0x2c] sm:$0xf] %v795
  %860 = vst [vmem:[%s3 + $0x30] sm:$0xf] %v796
  %861 = vst [vmem:[%s3 + $0x34] sm:$0xf] %v797
  %862 = vst [vmem:[%s3 + $0x38] sm:$0xf] %v798
  %863 = vst [vmem:[%s3 + $0x3c] sm:$0xf] %v799
  %864 = vst [vmem:[%s3 + $0x40] sm:$0xf] %v800
  %865 = vst [vmem:[%s3 + $0x44] sm:$0xf] %v801
  %866 = vst [vmem:[%s3 + $0x48] sm:$0xf] %v802
  %867 = vst [vmem:[%s3 + $0x4c] sm:$0xf] %v803
  %868 = vst [vmem:[%s3 + $0x50] sm:$0xf] %v804
  %869 = vst [vmem:[%s3 + $0x54] sm:$0xf] %v805
  %870 = vst [vmem:[%s3 + $0x58] sm:$0xf] %v806
  %871 = vst [vmem:[%s3 + $0x5c] sm:$0xf] %v807
  %872 = vst [vmem:[%s3 + $0x60] sm:$0xf] %v808
  %873 = vst [vmem:[%s3 + $0x64] sm:$0xf] %v809
  %874 = vst [vmem:[%s3 + $0x68] sm:$0xf] %v810
  %875 = vst [vmem:[%s3 + $0x6c] sm:$0xf] %v811
  %876 = vst [vmem:[%s3 + $0x70] sm:$0xf] %v812
  %877 = vst [vmem:[%s3 + $0x74] sm:$0xf] %v813
  %878 = vst [vmem:[%s3 + $0x78] sm:$0xf] %v814
  %879 = vst [vmem:[%s3 + $0x7c] sm:$0xf] %v815
  // Predicated region
  $region14: #{beta_tc_vae_forward.14} parent=0 // pred_check
    _
  $region15: #{beta_tc_vae_forward.14} parent=0 // pred_check_branch
    %881 = sbr.rel (0) target = $region17
  $region16: #{beta_tc_vae_forward.14} parent=0 // pred_region
    _
  $region17: #{beta_tc_vae_forward.14} parent=0 // pred_fallthru
    _
  // Predicated region
  $region18: #{beta_tc_vae_forward.14} parent=0 // pred_check
    _
  $region19: #{beta_tc_vae_forward.14} parent=0 // pred_check_branch
    %883 = sbr.rel (0) target = $region21
  $region20: #{beta_tc_vae_forward.14} parent=0 // pred_region
    _
  $region21: #{beta_tc_vae_forward.14} parent=0 // pred_fallthru
    _

// kernel: beta_tc_vae_forward.15
$region0: #{beta_tc_vae_forward.15}
  #allocation0 [shape = 'u32[]', space=smem, size = 0x4, offset = 0x4, fixed_abs, tag = 'smem constant byte address 0x4 - core index']
  #allocation1 [shape = 'u32[144,128]{1,0:T(1,128)}', space=vmem, size = 0x12000, scoped, tag = 'internal scratch']
  %s0 = inlined_call_operand.vmem [shape: bf16[128,256], index: 0, kind: input, shape index: {}]
  %s1 = inlined_call_operand.vmem [shape: bf16[256,256], index: 1, kind: input, shape index: {}]
  %s2 = inlined_call_operand.vmem [shape: f32[128,1], index: 2, kind: input, shape index: {}]
  %s3 = inlined_call_operand.vmem [shape: bf16[128,256], index: 3, kind: output, shape index: {}]
  %s4 = sld [smem:[#allocation0]]
  $region123: #{beta_tc_vae_forward.15} parent=0
    _
  %s6 = ssub.s32 1, %s4
  %s7 = scalar_select 0, %s6, %s4
  $region1: #{beta_tc_vae_forward.15} parent=0
    #allocation2 [shape = 'u8[131072]{0}', space=vmem, size = 0x20000, scoped, tag = 'input window, operand 1']
    #allocation3 [shape = 'u8[65536]{0}', space=vmem, size = 0x10000, scoped, tag = 'output window, operand 0']
    loop: start=0, step=1, limit=4
    $region2: #{beta_tc_vae_forward.15} parent=1 // loop_pre_header
      _
    $region3: #{beta_tc_vae_forward.15} parent=1 // loop_header
      %s9 = sphi 0, %s13
      %p10 = scmp.ge.s32.totalorder %s9, 4
      %s17 = sphi 0, %s17
      %s19 = sphi 0, %s17
      %s20 = sphi 0, %s19
      %s34 = sphi 0, %s20
      %s40 = sphi 0, %s42
      %s43 = sphi 0, %s40
      %s44 = sphi 0, %s43
      %s60 = sphi 0, %s44
      %s64 = sphi 0, %s64
      %s66 = sphi 0, %s64
      %s67 = sphi 0, %s66
      %s81 = sphi 0, %s67
      %s87 = sphi 0, %s89
      %s90 = sphi 0, %s87
      %s91 = sphi 0, %s90
      %s107 = sphi 0, %s91
    $region4: #{beta_tc_vae_forward.15} parent=1 // loop_header_branch
      %12 = sbr.rel (%p10) target = $region8
    $region5: #{beta_tc_vae_forward.15} parent=1 // loop_body
      %s14 = ssub.s32 %s9, 1
      %s15 = ssub.s32 %s9, 2
      %s16 = sadd.s32 %s9, 1
      %s18 = sadd.s32 %s17, 1
      %p21 = scmp.eq.s32.totalorder %s9, 1
      %p22 = scmp.ne.s32.totalorder %s17, %s19
      %p23 = scmp.eq.s32.totalorder %s9, 0
      %p24 = por %p22, %p23
      %p25 = scmp.ne.s32.totalorder %s17, %s19
      %p26 = scmp.eq.s32.totalorder %s14, 1
      %p27 = por %p25, %p26
      %p28 = scmp.ne.s32.totalorder %s19, %s20
      %p29 = scmp.eq.s32.totalorder %s14, 0
      %p30 = por %p28, %p29
      %p31 = scmp.ne.s32.totalorder %s19, %s20
      %p32 = scmp.eq.s32.totalorder %s15, 1
      %p33 = por %p31, %p32
      %p35 = scmp.ne.s32.totalorder %s20, %s34
      %p36 = scmp.eq.s32.totalorder %s15, 0
      %p37 = por %p35, %p36
      %s38 = ssub.s32 %s9, %s16
      %p39 = scmp.eq.s32.totalorder %s38, 0
      %s41 = sadd.s32 %s40, 1
      %s42 = scalar_select %p39, %s40, %s41
      %p45 = pneg %p39
      %p46 = scmp.eq.s32.totalorder %s9, 1
      %p47 = por %p45, %p46
      %p48 = scmp.ne.s32.totalorder %s40, %s43
      %p49 = scmp.eq.s32.totalorder %s9, 0
      %p50 = por %p48, %p49
      %p51 = scmp.ne.s32.totalorder %s40, %s43
      %p52 = scmp.eq.s32.totalorder %s14, 1
      %p53 = por %p51, %p52
      %p54 = scmp.ne.s32.totalorder %s43, %s44
      %p55 = scmp.eq.s32.totalorder %s14, 0
      %p56 = por %p54, %p55
      %p57 = scmp.ne.s32.totalorder %s43, %s44
      %p58 = scmp.eq.s32.totalorder %s15, 1
      %p59 = por %p57, %p58
      %p61 = scmp.ne.s32.totalorder %s44, %s60
      %p62 = scmp.eq.s32.totalorder %s15, 0
      %p63 = por %p61, %p62
      %s65 = sadd.s32 %s64, 1
      %p68 = scmp.eq.s32.totalorder %s9, 1
      %p69 = scmp.ne.s32.totalorder %s64, %s66
      %p70 = scmp.eq.s32.totalorder %s9, 0
      %p71 = por %p69, %p70
      %p72 = scmp.ne.s32.totalorder %s64, %s66
      %p73 = scmp.eq.s32.totalorder %s14, 1
      %p74 = por %p72, %p73
      %p75 = scmp.ne.s32.totalorder %s66, %s67
      %p76 = scmp.eq.s32.totalorder %s14, 0
      %p77 = por %p75, %p76
      %p78 = scmp.ne.s32.totalorder %s66, %s67
      %p79 = scmp.eq.s32.totalorder %s15, 1
      %p80 = por %p78, %p79
      %p82 = scmp.ne.s32.totalorder %s67, %s81
      %p83 = scmp.eq.s32.totalorder %s15, 0
      %p84 = por %p82, %p83
      %s85 = ssub.s32 %s9, %s16
      %p86 = scmp.eq.s32.totalorder %s85, 0
      %s88 = sadd.s32 %s87, 1
      %s89 = scalar_select %p86, %s87, %s88
      %p92 = pneg %p86
      %p93 = scmp.eq.s32.totalorder %s9, 1
      %p94 = por %p92, %p93
      %p95 = scmp.ne.s32.totalorder %s87, %s90
      %p96 = scmp.eq.s32.totalorder %s9, 0
      %p97 = por %p95, %p96
      %p98 = scmp.ne.s32.totalorder %s87, %s90
      %p99 = scmp.eq.s32.totalorder %s14, 1
      %p100 = por %p98, %p99
      %p101 = scmp.ne.s32.totalorder %s90, %s91
      %p102 = scmp.eq.s32.totalorder %s14, 0
      %p103 = por %p101, %p102
      %p104 = scmp.ne.s32.totalorder %s90, %s91
      %p105 = scmp.eq.s32.totalorder %s15, 1
      %p106 = por %p104, %p105
      %p108 = scmp.ne.s32.totalorder %s91, %s107
      %p109 = scmp.eq.s32.totalorder %s15, 0
      %p110 = por %p108, %p109
      %p111 = scmp.le.s32.totalorder 1, %s9
      %p112 = scmp.lt.s32.totalorder %s9, 3
      %p113 = pnand %p111, %p112
      %p114 = pneg %p113
      // Predicated region
      $region9: #{beta_tc_vae_forward.15} parent=5 // pred_check
        _
      $region10: #{beta_tc_vae_forward.15} parent=5 // pred_check_branch
        %116 = sbr.rel (%p113) target = $region12
      $region11: #{beta_tc_vae_forward.15} parent=5 // pred_region
        %s117 = ssub.s32 %s9, 1
        // Predicated region
        $region13: #{beta_tc_vae_forward.15} parent=11 // pred_check
          %p118 = pneg %p30
        $region14: #{beta_tc_vae_forward.15} parent=11 // pred_check_branch
          %120 = sbr.rel (%p118) target = $region16
        $region15: #{beta_tc_vae_forward.15} parent=11 // pred_region
          _
        $region16: #{beta_tc_vae_forward.15} parent=11 // pred_fallthru
          _
        // Predicated region
        $region17: #{beta_tc_vae_forward.15} parent=11 // pred_check
          %p121 = pneg %p77
        $region18: #{beta_tc_vae_forward.15} parent=11 // pred_check_branch
          %123 = sbr.rel (%p121) target = $region20
        $region19: #{beta_tc_vae_forward.15} parent=11 // pred_region
          _
        $region20: #{beta_tc_vae_forward.15} parent=11 // pred_fallthru
          _
      $region12: #{beta_tc_vae_forward.15} parent=5 // pred_fallthru
        _
      %p124 = scmp.lt.s32.totalorder %s9, 2
      // Predicated region
      $region21: #{beta_tc_vae_forward.15} parent=5 // pred_check
        %p125 = pneg %p124
      $region22: #{beta_tc_vae_forward.15} parent=5 // pred_check_branch
        %127 = sbr.rel (%p125) target = $region24
      $region23: #{beta_tc_vae_forward.15} parent=5 // pred_region
        // Predicated region
        $region25: #{beta_tc_vae_forward.15} parent=23 // pred_check
          %p128 = pneg %p50
        $region26: #{beta_tc_vae_forward.15} parent=23 // pred_check_branch
          %130 = sbr.rel (%p128) target = $region28
        $region27: #{beta_tc_vae_forward.15} parent=23 // pred_region
          %s131 = sand.u32 %s40, 1
          %s132 = sand.u32 %s40, 1
          %s133 = smul.addr %s132, 128
          %s134 = scalar_lea.vmem [#allocation2], %s133
          %s135 = smul.addr %s9, 4
          %s136 = scalar_lea.vmem %s1, %s135
          // Predicated region
          $region29: #{beta_tc_vae_forward.15} parent=27 // pred_check
            _
          $region30: #{beta_tc_vae_forward.15} parent=27 // pred_check_branch
            %138 = sbr.rel (0) target = $region32
          $region31: #{beta_tc_vae_forward.15} parent=27 // pred_region
            // Predicated region
            $region33: #{beta_tc_vae_forward.15} parent=31 // pred_check
              _
            $region34: #{beta_tc_vae_forward.15} parent=31 // pred_check_branch
              %140 = sbr.rel target = $region36
            $region35: #{beta_tc_vae_forward.15} parent=31 // pred_region
              // Predicated region
              $region48: #{beta_tc_vae_forward.15} parent=35 // pred_check
                _
              $region49: #{beta_tc_vae_forward.15} parent=35 // pred_check_branch
                %217 = sbr.rel (0) target = $region51
              $region50: #{beta_tc_vae_forward.15} parent=35 // pred_region
                loop: start=0, step=1, limit=1
                $region52: #{beta_tc_vae_forward.15} parent=50 // loop_pre_header
                  _
                $region53: #{beta_tc_vae_forward.15} parent=50 // loop_header
                  %s219 = sphi 0, %s223
                  %p220 = scmp.ge.s32.totalorder %s219, 1
                  %s224 = sphi %s136, %s136
                  %s225 = sphi %s134, %s134
                $region54: #{beta_tc_vae_forward.15} parent=50 // loop_header_branch
                  %222 = sbr.rel (%p220) target = $region58
                $region55: #{beta_tc_vae_forward.15} parent=50 // loop_body
                  _
                $region56: #{beta_tc_vae_forward.15} parent=50 // loop_footer
                  %s223 = sadd.s32 1, %s219
                $region57: #{beta_tc_vae_forward.15} parent=50 // loop_footer_branch
                  %218 = sbr.rel target = $region53
                $region58: #{beta_tc_vae_forward.15} parent=50 // loop_exit
                  _
                loop: start=0, step=1, limit=1
                $region59: #{beta_tc_vae_forward.15} parent=50 // loop_pre_header
                  _
                $region60: #{beta_tc_vae_forward.15} parent=50 // loop_header
                  %s228 = sphi 0, %s232
                  %p229 = scmp.ge.s32.totalorder %s228, 1
                  %s233 = sphi %s136, %s136
                  %s234 = sphi %s134, %s134
                $region61: #{beta_tc_vae_forward.15} parent=50 // loop_header_branch
                  %231 = sbr.rel (%p229) target = $region65
                $region62: #{beta_tc_vae_forward.15} parent=50 // loop_body
                  %v235 = vld [vmem:[%s233] sm:$0xf]
                  %236 = vst [vmem:[%s234] sm:$0xf] %v235
                  %v237 = vld [vmem:[%s233 + $0x8] sm:$0xf]
                  %238 = vst [vmem:[%s234 + $0x4] sm:$0xf] %v237
                  %v239 = vld [vmem:[%s233 + $0x10] sm:$0xf]
                  %240 = vst [vmem:[%s234 + $0x8] sm:$0xf] %v239
                  %v241 = vld [vmem:[%s233 + $0x18] sm:$0xf]
                  %242 = vst [vmem:[%s234 + $0xc] sm:$0xf] %v241
                  %v243 = vld [vmem:[%s233 + $0x20] sm:$0xf]
                  %244 = vst [vmem:[%s234 + $0x10] sm:$0xf] %v243
                  %v245 = vld [vmem:[%s233 + $0x28] sm:$0xf]
                  %246 = vst [vmem:[%s234 + $0x14] sm:$0xf] %v245
                  %v247 = vld [vmem:[%s233 + $0x30] sm:$0xf]
                  %248 = vst [vmem:[%s234 + $0x18] sm:$0xf] %v247
                  %v249 = vld [vmem:[%s233 + $0x38] sm:$0xf]
                  %250 = vst [vmem:[%s234 + $0x1c] sm:$0xf] %v249
                  %v251 = vld [vmem:[%s233 + $0x40] sm:$0xf]
                  %252 = vst [vmem:[%s234 + $0x20] sm:$0xf] %v251
                  %v253 = vld [vmem:[%s233 + $0x48] sm:$0xf]
                  %254 = vst [vmem:[%s234 + $0x24] sm:$0xf] %v253
                  %v255 = vld [vmem:[%s233 + $0x50] sm:$0xf]
                  %256 = vst [vmem:[%s234 + $0x28] sm:$0xf] %v255
                  %v257 = vld [vmem:[%s233 + $0x58] sm:$0xf]
                  %258 = vst [vmem:[%s234 + $0x2c] sm:$0xf] %v257
                  %v259 = vld [vmem:[%s233 + $0x60] sm:$0xf]
                  %260 = vst [vmem:[%s234 + $0x30] sm:$0xf] %v259
                  %v261 = vld [vmem:[%s233 + $0x68] sm:$0xf]
                  %262 = vst [vmem:[%s234 + $0x34] sm:$0xf] %v261
                  %v263 = vld [vmem:[%s233 + $0x70] sm:$0xf]
                  %264 = vst [vmem:[%s234 + $0x38] sm:$0xf] %v263
                  %v265 = vld [vmem:[%s233 + $0x78] sm:$0xf]
                  %266 = vst [vmem:[%s234 + $0x3c] sm:$0xf] %v265
                  %v267 = vld [vmem:[%s233 + $0x80] sm:$0xf]
                  %268 = vst [vmem:[%s234 + $0x40] sm:$0xf] %v267
                  %v269 = vld [vmem:[%s233 + $0x88] sm:$0xf]
                  %270 = vst [vmem:[%s234 + $0x44] sm:$0xf] %v269
                  %v271 = vld [vmem:[%s233 + $0x90] sm:$0xf]
                  %272 = vst [vmem:[%s234 + $0x48] sm:$0xf] %v271
                  %v273 = vld [vmem:[%s233 + $0x98] sm:$0xf]
                  %274 = vst [vmem:[%s234 + $0x4c] sm:$0xf] %v273
                  %v275 = vld [vmem:[%s233 + $0xa0] sm:$0xf]
                  %276 = vst [vmem:[%s234 + $0x50] sm:$0xf] %v275
                  %v277 = vld [vmem:[%s233 + $0xa8] sm:$0xf]
                  %278 = vst [vmem:[%s234 + $0x54] sm:$0xf] %v277
                  %v279 = vld [vmem:[%s233 + $0xb0] sm:$0xf]
                  %280 = vst [vmem:[%s234 + $0x58] sm:$0xf] %v279
                  %v281 = vld [vmem:[%s233 + $0xb8] sm:$0xf]
                  %282 = vst [vmem:[%s234 + $0x5c] sm:$0xf] %v281
                  %v283 = vld [vmem:[%s233 + $0xc0] sm:$0xf]
                  %284 = vst [vmem:[%s234 + $0x60] sm:$0xf] %v283
                  %v285 = vld [vmem:[%s233 + $0xc8] sm:$0xf]
                  %286 = vst [vmem:[%s234 + $0x64] sm:$0xf] %v285
                  %v287 = vld [vmem:[%s233 + $0xd0] sm:$0xf]
                  %288 = vst [vmem:[%s234 + $0x68] sm:$0xf] %v287
                  %v289 = vld [vmem:[%s233 + $0xd8] sm:$0xf]
                  %290 = vst [vmem:[%s234 + $0x6c] sm:$0xf] %v289
                  %v291 = vld [vmem:[%s233 + $0xe0] sm:$0xf]
                  %292 = vst [vmem:[%s234 + $0x70] sm:$0xf] %v291
                  %v293 = vld [vmem:[%s233 + $0xe8] sm:$0xf]
                  %294 = vst [vmem:[%s234 + $0x74] sm:$0xf] %v293
                  %v295 = vld [vmem:[%s233 + $0xf0] sm:$0xf]
                  %296 = vst [vmem:[%s234 + $0x78] sm:$0xf] %v295
                  %v297 = vld [vmem:[%s233 + $0xf8] sm:$0xf]
                  %298 = vst [vmem:[%s234 + $0x7c] sm:$0xf] %v297
                $region63: #{beta_tc_vae_forward.15} parent=50 // loop_footer
                  %s232 = sadd.s32 1, %s228
                $region64: #{beta_tc_vae_forward.15} parent=50 // loop_footer_branch
                  %227 = sbr.rel target = $region60
                $region65: #{beta_tc_vae_forward.15} parent=50 // loop_exit
                  _
              $region51: #{beta_tc_vae_forward.15} parent=35 // pred_fallthru
                _
            $region36: #{beta_tc_vae_forward.15} parent=31 // pred_fallthru
              _
            // Predicated region
            $region37: #{beta_tc_vae_forward.15} parent=31 // pred_check
              _
            $region38: #{beta_tc_vae_forward.15} parent=31 // pred_check_branch
              %142 = sbr.rel (0) target = $region40
            $region39: #{beta_tc_vae_forward.15} parent=31 // pred_region
              loop: start=0, step=1, limit=1
              $region41: #{beta_tc_vae_forward.15} parent=39 // loop_pre_header
                _
              $region42: #{beta_tc_vae_forward.15} parent=39 // loop_header
                %s145 = sphi 0, %s149
                %p146 = scmp.ge.s32.totalorder %s145, 1
                %s150 = sphi %s136, %s136
                %s151 = sphi %s134, %s134
              $region43: #{beta_tc_vae_forward.15} parent=39 // loop_header_branch
                %148 = sbr.rel (%p146) target = $region47
              $region44: #{beta_tc_vae_forward.15} parent=39 // loop_body
                %v152 = vld [vmem:[%s150] sm:$0xf]
                %153 = vst [vmem:[%s151] sm:$0xf] %v152
                %v154 = vld [vmem:[%s150 + $0x8] sm:$0xf]
                %155 = vst [vmem:[%s151 + $0x4] sm:$0xf] %v154
                %v156 = vld [vmem:[%s150 + $0x10] sm:$0xf]
                %157 = vst [vmem:[%s151 + $0x8] sm:$0xf] %v156
                %v158 = vld [vmem:[%s150 + $0x18] sm:$0xf]
                %159 = vst [vmem:[%s151 + $0xc] sm:$0xf] %v158
                %v160 = vld [vmem:[%s150 + $0x20] sm:$0xf]
                %161 = vst [vmem:[%s151 + $0x10] sm:$0xf] %v160
                %v162 = vld [vmem:[%s150 + $0x28] sm:$0xf]
                %163 = vst [vmem:[%s151 + $0x14] sm:$0xf] %v162
                %v164 = vld [vmem:[%s150 + $0x30] sm:$0xf]
                %165 = vst [vmem:[%s151 + $0x18] sm:$0xf] %v164
                %v166 = vld [vmem:[%s150 + $0x38] sm:$0xf]
                %167 = vst [vmem:[%s151 + $0x1c] sm:$0xf] %v166
                %v168 = vld [vmem:[%s150 + $0x40] sm:$0xf]
                %169 = vst [vmem:[%s151 + $0x20] sm:$0xf] %v168
                %v170 = vld [vmem:[%s150 + $0x48] sm:$0xf]
                %171 = vst [vmem:[%s151 + $0x24] sm:$0xf] %v170
                %v172 = vld [vmem:[%s150 + $0x50] sm:$0xf]
                %173 = vst [vmem:[%s151 + $0x28] sm:$0xf] %v172
                %v174 = vld [vmem:[%s150 + $0x58] sm:$0xf]
                %175 = vst [vmem:[%s151 + $0x2c] sm:$0xf] %v174
                %v176 = vld [vmem:[%s150 + $0x60] sm:$0xf]
                %177 = vst [vmem:[%s151 + $0x30] sm:$0xf] %v176
                %v178 = vld [vmem:[%s150 + $0x68] sm:$0xf]
                %179 = vst [vmem:[%s151 + $0x34] sm:$0xf] %v178
                %v180 = vld [vmem:[%s150 + $0x70] sm:$0xf]
                %181 = vst [vmem:[%s151 + $0x38] sm:$0xf] %v180
                %v182 = vld [vmem:[%s150 + $0x78] sm:$0xf]
                %183 = vst [vmem:[%s151 + $0x3c] sm:$0xf] %v182
                %v184 = vld [vmem:[%s150 + $0x80] sm:$0xf]
                %185 = vst [vmem:[%s151 + $0x40] sm:$0xf] %v184
                %v186 = vld [vmem:[%s150 + $0x88] sm:$0xf]
                %187 = vst [vmem:[%s151 + $0x44] sm:$0xf] %v186
                %v188 = vld [vmem:[%s150 + $0x90] sm:$0xf]
                %189 = vst [vmem:[%s151 + $0x48] sm:$0xf] %v188
                %v190 = vld [vmem:[%s150 + $0x98] sm:$0xf]
                %191 = vst [vmem:[%s151 + $0x4c] sm:$0xf] %v190
                %v192 = vld [vmem:[%s150 + $0xa0] sm:$0xf]
                %193 = vst [vmem:[%s151 + $0x50] sm:$0xf] %v192
                %v194 = vld [vmem:[%s150 + $0xa8] sm:$0xf]
                %195 = vst [vmem:[%s151 + $0x54] sm:$0xf] %v194
                %v196 = vld [vmem:[%s150 + $0xb0] sm:$0xf]
                %197 = vst [vmem:[%s151 + $0x58] sm:$0xf] %v196
                %v198 = vld [vmem:[%s150 + $0xb8] sm:$0xf]
                %199 = vst [vmem:[%s151 + $0x5c] sm:$0xf] %v198
                %v200 = vld [vmem:[%s150 + $0xc0] sm:$0xf]
                %201 = vst [vmem:[%s151 + $0x60] sm:$0xf] %v200
                %v202 = vld [vmem:[%s150 + $0xc8] sm:$0xf]
                %203 = vst [vmem:[%s151 + $0x64] sm:$0xf] %v202
                %v204 = vld [vmem:[%s150 + $0xd0] sm:$0xf]
                %205 = vst [vmem:[%s151 + $0x68] sm:$0xf] %v204
                %v206 = vld [vmem:[%s150 + $0xd8] sm:$0xf]
                %207 = vst [vmem:[%s151 + $0x6c] sm:$0xf] %v206
                %v208 = vld [vmem:[%s150 + $0xe0] sm:$0xf]
                %209 = vst [vmem:[%s151 + $0x70] sm:$0xf] %v208
                %v210 = vld [vmem:[%s150 + $0xe8] sm:$0xf]
                %211 = vst [vmem:[%s151 + $0x74] sm:$0xf] %v210
                %v212 = vld [vmem:[%s150 + $0xf0] sm:$0xf]
                %213 = vst [vmem:[%s151 + $0x78] sm:$0xf] %v212
                %v214 = vld [vmem:[%s150 + $0xf8] sm:$0xf]
                %215 = vst [vmem:[%s151 + $0x7c] sm:$0xf] %v214
              $region45: #{beta_tc_vae_forward.15} parent=39 // loop_footer
                %s149 = sadd.s32 1, %s145
              $region46: #{beta_tc_vae_forward.15} parent=39 // loop_footer_branch
                %144 = sbr.rel target = $region42
              $region47: #{beta_tc_vae_forward.15} parent=39 // loop_exit
                _
            $region40: #{beta_tc_vae_forward.15} parent=31 // pred_fallthru
              _
          $region32: #{beta_tc_vae_forward.15} parent=27 // pred_fallthru
            _
          %299 = vnop
        $region28: #{beta_tc_vae_forward.15} parent=23 // pred_fallthru
          _
      $region24: #{beta_tc_vae_forward.15} parent=5 // pred_fallthru
        _
      %p300 = scmp.le.s32.totalorder 1, %s9
      %p301 = scmp.lt.s32.totalorder %s9, 3
      %p302 = pnand %p300, %p301
      %p303 = pneg %p302
      // Predicated region
      $region66: #{beta_tc_vae_forward.15} parent=5 // pred_check
        _
      $region67: #{beta_tc_vae_forward.15} parent=5 // pred_check_branch
        %305 = sbr.rel (%p302) target = $region69
      $region68: #{beta_tc_vae_forward.15} parent=5 // pred_region
        %s306 = ssub.s32 %s9, 1
        %s307 = sand.u32 %s43, 1
        %s308 = sand.u32 %s43, 1
        %s309 = smul.addr %s308, 128
        %s310 = scalar_lea.vmem [#allocation2], %s309
        // Predicated region
        $region70: #{beta_tc_vae_forward.15} parent=68 // pred_check
          %p311 = pneg %p56
        $region71: #{beta_tc_vae_forward.15} parent=68 // pred_check_branch
          %313 = sbr.rel (%p311) target = $region73
        $region72: #{beta_tc_vae_forward.15} parent=68 // pred_region
          _
        $region73: #{beta_tc_vae_forward.15} parent=68 // pred_fallthru
          _
        %p314 = pneg %p30
        %p315 = pneg %p27
        %s316 = sand.u32 %s43, 1
        %s317 = sand.u32 %s43, 1
        %s318 = smul.addr %s317, 128
        %s319 = scalar_lea.vmem [#allocation2], %s318
        %p320 = pneg %p56
        %p321 = pneg %p53
        %p322 = pneg %p77
        %p323 = pneg %p74
        %p324 = pneg %p103
        %p325 = pneg %p100
        %s326 = sand.u32 %s90, 1
        %s327 = sand.u32 %s90, 1
        %s328 = smul.addr %s327, 64
        %s329 = scalar_lea.vmem [#allocation3], %s328
        %v331 = vld [vmem:[%s0] sm:$0xff]
        %v332 = vld [vmem:[%s0 + $0x8] sm:$0xff]
        %v333 = vld [vmem:[%s0 + $0x10] sm:$0xff]
        %v334 = vld [vmem:[%s0 + $0x18] sm:$0xff]
        %v335 = vld [vmem:[%s0 + $0x20] sm:$0xff]
        %v336 = vld [vmem:[%s0 + $0x28] sm:$0xff]
        %v337 = vld [vmem:[%s0 + $0x30] sm:$0xff]
        %v338 = vld [vmem:[%s0 + $0x38] sm:$0xff]
        %v339 = vld [vmem:[%s0 + $0x40] sm:$0xff]
        %v340 = vld [vmem:[%s0 + $0x48] sm:$0xff]
        %v341 = vld [vmem:[%s0 + $0x50] sm:$0xff]
        %v342 = vld [vmem:[%s0 + $0x58] sm:$0xff]
        %v343 = vld [vmem:[%s0 + $0x60] sm:$0xff]
        %v344 = vld [vmem:[%s0 + $0x68] sm:$0xff]
        %v345 = vld [vmem:[%s0 + $0x70] sm:$0xff]
        %v346 = vld [vmem:[%s0 + $0x78] sm:$0xff]
        %v347 = vld [vmem:[%s310] sm:$0xf]
        %v348 = vld [vmem:[%s310 + $0x4] sm:$0xf]
        %v349 = vld [vmem:[%s310 + $0x8] sm:$0xf]
        %v350 = vld [vmem:[%s310 + $0xc] sm:$0xf]
        %v351 = vld [vmem:[%s310 + $0x10] sm:$0xf]
        %v352 = vld [vmem:[%s310 + $0x14] sm:$0xf]
        %v353 = vld [vmem:[%s310 + $0x18] sm:$0xf]
        %v354 = vld [vmem:[%s310 + $0x1c] sm:$0xf]
        %v355 = vld [vmem:[%s310 + $0x20] sm:$0xf]
        %v356 = vld [vmem:[%s310 + $0x24] sm:$0xf]
        %v357 = vld [vmem:[%s310 + $0x28] sm:$0xf]
        %v358 = vld [vmem:[%s310 + $0x2c] sm:$0xf]
        %v359 = vld [vmem:[%s310 + $0x30] sm:$0xf]
        %v360 = vld [vmem:[%s310 + $0x34] sm:$0xf]
        %v361 = vld [vmem:[%s310 + $0x38] sm:$0xf]
        %v362 = vld [vmem:[%s310 + $0x3c] sm:$0xf]
        %v363 = vld [vmem:[%s310 + $0x40] sm:$0xf]
        %v364 = vld [vmem:[%s310 + $0x44] sm:$0xf]
        %v365 = vld [vmem:[%s310 + $0x48] sm:$0xf]
        %v366 = vld [vmem:[%s310 + $0x4c] sm:$0xf]
        %v367 = vld [vmem:[%s310 + $0x50] sm:$0xf]
        %v368 = vld [vmem:[%s310 + $0x54] sm:$0xf]
        %v369 = vld [vmem:[%s310 + $0x58] sm:$0xf]
        %v370 = vld [vmem:[%s310 + $0x5c] sm:$0xf]
        %v371 = vld [vmem:[%s310 + $0x60] sm:$0xf]
        %v372 = vld [vmem:[%s310 + $0x64] sm:$0xf]
        %v373 = vld [vmem:[%s310 + $0x68] sm:$0xf]
        %v374 = vld [vmem:[%s310 + $0x6c] sm:$0xf]
        %v375 = vld [vmem:[%s310 + $0x70] sm:$0xf]
        %v376 = vld [vmem:[%s310 + $0x74] sm:$0xf]
        %v377 = vld [vmem:[%s310 + $0x78] sm:$0xf]
        %v378 = vld [vmem:[%s310 + $0x7c] sm:$0xf]
        %v379 = vld [vmem:[%s2] sm:$0xff]
        %v380 = vld [vmem:[%s2 + $0x8] sm:$0xff]
        %v381 = vld [vmem:[%s2 + $0x10] sm:$0xff]
        %v382 = vld [vmem:[%s2 + $0x18] sm:$0xff]
        %v383 = vld [vmem:[%s2 + $0x20] sm:$0xff]
        %v384 = vld [vmem:[%s2 + $0x28] sm:$0xff]
        %v385 = vld [vmem:[%s2 + $0x30] sm:$0xff]
        %v386 = vld [vmem:[%s2 + $0x38] sm:$0xff]
        %v387 = vld [vmem:[%s2 + $0x40] sm:$0xff]
        %v388 = vld [vmem:[%s2 + $0x48] sm:$0xff]
        %v389 = vld [vmem:[%s2 + $0x50] sm:$0xff]
        %v390 = vld [vmem:[%s2 + $0x58] sm:$0xff]
        %v391 = vld [vmem:[%s2 + $0x60] sm:$0xff]
        %v392 = vld [vmem:[%s2 + $0x68] sm:$0xff]
        %v393 = vld [vmem:[%s2 + $0x70] sm:$0xff]
        %v394 = vld [vmem:[%s2 + $0x78] sm:$0xff]
        %396 = vset.pattern.permute.xlu0 0
        %397 = vperm.xlu0 %396, %v379
        %v398 = vpop.permute.xlu0 %397
        %401 = vset.pattern.permute.xlu0 0
        %402 = vperm.xlu0 %401, %v380
        %v403 = vpop.permute.xlu0 %402
        %406 = vset.pattern.permute.xlu0 0
        %407 = vperm.xlu0 %406, %v381
        %v408 = vpop.permute.xlu0 %407
        %411 = vset.pattern.permute.xlu0 0
        %412 = vperm.xlu0 %411, %v382
        %v413 = vpop.permute.xlu0 %412
        %416 = vset.pattern.permute.xlu0 0
        %417 = vperm.xlu0 %416, %v383
        %v418 = vpop.permute.xlu0 %417
        %421 = vset.pattern.permute.xlu0 0
        %422 = vperm.xlu0 %421, %v384
        %v423 = vpop.permute.xlu0 %422
        %426 = vset.pattern.permute.xlu0 0
        %427 = vperm.xlu0 %426, %v385
        %v428 = vpop.permute.xlu0 %427
        %431 = vset.pattern.permute.xlu0 0
        %432 = vperm.xlu0 %431, %v386
        %v433 = vpop.permute.xlu0 %432
        %436 = vset.pattern.permute.xlu0 0
        %437 = vperm.xlu0 %436, %v387
        %v438 = vpop.permute.xlu0 %437
        %441 = vset.pattern.permute.xlu0 0
        %442 = vperm.xlu0 %441, %v388
        %v443 = vpop.permute.xlu0 %442
        %446 = vset.pattern.permute.xlu0 0
        %447 = vperm.xlu0 %446, %v389
        %v448 = vpop.permute.xlu0 %447
        %451 = vset.pattern.permute.xlu0 0
        %452 = vperm.xlu0 %451, %v390
        %v453 = vpop.permute.xlu0 %452
        %456 = vset.pattern.permute.xlu0 0
        %457 = vperm.xlu0 %456, %v391
        %v458 = vpop.permute.xlu0 %457
        %461 = vset.pattern.permute.xlu0 0
        %462 = vperm.xlu0 %461, %v392
        %v463 = vpop.permute.xlu0 %462
        %466 = vset.pattern.permute.xlu0 0
        %467 = vperm.xlu0 %466, %v393
        %v468 = vpop.permute.xlu0 %467
        %471 = vset.pattern.permute.xlu0 0
        %472 = vperm.xlu0 %471, %v394
        %v473 = vpop.permute.xlu0 %472
        %v491 = vunpack.c.l.b16 %v331
        %v492 = vunpack.c.h.b16 %v331
        %v493 = vunpack.c.l.b16 %v332
        %v494 = vunpack.c.h.b16 %v332
        %v495 = vunpack.c.l.b16 %v333
        %v496 = vunpack.c.h.b16 %v333
        %v497 = vunpack.c.l.b16 %v334
        %v498 = vunpack.c.h.b16 %v334
        %v499 = vunpack.c.l.b16 %v335
        %v500 = vunpack.c.h.b16 %v335
        %v501 = vunpack.c.l.b16 %v336
        %v502 = vunpack.c.h.b16 %v336
        %v503 = vunpack.c.l.b16 %v337
        %v504 = vunpack.c.h.b16 %v337
        %v505 = vunpack.c.l.b16 %v338
        %v506 = vunpack.c.h.b16 %v338
        %v507 = vunpack.c.l.b16 %v339
        %v508 = vunpack.c.h.b16 %v339
        %v509 = vunpack.c.l.b16 %v340
        %v510 = vunpack.c.h.b16 %v340
        %v511 = vunpack.c.l.b16 %v341
        %v512 = vunpack.c.h.b16 %v341
        %v513 = vunpack.c.l.b16 %v342
        %v514 = vunpack.c.h.b16 %v342
        %v515 = vunpack.c.l.b16 %v343
        %v516 = vunpack.c.h.b16 %v343
        %v517 = vunpack.c.l.b16 %v344
        %v518 = vunpack.c.h.b16 %v344
        %v519 = vunpack.c.l.b16 %v345
        %v520 = vunpack.c.h.b16 %v345
        %v521 = vunpack.c.l.b16 %v346
        %v522 = vunpack.c.h.b16 %v346
        %v523 = vpack.c.b16 %v493, %v491
        %v524 = vpack.c.b16 %v494, %v492
        %v525 = vpack.c.b16 %v497, %v495
        %v526 = vpack.c.b16 %v498, %v496
        %v527 = vpack.c.b16 %v501, %v499
        %v528 = vpack.c.b16 %v502, %v500
        %v529 = vpack.c.b16 %v505, %v503
        %v530 = vpack.c.b16 %v506, %v504
        %v531 = vpack.c.b16 %v509, %v507
        %v532 = vpack.c.b16 %v510, %v508
        %v533 = vpack.c.b16 %v513, %v511
        %v534 = vpack.c.b16 %v514, %v512
        %v535 = vpack.c.b16 %v517, %v515
        %v536 = vpack.c.b16 %v518, %v516
        %v537 = vpack.c.b16 %v521, %v519
        %v538 = vpack.c.b16 %v522, %v520
        %v587 = vunpack.c.l.b16 %v347
        %v588 = vunpack.c.l.b16 %v348
        %v589 = vunpack.c.l.b16 %v349
        %v590 = vunpack.c.l.b16 %v350
        %v591 = vunpack.c.l.b16 %v351
        %v592 = vunpack.c.l.b16 %v352
        %v593 = vunpack.c.l.b16 %v353
        %v594 = vunpack.c.l.b16 %v354
        %v595 = vunpack.c.l.b16 %v355
        %v596 = vunpack.c.l.b16 %v356
        %v597 = vunpack.c.l.b16 %v357
        %v598 = vunpack.c.l.b16 %v358
        %v599 = vunpack.c.l.b16 %v359
        %v600 = vunpack.c.l.b16 %v360
        %v601 = vunpack.c.l.b16 %v361
        %v602 = vunpack.c.l.b16 %v362
        %v603 = vunpack.c.l.b16 %v363
        %v604 = vunpack.c.l.b16 %v364
        %v605 = vunpack.c.l.b16 %v365
        %v606 = vunpack.c.l.b16 %v366
        %v607 = vunpack.c.l.b16 %v367
        %v608 = vunpack.c.l.b16 %v368
        %v609 = vunpack.c.l.b16 %v369
        %v610 = vunpack.c.l.b16 %v370
        %v611 = vunpack.c.l.b16 %v371
        %v612 = vunpack.c.l.b16 %v372
        %v613 = vunpack.c.l.b16 %v373
        %v614 = vunpack.c.l.b16 %v374
        %v615 = vunpack.c.l.b16 %v375
        %v616 = vunpack.c.l.b16 %v376
        %v617 = vunpack.c.l.b16 %v377
        %v618 = vunpack.c.l.b16 %v378
        %v619 = vpack.c.b16 %v588, %v587
        %v620 = vpack.c.b16 %v590, %v589
        %v621 = vpack.c.b16 %v592, %v591
        %v622 = vpack.c.b16 %v594, %v593
        %v623 = vpack.c.b16 %v596, %v595
        %v624 = vpack.c.b16 %v598, %v597
        %v625 = vpack.c.b16 %v600, %v599
        %v626 = vpack.c.b16 %v602, %v601
        %v627 = vpack.c.b16 %v604, %v603
        %v628 = vpack.c.b16 %v606, %v605
        %v629 = vpack.c.b16 %v608, %v607
        %v630 = vpack.c.b16 %v610, %v609
        %v631 = vpack.c.b16 %v612, %v611
        %v632 = vpack.c.b16 %v614, %v613
        %v633 = vpack.c.b16 %v616, %v615
        %v634 = vpack.c.b16 %v618, %v617
        %651 = vmatprep.subr.bf16.mxu0 0
        %652 = vmatpush1.bf16.msra.mxu0 %v619
        %653 = vmatprep.subr.bf16.mxu0 0
        %654 = vmatpush1.bf16.msra.mxu0 %v620
        %655 = vmatprep.subr.bf16.mxu0 0
        %656 = vmatpush1.bf16.msra.mxu0 %v621
        %657 = vmatprep.subr.bf16.mxu0 0
        %658 = vmatpush1.bf16.msra.mxu0 %v622
        %659 = vmatprep.subr.bf16.mxu0 0
        %660 = vmatpush1.bf16.msra.mxu0 %v623
        %661 = vmatprep.subr.bf16.mxu0 0
        %662 = vmatpush1.bf16.msra.mxu0 %v624
        %663 = vmatprep.subr.bf16.mxu0 0
        %664 = vmatpush1.bf16.msra.mxu0 %v625
        %665 = vmatprep.subr.bf16.mxu0 0
        %666 = vmatpush1.bf16.msra.mxu0 %v626
        %667 = vmatprep.subr.bf16.mxu0 0
        %668 = vmatpush1.bf16.msra.mxu0 %v627
        %669 = vmatprep.subr.bf16.mxu0 0
        %670 = vmatpush1.bf16.msra.mxu0 %v628
        %671 = vmatprep.subr.bf16.mxu0 0
        %672 = vmatpush1.bf16.msra.mxu0 %v629
        %673 = vmatprep.subr.bf16.mxu0 0
        %674 = vmatpush1.bf16.msra.mxu0 %v630
        %675 = vmatprep.subr.bf16.mxu0 0
        %676 = vmatpush1.bf16.msra.mxu0 %v631
        %677 = vmatprep.subr.bf16.mxu0 0
        %678 = vmatpush1.bf16.msra.mxu0 %v632
        %679 = vmatprep.subr.bf16.mxu0 0
        %680 = vmatpush1.bf16.msra.mxu0 %v633
        %681 = vmatprep.subr.bf16.mxu0 0
        %682 = vmatpush1.bf16.msra.mxu0 %v634
        %683 = vmatprep.mubr.bf16.mxu0 %v524
        %684 = vmatmul.mubr.bf16.gmra.mrb[0].mxu0 %v523
        %v685 = vpop.f32.mrb[0].mxu0
        %v686 = vadd.f32 %v398, %v685
        %v687 = vpop.f32.mrb[0].mxu0
        %v688 = vpop.f32.mrb[0].mxu0
        %v689 = vadd.f32 %v403, %v688
        %v690 = vpop.f32.mrb[0].mxu0
        %691 = vmatprep.mubr.bf16.mxu0 %v526
        %692 = vmatmul.mubr.bf16.gmra.mrb[0].mxu0 %v525
        %v693 = vpop.f32.mrb[0].mxu0
        %v694 = vadd.f32 %v408, %v693
        %v695 = vpop.f32.mrb[0].mxu0
        %v696 = vpop.f32.mrb[0].mxu0
        %v697 = vadd.f32 %v413, %v696
        %v698 = vpop.f32.mrb[0].mxu0
        %699 = vmatprep.mubr.bf16.mxu0 %v528
        %700 = vmatmul.mubr.bf16.gmra.mrb[0].mxu0 %v527
        %v701 = vpop.f32.mrb[0].mxu0
        %v702 = vadd.f32 %v418, %v701
        %v703 = vpop.f32.mrb[0].mxu0
        %v704 = vpop.f32.mrb[0].mxu0
        %v705 = vadd.f32 %v423, %v704
        %v706 = vpop.f32.mrb[0].mxu0
        %707 = vmatprep.mubr.bf16.mxu0 %v530
        %708 = vmatmul.mubr.bf16.gmra.mrb[0].mxu0 %v529
        %v709 = vpop.f32.mrb[0].mxu0
        %v710 = vadd.f32 %v428, %v709
        %v711 = vpop.f32.mrb[0].mxu0
        %v712 = vpop.f32.mrb[0].mxu0
        %v713 = vadd.f32 %v433, %v712
        %v714 = vpop.f32.mrb[0].mxu0
        %715 = vmatprep.mubr.bf16.mxu0 %v532
        %716 = vmatmul.mubr.bf16.gmra.mrb[0].mxu0 %v531
        %v717 = vpop.f32.mrb[0].mxu0
        %v718 = vadd.f32 %v438, %v717
        %v719 = vpop.f32.mrb[0].mxu0
        %v720 = vpop.f32.mrb[0].mxu0
        %v721 = vadd.f32 %v443, %v720
        %v722 = vpop.f32.mrb[0].mxu0
        %723 = vmatprep.mubr.bf16.mxu0 %v534
        %724 = vmatmul.mubr.bf16.gmra.mrb[0].mxu0 %v533
        %v725 = vpop.f32.mrb[0].mxu0
        %v726 = vadd.f32 %v448, %v725
        %v727 = vpop.f32.mrb[0].mxu0
        %v728 = vpop.f32.mrb[0].mxu0
        %v729 = vadd.f32 %v453, %v728
        %v730 = vpop.f32.mrb[0].mxu0
        %731 = vmatprep.mubr.bf16.mxu0 %v536
        %732 = vmatmul.mubr.bf16.gmra.mrb[0].mxu0 %v535
        %v733 = vpop.f32.mrb[0].mxu0
        %v734 = vadd.f32 %v458, %v733
        %v735 = vpop.f32.mrb[0].mxu0
        %v736 = vpop.f32.mrb[0].mxu0
        %v737 = vadd.f32 %v463, %v736
        %v738 = vpop.f32.mrb[0].mxu0
        %739 = vmatprep.mubr.bf16.mxu0 %v538
        %740 = vmatmul.mubr.bf16.gmra.mrb[0].mxu0 %v537
        %v741 = vpop.f32.mrb[0].mxu0
        %v742 = vadd.f32 %v468, %v741
        %v743 = vpop.f32.mrb[0].mxu0
        %v744 = vpop.f32.mrb[0].mxu0
        %v745 = vadd.f32 %v473, %v744
        %v746 = vpop.f32.mrb[0].mxu0
        %747 = vdwg.mxu0
        %v748 = vmax.f32 %v686, 0.0
        %v749 = vmax.f32 %v689, 0.0
        %v750 = vmax.f32 %v694, 0.0
        %v751 = vmax.f32 %v697, 0.0
        %v752 = vmax.f32 %v702, 0.0
        %v753 = vmax.f32 %v705, 0.0
        %v754 = vmax.f32 %v710, 0.0
        %v755 = vmax.f32 %v713, 0.0
        %v756 = vmax.f32 %v718, 0.0
        %v757 = vmax.f32 %v721, 0.0
        %v758 = vmax.f32 %v726, 0.0
        %v759 = vmax.f32 %v729, 0.0
        %v760 = vmax.f32 %v734, 0.0
        %v761 = vmax.f32 %v737, 0.0
        %v762 = vmax.f32 %v742, 0.0
        %v763 = vmax.f32 %v745, 0.0
        %v764 = vpack.c.bf16 %v749, %v748
        %v765 = vpack.c.bf16 %v751, %v750
        %v766 = vpack.c.bf16 %v753, %v752
        %v767 = vpack.c.bf16 %v755, %v754
        %v768 = vpack.c.bf16 %v757, %v756
        %v769 = vpack.c.bf16 %v759, %v758
        %v770 = vpack.c.bf16 %v761, %v760
        %v771 = vpack.c.bf16 %v763, %v762
        %v780 = vunpack.c.l.b16 %v764
        %v781 = vunpack.c.h.b16 %v764
        %v782 = vunpack.c.l.b16 %v765
        %v783 = vunpack.c.h.b16 %v765
        %v784 = vunpack.c.l.b16 %v766
        %v785 = vunpack.c.h.b16 %v766
        %v786 = vunpack.c.l.b16 %v767
        %v787 = vunpack.c.h.b16 %v767
        %v788 = vunpack.c.l.b16 %v768
        %v789 = vunpack.c.h.b16 %v768
        %v790 = vunpack.c.l.b16 %v769
        %v791 = vunpack.c.h.b16 %v769
        %v792 = vunpack.c.l.b16 %v770
        %v793 = vunpack.c.h.b16 %v770
        %v794 = vunpack.c.l.b16 %v771
        %v795 = vunpack.c.h.b16 %v771
        %v796 = vpack.c.b16 %v780, %v780
        %v797 = vpack.c.b16 %v781, %v781
        %v798 = vpack.c.b16 %v782, %v782
        %v799 = vpack.c.b16 %v783, %v783
        %v800 = vpack.c.b16 %v784, %v784
        %v801 = vpack.c.b16 %v785, %v785
        %v802 = vpack.c.b16 %v786, %v786
        %v803 = vpack.c.b16 %v787, %v787
        %v804 = vpack.c.b16 %v788, %v788
        %v805 = vpack.c.b16 %v789, %v789
        %v806 = vpack.c.b16 %v790, %v790
        %v807 = vpack.c.b16 %v791, %v791
        %v808 = vpack.c.b16 %v792, %v792
        %v809 = vpack.c.b16 %v793, %v793
        %v810 = vpack.c.b16 %v794, %v794
        %v811 = vpack.c.b16 %v795, %v795
        %828 = vst [vmem:[%s329] sm:$0xf] %v796
        %829 = vst [vmem:[%s329 + $0x4] sm:$0xf] %v797
        %830 = vst [vmem:[%s329 + $0x8] sm:$0xf] %v798
        %831 = vst [vmem:[%s329 + $0xc] sm:$0xf] %v799
        %832 = vst [vmem:[%s329 + $0x10] sm:$0xf] %v800
        %833 = vst [vmem:[%s329 + $0x14] sm:$0xf] %v801
        %834 = vst [vmem:[%s329 + $0x18] sm:$0xf] %v802
        %835 = vst [vmem:[%s329 + $0x1c] sm:$0xf] %v803
        %836 = vst [vmem:[%s329 + $0x20] sm:$0xf] %v804
        %837 = vst [vmem:[%s329 + $0x24] sm:$0xf] %v805
        %838 = vst [vmem:[%s329 + $0x28] sm:$0xf] %v806
        %839 = vst [vmem:[%s329 + $0x2c] sm:$0xf] %v807
        %840 = vst [vmem:[%s329 + $0x30] sm:$0xf] %v808
        %841 = vst [vmem:[%s329 + $0x34] sm:$0xf] %v809
        %842 = vst [vmem:[%s329 + $0x38] sm:$0xf] %v810
        %843 = vst [vmem:[%s329 + $0x3c] sm:$0xf] %v811
        %s844 = sand.u32 %s90, 1
        %s845 = sand.u32 %s90, 1
        %s846 = smul.addr %s845, 64
        %s847 = scalar_lea.vmem [#allocation3], %s846
        // Predicated region
        $region74: #{beta_tc_vae_forward.15} parent=68 // pred_check
          %p848 = pneg %p100
        $region75: #{beta_tc_vae_forward.15} parent=68 // pred_check_branch
          %850 = sbr.rel (%p848) target = $region77
        $region76: #{beta_tc_vae_forward.15} parent=68 // pred_region
          %s851 = smul.addr %s14, 4
          %s852 = scalar_lea.vmem %s3, %s851
          // Predicated region
          $region78: #{beta_tc_vae_forward.15} parent=76 // pred_check
            _
          $region79: #{beta_tc_vae_forward.15} parent=76 // pred_check_branch
            %854 = sbr.rel (0) target = $region81
          $region80: #{beta_tc_vae_forward.15} parent=76 // pred_region
            // Predicated region
            $region82: #{beta_tc_vae_forward.15} parent=80 // pred_check
              _
            $region83: #{beta_tc_vae_forward.15} parent=80 // pred_check_branch
              %856 = sbr.rel target = $region85
            $region84: #{beta_tc_vae_forward.15} parent=80 // pred_region
              // Predicated region
              $region97: #{beta_tc_vae_forward.15} parent=84 // pred_check
                _
              $region98: #{beta_tc_vae_forward.15} parent=84 // pred_check_branch
                %901 = sbr.rel (0) target = $region100
              $region99: #{beta_tc_vae_forward.15} parent=84 // pred_region
                loop: start=0, step=1, limit=1
                $region101: #{beta_tc_vae_forward.15} parent=99 // loop_pre_header
                  _
                $region102: #{beta_tc_vae_forward.15} parent=99 // loop_header
                  %s903 = sphi 0, %s907
                  %p904 = scmp.ge.s32.totalorder %s903, 1
                  %s908 = sphi %s847, %s847
                  %s909 = sphi %s852, %s852
                $region103: #{beta_tc_vae_forward.15} parent=99 // loop_header_branch
                  %906 = sbr.rel (%p904) target = $region107
                $region104: #{beta_tc_vae_forward.15} parent=99 // loop_body
                  _
                $region105: #{beta_tc_vae_forward.15} parent=99 // loop_footer
                  %s907 = sadd.s32 1, %s903
                $region106: #{beta_tc_vae_forward.15} parent=99 // loop_footer_branch
                  %902 = sbr.rel target = $region102
                $region107: #{beta_tc_vae_forward.15} parent=99 // loop_exit
                  _
                loop: start=0, step=1, limit=1
                $region108: #{beta_tc_vae_forward.15} parent=99 // loop_pre_header
                  _
                $region109: #{beta_tc_vae_forward.15} parent=99 // loop_header
                  %s912 = sphi 0, %s916
                  %p913 = scmp.ge.s32.totalorder %s912, 1
                  %s917 = sphi %s847, %s847
                  %s918 = sphi %s852, %s852
                $region110: #{beta_tc_vae_forward.15} parent=99 // loop_header_branch
                  %915 = sbr.rel (%p913) target = $region114
                $region111: #{beta_tc_vae_forward.15} parent=99 // loop_body
                  %v919 = vld [vmem:[%s917] sm:$0xf]
                  %920 = vst [vmem:[%s918] sm:$0xf] %v919
                  %v921 = vld [vmem:[%s917 + $0x4] sm:$0xf]
                  %922 = vst [vmem:[%s918 + $0x8] sm:$0xf] %v921
                  %v923 = vld [vmem:[%s917 + $0x8] sm:$0xf]
                  %924 = vst [vmem:[%s918 + $0x10] sm:$0xf] %v923
                  %v925 = vld [vmem:[%s917 + $0xc] sm:$0xf]
                  %926 = vst [vmem:[%s918 + $0x18] sm:$0xf] %v925
                  %v927 = vld [vmem:[%s917 + $0x10] sm:$0xf]
                  %928 = vst [vmem:[%s918 + $0x20] sm:$0xf] %v927
                  %v929 = vld [vmem:[%s917 + $0x14] sm:$0xf]
                  %930 = vst [vmem:[%s918 + $0x28] sm:$0xf] %v929
                  %v931 = vld [vmem:[%s917 + $0x18] sm:$0xf]
                  %932 = vst [vmem:[%s918 + $0x30] sm:$0xf] %v931
                  %v933 = vld [vmem:[%s917 + $0x1c] sm:$0xf]
                  %934 = vst [vmem:[%s918 + $0x38] sm:$0xf] %v933
                  %v935 = vld [vmem:[%s917 + $0x20] sm:$0xf]
                  %936 = vst [vmem:[%s918 + $0x40] sm:$0xf] %v935
                  %v937 = vld [vmem:[%s917 + $0x24] sm:$0xf]
                  %938 = vst [vmem:[%s918 + $0x48] sm:$0xf] %v937
                  %v939 = vld [vmem:[%s917 + $0x28] sm:$0xf]
                  %940 = vst [vmem:[%s918 + $0x50] sm:$0xf] %v939
                  %v941 = vld [vmem:[%s917 + $0x2c] sm:$0xf]
                  %942 = vst [vmem:[%s918 + $0x58] sm:$0xf] %v941
                  %v943 = vld [vmem:[%s917 + $0x30] sm:$0xf]
                  %944 = vst [vmem:[%s918 + $0x60] sm:$0xf] %v943
                  %v945 = vld [vmem:[%s917 + $0x34] sm:$0xf]
                  %946 = vst [vmem:[%s918 + $0x68] sm:$0xf] %v945
                  %v947 = vld [vmem:[%s917 + $0x38] sm:$0xf]
                  %948 = vst [vmem:[%s918 + $0x70] sm:$0xf] %v947
                  %v949 = vld [vmem:[%s917 + $0x3c] sm:$0xf]
                  %950 = vst [vmem:[%s918 + $0x78] sm:$0xf] %v949
                $region112: #{beta_tc_vae_forward.15} parent=99 // loop_footer
                  %s916 = sadd.s32 1, %s912
                $region113: #{beta_tc_vae_forward.15} parent=99 // loop_footer_branch
                  %911 = sbr.rel target = $region109
                $region114: #{beta_tc_vae_forward.15} parent=99 // loop_exit
                  _
              $region100: #{beta_tc_vae_forward.15} parent=84 // pred_fallthru
                _
            $region85: #{beta_tc_vae_forward.15} parent=80 // pred_fallthru
              _
            // Predicated region
            $region86: #{beta_tc_vae_forward.15} parent=80 // pred_check
              _
            $region87: #{beta_tc_vae_forward.15} parent=80 // pred_check_branch
              %858 = sbr.rel (0) target = $region89
            $region88: #{beta_tc_vae_forward.15} parent=80 // pred_region
              loop: start=0, step=1, limit=1
              $region90: #{beta_tc_vae_forward.15} parent=88 // loop_pre_header
                _
              $region91: #{beta_tc_vae_forward.15} parent=88 // loop_header
                %s861 = sphi 0, %s865
                %p862 = scmp.ge.s32.totalorder %s861, 1
                %s866 = sphi %s847, %s847
                %s867 = sphi %s852, %s852
              $region92: #{beta_tc_vae_forward.15} parent=88 // loop_header_branch
                %864 = sbr.rel (%p862) target = $region96
              $region93: #{beta_tc_vae_forward.15} parent=88 // loop_body
                %v868 = vld [vmem:[%s866] sm:$0xf]
                %869 = vst [vmem:[%s867] sm:$0xf] %v868
                %v870 = vld [vmem:[%s866 + $0x4] sm:$0xf]
                %871 = vst [vmem:[%s867 + $0x8] sm:$0xf] %v870
                %v872 = vld [vmem:[%s866 + $0x8] sm:$0xf]
                %873 = vst [vmem:[%s867 + $0x10] sm:$0xf] %v872
                %v874 = vld [vmem:[%s866 + $0xc] sm:$0xf]
                %875 = vst [vmem:[%s867 + $0x18] sm:$0xf] %v874
                %v876 = vld [vmem:[%s866 + $0x10] sm:$0xf]
                %877 = vst [vmem:[%s867 + $0x20] sm:$0xf] %v876
                %v878 = vld [vmem:[%s866 + $0x14] sm:$0xf]
                %879 = vst [vmem:[%s867 + $0x28] sm:$0xf] %v878
                %v880 = vld [vmem:[%s866 + $0x18] sm:$0xf]
                %881 = vst [vmem:[%s867 + $0x30] sm:$0xf] %v880
                %v882 = vld [vmem:[%s866 + $0x1c] sm:$0xf]
                %883 = vst [vmem:[%s867 + $0x38] sm:$0xf] %v882
                %v884 = vld [vmem:[%s866 + $0x20] sm:$0xf]
                %885 = vst [vmem:[%s867 + $0x40] sm:$0xf] %v884
                %v886 = vld [vmem:[%s866 + $0x24] sm:$0xf]
                %887 = vst [vmem:[%s867 + $0x48] sm:$0xf] %v886
                %v888 = vld [vmem:[%s866 + $0x28] sm:$0xf]
                %889 = vst [vmem:[%s867 + $0x50] sm:$0xf] %v888
                %v890 = vld [vmem:[%s866 + $0x2c] sm:$0xf]
                %891 = vst [vmem:[%s867 + $0x58] sm:$0xf] %v890
                %v892 = vld [vmem:[%s866 + $0x30] sm:$0xf]
                %893 = vst [vmem:[%s867 + $0x60] sm:$0xf] %v892
                %v894 = vld [vmem:[%s866 + $0x34] sm:$0xf]
                %895 = vst [vmem:[%s867 + $0x68] sm:$0xf] %v894
                %v896 = vld [vmem:[%s866 + $0x38] sm:$0xf]
                %897 = vst [vmem:[%s867 + $0x70] sm:$0xf] %v896
                %v898 = vld [vmem:[%s866 + $0x3c] sm:$0xf]
                %899 = vst [vmem:[%s867 + $0x78] sm:$0xf] %v898
              $region94: #{beta_tc_vae_forward.15} parent=88 // loop_footer
                %s865 = sadd.s32 1, %s861
              $region95: #{beta_tc_vae_forward.15} parent=88 // loop_footer_branch
                %860 = sbr.rel target = $region91
              $region96: #{beta_tc_vae_forward.15} parent=88 // loop_exit
                _
            $region89: #{beta_tc_vae_forward.15} parent=80 // pred_fallthru
              _
          $region81: #{beta_tc_vae_forward.15} parent=76 // pred_fallthru
            _
          %951 = vnop
        $region77: #{beta_tc_vae_forward.15} parent=68 // pred_fallthru
          _
      $region69: #{beta_tc_vae_forward.15} parent=5 // pred_fallthru
        _
      %p952 = scmp.le.s32.totalorder 2, %s9
      // Predicated region
      $region115: #{beta_tc_vae_forward.15} parent=5 // pred_check
        %p953 = pneg %p952
      $region116: #{beta_tc_vae_forward.15} parent=5 // pred_check_branch
        %955 = sbr.rel (%p953) target = $region118
      $region117: #{beta_tc_vae_forward.15} parent=5 // pred_region
        %s956 = ssub.s32 %s9, 2
        // Predicated region
        $region119: #{beta_tc_vae_forward.15} parent=117 // pred_check
          %p957 = pneg %p106
        $region120: #{beta_tc_vae_forward.15} parent=117 // pred_check_branch
          %959 = sbr.rel (%p957) target = $region122
        $region121: #{beta_tc_vae_forward.15} parent=117 // pred_region
          %s960 = sand.u32 %s91, 1
          %s961 = sand.u32 %s91, 1
          %s962 = smul.addr %s961, 64
          %s963 = scalar_lea.vmem [#allocation3], %s962
        $region122: #{beta_tc_vae_forward.15} parent=117 // pred_fallthru
          _
      $region118: #{beta_tc_vae_forward.15} parent=5 // pred_fallthru
        _
    $region6: #{beta_tc_vae_forward.15} parent=1 // loop_footer
      %s13 = sadd.s32 1, %s9
    $region7: #{beta_tc_vae_forward.15} parent=1 // loop_footer_branch
      %8 = sbr.rel target = $region3
    $region8: #{beta_tc_vae_forward.15} parent=1 // loop_exit
      _

// kernel: beta_tc_vae_forward.16
$region0: #{beta_tc_vae_forward.16}
  #allocation0 [shape = 'u32[]', space=smem, size = 0x4, offset = 0x4, fixed_abs, tag = 'smem constant byte address 0x4 - core index']
  #allocation1 [shape = 'u32[144,128]{1,0:T(1,128)}', space=vmem, size = 0x12000, scoped, tag = 'internal scratch']
  %s0 = inlined_call_operand.vmem [shape: bf16[128,128], index: 0, kind: input, shape index: {}]
  %s1 = inlined_call_operand.vmem [shape: bf16[128,640], index: 1, kind: input, shape index: {}]
  %s2 = inlined_call_operand.vmem [shape: f32[128,1], index: 2, kind: input, shape index: {}]
  %s3 = inlined_call_operand.vmem [shape: bf16[128,640], index: 3, kind: output, shape index: {}]
  %s4 = sld [smem:[#allocation0]]
  $region123: #{beta_tc_vae_forward.16} parent=0
    _
  %s6 = ssub.s32 1, %s4
  %s7 = scalar_select 0, %s6, %s4
  $region1: #{beta_tc_vae_forward.16} parent=0
    #allocation2 [shape = 'u8[65536]{0}', space=vmem, size = 0x10000, scoped, tag = 'input window, operand 1']
    #allocation3 [shape = 'u8[65536]{0}', space=vmem, size = 0x10000, scoped, tag = 'output window, operand 0']
    loop: start=0, step=1, limit=7
    $region2: #{beta_tc_vae_forward.16} parent=1 // loop_pre_header
      _
    $region3: #{beta_tc_vae_forward.16} parent=1 // loop_header
      %s9 = sphi 0, %s13
      %p10 = scmp.ge.s32.totalorder %s9, 7
      %s17 = sphi 0, %s17
      %s19 = sphi 0, %s17
      %s20 = sphi 0, %s19
      %s34 = sphi 0, %s20
      %s40 = sphi 0, %s42
      %s43 = sphi 0, %s40
      %s44 = sphi 0, %s43
      %s60 = sphi 0, %s44
      %s64 = sphi 0, %s64
      %s66 = sphi 0, %s64
      %s67 = sphi 0, %s66
      %s81 = sphi 0, %s67
      %s87 = sphi 0, %s89
      %s90 = sphi 0, %s87
      %s91 = sphi 0, %s90
      %s107 = sphi 0, %s91
    $region4: #{beta_tc_vae_forward.16} parent=1 // loop_header_branch
      %12 = sbr.rel (%p10) target = $region8
    $region5: #{beta_tc_vae_forward.16} parent=1 // loop_body
      %s14 = ssub.s32 %s9, 1
      %s15 = ssub.s32 %s9, 2
      %s16 = sadd.s32 %s9, 1
      %s18 = sadd.s32 %s17, 1
      %p21 = scmp.eq.s32.totalorder %s9, 4
      %p22 = scmp.ne.s32.totalorder %s17, %s19
      %p23 = scmp.eq.s32.totalorder %s9, 0
      %p24 = por %p22, %p23
      %p25 = scmp.ne.s32.totalorder %s17, %s19
      %p26 = scmp.eq.s32.totalorder %s14, 4
      %p27 = por %p25, %p26
      %p28 = scmp.ne.s32.totalorder %s19, %s20
      %p29 = scmp.eq.s32.totalorder %s14, 0
      %p30 = por %p28, %p29
      %p31 = scmp.ne.s32.totalorder %s19, %s20
      %p32 = scmp.eq.s32.totalorder %s15, 4
      %p33 = por %p31, %p32
      %p35 = scmp.ne.s32.totalorder %s20, %s34
      %p36 = scmp.eq.s32.totalorder %s15, 0
      %p37 = por %p35, %p36
      %s38 = ssub.s32 %s9, %s16
      %p39 = scmp.eq.s32.totalorder %s38, 0
      %s41 = sadd.s32 %s40, 1
      %s42 = scalar_select %p39, %s40, %s41
      %p45 = pneg %p39
      %p46 = scmp.eq.s32.totalorder %s9, 4
      %p47 = por %p45, %p46
      %p48 = scmp.ne.s32.totalorder %s40, %s43
      %p49 = scmp.eq.s32.totalorder %s9, 0
      %p50 = por %p48, %p49
      %p51 = scmp.ne.s32.totalorder %s40, %s43
      %p52 = scmp.eq.s32.totalorder %s14, 4
      %p53 = por %p51, %p52
      %p54 = scmp.ne.s32.totalorder %s43, %s44
      %p55 = scmp.eq.s32.totalorder %s14, 0
      %p56 = por %p54, %p55
      %p57 = scmp.ne.s32.totalorder %s43, %s44
      %p58 = scmp.eq.s32.totalorder %s15, 4
      %p59 = por %p57, %p58
      %p61 = scmp.ne.s32.totalorder %s44, %s60
      %p62 = scmp.eq.s32.totalorder %s15, 0
      %p63 = por %p61, %p62
      %s65 = sadd.s32 %s64, 1
      %p68 = scmp.eq.s32.totalorder %s9, 4
      %p69 = scmp.ne.s32.totalorder %s64, %s66
      %p70 = scmp.eq.s32.totalorder %s9, 0
      %p71 = por %p69, %p70
      %p72 = scmp.ne.s32.totalorder %s64, %s66
      %p73 = scmp.eq.s32.totalorder %s14, 4
      %p74 = por %p72, %p73
      %p75 = scmp.ne.s32.totalorder %s66, %s67
      %p76 = scmp.eq.s32.totalorder %s14, 0
      %p77 = por %p75, %p76
      %p78 = scmp.ne.s32.totalorder %s66, %s67
      %p79 = scmp.eq.s32.totalorder %s15, 4
      %p80 = por %p78, %p79
      %p82 = scmp.ne.s32.totalorder %s67, %s81
      %p83 = scmp.eq.s32.totalorder %s15, 0
      %p84 = por %p82, %p83
      %s85 = ssub.s32 %s9, %s16
      %p86 = scmp.eq.s32.totalorder %s85, 0
      %s88 = sadd.s32 %s87, 1
      %s89 = scalar_select %p86, %s87, %s88
      %p92 = pneg %p86
      %p93 = scmp.eq.s32.totalorder %s9, 4
      %p94 = por %p92, %p93
      %p95 = scmp.ne.s32.totalorder %s87, %s90
      %p96 = scmp.eq.s32.totalorder %s9, 0
      %p97 = por %p95, %p96
      %p98 = scmp.ne.s32.totalorder %s87, %s90
      %p99 = scmp.eq.s32.totalorder %s14, 4
      %p100 = por %p98, %p99
      %p101 = scmp.ne.s32.totalorder %s90, %s91
      %p102 = scmp.eq.s32.totalorder %s14, 0
      %p103 = por %p101, %p102
      %p104 = scmp.ne.s32.totalorder %s90, %s91
      %p105 = scmp.eq.s32.totalorder %s15, 4
      %p106 = por %p104, %p105
      %p108 = scmp.ne.s32.totalorder %s91, %s107
      %p109 = scmp.eq.s32.totalorder %s15, 0
      %p110 = por %p108, %p109
      %p111 = scmp.le.s32.totalorder 1, %s9
      %p112 = scmp.lt.s32.totalorder %s9, 6
      %p113 = pnand %p111, %p112
      %p114 = pneg %p113
      // Predicated region
      $region9: #{beta_tc_vae_forward.16} parent=5 // pred_check
        _
      $region10: #{beta_tc_vae_forward.16} parent=5 // pred_check_branch
        %116 = sbr.rel (%p113) target = $region12
      $region11: #{beta_tc_vae_forward.16} parent=5 // pred_region
        %s117 = ssub.s32 %s9, 1
        // Predicated region
        $region13: #{beta_tc_vae_forward.16} parent=11 // pred_check
          %p118 = pneg %p30
        $region14: #{beta_tc_vae_forward.16} parent=11 // pred_check_branch
          %120 = sbr.rel (%p118) target = $region16
        $region15: #{beta_tc_vae_forward.16} parent=11 // pred_region
          _
        $region16: #{beta_tc_vae_forward.16} parent=11 // pred_fallthru
          _
        // Predicated region
        $region17: #{beta_tc_vae_forward.16} parent=11 // pred_check
          %p121 = pneg %p77
        $region18: #{beta_tc_vae_forward.16} parent=11 // pred_check_branch
          %123 = sbr.rel (%p121) target = $region20
        $region19: #{beta_tc_vae_forward.16} parent=11 // pred_region
          _
        $region20: #{beta_tc_vae_forward.16} parent=11 // pred_fallthru
          _
      $region12: #{beta_tc_vae_forward.16} parent=5 // pred_fallthru
        _
      %p124 = scmp.lt.s32.totalorder %s9, 5
      // Predicated region
      $region21: #{beta_tc_vae_forward.16} parent=5 // pred_check
        %p125 = pneg %p124
      $region22: #{beta_tc_vae_forward.16} parent=5 // pred_check_branch
        %127 = sbr.rel (%p125) target = $region24
      $region23: #{beta_tc_vae_forward.16} parent=5 // pred_region
        // Predicated region
        $region25: #{beta_tc_vae_forward.16} parent=23 // pred_check
          %p128 = pneg %p50
        $region26: #{beta_tc_vae_forward.16} parent=23 // pred_check_branch
          %130 = sbr.rel (%p128) target = $region28
        $region27: #{beta_tc_vae_forward.16} parent=23 // pred_region
          %s131 = sand.u32 %s40, 1
          %s132 = sand.u32 %s40, 1
          %s133 = smul.addr %s132, 64
          %s134 = scalar_lea.vmem [#allocation2], %s133
          %s135 = smul.addr %s9, 4
          %s136 = scalar_lea.vmem %s1, %s135
          // Predicated region
          $region29: #{beta_tc_vae_forward.16} parent=27 // pred_check
            _
          $region30: #{beta_tc_vae_forward.16} parent=27 // pred_check_branch
            %138 = sbr.rel (0) target = $region32
          $region31: #{beta_tc_vae_forward.16} parent=27 // pred_region
            // Predicated region
            $region33: #{beta_tc_vae_forward.16} parent=31 // pred_check
              _
            $region34: #{beta_tc_vae_forward.16} parent=31 // pred_check_branch
              %140 = sbr.rel target = $region36
            $region35: #{beta_tc_vae_forward.16} parent=31 // pred_region
              // Predicated region
              $region48: #{beta_tc_vae_forward.16} parent=35 // pred_check
                _
              $region49: #{beta_tc_vae_forward.16} parent=35 // pred_check_branch
                %185 = sbr.rel (0) target = $region51
              $region50: #{beta_tc_vae_forward.16} parent=35 // pred_region
                loop: start=0, step=1, limit=1
                $region52: #{beta_tc_vae_forward.16} parent=50 // loop_pre_header
                  _
                $region53: #{beta_tc_vae_forward.16} parent=50 // loop_header
                  %s187 = sphi 0, %s191
                  %p188 = scmp.ge.s32.totalorder %s187, 1
                  %s192 = sphi %s136, %s136
                  %s193 = sphi %s134, %s134
                $region54: #{beta_tc_vae_forward.16} parent=50 // loop_header_branch
                  %190 = sbr.rel (%p188) target = $region58
                $region55: #{beta_tc_vae_forward.16} parent=50 // loop_body
                  _
                $region56: #{beta_tc_vae_forward.16} parent=50 // loop_footer
                  %s191 = sadd.s32 1, %s187
                $region57: #{beta_tc_vae_forward.16} parent=50 // loop_footer_branch
                  %186 = sbr.rel target = $region53
                $region58: #{beta_tc_vae_forward.16} parent=50 // loop_exit
                  _
                loop: start=0, step=1, limit=1
                $region59: #{beta_tc_vae_forward.16} parent=50 // loop_pre_header
                  _
                $region60: #{beta_tc_vae_forward.16} parent=50 // loop_header
                  %s196 = sphi 0, %s200
                  %p197 = scmp.ge.s32.totalorder %s196, 1
                  %s201 = sphi %s136, %s136
                  %s202 = sphi %s134, %s134
                $region61: #{beta_tc_vae_forward.16} parent=50 // loop_header_branch
                  %199 = sbr.rel (%p197) target = $region65
                $region62: #{beta_tc_vae_forward.16} parent=50 // loop_body
                  %v203 = vld [vmem:[%s201] sm:$0xf]
                  %204 = vst [vmem:[%s202] sm:$0xf] %v203
                  %v205 = vld [vmem:[%s201 + $0x14] sm:$0xf]
                  %206 = vst [vmem:[%s202 + $0x4] sm:$0xf] %v205
                  %v207 = vld [vmem:[%s201 + $0x28] sm:$0xf]
                  %208 = vst [vmem:[%s202 + $0x8] sm:$0xf] %v207
                  %v209 = vld [vmem:[%s201 + $0x3c] sm:$0xf]
                  %210 = vst [vmem:[%s202 + $0xc] sm:$0xf] %v209
                  %v211 = vld [vmem:[%s201 + $0x50] sm:$0xf]
                  %212 = vst [vmem:[%s202 + $0x10] sm:$0xf] %v211
                  %v213 = vld [vmem:[%s201 + $0x64] sm:$0xf]
                  %214 = vst [vmem:[%s202 + $0x14] sm:$0xf] %v213
                  %v215 = vld [vmem:[%s201 + $0x78] sm:$0xf]
                  %216 = vst [vmem:[%s202 + $0x18] sm:$0xf] %v215
                  %v217 = vld [vmem:[%s201 + $0x8c] sm:$0xf]
                  %218 = vst [vmem:[%s202 + $0x1c] sm:$0xf] %v217
                  %v219 = vld [vmem:[%s201 + $0xa0] sm:$0xf]
                  %220 = vst [vmem:[%s202 + $0x20] sm:$0xf] %v219
                  %v221 = vld [vmem:[%s201 + $0xb4] sm:$0xf]
                  %222 = vst [vmem:[%s202 + $0x24] sm:$0xf] %v221
                  %v223 = vld [vmem:[%s201 + $0xc8] sm:$0xf]
                  %224 = vst [vmem:[%s202 + $0x28] sm:$0xf] %v223
                  %v225 = vld [vmem:[%s201 + $0xdc] sm:$0xf]
                  %226 = vst [vmem:[%s202 + $0x2c] sm:$0xf] %v225
                  %v227 = vld [vmem:[%s201 + $0xf0] sm:$0xf]
                  %228 = vst [vmem:[%s202 + $0x30] sm:$0xf] %v227
                  %v229 = vld [vmem:[%s201 + $0x104] sm:$0xf]
                  %230 = vst [vmem:[%s202 + $0x34] sm:$0xf] %v229
                  %v231 = vld [vmem:[%s201 + $0x118] sm:$0xf]
                  %232 = vst [vmem:[%s202 + $0x38] sm:$0xf] %v231
                  %v233 = vld [vmem:[%s201 + $0x12c] sm:$0xf]
                  %234 = vst [vmem:[%s202 + $0x3c] sm:$0xf] %v233
                $region63: #{beta_tc_vae_forward.16} parent=50 // loop_footer
                  %s200 = sadd.s32 1, %s196
                $region64: #{beta_tc_vae_forward.16} parent=50 // loop_footer_branch
                  %195 = sbr.rel target = $region60
                $region65: #{beta_tc_vae_forward.16} parent=50 // loop_exit
                  _
              $region51: #{beta_tc_vae_forward.16} parent=35 // pred_fallthru
                _
            $region36: #{beta_tc_vae_forward.16} parent=31 // pred_fallthru
              _
            // Predicated region
            $region37: #{beta_tc_vae_forward.16} parent=31 // pred_check
              _
            $region38: #{beta_tc_vae_forward.16} parent=31 // pred_check_branch
              %142 = sbr.rel (0) target = $region40
            $region39: #{beta_tc_vae_forward.16} parent=31 // pred_region
              loop: start=0, step=1, limit=1
              $region41: #{beta_tc_vae_forward.16} parent=39 // loop_pre_header
                _
              $region42: #{beta_tc_vae_forward.16} parent=39 // loop_header
                %s145 = sphi 0, %s149
                %p146 = scmp.ge.s32.totalorder %s145, 1
                %s150 = sphi %s136, %s136
                %s151 = sphi %s134, %s134
              $region43: #{beta_tc_vae_forward.16} parent=39 // loop_header_branch
                %148 = sbr.rel (%p146) target = $region47
              $region44: #{beta_tc_vae_forward.16} parent=39 // loop_body
                %v152 = vld [vmem:[%s150] sm:$0xf]
                %153 = vst [vmem:[%s151] sm:$0xf] %v152
                %v154 = vld [vmem:[%s150 + $0x14] sm:$0xf]
                %155 = vst [vmem:[%s151 + $0x4] sm:$0xf] %v154
                %v156 = vld [vmem:[%s150 + $0x28] sm:$0xf]
                %157 = vst [vmem:[%s151 + $0x8] sm:$0xf] %v156
                %v158 = vld [vmem:[%s150 + $0x3c] sm:$0xf]
                %159 = vst [vmem:[%s151 + $0xc] sm:$0xf] %v158
                %v160 = vld [vmem:[%s150 + $0x50] sm:$0xf]
                %161 = vst [vmem:[%s151 + $0x10] sm:$0xf] %v160
                %v162 = vld [vmem:[%s150 + $0x64] sm:$0xf]
                %163 = vst [vmem:[%s151 + $0x14] sm:$0xf] %v162
                %v164 = vld [vmem:[%s150 + $0x78] sm:$0xf]
                %165 = vst [vmem:[%s151 + $0x18] sm:$0xf] %v164
                %v166 = vld [vmem:[%s150 + $0x8c] sm:$0xf]
                %167 = vst [vmem:[%s151 + $0x1c] sm:$0xf] %v166
                %v168 = vld [vmem:[%s150 + $0xa0] sm:$0xf]
                %169 = vst [vmem:[%s151 + $0x20] sm:$0xf] %v168
                %v170 = vld [vmem:[%s150 + $0xb4] sm:$0xf]
                %171 = vst [vmem:[%s151 + $0x24] sm:$0xf] %v170
                %v172 = vld [vmem:[%s150 + $0xc8] sm:$0xf]
                %173 = vst [vmem:[%s151 + $0x28] sm:$0xf] %v172
                %v174 = vld [vmem:[%s150 + $0xdc] sm:$0xf]
                %175 = vst [vmem:[%s151 + $0x2c] sm:$0xf] %v174
                %v176 = vld [vmem:[%s150 + $0xf0] sm:$0xf]
                %177 = vst [vmem:[%s151 + $0x30] sm:$0xf] %v176
                %v178 = vld [vmem:[%s150 + $0x104] sm:$0xf]
                %179 = vst [vmem:[%s151 + $0x34] sm:$0xf] %v178
                %v180 = vld [vmem:[%s150 + $0x118] sm:$0xf]
                %181 = vst [vmem:[%s151 + $0x38] sm:$0xf] %v180
                %v182 = vld [vmem:[%s150 + $0x12c] sm:$0xf]
                %183 = vst [vmem:[%s151 + $0x3c] sm:$0xf] %v182
              $region45: #{beta_tc_vae_forward.16} parent=39 // loop_footer
                %s149 = sadd.s32 1, %s145
              $region46: #{beta_tc_vae_forward.16} parent=39 // loop_footer_branch
                %144 = sbr.rel target = $region42
              $region47: #{beta_tc_vae_forward.16} parent=39 // loop_exit
                _
            $region40: #{beta_tc_vae_forward.16} parent=31 // pred_fallthru
              _
          $region32: #{beta_tc_vae_forward.16} parent=27 // pred_fallthru
            _
          %235 = vnop
        $region28: #{beta_tc_vae_forward.16} parent=23 // pred_fallthru
          _
      $region24: #{beta_tc_vae_forward.16} parent=5 // pred_fallthru
        _
      %p236 = scmp.le.s32.totalorder 1, %s9
      %p237 = scmp.lt.s32.totalorder %s9, 6
      %p238 = pnand %p236, %p237
      %p239 = pneg %p238
      // Predicated region
      $region66: #{beta_tc_vae_forward.16} parent=5 // pred_check
        _
      $region67: #{beta_tc_vae_forward.16} parent=5 // pred_check_branch
        %241 = sbr.rel (%p238) target = $region69
      $region68: #{beta_tc_vae_forward.16} parent=5 // pred_region
        %s242 = ssub.s32 %s9, 1
        %s243 = sand.u32 %s43, 1
        %s244 = sand.u32 %s43, 1
        %s245 = smul.addr %s244, 64
        %s246 = scalar_lea.vmem [#allocation2], %s245
        // Predicated region
        $region70: #{beta_tc_vae_forward.16} parent=68 // pred_check
          %p247 = pneg %p56
        $region71: #{beta_tc_vae_forward.16} parent=68 // pred_check_branch
          %249 = sbr.rel (%p247) target = $region73
        $region72: #{beta_tc_vae_forward.16} parent=68 // pred_region
          _
        $region73: #{beta_tc_vae_forward.16} parent=68 // pred_fallthru
          _
        %p250 = pneg %p30
        %p251 = pneg %p27
        %s252 = sand.u32 %s43, 1
        %s253 = sand.u32 %s43, 1
        %s254 = smul.addr %s253, 64
        %s255 = scalar_lea.vmem [#allocation2], %s254
        %p256 = pneg %p56
        %p257 = pneg %p53
        %p258 = pneg %p77
        %p259 = pneg %p74
        %p260 = pneg %p103
        %p261 = pneg %p100
        %s262 = sand.u32 %s90, 1
        %s263 = sand.u32 %s90, 1
        %s264 = smul.addr %s263, 64
        %s265 = scalar_lea.vmem [#allocation3], %s264
        %v267 = vld [vmem:[%s0] sm:$0xf]
        %v268 = vld [vmem:[%s0 + $0x4] sm:$0xf]
        %v269 = vld [vmem:[%s0 + $0x8] sm:$0xf]
        %v270 = vld [vmem:[%s0 + $0xc] sm:$0xf]
        %v271 = vld [vmem:[%s0 + $0x10] sm:$0xf]
        %v272 = vld [vmem:[%s0 + $0x14] sm:$0xf]
        %v273 = vld [vmem:[%s0 + $0x18] sm:$0xf]
        %v274 = vld [vmem:[%s0 + $0x1c] sm:$0xf]
        %v275 = vld [vmem:[%s0 + $0x20] sm:$0xf]
        %v276 = vld [vmem:[%s0 + $0x24] sm:$0xf]
        %v277 = vld [vmem:[%s0 + $0x28] sm:$0xf]
        %v278 = vld [vmem:[%s0 + $0x2c] sm:$0xf]
        %v279 = vld [vmem:[%s0 + $0x30] sm:$0xf]
        %v280 = vld [vmem:[%s0 + $0x34] sm:$0xf]
        %v281 = vld [vmem:[%s0 + $0x38] sm:$0xf]
        %v282 = vld [vmem:[%s0 + $0x3c] sm:$0xf]
        %v283 = vld [vmem:[%s246] sm:$0xf]
        %v284 = vld [vmem:[%s246 + $0x4] sm:$0xf]
        %v285 = vld [vmem:[%s246 + $0x8] sm:$0xf]
        %v286 = vld [vmem:[%s246 + $0xc] sm:$0xf]
        %v287 = vld [vmem:[%s246 + $0x10] sm:$0xf]
        %v288 = vld [vmem:[%s246 + $0x14] sm:$0xf]
        %v289 = vld [vmem:[%s246 + $0x18] sm:$0xf]
        %v290 = vld [vmem:[%s246 + $0x1c] sm:$0xf]
        %v291 = vld [vmem:[%s246 + $0x20] sm:$0xf]
        %v292 = vld [vmem:[%s246 + $0x24] sm:$0xf]
        %v293 = vld [vmem:[%s246 + $0x28] sm:$0xf]
        %v294 = vld [vmem:[%s246 + $0x2c] sm:$0xf]
        %v295 = vld [vmem:[%s246 + $0x30] sm:$0xf]
        %v296 = vld [vmem:[%s246 + $0x34] sm:$0xf]
        %v297 = vld [vmem:[%s246 + $0x38] sm:$0xf]
        %v298 = vld [vmem:[%s246 + $0x3c] sm:$0xf]
        %v299 = vld [vmem:[%s2] sm:$0xff]
        %v300 = vld [vmem:[%s2 + $0x8] sm:$0xff]
        %v301 = vld [vmem:[%s2 + $0x10] sm:$0xff]
        %v302 = vld [vmem:[%s2 + $0x18] sm:$0xff]
        %v303 = vld [vmem:[%s2 + $0x20] sm:$0xff]
        %v304 = vld [vmem:[%s2 + $0x28] sm:$0xff]
        %v305 = vld [vmem:[%s2 + $0x30] sm:$0xff]
        %v306 = vld [vmem:[%s2 + $0x38] sm:$0xff]
        %v307 = vld [vmem:[%s2 + $0x40] sm:$0xff]
        %v308 = vld [vmem:[%s2 + $0x48] sm:$0xff]
        %v309 = vld [vmem:[%s2 + $0x50] sm:$0xff]
        %v310 = vld [vmem:[%s2 + $0x58] sm:$0xff]
        %v311 = vld [vmem:[%s2 + $0x60] sm:$0xff]
        %v312 = vld [vmem:[%s2 + $0x68] sm:$0xff]
        %v313 = vld [vmem:[%s2 + $0x70] sm:$0xff]
        %v314 = vld [vmem:[%s2 + $0x78] sm:$0xff]
        %316 = vset.pattern.permute.xlu0 0
        %317 = vperm.xlu0 %316, %v299
        %v318 = vpop.permute.xlu0 %317
        %321 = vset.pattern.permute.xlu0 0
        %322 = vperm.xlu0 %321, %v300
        %v323 = vpop.permute.xlu0 %322
        %326 = vset.pattern.permute.xlu0 0
        %327 = vperm.xlu0 %326, %v301
        %v328 = vpop.permute.xlu0 %327
        %331 = vset.pattern.permute.xlu0 0
        %332 = vperm.xlu0 %331, %v302
        %v333 = vpop.permute.xlu0 %332
        %336 = vset.pattern.permute.xlu0 0
        %337 = vperm.xlu0 %336, %v303
        %v338 = vpop.permute.xlu0 %337
        %341 = vset.pattern.permute.xlu0 0
        %342 = vperm.xlu0 %341, %v304
        %v343 = vpop.permute.xlu0 %342
        %346 = vset.pattern.permute.xlu0 0
        %347 = vperm.xlu0 %346, %v305
        %v348 = vpop.permute.xlu0 %347
        %351 = vset.pattern.permute.xlu0 0
        %352 = vperm.xlu0 %351, %v306
        %v353 = vpop.permute.xlu0 %352
        %356 = vset.pattern.permute.xlu0 0
        %357 = vperm.xlu0 %356, %v307
        %v358 = vpop.permute.xlu0 %357
        %361 = vset.pattern.permute.xlu0 0
        %362 = vperm.xlu0 %361, %v308
        %v363 = vpop.permute.xlu0 %362
        %366 = vset.pattern.permute.xlu0 0
        %367 = vperm.xlu0 %366, %v309
        %v368 = vpop.permute.xlu0 %367
        %371 = vset.pattern.permute.xlu0 0
        %372 = vperm.xlu0 %371, %v310
        %v373 = vpop.permute.xlu0 %372
        %376 = vset.pattern.permute.xlu0 0
        %377 = vperm.xlu0 %376, %v311
        %v378 = vpop.permute.xlu0 %377
        %381 = vset.pattern.permute.xlu0 0
        %382 = vperm.xlu0 %381, %v312
        %v383 = vpop.permute.xlu0 %382
        %386 = vset.pattern.permute.xlu0 0
        %387 = vperm.xlu0 %386, %v313
        %v388 = vpop.permute.xlu0 %387
        %391 = vset.pattern.permute.xlu0 0
        %392 = vperm.xlu0 %391, %v314
        %v393 = vpop.permute.xlu0 %392
        %v411 = vunpack.c.l.b16 %v267
        %v412 = vunpack.c.l.b16 %v268
        %v413 = vunpack.c.l.b16 %v269
        %v414 = vunpack.c.l.b16 %v270
        %v415 = vunpack.c.l.b16 %v271
        %v416 = vunpack.c.l.b16 %v272
        %v417 = vunpack.c.l.b16 %v273
        %v418 = vunpack.c.l.b16 %v274
        %v419 = vunpack.c.l.b16 %v275
        %v420 = vunpack.c.l.b16 %v276
        %v421 = vunpack.c.l.b16 %v277
        %v422 = vunpack.c.l.b16 %v278
        %v423 = vunpack.c.l.b16 %v279
        %v424 = vunpack.c.l.b16 %v280
        %v425 = vunpack.c.l.b16 %v281
        %v426 = vunpack.c.l.b16 %v282
        %v427 = vpack.c.b16 %v412, %v411
        %v428 = vpack.c.b16 %v414, %v413
        %v429 = vpack.c.b16 %v416, %v415
        %v430 = vpack.c.b16 %v418, %v417
        %v431 = vpack.c.b16 %v420, %v419
        %v432 = vpack.c.b16 %v422, %v421
        %v433 = vpack.c.b16 %v424, %v423
        %v434 = vpack.c.b16 %v426, %v425
        %v459 = vunpack.c.l.b16 %v283
        %v460 = vunpack.c.l.b16 %v284
        %v461 = vunpack.c.l.b16 %v285
        %v462 = vunpack.c.l.b16 %v286
        %v463 = vunpack.c.l.b16 %v287
        %v464 = vunpack.c.l.b16 %v288
        %v465 = vunpack.c.l.b16 %v289
        %v466 = vunpack.c.l.b16 %v290
        %v467 = vunpack.c.l.b16 %v291
        %v468 = vunpack.c.l.b16 %v292
        %v469 = vunpack.c.l.b16 %v293
        %v470 = vunpack.c.l.b16 %v294
        %v471 = vunpack.c.l.b16 %v295
        %v472 = vunpack.c.l.b16 %v296
        %v473 = vunpack.c.l.b16 %v297
        %v474 = vunpack.c.l.b16 %v298
        %v475 = vpack.c.b16 %v460, %v459
        %v476 = vpack.c.b16 %v462, %v461
        %v477 = vpack.c.b16 %v464, %v463
        %v478 = vpack.c.b16 %v466, %v465
        %v479 = vpack.c.b16 %v468, %v467
        %v480 = vpack.c.b16 %v470, %v469
        %v481 = vpack.c.b16 %v472, %v471
        %v482 = vpack.c.b16 %v474, %v473
        %491 = vmatprep.subr.bf16.mxu0 0
        %492 = vmatpush1.bf16.msra.mxu0 %v475
        %493 = vmatprep.subr.bf16.mxu0 0
        %494 = vmatpush1.bf16.msra.mxu0 %v476
        %495 = vmatprep.subr.bf16.mxu0 0
        %496 = vmatpush1.bf16.msra.mxu0 %v477
        %497 = vmatprep.subr.bf16.mxu0 0
        %498 = vmatpush1.bf16.msra.mxu0 %v478
        %499 = vmatprep.subr.bf16.mxu0 0
        %500 = vmatpush1.bf16.msra.mxu0 %v479
        %501 = vmatprep.subr.bf16.mxu0 0
        %502 = vmatpush1.bf16.msra.mxu0 %v480
        %503 = vmatprep.subr.bf16.mxu0 0
        %504 = vmatpush1.bf16.msra.mxu0 %v481
        %505 = vmatprep.subr.bf16.mxu0 0
        %506 = vmatpush1.bf16.msra.mxu0 %v482
        %507 = vmatprep.subr.bf16.mxu0 0
        %508 = vmatpush1.bf16.msra.mxu0 0
        %509 = vmatprep.subr.bf16.mxu0 0
        %510 = vmatpush1.bf16.msra.mxu0 0
        %511 = vmatprep.subr.bf16.mxu0 0
        %512 = vmatpush1.bf16.msra.mxu0 0
        %513 = vmatprep.subr.bf16.mxu0 0
        %514 = vmatpush1.bf16.msra.mxu0 0
        %515 = vmatprep.subr.bf16.mxu0 0
        %516 = vmatpush1.bf16.msra.mxu0 0
        %517 = vmatprep.subr.bf16.mxu0 0
        %518 = vmatpush1.bf16.msra.mxu0 0
        %519 = vmatprep.subr.bf16.mxu0 0
        %520 = vmatpush1.bf16.msra.mxu0 0
        %521 = vmatprep.subr.bf16.mxu0 0
        %522 = vmatpush1.bf16.msra.mxu0 0
        %523 = vmatprep.mubr.bf16.mxu0 0
        %524 = vmatmul.mubr.bf16.gmra.mrb[0].mxu0 %v427
        %v525 = vpop.f32.mrb[0].mxu0
        %v526 = vadd.f32 %v318, %v525
        %v527 = vpop.f32.mrb[0].mxu0
        %v528 = vpop.f32.mrb[0].mxu0
        %v529 = vadd.f32 %v323, %v528
        %v530 = vpop.f32.mrb[0].mxu0
        %531 = vmatprep.mubr.bf16.mxu0 0
        %532 = vmatmul.mubr.bf16.gmra.mrb[0].mxu0 %v428
        %v533 = vpop.f32.mrb[0].mxu0
        %v534 = vadd.f32 %v328, %v533
        %v535 = vpop.f32.mrb[0].mxu0
        %v536 = vpop.f32.mrb[0].mxu0
        %v537 = vadd.f32 %v333, %v536
        %v538 = vpop.f32.mrb[0].mxu0
        %539 = vmatprep.mubr.bf16.mxu0 0
        %540 = vmatmul.mubr.bf16.gmra.mrb[0].mxu0 %v429
        %v541 = vpop.f32.mrb[0].mxu0
        %v542 = vadd.f32 %v338, %v541
        %v543 = vpop.f32.mrb[0].mxu0
        %v544 = vpop.f32.mrb[0].mxu0
        %v545 = vadd.f32 %v343, %v544
        %v546 = vpop.f32.mrb[0].mxu0
        %547 = vmatprep.mubr.bf16.mxu0 0
        %548 = vmatmul.mubr.bf16.gmra.mrb[0].mxu0 %v430
        %v549 = vpop.f32.mrb[0].mxu0
        %v550 = vadd.f32 %v348, %v549
        %v551 = vpop.f32.mrb[0].mxu0
        %v552 = vpop.f32.mrb[0].mxu0
        %v553 = vadd.f32 %v353, %v552
        %v554 = vpop.f32.mrb[0].mxu0
        %555 = vmatprep.mubr.bf16.mxu0 0
        %556 = vmatmul.mubr.bf16.gmra.mrb[0].mxu0 %v431
        %v557 = vpop.f32.mrb[0].mxu0
        %v558 = vadd.f32 %v358, %v557
        %v559 = vpop.f32.mrb[0].mxu0
        %v560 = vpop.f32.mrb[0].mxu0
        %v561 = vadd.f32 %v363, %v560
        %v562 = vpop.f32.mrb[0].mxu0
        %563 = vmatprep.mubr.bf16.mxu0 0
        %564 = vmatmul.mubr.bf16.gmra.mrb[0].mxu0 %v432
        %v565 = vpop.f32.mrb[0].mxu0
        %v566 = vadd.f32 %v368, %v565
        %v567 = vpop.f32.mrb[0].mxu0
        %v568 = vpop.f32.mrb[0].mxu0
        %v569 = vadd.f32 %v373, %v568
        %v570 = vpop.f32.mrb[0].mxu0
        %571 = vmatprep.mubr.bf16.mxu0 0
        %572 = vmatmul.mubr.bf16.gmra.mrb[0].mxu0 %v433
        %v573 = vpop.f32.mrb[0].mxu0
        %v574 = vadd.f32 %v378, %v573
        %v575 = vpop.f32.mrb[0].mxu0
        %v576 = vpop.f32.mrb[0].mxu0
        %v577 = vadd.f32 %v383, %v576
        %v578 = vpop.f32.mrb[0].mxu0
        %579 = vmatprep.mubr.bf16.mxu0 0
        %580 = vmatmul.mubr.bf16.gmra.mrb[0].mxu0 %v434
        %v581 = vpop.f32.mrb[0].mxu0
        %v582 = vadd.f32 %v388, %v581
        %v583 = vpop.f32.mrb[0].mxu0
        %v584 = vpop.f32.mrb[0].mxu0
        %v585 = vadd.f32 %v393, %v584
        %v586 = vpop.f32.mrb[0].mxu0
        %587 = vdwg.mxu0
        %v588 = vmax.f32 %v526, 0.0
        %v589 = vmax.f32 %v529, 0.0
        %v590 = vmax.f32 %v534, 0.0
        %v591 = vmax.f32 %v537, 0.0
        %v592 = vmax.f32 %v542, 0.0
        %v593 = vmax.f32 %v545, 0.0
        %v594 = vmax.f32 %v550, 0.0
        %v595 = vmax.f32 %v553, 0.0
        %v596 = vmax.f32 %v558, 0.0
        %v597 = vmax.f32 %v561, 0.0
        %v598 = vmax.f32 %v566, 0.0
        %v599 = vmax.f32 %v569, 0.0
        %v600 = vmax.f32 %v574, 0.0
        %v601 = vmax.f32 %v577, 0.0
        %v602 = vmax.f32 %v582, 0.0
        %v603 = vmax.f32 %v585, 0.0
        %v604 = vpack.c.bf16 %v589, %v588
        %v605 = vpack.c.bf16 %v591, %v590
        %v606 = vpack.c.bf16 %v593, %v592
        %v607 = vpack.c.bf16 %v595, %v594
        %v608 = vpack.c.bf16 %v597, %v596
        %v609 = vpack.c.bf16 %v599, %v598
        %v610 = vpack.c.bf16 %v601, %v600
        %v611 = vpack.c.bf16 %v603, %v602
        %v620 = vunpack.c.l.b16 %v604
        %v621 = vunpack.c.h.b16 %v604
        %v622 = vunpack.c.l.b16 %v605
        %v623 = vunpack.c.h.b16 %v605
        %v624 = vunpack.c.l.b16 %v606
        %v625 = vunpack.c.h.b16 %v606
        %v626 = vunpack.c.l.b16 %v607
        %v627 = vunpack.c.h.b16 %v607
        %v628 = vunpack.c.l.b16 %v608
        %v629 = vunpack.c.h.b16 %v608
        %v630 = vunpack.c.l.b16 %v609
        %v631 = vunpack.c.h.b16 %v609
        %v632 = vunpack.c.l.b16 %v610
        %v633 = vunpack.c.h.b16 %v610
        %v634 = vunpack.c.l.b16 %v611
        %v635 = vunpack.c.h.b16 %v611
        %v636 = vpack.c.b16 %v620, %v620
        %v637 = vpack.c.b16 %v621, %v621
        %v638 = vpack.c.b16 %v622, %v622
        %v639 = vpack.c.b16 %v623, %v623
        %v640 = vpack.c.b16 %v624, %v624
        %v641 = vpack.c.b16 %v625, %v625
        %v642 = vpack.c.b16 %v626, %v626
        %v643 = vpack.c.b16 %v627, %v627
        %v644 = vpack.c.b16 %v628, %v628
        %v645 = vpack.c.b16 %v629, %v629
        %v646 = vpack.c.b16 %v630, %v630
        %v647 = vpack.c.b16 %v631, %v631
        %v648 = vpack.c.b16 %v632, %v632
        %v649 = vpack.c.b16 %v633, %v633
        %v650 = vpack.c.b16 %v634, %v634
        %v651 = vpack.c.b16 %v635, %v635
        %668 = vst [vmem:[%s265] sm:$0xf] %v636
        %669 = vst [vmem:[%s265 + $0x4] sm:$0xf] %v637
        %670 = vst [vmem:[%s265 + $0x8] sm:$0xf] %v638
        %671 = vst [vmem:[%s265 + $0xc] sm:$0xf] %v639
        %672 = vst [vmem:[%s265 + $0x10] sm:$0xf] %v640
        %673 = vst [vmem:[%s265 + $0x14] sm:$0xf] %v641
        %674 = vst [vmem:[%s265 + $0x18] sm:$0xf] %v642
        %675 = vst [vmem:[%s265 + $0x1c] sm:$0xf] %v643
        %676 = vst [vmem:[%s265 + $0x20] sm:$0xf] %v644
        %677 = vst [vmem:[%s265 + $0x24] sm:$0xf] %v645
        %678 = vst [vmem:[%s265 + $0x28] sm:$0xf] %v646
        %679 = vst [vmem:[%s265 + $0x2c] sm:$0xf] %v647
        %680 = vst [vmem:[%s265 + $0x30] sm:$0xf] %v648
        %681 = vst [vmem:[%s265 + $0x34] sm:$0xf] %v649
        %682 = vst [vmem:[%s265 + $0x38] sm:$0xf] %v650
        %683 = vst [vmem:[%s265 + $0x3c] sm:$0xf] %v651
        %s684 = sand.u32 %s90, 1
        %s685 = sand.u32 %s90, 1
        %s686 = smul.addr %s685, 64
        %s687 = scalar_lea.vmem [#allocation3], %s686
        // Predicated region
        $region74: #{beta_tc_vae_forward.16} parent=68 // pred_check
          %p688 = pneg %p100
        $region75: #{beta_tc_vae_forward.16} parent=68 // pred_check_branch
          %690 = sbr.rel (%p688) target = $region77
        $region76: #{beta_tc_vae_forward.16} parent=68 // pred_region
          %s691 = smul.addr %s14, 4
          %s692 = scalar_lea.vmem %s3, %s691
          // Predicated region
          $region78: #{beta_tc_vae_forward.16} parent=76 // pred_check
            _
          $region79: #{beta_tc_vae_forward.16} parent=76 // pred_check_branch
            %694 = sbr.rel (0) target = $region81
          $region80: #{beta_tc_vae_forward.16} parent=76 // pred_region
            // Predicated region
            $region82: #{beta_tc_vae_forward.16} parent=80 // pred_check
              _
            $region83: #{beta_tc_vae_forward.16} parent=80 // pred_check_branch
              %696 = sbr.rel target = $region85
            $region84: #{beta_tc_vae_forward.16} parent=80 // pred_region
              // Predicated region
              $region97: #{beta_tc_vae_forward.16} parent=84 // pred_check
                _
              $region98: #{beta_tc_vae_forward.16} parent=84 // pred_check_branch
                %741 = sbr.rel (0) target = $region100
              $region99: #{beta_tc_vae_forward.16} parent=84 // pred_region
                loop: start=0, step=1, limit=1
                $region101: #{beta_tc_vae_forward.16} parent=99 // loop_pre_header
                  _
                $region102: #{beta_tc_vae_forward.16} parent=99 // loop_header
                  %s743 = sphi 0, %s747
                  %p744 = scmp.ge.s32.totalorder %s743, 1
                  %s748 = sphi %s687, %s687
                  %s749 = sphi %s692, %s692
                $region103: #{beta_tc_vae_forward.16} parent=99 // loop_header_branch
                  %746 = sbr.rel (%p744) target = $region107
                $region104: #{beta_tc_vae_forward.16} parent=99 // loop_body
                  _
                $region105: #{beta_tc_vae_forward.16} parent=99 // loop_footer
                  %s747 = sadd.s32 1, %s743
                $region106: #{beta_tc_vae_forward.16} parent=99 // loop_footer_branch
                  %742 = sbr.rel target = $region102
                $region107: #{beta_tc_vae_forward.16} parent=99 // loop_exit
                  _
                loop: start=0, step=1, limit=1
                $region108: #{beta_tc_vae_forward.16} parent=99 // loop_pre_header
                  _
                $region109: #{beta_tc_vae_forward.16} parent=99 // loop_header
                  %s752 = sphi 0, %s756
                  %p753 = scmp.ge.s32.totalorder %s752, 1
                  %s757 = sphi %s687, %s687
                  %s758 = sphi %s692, %s692
                $region110: #{beta_tc_vae_forward.16} parent=99 // loop_header_branch
                  %755 = sbr.rel (%p753) target = $region114
                $region111: #{beta_tc_vae_forward.16} parent=99 // loop_body
                  %v759 = vld [vmem:[%s757] sm:$0xf]
                  %760 = vst [vmem:[%s758] sm:$0xf] %v759
                  %v761 = vld [vmem:[%s757 + $0x4] sm:$0xf]
                  %762 = vst [vmem:[%s758 + $0x14] sm:$0xf] %v761
                  %v763 = vld [vmem:[%s757 + $0x8] sm:$0xf]
                  %764 = vst [vmem:[%s758 + $0x28] sm:$0xf] %v763
                  %v765 = vld [vmem:[%s757 + $0xc] sm:$0xf]
                  %766 = vst [vmem:[%s758 + $0x3c] sm:$0xf] %v765
                  %v767 = vld [vmem:[%s757 + $0x10] sm:$0xf]
                  %768 = vst [vmem:[%s758 + $0x50] sm:$0xf] %v767
                  %v769 = vld [vmem:[%s757 + $0x14] sm:$0xf]
                  %770 = vst [vmem:[%s758 + $0x64] sm:$0xf] %v769
                  %v771 = vld [vmem:[%s757 + $0x18] sm:$0xf]
                  %772 = vst [vmem:[%s758 + $0x78] sm:$0xf] %v771
                  %v773 = vld [vmem:[%s757 + $0x1c] sm:$0xf]
                  %774 = vst [vmem:[%s758 + $0x8c] sm:$0xf] %v773
                  %v775 = vld [vmem:[%s757 + $0x20] sm:$0xf]
                  %776 = vst [vmem:[%s758 + $0xa0] sm:$0xf] %v775
                  %v777 = vld [vmem:[%s757 + $0x24] sm:$0xf]
                  %778 = vst [vmem:[%s758 + $0xb4] sm:$0xf] %v777
                  %v779 = vld [vmem:[%s757 + $0x28] sm:$0xf]
                  %780 = vst [vmem:[%s758 + $0xc8] sm:$0xf] %v779
                  %v781 = vld [vmem:[%s757 + $0x2c] sm:$0xf]
                  %782 = vst [vmem:[%s758 + $0xdc] sm:$0xf] %v781
                  %v783 = vld [vmem:[%s757 + $0x30] sm:$0xf]
                  %784 = vst [vmem:[%s758 + $0xf0] sm:$0xf] %v783
                  %v785 = vld [vmem:[%s757 + $0x34] sm:$0xf]
                  %786 = vst [vmem:[%s758 + $0x104] sm:$0xf] %v785
                  %v787 = vld [vmem:[%s757 + $0x38] sm:$0xf]
                  %788 = vst [vmem:[%s758 + $0x118] sm:$0xf] %v787
                  %v789 = vld [vmem:[%s757 + $0x3c] sm:$0xf]
                  %790 = vst [vmem:[%s758 + $0x12c] sm:$0xf] %v789
                $region112: #{beta_tc_vae_forward.16} parent=99 // loop_footer
                  %s756 = sadd.s32 1, %s752
                $region113: #{beta_tc_vae_forward.16} parent=99 // loop_footer_branch
                  %751 = sbr.rel target = $region109
                $region114: #{beta_tc_vae_forward.16} parent=99 // loop_exit
                  _
              $region100: #{beta_tc_vae_forward.16} parent=84 // pred_fallthru
                _
            $region85: #{beta_tc_vae_forward.16} parent=80 // pred_fallthru
              _
            // Predicated region
            $region86: #{beta_tc_vae_forward.16} parent=80 // pred_check
              _
            $region87: #{beta_tc_vae_forward.16} parent=80 // pred_check_branch
              %698 = sbr.rel (0) target = $region89
            $region88: #{beta_tc_vae_forward.16} parent=80 // pred_region
              loop: start=0, step=1, limit=1
              $region90: #{beta_tc_vae_forward.16} parent=88 // loop_pre_header
                _
              $region91: #{beta_tc_vae_forward.16} parent=88 // loop_header
                %s701 = sphi 0, %s705
                %p702 = scmp.ge.s32.totalorder %s701, 1
                %s706 = sphi %s687, %s687
                %s707 = sphi %s692, %s692
              $region92: #{beta_tc_vae_forward.16} parent=88 // loop_header_branch
                %704 = sbr.rel (%p702) target = $region96
              $region93: #{beta_tc_vae_forward.16} parent=88 // loop_body
                %v708 = vld [vmem:[%s706] sm:$0xf]
                %709 = vst [vmem:[%s707] sm:$0xf] %v708
                %v710 = vld [vmem:[%s706 + $0x4] sm:$0xf]
                %711 = vst [vmem:[%s707 + $0x14] sm:$0xf] %v710
                %v712 = vld [vmem:[%s706 + $0x8] sm:$0xf]
                %713 = vst [vmem:[%s707 + $0x28] sm:$0xf] %v712
                %v714 = vld [vmem:[%s706 + $0xc] sm:$0xf]
                %715 = vst [vmem:[%s707 + $0x3c] sm:$0xf] %v714
                %v716 = vld [vmem:[%s706 + $0x10] sm:$0xf]
                %717 = vst [vmem:[%s707 + $0x50] sm:$0xf] %v716
                %v718 = vld [vmem:[%s706 + $0x14] sm:$0xf]
                %719 = vst [vmem:[%s707 + $0x64] sm:$0xf] %v718
                %v720 = vld [vmem:[%s706 + $0x18] sm:$0xf]
                %721 = vst [vmem:[%s707 + $0x78] sm:$0xf] %v720
                %v722 = vld [vmem:[%s706 + $0x1c] sm:$0xf]
                %723 = vst [vmem:[%s707 + $0x8c] sm:$0xf] %v722
                %v724 = vld [vmem:[%s706 + $0x20] sm:$0xf]
                %725 = vst [vmem:[%s707 + $0xa0] sm:$0xf] %v724
                %v726 = vld [vmem:[%s706 + $0x24] sm:$0xf]
                %727 = vst [vmem:[%s707 + $0xb4] sm:$0xf] %v726
                %v728 = vld [vmem:[%s706 + $0x28] sm:$0xf]
                %729 = vst [vmem:[%s707 + $0xc8] sm:$0xf] %v728
                %v730 = vld [vmem:[%s706 + $0x2c] sm:$0xf]
                %731 = vst [vmem:[%s707 + $0xdc] sm:$0xf] %v730
                %v732 = vld [vmem:[%s706 + $0x30] sm:$0xf]
                %733 = vst [vmem:[%s707 + $0xf0] sm:$0xf] %v732
                %v734 = vld [vmem:[%s706 + $0x34] sm:$0xf]
                %735 = vst [vmem:[%s707 + $0x104] sm:$0xf] %v734
                %v736 = vld [vmem:[%s706 + $0x38] sm:$0xf]
                %737 = vst [vmem:[%s707 + $0x118] sm:$0xf] %v736
                %v738 = vld [vmem:[%s706 + $0x3c] sm:$0xf]
                %739 = vst [vmem:[%s707 + $0x12c] sm:$0xf] %v738
              $region94: #{beta_tc_vae_forward.16} parent=88 // loop_footer
                %s705 = sadd.s32 1, %s701
              $region95: #{beta_tc_vae_forward.16} parent=88 // loop_footer_branch
                %700 = sbr.rel target = $region91
              $region96: #{beta_tc_vae_forward.16} parent=88 // loop_exit
                _
            $region89: #{beta_tc_vae_forward.16} parent=80 // pred_fallthru
              _
          $region81: #{beta_tc_vae_forward.16} parent=76 // pred_fallthru
            _
          %791 = vnop
        $region77: #{beta_tc_vae_forward.16} parent=68 // pred_fallthru
          _
      $region69: #{beta_tc_vae_forward.16} parent=5 // pred_fallthru
        _
      %p792 = scmp.le.s32.totalorder 2, %s9
      // Predicated region
      $region115: #{beta_tc_vae_forward.16} parent=5 // pred_check
        %p793 = pneg %p792
      $region116: #{beta_tc_vae_forward.16} parent=5 // pred_check_branch
        %795 = sbr.rel (%p793) target = $region118
      $region117: #{beta_tc_vae_forward.16} parent=5 // pred_region
        %s796 = ssub.s32 %s9, 2
        // Predicated region
        $region119: #{beta_tc_vae_forward.16} parent=117 // pred_check
          %p797 = pneg %p106
        $region120: #{beta_tc_vae_forward.16} parent=117 // pred_check_branch
          %799 = sbr.rel (%p797) target = $region122
        $region121: #{beta_tc_vae_forward.16} parent=117 // pred_region
          %s800 = sand.u32 %s91, 1
          %s801 = sand.u32 %s91, 1
          %s802 = smul.addr %s801, 64
          %s803 = scalar_lea.vmem [#allocation3], %s802
        $region122: #{beta_tc_vae_forward.16} parent=117 // pred_fallthru
          _
      $region118: #{beta_tc_vae_forward.16} parent=5 // pred_fallthru
        _
    $region6: #{beta_tc_vae_forward.16} parent=1 // loop_footer
      %s13 = sadd.s32 1, %s9
    $region7: #{beta_tc_vae_forward.16} parent=1 // loop_footer_branch
      %8 = sbr.rel target = $region3
    $region8: #{beta_tc_vae_forward.16} parent=1 // loop_exit
      _

// kernel: beta_tc_vae_forward.17
$region0: #{beta_tc_vae_forward.17}
  #allocation0 [shape = 'u32[]', space=smem, size = 0x4, offset = 0x4, fixed_abs, tag = 'smem constant byte address 0x4 - core index']
  #allocation1 [shape = 'u32[144,128]{1,0:T(1,128)}', space=vmem, size = 0x12000, scoped, tag = 'internal scratch']
  %s0 = inlined_call_operand.vmem [shape: bf16[4,128], index: 0, kind: input, shape index: {}]
  %s1 = inlined_call_operand.vmem [shape: bf16[128,2304], index: 1, kind: input, shape index: {}]
  %s2 = inlined_call_operand.vmem [shape: f32[4,1], index: 2, kind: input, shape index: {}]
  %s3 = inlined_call_operand.vmem [shape: f32[4,2304], index: 3, kind: output, shape index: {}]
  %s4 = sld [smem:[#allocation0]]
  $region71: #{beta_tc_vae_forward.17} parent=0
    _
  %s6 = ssub.s32 1, %s4
  %s7 = scalar_select 0, %s6, %s4
  $region1: #{beta_tc_vae_forward.17} parent=0
    #allocation2 [shape = 'u8[589824]{0}', space=vmem, size = 0x90000, scoped, tag = 'input window, operand 1']
    loop: start=0, step=1, limit=4
    $region2: #{beta_tc_vae_forward.17} parent=1 // loop_pre_header
      _
    $region3: #{beta_tc_vae_forward.17} parent=1 // loop_header
      %s9 = sphi 0, %s13
      %p10 = scmp.ge.s32.totalorder %s9, 4
      %s17 = sphi 0, %s17
      %s19 = sphi 0, %s17
      %s20 = sphi 0, %s19
      %s34 = sphi 0, %s20
      %s40 = sphi 0, %s42
      %s43 = sphi 0, %s40
      %s44 = sphi 0, %s43
      %s60 = sphi 0, %s44
      %s64 = sphi 0, %s64
      %s66 = sphi 0, %s64
      %s67 = sphi 0, %s66
      %s81 = sphi 0, %s67
      %s87 = sphi 0, %s89
      %s90 = sphi 0, %s87
      %s91 = sphi 0, %s90
      %s107 = sphi 0, %s91
    $region4: #{beta_tc_vae_forward.17} parent=1 // loop_header_branch
      %12 = sbr.rel (%p10) target = $region8
    $region5: #{beta_tc_vae_forward.17} parent=1 // loop_body
      %s14 = ssub.s32 %s9, 1
      %s15 = ssub.s32 %s9, 2
      %s16 = sadd.s32 %s9, 1
      %s18 = sadd.s32 %s17, 1
      %p21 = scmp.eq.s32.totalorder %s9, 1
      %p22 = scmp.ne.s32.totalorder %s17, %s19
      %p23 = scmp.eq.s32.totalorder %s9, 0
      %p24 = por %p22, %p23
      %p25 = scmp.ne.s32.totalorder %s17, %s19
      %p26 = scmp.eq.s32.totalorder %s14, 1
      %p27 = por %p25, %p26
      %p28 = scmp.ne.s32.totalorder %s19, %s20
      %p29 = scmp.eq.s32.totalorder %s14, 0
      %p30 = por %p28, %p29
      %p31 = scmp.ne.s32.totalorder %s19, %s20
      %p32 = scmp.eq.s32.totalorder %s15, 1
      %p33 = por %p31, %p32
      %p35 = scmp.ne.s32.totalorder %s20, %s34
      %p36 = scmp.eq.s32.totalorder %s15, 0
      %p37 = por %p35, %p36
      %s38 = ssub.s32 %s9, %s16
      %p39 = scmp.eq.s32.totalorder %s38, 0
      %s41 = sadd.s32 %s40, 1
      %s42 = scalar_select %p39, %s40, %s41
      %p45 = pneg %p39
      %p46 = scmp.eq.s32.totalorder %s9, 1
      %p47 = por %p45, %p46
      %p48 = scmp.ne.s32.totalorder %s40, %s43
      %p49 = scmp.eq.s32.totalorder %s9, 0
      %p50 = por %p48, %p49
      %p51 = scmp.ne.s32.totalorder %s40, %s43
      %p52 = scmp.eq.s32.totalorder %s14, 1
      %p53 = por %p51, %p52
      %p54 = scmp.ne.s32.totalorder %s43, %s44
      %p55 = scmp.eq.s32.totalorder %s14, 0
      %p56 = por %p54, %p55
      %p57 = scmp.ne.s32.totalorder %s43, %s44
      %p58 = scmp.eq.s32.totalorder %s15, 1
      %p59 = por %p57, %p58
      %p61 = scmp.ne.s32.totalorder %s44, %s60
      %p62 = scmp.eq.s32.totalorder %s15, 0
      %p63 = por %p61, %p62
      %s65 = sadd.s32 %s64, 1
      %p68 = scmp.eq.s32.totalorder %s9, 1
      %p69 = scmp.ne.s32.totalorder %s64, %s66
      %p70 = scmp.eq.s32.totalorder %s9, 0
      %p71 = por %p69, %p70
      %p72 = scmp.ne.s32.totalorder %s64, %s66
      %p73 = scmp.eq.s32.totalorder %s14, 1
      %p74 = por %p72, %p73
      %p75 = scmp.ne.s32.totalorder %s66, %s67
      %p76 = scmp.eq.s32.totalorder %s14, 0
      %p77 = por %p75, %p76
      %p78 = scmp.ne.s32.totalorder %s66, %s67
      %p79 = scmp.eq.s32.totalorder %s15, 1
      %p80 = por %p78, %p79
      %p82 = scmp.ne.s32.totalorder %s67, %s81
      %p83 = scmp.eq.s32.totalorder %s15, 0
      %p84 = por %p82, %p83
      %s85 = ssub.s32 %s9, %s16
      %p86 = scmp.eq.s32.totalorder %s85, 0
      %s88 = sadd.s32 %s87, 1
      %s89 = scalar_select %p86, %s87, %s88
      %p92 = pneg %p86
      %p93 = scmp.eq.s32.totalorder %s9, 1
      %p94 = por %p92, %p93
      %p95 = scmp.ne.s32.totalorder %s87, %s90
      %p96 = scmp.eq.s32.totalorder %s9, 0
      %p97 = por %p95, %p96
      %p98 = scmp.ne.s32.totalorder %s87, %s90
      %p99 = scmp.eq.s32.totalorder %s14, 1
      %p100 = por %p98, %p99
      %p101 = scmp.ne.s32.totalorder %s90, %s91
      %p102 = scmp.eq.s32.totalorder %s14, 0
      %p103 = por %p101, %p102
      %p104 = scmp.ne.s32.totalorder %s90, %s91
      %p105 = scmp.eq.s32.totalorder %s15, 1
      %p106 = por %p104, %p105
      %p108 = scmp.ne.s32.totalorder %s91, %s107
      %p109 = scmp.eq.s32.totalorder %s15, 0
      %p110 = por %p108, %p109
      %p111 = scmp.le.s32.totalorder 1, %s9
      %p112 = scmp.lt.s32.totalorder %s9, 3
      %p113 = pnand %p111, %p112
      %p114 = pneg %p113
      // Predicated region
      $region9: #{beta_tc_vae_forward.17} parent=5 // pred_check
        _
      $region10: #{beta_tc_vae_forward.17} parent=5 // pred_check_branch
        %116 = sbr.rel (%p113) target = $region12
      $region11: #{beta_tc_vae_forward.17} parent=5 // pred_region
        %s117 = ssub.s32 %s9, 1
        // Predicated region
        $region13: #{beta_tc_vae_forward.17} parent=11 // pred_check
          %p118 = pneg %p30
        $region14: #{beta_tc_vae_forward.17} parent=11 // pred_check_branch
          %120 = sbr.rel (%p118) target = $region16
        $region15: #{beta_tc_vae_forward.17} parent=11 // pred_region
          _
        $region16: #{beta_tc_vae_forward.17} parent=11 // pred_fallthru
          _
        // Predicated region
        $region17: #{beta_tc_vae_forward.17} parent=11 // pred_check
          %p121 = pneg %p77
        $region18: #{beta_tc_vae_forward.17} parent=11 // pred_check_branch
          %123 = sbr.rel (%p121) target = $region20
        $region19: #{beta_tc_vae_forward.17} parent=11 // pred_region
          _
        $region20: #{beta_tc_vae_forward.17} parent=11 // pred_fallthru
          _
      $region12: #{beta_tc_vae_forward.17} parent=5 // pred_fallthru
        _
      %p124 = scmp.lt.s32.totalorder %s9, 2
      // Predicated region
      $region21: #{beta_tc_vae_forward.17} parent=5 // pred_check
        %p125 = pneg %p124
      $region22: #{beta_tc_vae_forward.17} parent=5 // pred_check_branch
        %127 = sbr.rel (%p125) target = $region24
      $region23: #{beta_tc_vae_forward.17} parent=5 // pred_region
        // Predicated region
        $region25: #{beta_tc_vae_forward.17} parent=23 // pred_check
          %p128 = pneg %p50
        $region26: #{beta_tc_vae_forward.17} parent=23 // pred_check_branch
          %130 = sbr.rel (%p128) target = $region28
        $region27: #{beta_tc_vae_forward.17} parent=23 // pred_region
          %s131 = sand.u32 %s40, 1
          %s132 = sand.u32 %s40, 1
          %s133 = smul.addr %s132, 576
          %s134 = scalar_lea.vmem [#allocation2], %s133
          %s135 = smul.u32 9, %s9
          %s136 = smul.addr %s135, 4
          %s137 = scalar_lea.vmem %s1, %s136
          // Predicated region
          $region29: #{beta_tc_vae_forward.17} parent=27 // pred_check
            _
          $region30: #{beta_tc_vae_forward.17} parent=27 // pred_check_branch
            %139 = sbr.rel (0) target = $region32
          $region31: #{beta_tc_vae_forward.17} parent=27 // pred_region
            // Predicated region
            $region33: #{beta_tc_vae_forward.17} parent=31 // pred_check
              _
            $region34: #{beta_tc_vae_forward.17} parent=31 // pred_check_branch
              %141 = sbr.rel (0) target = $region36
            $region35: #{beta_tc_vae_forward.17} parent=31 // pred_region
              %s142 = scalar_lea.vmem %s137, 32
              %s143 = scalar_lea.vmem %s134, 32 [#allocation2]
              loop: start=0, step=1, limit=1
              $region37: #{beta_tc_vae_forward.17} parent=35 // loop_pre_header
                _
              $region38: #{beta_tc_vae_forward.17} parent=35 // loop_header
                %s145 = sphi 0, %s149
                %p146 = scmp.ge.s32.totalorder %s145, 1
                %s150 = sphi %s137, %s137
                %s151 = sphi %s134, %s134
              $region39: #{beta_tc_vae_forward.17} parent=35 // loop_header_branch
                %148 = sbr.rel (%p146) target = $region43
              $region40: #{beta_tc_vae_forward.17} parent=35 // loop_body
                %v152 = vld [vmem:[%s150] sm:$0xff]
                %153 = vst [vmem:[%s151] sm:$0xff] %v152
                %v154 = vld [vmem:[%s150 + $0x8] sm:$0xff]
                %155 = vst [vmem:[%s151 + $0x8] sm:$0xff] %v154
                %v156 = vld [vmem:[%s150 + $0x10] sm:$0xff]
                %157 = vst [vmem:[%s151 + $0x10] sm:$0xff] %v156
                %v158 = vld [vmem:[%s150 + $0x18] sm:$0xff]
                %159 = vst [vmem:[%s151 + $0x18] sm:$0xff] %v158
                %v160 = vld [vmem:[%s150 + $0x48] sm:$0xff]
                %161 = vst [vmem:[%s151 + $0x24] sm:$0xff] %v160
                %v162 = vld [vmem:[%s150 + $0x50] sm:$0xff]
                %163 = vst [vmem:[%s151 + $0x2c] sm:$0xff] %v162
                %v164 = vld [vmem:[%s150 + $0x58] sm:$0xff]
                %165 = vst [vmem:[%s151 + $0x34] sm:$0xff] %v164
                %v166 = vld [vmem:[%s150 + $0x60] sm:$0xff]
                %167 = vst [vmem:[%s151 + $0x3c] sm:$0xff] %v166
                %v168 = vld [vmem:[%s150 + $0x90] sm:$0xff]
                %169 = vst [vmem:[%s151 + $0x48] sm:$0xff] %v168
                %v170 = vld [vmem:[%s150 + $0x98] sm:$0xff]
                %171 = vst [vmem:[%s151 + $0x50] sm:$0xff] %v170
                %v172 = vld [vmem:[%s150 + $0xa0] sm:$0xff]
                %173 = vst [vmem:[%s151 + $0x58] sm:$0xff] %v172
                %v174 = vld [vmem:[%s150 + $0xa8] sm:$0xff]
                %175 = vst [vmem:[%s151 + $0x60] sm:$0xff] %v174
                %v176 = vld [vmem:[%s150 + $0xd8] sm:$0xff]
                %177 = vst [vmem:[%s151 + $0x6c] sm:$0xff] %v176
                %v178 = vld [vmem:[%s150 + $0xe0] sm:$0xff]
                %179 = vst [vmem:[%s151 + $0x74] sm:$0xff] %v178
                %v180 = vld [vmem:[%s150 + $0xe8] sm:$0xff]
                %181 = vst [vmem:[%s151 + $0x7c] sm:$0xff] %v180
                %v182 = vld [vmem:[%s150 + $0xf0] sm:$0xff]
                %183 = vst [vmem:[%s151 + $0x84] sm:$0xff] %v182
                %v184 = vld [vmem:[%s150 + $0x120] sm:$0xff]
                %185 = vst [vmem:[%s151 + $0x90] sm:$0xff] %v184
                %v186 = vld [vmem:[%s150 + $0x128] sm:$0xff]
                %187 = vst [vmem:[%s151 + $0x98] sm:$0xff] %v186
                %v188 = vld [vmem:[%s150 + $0x130] sm:$0xff]
                %189 = vst [vmem:[%s151 + $0xa0] sm:$0xff] %v188
                %v190 = vld [vmem:[%s150 + $0x138] sm:$0xff]
                %191 = vst [vmem:[%s151 + $0xa8] sm:$0xff] %v190
                %v192 = vld [vmem:[%s150 + $0x168] sm:$0xff]
                %193 = vst [vmem:[%s151 + $0xb4] sm:$0xff] %v192
                %v194 = vld [vmem:[%s150 + $0x170] sm:$0xff]
                %195 = vst [vmem:[%s151 + $0xbc] sm:$0xff] %v194
                %v196 = vld [vmem:[%s150 + $0x178] sm:$0xff]
                %197 = vst [vmem:[%s151 + $0xc4] sm:$0xff] %v196
                %v198 = vld [vmem:[%s150 + $0x180] sm:$0xff]
                %199 = vst [vmem:[%s151 + $0xcc] sm:$0xff] %v198
                %v200 = vld [vmem:[%s150 + $0x1b0] sm:$0xff]
                %201 = vst [vmem:[%s151 + $0xd8] sm:$0xff] %v200
                %v202 = vld [vmem:[%s150 + $0x1b8] sm:$0xff]
                %203 = vst [vmem:[%s151 + $0xe0] sm:$0xff] %v202
                %v204 = vld [vmem:[%s150 + $0x1c0] sm:$0xff]
                %205 = vst [vmem:[%s151 + $0xe8] sm:$0xff] %v204
                %v206 = vld [vmem:[%s150 + $0x1c8] sm:$0xff]
                %207 = vst [vmem:[%s151 + $0xf0] sm:$0xff] %v206
                %v208 = vld [vmem:[%s150 + $0x1f8] sm:$0xff]
                %209 = vst [vmem:[%s151 + $0xfc] sm:$0xff] %v208
                %v210 = vld [vmem:[%s150 + $0x200] sm:$0xff]
                %211 = vst [vmem:[%s151 + $0x104] sm:$0xff] %v210
                %v212 = vld [vmem:[%s150 + $0x208] sm:$0xff]
                %213 = vst [vmem:[%s151 + $0x10c] sm:$0xff] %v212
                %v214 = vld [vmem:[%s150 + $0x210] sm:$0xff]
                %215 = vst [vmem:[%s151 + $0x114] sm:$0xff] %v214
                %v216 = vld [vmem:[%s150 + $0x240] sm:$0xff]
                %217 = vst [vmem:[%s151 + $0x120] sm:$0xff] %v216
                %v218 = vld [vmem:[%s150 + $0x248] sm:$0xff]
                %219 = vst [vmem:[%s151 + $0x128] sm:$0xff] %v218
                %v220 = vld [vmem:[%s150 + $0x250] sm:$0xff]
                %221 = vst [vmem:[%s151 + $0x130] sm:$0xff] %v220
                %v222 = vld [vmem:[%s150 + $0x258] sm:$0xff]
                %223 = vst [vmem:[%s151 + $0x138] sm:$0xff] %v222
                %v224 = vld [vmem:[%s150 + $0x288] sm:$0xff]
                %225 = vst [vmem:[%s151 + $0x144] sm:$0xff] %v224
                %v226 = vld [vmem:[%s150 + $0x290] sm:$0xff]
                %227 = vst [vmem:[%s151 + $0x14c] sm:$0xff] %v226
                %v228 = vld [vmem:[%s150 + $0x298] sm:$0xff]
                %229 = vst [vmem:[%s151 + $0x154] sm:$0xff] %v228
                %v230 = vld [vmem:[%s150 + $0x2a0] sm:$0xff]
                %231 = vst [vmem:[%s151 + $0x15c] sm:$0xff] %v230
                %v232 = vld [vmem:[%s150 + $0x2d0] sm:$0xff]
                %233 = vst [vmem:[%s151 + $0x168] sm:$0xff] %v232
                %v234 = vld [vmem:[%s150 + $0x2d8] sm:$0xff]
                %235 = vst [vmem:[%s151 + $0x170] sm:$0xff] %v234
                %v236 = vld [vmem:[%s150 + $0x2e0] sm:$0xff]
                %237 = vst [vmem:[%s151 + $0x178] sm:$0xff] %v236
                %v238 = vld [vmem:[%s150 + $0x2e8] sm:$0xff]
                %239 = vst [vmem:[%s151 + $0x180] sm:$0xff] %v238
                %v240 = vld [vmem:[%s150 + $0x318] sm:$0xff]
                %241 = vst [vmem:[%s151 + $0x18c] sm:$0xff] %v240
                %v242 = vld [vmem:[%s150 + $0x320] sm:$0xff]
                %243 = vst [vmem:[%s151 + $0x194] sm:$0xff] %v242
                %v244 = vld [vmem:[%s150 + $0x328] sm:$0xff]
                %245 = vst [vmem:[%s151 + $0x19c] sm:$0xff] %v244
                %v246 = vld [vmem:[%s150 + $0x330] sm:$0xff]
                %247 = vst [vmem:[%s151 + $0x1a4] sm:$0xff] %v246
                %v248 = vld [vmem:[%s150 + $0x360] sm:$0xff]
                %249 = vst [vmem:[%s151 + $0x1b0] sm:$0xff] %v248
                %v250 = vld [vmem:[%s150 + $0x368] sm:$0xff]
                %251 = vst [vmem:[%s151 + $0x1b8] sm:$0xff] %v250
                %v252 = vld [vmem:[%s150 + $0x370] sm:$0xff]
                %253 = vst [vmem:[%s151 + $0x1c0] sm:$0xff] %v252
                %v254 = vld [vmem:[%s150 + $0x378] sm:$0xff]
                %255 = vst [vmem:[%s151 + $0x1c8] sm:$0xff] %v254
                %v256 = vld [vmem:[%s150 + $0x3a8] sm:$0xff]
                %257 = vst [vmem:[%s151 + $0x1d4] sm:$0xff] %v256
                %v258 = vld [vmem:[%s150 + $0x3b0] sm:$0xff]
                %259 = vst [vmem:[%s151 + $0x1dc] sm:$0xff] %v258
                %v260 = vld [vmem:[%s150 + $0x3b8] sm:$0xff]
                %261 = vst [vmem:[%s151 + $0x1e4] sm:$0xff] %v260
                %v262 = vld [vmem:[%s150 + $0x3c0] sm:$0xff]
                %263 = vst [vmem:[%s151 + $0x1ec] sm:$0xff] %v262
                %v264 = vld [vmem:[%s150 + $0x3f0] sm:$0xff]
                %265 = vst [vmem:[%s151 + $0x1f8] sm:$0xff] %v264
                %v266 = vld [vmem:[%s150 + $0x3f8] sm:$0xff]
                %267 = vst [vmem:[%s151 + $0x200] sm:$0xff] %v266
                %v268 = vld [vmem:[%s150 + $0x400] sm:$0xff]
                %269 = vst [vmem:[%s151 + $0x208] sm:$0xff] %v268
                %v270 = vld [vmem:[%s150 + $0x408] sm:$0xff]
                %271 = vst [vmem:[%s151 + $0x210] sm:$0xff] %v270
                %v272 = vld [vmem:[%s150 + $0x438] sm:$0xff]
                %273 = vst [vmem:[%s151 + $0x21c] sm:$0xff] %v272
                %v274 = vld [vmem:[%s150 + $0x440] sm:$0xff]
                %275 = vst [vmem:[%s151 + $0x224] sm:$0xff] %v274
                %v276 = vld [vmem:[%s150 + $0x448] sm:$0xff]
                %277 = vst [vmem:[%s151 + $0x22c] sm:$0xff] %v276
                %v278 = vld [vmem:[%s150 + $0x450] sm:$0xff]
                %279 = vst [vmem:[%s151 + $0x234] sm:$0xff] %v278
              $region41: #{beta_tc_vae_forward.17} parent=35 // loop_footer
                %s149 = sadd.s32 1, %s145
              $region42: #{beta_tc_vae_forward.17} parent=35 // loop_footer_branch
                %144 = sbr.rel target = $region38
              $region43: #{beta_tc_vae_forward.17} parent=35 // loop_exit
                _
              loop: start=0, step=1, limit=1
              $region44: #{beta_tc_vae_forward.17} parent=35 // loop_pre_header
                _
              $region45: #{beta_tc_vae_forward.17} parent=35 // loop_header
                %s282 = sphi 0, %s286
                %p283 = scmp.ge.s32.totalorder %s282, 1
                %s287 = sphi %s142, %s142
                %s288 = sphi %s143, %s143
              $region46: #{beta_tc_vae_forward.17} parent=35 // loop_header_branch
                %285 = sbr.rel (%p283) target = $region50
              $region47: #{beta_tc_vae_forward.17} parent=35 // loop_body
                %v289 = vld [vmem:[%s287] sm:$0xf]
                %290 = vst [vmem:[%s288] sm:$0xf] %v289
                %v291 = vld [vmem:[%s287 + $0x48] sm:$0xf]
                %292 = vst [vmem:[%s288 + $0x24] sm:$0xf] %v291
                %v293 = vld [vmem:[%s287 + $0x90] sm:$0xf]
                %294 = vst [vmem:[%s288 + $0x48] sm:$0xf] %v293
                %v295 = vld [vmem:[%s287 + $0xd8] sm:$0xf]
                %296 = vst [vmem:[%s288 + $0x6c] sm:$0xf] %v295
                %v297 = vld [vmem:[%s287 + $0x120] sm:$0xf]
                %298 = vst [vmem:[%s288 + $0x90] sm:$0xf] %v297
                %v299 = vld [vmem:[%s287 + $0x168] sm:$0xf]
                %300 = vst [vmem:[%s288 + $0xb4] sm:$0xf] %v299
                %v301 = vld [vmem:[%s287 + $0x1b0] sm:$0xf]
                %302 = vst [vmem:[%s288 + $0xd8] sm:$0xf] %v301
                %v303 = vld [vmem:[%s287 + $0x1f8] sm:$0xf]
                %304 = vst [vmem:[%s288 + $0xfc] sm:$0xf] %v303
                %v305 = vld [vmem:[%s287 + $0x240] sm:$0xf]
                %306 = vst [vmem:[%s288 + $0x120] sm:$0xf] %v305
                %v307 = vld [vmem:[%s287 + $0x288] sm:$0xf]
                %308 = vst [vmem:[%s288 + $0x144] sm:$0xf] %v307
                %v309 = vld [vmem:[%s287 + $0x2d0] sm:$0xf]
                %310 = vst [vmem:[%s288 + $0x168] sm:$0xf] %v309
                %v311 = vld [vmem:[%s287 + $0x318] sm:$0xf]
                %312 = vst [vmem:[%s288 + $0x18c] sm:$0xf] %v311
                %v313 = vld [vmem:[%s287 + $0x360] sm:$0xf]
                %314 = vst [vmem:[%s288 + $0x1b0] sm:$0xf] %v313
                %v315 = vld [vmem:[%s287 + $0x3a8] sm:$0xf]
                %316 = vst [vmem:[%s288 + $0x1d4] sm:$0xf] %v315
                %v317 = vld [vmem:[%s287 + $0x3f0] sm:$0xf]
                %318 = vst [vmem:[%s288 + $0x1f8] sm:$0xf] %v317
                %v319 = vld [vmem:[%s287 + $0x438] sm:$0xf]
                %320 = vst [vmem:[%s288 + $0x21c] sm:$0xf] %v319
              $region48: #{beta_tc_vae_forward.17} parent=35 // loop_footer
                %s286 = sadd.s32 1, %s282
              $region49: #{beta_tc_vae_forward.17} parent=35 // loop_footer_branch
                %281 = sbr.rel target = $region45
              $region50: #{beta_tc_vae_forward.17} parent=35 // loop_exit
                _
            $region36: #{beta_tc_vae_forward.17} parent=31 // pred_fallthru
              _
          $region32: #{beta_tc_vae_forward.17} parent=27 // pred_fallthru
            _
          %321 = vnop
        $region28: #{beta_tc_vae_forward.17} parent=23 // pred_fallthru
          _
      $region24: #{beta_tc_vae_forward.17} parent=5 // pred_fallthru
        _
      %p322 = scmp.le.s32.totalorder 1, %s9
      %p323 = scmp.lt.s32.totalorder %s9, 3
      %p324 = pnand %p322, %p323
      %p325 = pneg %p324
      // Predicated region
      $region51: #{beta_tc_vae_forward.17} parent=5 // pred_check
        _
      $region52: #{beta_tc_vae_forward.17} parent=5 // pred_check_branch
        %327 = sbr.rel (%p324) target = $region54
      $region53: #{beta_tc_vae_forward.17} parent=5 // pred_region
        %s328 = ssub.s32 %s9, 1
        %s329 = sand.u32 %s43, 1
        %s330 = sand.u32 %s43, 1
        %s331 = smul.addr %s330, 576
        %s332 = scalar_lea.vmem [#allocation2], %s331
        // Predicated region
        $region55: #{beta_tc_vae_forward.17} parent=53 // pred_check
          %p333 = pneg %p56
        $region56: #{beta_tc_vae_forward.17} parent=53 // pred_check_branch
          %335 = sbr.rel (%p333) target = $region58
        $region57: #{beta_tc_vae_forward.17} parent=53 // pred_region
          _
        $region58: #{beta_tc_vae_forward.17} parent=53 // pred_fallthru
          _
        %p336 = pneg %p30
        %p337 = pneg %p27
        %s338 = sand.u32 %s43, 1
        %s339 = sand.u32 %s43, 1
        %s340 = smul.addr %s339, 576
        %s341 = scalar_lea.vmem [#allocation2], %s340
        %p342 = pneg %p56
        %p343 = pneg %p53
        %p344 = pneg %p77
        %p345 = pneg %p74
        %p346 = pneg %p103
        %p347 = pneg %p100
        %s348 = smul.u32 9, %s14
        %p349 = scmp.lt.s32.totalorder %s348, 17
        %s350 = scalar_select %p349, %s348, 17
        %s351 = smul.addr %s350, 4
        %s352 = scalar_lea.vmem %s3, %s351
        %s353 = smul.u32 9, %s14
        %s354 = smul.u32 9, %s14
        %p355 = scmp.lt.s32.totalorder %s354, 17
        %s356 = scalar_select %p355, %s354, 17
        %s357 = smul.addr %s356, 4
        %s358 = scalar_lea.vmem %s3, %s357
        %s359 = smul.u32 9, %s14
        %v361 = vld [vmem:[%s0] sm:$0x3]
        %v362 = vld [vmem:[%s332] sm:$0xff]
        %v363 = vld [vmem:[%s332 + $0x8] sm:$0xff]
        %v364 = vld [vmem:[%s332 + $0x10] sm:$0xff]
        %v365 = vld [vmem:[%s332 + $0x18] sm:$0xff]
        %v366 = vld [vmem:[%s332 + $0x20] sm:$0xf]
        %v367 = vld [vmem:[%s332 + $0x24] sm:$0xff]
        %v368 = vld [vmem:[%s332 + $0x2c] sm:$0xff]
        %v369 = vld [vmem:[%s332 + $0x34] sm:$0xff]
        %v370 = vld [vmem:[%s332 + $0x3c] sm:$0xff]
        %v371 = vld [vmem:[%s332 + $0x44] sm:$0xf]
        %v372 = vld [vmem:[%s332 + $0x48] sm:$0xff]
        %v373 = vld [vmem:[%s332 + $0x50] sm:$0xff]
        %v374 = vld [vmem:[%s332 + $0x58] sm:$0xff]
        %v375 = vld [vmem:[%s332 + $0x60] sm:$0xff]
        %v376 = vld [vmem:[%s332 + $0x68] sm:$0xf]
        %v377 = vld [vmem:[%s332 + $0x6c] sm:$0xff]
        %v378 = vld [vmem:[%s332 + $0x74] sm:$0xff]
        %v379 = vld [vmem:[%s332 + $0x7c] sm:$0xff]
        %v380 = vld [vmem:[%s332 + $0x84] sm:$0xff]
        %v381 = vld [vmem:[%s332 + $0x8c] sm:$0xf]
        %v382 = vld [vmem:[%s332 + $0x90] sm:$0xff]
        %v383 = vld [vmem:[%s332 + $0x98] sm:$0xff]
        %v384 = vld [vmem:[%s332 + $0xa0] sm:$0xff]
        %v385 = vld [vmem:[%s332 + $0xa8] sm:$0xff]
        %v386 = vld [vmem:[%s332 + $0xb0] sm:$0xf]
        %v387 = vld [vmem:[%s332 + $0xb4] sm:$0xff]
        %v388 = vld [vmem:[%s332 + $0xbc] sm:$0xff]
        %v389 = vld [vmem:[%s332 + $0xc4] sm:$0xff]
        %v390 = vld [vmem:[%s332 + $0xcc] sm:$0xff]
        %v391 = vld [vmem:[%s332 + $0xd4] sm:$0xf]
        %v392 = vld [vmem:[%s332 + $0xd8] sm:$0xff]
        %v393 = vld [vmem:[%s332 + $0xe0] sm:$0xff]
        %v394 = vld [vmem:[%s332 + $0xe8] sm:$0xff]
        %v395 = vld [vmem:[%s332 + $0xf0] sm:$0xff]
        %v396 = vld [vmem:[%s332 + $0xf8] sm:$0xf]
        %v397 = vld [vmem:[%s332 + $0xfc] sm:$0xff]
        %v398 = vld [vmem:[%s332 + $0x104] sm:$0xff]
        %v399 = vld [vmem:[%s332 + $0x10c] sm:$0xff]
        %v400 = vld [vmem:[%s332 + $0x114] sm:$0xff]
        %v401 = vld [vmem:[%s332 + $0x11c] sm:$0xf]
        %v402 = vld [vmem:[%s332 + $0x120] sm:$0xff]
        %v403 = vld [vmem:[%s332 + $0x128] sm:$0xff]
        %v404 = vld [vmem:[%s332 + $0x130] sm:$0xff]
        %v405 = vld [vmem:[%s332 + $0x138] sm:$0xff]
        %v406 = vld [vmem:[%s332 + $0x140] sm:$0xf]
        %v407 = vld [vmem:[%s332 + $0x144] sm:$0xff]
        %v408 = vld [vmem:[%s332 + $0x14c] sm:$0xff]
        %v409 = vld [vmem:[%s332 + $0x154] sm:$0xff]
        %v410 = vld [vmem:[%s332 + $0x15c] sm:$0xff]
        %v411 = vld [vmem:[%s332 + $0x164] sm:$0xf]
        %v412 = vld [vmem:[%s332 + $0x168] sm:$0xff]
        %v413 = vld [vmem:[%s332 + $0x170] sm:$0xff]
        %v414 = vld [vmem:[%s332 + $0x178] sm:$0xff]
        %v415 = vld [vmem:[%s332 + $0x180] sm:$0xff]
        %v416 = vld [vmem:[%s332 + $0x188] sm:$0xf]
        %v417 = vld [vmem:[%s332 + $0x18c] sm:$0xff]
        %v418 = vld [vmem:[%s332 + $0x194] sm:$0xff]
        %v419 = vld [vmem:[%s332 + $0x19c] sm:$0xff]
        %v420 = vld [vmem:[%s332 + $0x1a4] sm:$0xff]
        %v421 = vld [vmem:[%s332 + $0x1ac] sm:$0xf]
        %v422 = vld [vmem:[%s332 + $0x1b0] sm:$0xff]
        %v423 = vld [vmem:[%s332 + $0x1b8] sm:$0xff]
        %v424 = vld [vmem:[%s332 + $0x1c0] sm:$0xff]
        %v425 = vld [vmem:[%s332 + $0x1c8] sm:$0xff]
        %v426 = vld [vmem:[%s332 + $0x1d0] sm:$0xf]
        %v427 = vld [vmem:[%s332 + $0x1d4] sm:$0xff]
        %v428 = vld [vmem:[%s332 + $0x1dc] sm:$0xff]
        %v429 = vld [vmem:[%s332 + $0x1e4] sm:$0xff]
        %v430 = vld [vmem:[%s332 + $0x1ec] sm:$0xff]
        %v431 = vld [vmem:[%s332 + $0x1f4] sm:$0xf]
        %v432 = vld [vmem:[%s332 + $0x1f8] sm:$0xff]
        %v433 = vld [vmem:[%s332 + $0x200] sm:$0xff]
        %v434 = vld [vmem:[%s332 + $0x208] sm:$0xff]
        %v435 = vld [vmem:[%s332 + $0x210] sm:$0xff]
        %v436 = vld [vmem:[%s332 + $0x218] sm:$0xf]
        %v437 = vld [vmem:[%s332 + $0x21c] sm:$0xff]
        %v438 = vld [vmem:[%s332 + $0x224] sm:$0xff]
        %v439 = vld [vmem:[%s332 + $0x22c] sm:$0xff]
        %v440 = vld [vmem:[%s332 + $0x234] sm:$0xff]
        %v441 = vld [vmem:[%s332 + $0x23c] sm:$0xf]
        %v442 = vld [vmem:[%s2] sm:$0xf]
        %444 = vset.pattern.permute.xlu0 0
        %445 = vperm.xlu0 %444, %v442
        %v446 = vpop.permute.xlu0 %445
        %v528 = vunpack.c.l.b16 %v362
        %v529 = vunpack.c.h.b16 %v362
        %v530 = vunpack.c.l.b16 %v363
        %v531 = vunpack.c.h.b16 %v363
        %v532 = vunpack.c.l.b16 %v364
        %v533 = vunpack.c.h.b16 %v364
        %v534 = vunpack.c.l.b16 %v365
        %v535 = vunpack.c.h.b16 %v365
        %v536 = vunpack.c.l.b16 %v366
        %v537 = vunpack.c.l.b16 %v367
        %v538 = vunpack.c.h.b16 %v367
        %v539 = vunpack.c.l.b16 %v368
        %v540 = vunpack.c.h.b16 %v368
        %v541 = vunpack.c.l.b16 %v369
        %v542 = vunpack.c.h.b16 %v369
        %v543 = vunpack.c.l.b16 %v370
        %v544 = vunpack.c.h.b16 %v370
        %v545 = vunpack.c.l.b16 %v371
        %v546 = vunpack.c.l.b16 %v372
        %v547 = vunpack.c.h.b16 %v372
        %v548 = vunpack.c.l.b16 %v373
        %v549 = vunpack.c.h.b16 %v373
        %v550 = vunpack.c.l.b16 %v374
        %v551 = vunpack.c.h.b16 %v374
        %v552 = vunpack.c.l.b16 %v375
        %v553 = vunpack.c.h.b16 %v375
        %v554 = vunpack.c.l.b16 %v376
        %v555 = vunpack.c.l.b16 %v377
        %v556 = vunpack.c.h.b16 %v377
        %v557 = vunpack.c.l.b16 %v378
        %v558 = vunpack.c.h.b16 %v378
        %v559 = vunpack.c.l.b16 %v379
        %v560 = vunpack.c.h.b16 %v379
        %v561 = vunpack.c.l.b16 %v380
        %v562 = vunpack.c.h.b16 %v380
        %v563 = vunpack.c.l.b16 %v381
        %v564 = vunpack.c.l.b16 %v382
        %v565 = vunpack.c.h.b16 %v382
        %v566 = vunpack.c.l.b16 %v383
        %v567 = vunpack.c.h.b16 %v383
        %v568 = vunpack.c.l.b16 %v384
        %v569 = vunpack.c.h.b16 %v384
        %v570 = vunpack.c.l.b16 %v385
        %v571 = vunpack.c.h.b16 %v385
        %v572 = vunpack.c.l.b16 %v386
        %v573 = vunpack.c.l.b16 %v387
        %v574 = vunpack.c.h.b16 %v387
        %v575 = vunpack.c.l.b16 %v388
        %v576 = vunpack.c.h.b16 %v388
        %v577 = vunpack.c.l.b16 %v389
        %v578 = vunpack.c.h.b16 %v389
        %v579 = vunpack.c.l.b16 %v390
        %v580 = vunpack.c.h.b16 %v390
        %v581 = vunpack.c.l.b16 %v391
        %v582 = vunpack.c.l.b16 %v392
        %v583 = vunpack.c.h.b16 %v392
        %v584 = vunpack.c.l.b16 %v393
        %v585 = vunpack.c.h.b16 %v393
        %v586 = vunpack.c.l.b16 %v394
        %v587 = vunpack.c.h.b16 %v394
        %v588 = vunpack.c.l.b16 %v395
        %v589 = vunpack.c.h.b16 %v395
        %v590 = vunpack.c.l.b16 %v396
        %v591 = vunpack.c.l.b16 %v397
        %v592 = vunpack.c.h.b16 %v397
        %v593 = vunpack.c.l.b16 %v398
        %v594 = vunpack.c.h.b16 %v398
        %v595 = vunpack.c.l.b16 %v399
        %v596 = vunpack.c.h.b16 %v399
        %v597 = vunpack.c.l.b16 %v400
        %v598 = vunpack.c.h.b16 %v400
        %v599 = vunpack.c.l.b16 %v401
        %v600 = vunpack.c.l.b16 %v402
        %v601 = vunpack.c.h.b16 %v402
        %v602 = vunpack.c.l.b16 %v403
        %v603 = vunpack.c.h.b16 %v403
        %v604 = vunpack.c.l.b16 %v404
        %v605 = vunpack.c.h.b16 %v404
        %v606 = vunpack.c.l.b16 %v405
        %v607 = vunpack.c.h.b16 %v405
        %v608 = vunpack.c.l.b16 %v406
        %v609 = vunpack.c.l.b16 %v407
        %v610 = vunpack.c.h.b16 %v407
        %v611 = vunpack.c.l.b16 %v408
        %v612 = vunpack.c.h.b16 %v408
        %v613 = vunpack.c.l.b16 %v409
        %v614 = vunpack.c.h.b16 %v409
        %v615 = vunpack.c.l.b16 %v410
        %v616 = vunpack.c.h.b16 %v410
        %v617 = vunpack.c.l.b16 %v411
        %v618 = vunpack.c.l.b16 %v412
        %v619 = vunpack.c.h.b16 %v412
        %v620 = vunpack.c.l.b16 %v413
        %v621 = vunpack.c.h.b16 %v413
        %v622 = vunpack.c.l.b16 %v414
        %v623 = vunpack.c.h.b16 %v414
        %v624 = vunpack.c.l.b16 %v415
        %v625 = vunpack.c.h.b16 %v415
        %v626 = vunpack.c.l.b16 %v416
        %v627 = vunpack.c.l.b16 %v417
        %v628 = vunpack.c.h.b16 %v417
        %v629 = vunpack.c.l.b16 %v418
        %v630 = vunpack.c.h.b16 %v418
        %v631 = vunpack.c.l.b16 %v419
        %v632 = vunpack.c.h.b16 %v419
        %v633 = vunpack.c.l.b16 %v420
        %v634 = vunpack.c.h.b16 %v420
        %v635 = vunpack.c.l.b16 %v421
        %v636 = vunpack.c.l.b16 %v422
        %v637 = vunpack.c.h.b16 %v422
        %v638 = vunpack.c.l.b16 %v423
        %v639 = vunpack.c.h.b16 %v423
        %v640 = vunpack.c.l.b16 %v424
        %v641 = vunpack.c.h.b16 %v424
        %v642 = vunpack.c.l.b16 %v425
        %v643 = vunpack.c.h.b16 %v425
        %v644 = vunpack.c.l.b16 %v426
        %v645 = vunpack.c.l.b16 %v427
        %v646 = vunpack.c.h.b16 %v427
        %v647 = vunpack.c.l.b16 %v428
        %v648 = vunpack.c.h.b16 %v428
        %v649 = vunpack.c.l.b16 %v429
        %v650 = vunpack.c.h.b16 %v429
        %v651 = vunpack.c.l.b16 %v430
        %v652 = vunpack.c.h.b16 %v430
        %v653 = vunpack.c.l.b16 %v431
        %v654 = vunpack.c.l.b16 %v432
        %v655 = vunpack.c.h.b16 %v432
        %v656 = vunpack.c.l.b16 %v433
        %v657 = vunpack.c.h.b16 %v433
        %v658 = vunpack.c.l.b16 %v434
        %v659 = vunpack.c.h.b16 %v434
        %v660 = vunpack.c.l.b16 %v435
        %v661 = vunpack.c.h.b16 %v435
        %v662 = vunpack.c.l.b16 %v436
        %v663 = vunpack.c.l.b16 %v437
        %v664 = vunpack.c.h.b16 %v437
        %v665 = vunpack.c.l.b16 %v438
        %v666 = vunpack.c.h.b16 %v438
        %v667 = vunpack.c.l.b16 %v439
        %v668 = vunpack.c.h.b16 %v439
        %v669 = vunpack.c.l.b16 %v440
        %v670 = vunpack.c.h.b16 %v440
        %v671 = vunpack.c.l.b16 %v441
        %v672 = vpack.c.b16 %v537, %v528
        %v673 = vpack.c.b16 %v538, %v529
        %v674 = vpack.c.b16 %v539, %v530
        %v675 = vpack.c.b16 %v540, %v531
        %v676 = vpack.c.b16 %v541, %v532
        %v677 = vpack.c.b16 %v542, %v533
        %v678 = vpack.c.b16 %v543, %v534
        %v679 = vpack.c.b16 %v544, %v535
        %v680 = vpack.c.b16 %v545, %v536
        %v681 = vpack.c.b16 %v555, %v546
        %v682 = vpack.c.b16 %v556, %v547
        %v683 = vpack.c.b16 %v557, %v548
        %v684 = vpack.c.b16 %v558, %v549
        %v685 = vpack.c.b16 %v559, %v550
        %v686 = vpack.c.b16 %v560, %v551
        %v687 = vpack.c.b16 %v561, %v552
        %v688 = vpack.c.b16 %v562, %v553
        %v689 = vpack.c.b16 %v563, %v554
        %v690 = vpack.c.b16 %v573, %v564
        %v691 = vpack.c.b16 %v574, %v565
        %v692 = vpack.c.b16 %v575, %v566
        %v693 = vpack.c.b16 %v576, %v567
        %v694 = vpack.c.b16 %v577, %v568
        %v695 = vpack.c.b16 %v578, %v569
        %v696 = vpack.c.b16 %v579, %v570
        %v697 = vpack.c.b16 %v580, %v571
        %v698 = vpack.c.b16 %v581, %v572
        %v699 = vpack.c.b16 %v591, %v582
        %v700 = vpack.c.b16 %v592, %v583
        %v701 = vpack.c.b16 %v593, %v584
        %v702 = vpack.c.b16 %v594, %v585
        %v703 = vpack.c.b16 %v595, %v586
        %v704 = vpack.c.b16 %v596, %v587
        %v705 = vpack.c.b16 %v597, %v588
        %v706 = vpack.c.b16 %v598, %v589
        %v707 = vpack.c.b16 %v599, %v590
        %v708 = vpack.c.b16 %v609, %v600
        %v709 = vpack.c.b16 %v610, %v601
        %v710 = vpack.c.b16 %v611, %v602
        %v711 = vpack.c.b16 %v612, %v603
        %v712 = vpack.c.b16 %v613, %v604
        %v713 = vpack.c.b16 %v614, %v605
        %v714 = vpack.c.b16 %v615, %v606
        %v715 = vpack.c.b16 %v616, %v607
        %v716 = vpack.c.b16 %v617, %v608
        %v717 = vpack.c.b16 %v627, %v618
        %v718 = vpack.c.b16 %v628, %v619
        %v719 = vpack.c.b16 %v629, %v620
        %v720 = vpack.c.b16 %v630, %v621
        %v721 = vpack.c.b16 %v631, %v622
        %v722 = vpack.c.b16 %v632, %v623
        %v723 = vpack.c.b16 %v633, %v624
        %v724 = vpack.c.b16 %v634, %v625
        %v725 = vpack.c.b16 %v635, %v626
        %v726 = vpack.c.b16 %v645, %v636
        %v727 = vpack.c.b16 %v646, %v637
        %v728 = vpack.c.b16 %v647, %v638
        %v729 = vpack.c.b16 %v648, %v639
        %v730 = vpack.c.b16 %v649, %v640
        %v731 = vpack.c.b16 %v650, %v641
        %v732 = vpack.c.b16 %v651, %v642
        %v733 = vpack.c.b16 %v652, %v643
        %v734 = vpack.c.b16 %v653, %v644
        %v735 = vpack.c.b16 %v663, %v654
        %v736 = vpack.c.b16 %v664, %v655
        %v737 = vpack.c.b16 %v665, %v656
        %v738 = vpack.c.b16 %v666, %v657
        %v739 = vpack.c.b16 %v667, %v658
        %v740 = vpack.c.b16 %v668, %v659
        %v741 = vpack.c.b16 %v669, %v660
        %v742 = vpack.c.b16 %v670, %v661
        %v743 = vpack.c.b16 %v671, %v662
        %816 = vmatprep.subr.bf16.mxu0 %v673
        %817 = vmatpush1.bf16.msra.mxu0 %v672
        %818 = vmatprep.subr.bf16.mxu0 %v682
        %819 = vmatpush1.bf16.msra.mxu0 %v681
        %820 = vmatprep.subr.bf16.mxu0 %v691
        %821 = vmatpush1.bf16.msra.mxu0 %v690
        %822 = vmatprep.subr.bf16.mxu0 %v700
        %823 = vmatpush1.bf16.msra.mxu0 %v699
        %824 = vmatprep.subr.bf16.mxu0 %v709
        %825 = vmatpush1.bf16.msra.mxu0 %v708
        %826 = vmatprep.subr.bf16.mxu0 %v718
        %827 = vmatpush1.bf16.msra.mxu0 %v717
        %828 = vmatprep.subr.bf16.mxu0 %v727
        %829 = vmatpush1.bf16.msra.mxu0 %v726
        %830 = vmatprep.subr.bf16.mxu0 %v736
        %831 = vmatpush1.bf16.msra.mxu0 %v735
        %832 = vmatprep.subr.bf16.mxu0 0
        %833 = vmatpush1.bf16.msra.mxu0 0
        %834 = vmatprep.subr.bf16.mxu0 0
        %835 = vmatpush1.bf16.msra.mxu0 0
        %836 = vmatprep.subr.bf16.mxu0 0
        %837 = vmatpush1.bf16.msra.mxu0 0
        %838 = vmatprep.subr.bf16.mxu0 0
        %839 = vmatpush1.bf16.msra.mxu0 0
        %840 = vmatprep.subr.bf16.mxu0 0
        %841 = vmatpush1.bf16.msra.mxu0 0
        %842 = vmatprep.subr.bf16.mxu0 0
        %843 = vmatpush1.bf16.msra.mxu0 0
        %844 = vmatprep.subr.bf16.mxu0 0
        %845 = vmatpush1.bf16.msra.mxu0 0
        %846 = vmatprep.subr.bf16.mxu0 0
        %847 = vmatpush1.bf16.msra.mxu0 0
        %848 = vmatprep.mubr.bf16.mxu0 0
        %849 = vmatmul.mubr.bf16.gmra.mrb[0].mxu0 %v361
        %v850 = vpop.f32.mrb[0].mxu0
        %v851 = vadd.f32 %v446, %v850
        %v852 = vpop.f32.mrb[0].mxu0
        %v853 = vadd.f32 %v446, %v852
        %v854 = vpop.f32.mrb[0].mxu0
        %v855 = vpop.f32.mrb[0].mxu0
        %856 = vdwg.mxu0
        %857 = vmatprep.subr.bf16.mxu0 %v675
        %858 = vmatpush1.bf16.msra.mxu0 %v674
        %859 = vmatprep.subr.bf16.mxu0 %v684
        %860 = vmatpush1.bf16.msra.mxu0 %v683
        %861 = vmatprep.subr.bf16.mxu0 %v693
        %862 = vmatpush1.bf16.msra.mxu0 %v692
        %863 = vmatprep.subr.bf16.mxu0 %v702
        %864 = vmatpush1.bf16.msra.mxu0 %v701
        %865 = vmatprep.subr.bf16.mxu0 %v711
        %866 = vmatpush1.bf16.msra.mxu0 %v710
        %867 = vmatprep.subr.bf16.mxu0 %v720
        %868 = vmatpush1.bf16.msra.mxu0 %v719
        %869 = vmatprep.subr.bf16.mxu0 %v729
        %870 = vmatpush1.bf16.msra.mxu0 %v728
        %871 = vmatprep.subr.bf16.mxu0 %v738
        %872 = vmatpush1.bf16.msra.mxu0 %v737
        %873 = vmatprep.subr.bf16.mxu0 0
        %874 = vmatpush1.bf16.msra.mxu0 0
        %875 = vmatprep.subr.bf16.mxu0 0
        %876 = vmatpush1.bf16.msra.mxu0 0
        %877 = vmatprep.subr.bf16.mxu0 0
        %878 = vmatpush1.bf16.msra.mxu0 0
        %879 = vmatprep.subr.bf16.mxu0 0
        %880 = vmatpush1.bf16.msra.mxu0 0
        %881 = vmatprep.subr.bf16.mxu0 0
        %882 = vmatpush1.bf16.msra.mxu0 0
        %883 = vmatprep.subr.bf16.mxu0 0
        %884 = vmatpush1.bf16.msra.mxu0 0
        %885 = vmatprep.subr.bf16.mxu0 0
        %886 = vmatpush1.bf16.msra.mxu0 0
        %887 = vmatprep.subr.bf16.mxu0 0
        %888 = vmatpush1.bf16.msra.mxu0 0
        %889 = vmatprep.mubr.bf16.mxu0 0
        %890 = vmatmul.mubr.bf16.gmra.mrb[0].mxu0 %v361
        %v891 = vpop.f32.mrb[0].mxu0
        %v892 = vadd.f32 %v446, %v891
        %v893 = vpop.f32.mrb[0].mxu0
        %v894 = vadd.f32 %v446, %v893
        %v895 = vpop.f32.mrb[0].mxu0
        %v896 = vpop.f32.mrb[0].mxu0
        %897 = vdwg.mxu0
        %898 = vmatprep.subr.bf16.mxu0 %v677
        %899 = vmatpush1.bf16.msra.mxu0 %v676
        %900 = vmatprep.subr.bf16.mxu0 %v686
        %901 = vmatpush1.bf16.msra.mxu0 %v685
        %902 = vmatprep.subr.bf16.mxu0 %v695
        %903 = vmatpush1.bf16.msra.mxu0 %v694
        %904 = vmatprep.subr.bf16.mxu0 %v704
        %905 = vmatpush1.bf16.msra.mxu0 %v703
        %906 = vmatprep.subr.bf16.mxu0 %v713
        %907 = vmatpush1.bf16.msra.mxu0 %v712
        %908 = vmatprep.subr.bf16.mxu0 %v722
        %909 = vmatpush1.bf16.msra.mxu0 %v721
        %910 = vmatprep.subr.bf16.mxu0 %v731
        %911 = vmatpush1.bf16.msra.mxu0 %v730
        %912 = vmatprep.subr.bf16.mxu0 %v740
        %913 = vmatpush1.bf16.msra.mxu0 %v739
        %914 = vmatprep.subr.bf16.mxu0 0
        %915 = vmatpush1.bf16.msra.mxu0 0
        %916 = vmatprep.subr.bf16.mxu0 0
        %917 = vmatpush1.bf16.msra.mxu0 0
        %918 = vmatprep.subr.bf16.mxu0 0
        %919 = vmatpush1.bf16.msra.mxu0 0
        %920 = vmatprep.subr.bf16.mxu0 0
        %921 = vmatpush1.bf16.msra.mxu0 0
        %922 = vmatprep.subr.bf16.mxu0 0
        %923 = vmatpush1.bf16.msra.mxu0 0
        %924 = vmatprep.subr.bf16.mxu0 0
        %925 = vmatpush1.bf16.msra.mxu0 0
        %926 = vmatprep.subr.bf16.mxu0 0
        %927 = vmatpush1.bf16.msra.mxu0 0
        %928 = vmatprep.subr.bf16.mxu0 0
        %929 = vmatpush1.bf16.msra.mxu0 0
        %930 = vmatprep.mubr.bf16.mxu0 0
        %931 = vmatmul.mubr.bf16.gmra.mrb[0].mxu0 %v361
        %v932 = vpop.f32.mrb[0].mxu0
        %v933 = vadd.f32 %v446, %v932
        %v934 = vpop.f32.mrb[0].mxu0
        %v935 = vadd.f32 %v446, %v934
        %v936 = vpop.f32.mrb[0].mxu0
        %v937 = vpop.f32.mrb[0].mxu0
        %938 = vdwg.mxu0
        %939 = vmatprep.subr.bf16.mxu0 %v679
        %940 = vmatpush1.bf16.msra.mxu0 %v678
        %941 = vmatprep.subr.bf16.mxu0 %v688
        %942 = vmatpush1.bf16.msra.mxu0 %v687
        %943 = vmatprep.subr.bf16.mxu0 %v697
        %944 = vmatpush1.bf16.msra.mxu0 %v696
        %945 = vmatprep.subr.bf16.mxu0 %v706
        %946 = vmatpush1.bf16.msra.mxu0 %v705
        %947 = vmatprep.subr.bf16.mxu0 %v715
        %948 = vmatpush1.bf16.msra.mxu0 %v714
        %949 = vmatprep.subr.bf16.mxu0 %v724
        %950 = vmatpush1.bf16.msra.mxu0 %v723
        %951 = vmatprep.subr.bf16.mxu0 %v733
        %952 = vmatpush1.bf16.msra.mxu0 %v732
        %953 = vmatprep.subr.bf16.mxu0 %v742
        %954 = vmatpush1.bf16.msra.mxu0 %v741
        %955 = vmatprep.subr.bf16.mxu0 0
        %956 = vmatpush1.bf16.msra.mxu0 0
        %957 = vmatprep.subr.bf16.mxu0 0
        %958 = vmatpush1.bf16.msra.mxu0 0
        %959 = vmatprep.subr.bf16.mxu0 0
        %960 = vmatpush1.bf16.msra.mxu0 0
        %961 = vmatprep.subr.bf16.mxu0 0
        %962 = vmatpush1.bf16.msra.mxu0 0
        %963 = vmatprep.subr.bf16.mxu0 0
        %964 = vmatpush1.bf16.msra.mxu0 0
        %965 = vmatprep.subr.bf16.mxu0 0
        %966 = vmatpush1.bf16.msra.mxu0 0
        %967 = vmatprep.subr.bf16.mxu0 0
        %968 = vmatpush1.bf16.msra.mxu0 0
        %969 = vmatprep.subr.bf16.mxu0 0
        %970 = vmatpush1.bf16.msra.mxu0 0
        %971 = vmatprep.mubr.bf16.mxu0 0
        %972 = vmatmul.mubr.bf16.gmra.mrb[0].mxu0 %v361
        %v973 = vpop.f32.mrb[0].mxu0
        %v974 = vadd.f32 %v446, %v973
        %v975 = vpop.f32.mrb[0].mxu0
        %v976 = vadd.f32 %v446, %v975
        %v977 = vpop.f32.mrb[0].mxu0
        %v978 = vpop.f32.mrb[0].mxu0
        %979 = vdwg.mxu0
        %980 = vmatprep.subr.bf16.mxu0 0
        %981 = vmatpush1.bf16.msra.mxu0 %v680
        %982 = vmatprep.subr.bf16.mxu0 0
        %983 = vmatpush1.bf16.msra.mxu0 %v689
        %984 = vmatprep.subr.bf16.mxu0 0
        %985 = vmatpush1.bf16.msra.mxu0 %v698
        %986 = vmatprep.subr.bf16.mxu0 0
        %987 = vmatpush1.bf16.msra.mxu0 %v707
        %988 = vmatprep.subr.bf16.mxu0 0
        %989 = vmatpush1.bf16.msra.mxu0 %v716
        %990 = vmatprep.subr.bf16.mxu0 0
        %991 = vmatpush1.bf16.msra.mxu0 %v725
        %992 = vmatprep.subr.bf16.mxu0 0
        %993 = vmatpush1.bf16.msra.mxu0 %v734
        %994 = vmatprep.subr.bf16.mxu0 0
        %995 = vmatpush1.bf16.msra.mxu0 %v743
        %996 = vmatprep.subr.bf16.mxu0 0
        %997 = vmatpush1.bf16.msra.mxu0 0
        %998 = vmatprep.subr.bf16.mxu0 0
        %999 = vmatpush1.bf16.msra.mxu0 0
        %1000 = vmatprep.subr.bf16.mxu0 0
        %1001 = vmatpush1.bf16.msra.mxu0 0
        %1002 = vmatprep.subr.bf16.mxu0 0
        %1003 = vmatpush1.bf16.msra.mxu0 0
        %1004 = vmatprep.subr.bf16.mxu0 0
        %1005 = vmatpush1.bf16.msra.mxu0 0
        %1006 = vmatprep.subr.bf16.mxu0 0
        %1007 = vmatpush1.bf16.msra.mxu0 0
        %1008 = vmatprep.subr.bf16.mxu0 0
        %1009 = vmatpush1.bf16.msra.mxu0 0
        %1010 = vmatprep.subr.bf16.mxu0 0
        %1011 = vmatpush1.bf16.msra.mxu0 0
        %1012 = vmatprep.mubr.bf16.mxu0 0
        %1013 = vmatmul.mubr.bf16.gmra.mrb[0].mxu0 %v361
        %v1014 = vpop.f32.mrb[0].mxu0
        %v1015 = vadd.f32 %v446, %v1014
        %v1016 = vpop.f32.mrb[0].mxu0
        %v1017 = vpop.f32.mrb[0].mxu0
        %v1018 = vpop.f32.mrb[0].mxu0
        %1019 = vdwg.mxu0
        %v1028 = vcombine.low %v851, %v853
        %v1029 = vcombine.low %v892, %v894
        %v1030 = vcombine.low %v933, %v935
        %v1031 = vcombine.low %v974, %v976
        %1036 = vst [vmem:[%s358] sm:$0xff] %v1028
        %1037 = vst [vmem:[%s358 + $0x8] sm:$0xff] %v1029
        %1038 = vst [vmem:[%s358 + $0x10] sm:$0xff] %v1030
        %1039 = vst [vmem:[%s358 + $0x18] sm:$0xff] %v1031
        %1040 = vst [vmem:[%s358 + $0x20] sm:$0xf] %v1015
        %s1041 = smul.u32 9, %s14
        %p1042 = scmp.lt.s32.totalorder %s1041, 17
        %s1043 = scalar_select %p1042, %s1041, 17
        %s1044 = smul.addr %s1043, 4
        %s1045 = scalar_lea.vmem %s3, %s1044
        // Predicated region
        $region59: #{beta_tc_vae_forward.17} parent=53 // pred_check
          %p1046 = pneg %p100
        $region60: #{beta_tc_vae_forward.17} parent=53 // pred_check_branch
          %1048 = sbr.rel (%p1046) target = $region62
        $region61: #{beta_tc_vae_forward.17} parent=53 // pred_region
          %s1049 = smul.u32 9, %s14
        $region62: #{beta_tc_vae_forward.17} parent=53 // pred_fallthru
          _
      $region54: #{beta_tc_vae_forward.17} parent=5 // pred_fallthru
        _
      %p1050 = scmp.le.s32.totalorder 2, %s9
      // Predicated region
      $region63: #{beta_tc_vae_forward.17} parent=5 // pred_check
        %p1051 = pneg %p1050
      $region64: #{beta_tc_vae_forward.17} parent=5 // pred_check_branch
        %1053 = sbr.rel (%p1051) target = $region66
      $region65: #{beta_tc_vae_forward.17} parent=5 // pred_region
        %s1054 = ssub.s32 %s9, 2
        // Predicated region
        $region67: #{beta_tc_vae_forward.17} parent=65 // pred_check
          %p1055 = pneg %p106
        $region68: #{beta_tc_vae_forward.17} parent=65 // pred_check_branch
          %1057 = sbr.rel (%p1055) target = $region70
        $region69: #{beta_tc_vae_forward.17} parent=65 // pred_region
          %s1058 = smul.u32 9, %s15
          %p1059 = scmp.lt.s32.totalorder %s1058, 17
          %s1060 = scalar_select %p1059, %s1058, 17
          %s1061 = smul.addr %s1060, 4
          %s1062 = scalar_lea.vmem %s3, %s1061
        $region70: #{beta_tc_vae_forward.17} parent=65 // pred_fallthru
          _
      $region66: #{beta_tc_vae_forward.17} parent=5 // pred_fallthru
        _
    $region6: #{beta_tc_vae_forward.17} parent=1 // loop_footer
      %s13 = sadd.s32 1, %s9
    $region7: #{beta_tc_vae_forward.17} parent=1 // loop_footer_branch
      %8 = sbr.rel target = $region3
    $region8: #{beta_tc_vae_forward.17} parent=1 // loop_exit
      _

</llo_original>
